<compile_context>
chip_gen: v5e
topology: v5e:2x2
jax: 0.10.0
libtpu: 0.0.40
codegen_flags: <defaults>
</compile_context>

<pallas_src>
import jax
import jax.numpy as jnp
from jax.experimental import pallas as pl
from jax.experimental.pallas import tpu as pltpu

LANE = 128  # lane-dense channel padding for conv outputs / fc2 output


# ----------------------------- Pallas kernels ------------------------------

def conv_relu_pool_kernel(p_ref, w_ref, b_ref, o_ref):
    """Fused 3x3 conv (im2col matmul) + 2x2 max-pool + bias + ReLU.

    p_ref: (1, 4*TM, K) bf16  patches, pool-position-major (K = 9*Cin, (kh,kw,Cin)).
    w_ref: (K, 128)     bf16  conv weight, Cout zero-padded to 128 lanes.
    b_ref: (1, 128)     f32   conv bias, zero-padded.
    o_ref: (TM, 128)    bf16  pooled activations (lane-dense).
    """
    tm = o_ref.shape[0]
    # One tall matmul over all 4 pool positions (4*TM rows), single contiguous load.
    y = jnp.dot(p_ref[0], w_ref[...], preferred_element_type=jnp.float32)  # (4*TM, 128)
    # 2x2 max-pool = max over the four TM-row chunks (TM is 8-aligned).
    mx = jnp.maximum(jnp.maximum(y[0 * tm:1 * tm], y[1 * tm:2 * tm]),
                     jnp.maximum(y[2 * tm:3 * tm], y[3 * tm:4 * tm]))
    # bias + ReLU hoisted out of the per-position work (ReLU monotone, shared bias).
    o_ref[...] = jnp.maximum(mx + b_ref[...], 0.0).astype(o_ref.dtype)


def conv3_dense_kernel(p_ref, w3_ref, b3_ref, w1_ref, b1_ref, w2_ref, b2_ref,
                       o_ref):
    """conv3 + ReLU + pool + flatten + fc1 + ReLU + fc2, all VMEM-resident.

    p_ref : (1, 4*9*Bp, 576) bf16  stage-3 patches, rows ordered (spatial, batch).
    w3_ref: (576, 128)       bf16 ; b3_ref: (1, 128) f32   (Cout padded 64 -> 128)
    w1_ref: (9*128, 128)     bf16  fc1 weight, rows in (h, w, c-padded) order.
    b1_ref: (1, 128)         f32
    w2_ref: (128, 128)       bf16  fc2 weight zero-padded from 10 to 128 cols.
    b2_ref: (1, 128)         f32
    o_ref : (Bp, 128)        f32   logits (cols >= 10 are zero padding).
    """
    bp = o_ref.shape[0]           # Bp (multiple of 8)
    c3 = w3_ref.shape[1]          # 128 (lane-dense; cols >= 64 are zero)
    p = p_ref[0]                  # (4*m3, 576) bf16, one contiguous load
    m3 = p.shape[0] // 4          # 9 * Bp
    npos = m3 // bp               # 9 spatial positions of the 3x3 map

    # conv3: one tall matmul over all 4 pool positions.
    y = jnp.dot(p, w3_ref[...], preferred_element_type=jnp.float32)   # (4*m3, 128)
    mx = jnp.maximum(jnp.maximum(y[0 * m3:1 * m3], y[1 * m3:2 * m3]),
                     jnp.maximum(y[2 * m3:3 * m3], y[3 * m3:4 * m3]))
    pooled = jnp.maximum(mx + b3_ref[...], 0.0)                       # (m3, 128) f32

    # fc1: NHWC flatten folded into npos lane-dense partial matmuls:
    #   h = relu( sum_pos pooled[pos] @ W1[pos*128:(pos+1)*128] + b1 )
    w1 = w1_ref[...]
    acc = jnp.zeros((bp, w1.shape[-1]), jnp.float32)
    for pos in range(npos):       # unrolled at trace time (9 iterations)
        xs = pooled[pos * bp:(pos + 1) * bp, :].astype(jnp.bfloat16)
        acc = acc + jnp.dot(xs, w1[pos * c3:(pos + 1) * c3, :],
                            preferred_element_type=jnp.float32)
    h = jnp.maximum(acc + b1_ref[...], 0.0).astype(jnp.bfloat16)      # (Bp, 128)

    # fc2 (padded to 128 lanes for an unmasked store).
    out = jnp.dot(h, w2_ref[...], preferred_element_type=jnp.float32) + b2_ref[...]
    o_ref[...] = out.astype(o_ref.dtype)


# ------------------------------- glue (JAX) --------------------------------

def _num_tensorcores():
    """2 TensorCores per chip on v7x; 1 on v5e/v6e.  A 'parallel' grid split
    only pays off when there really are 2 TCs."""
    try:
        kind = jax.devices()[0].device_kind.lower()
    except Exception:
        return 1
    return 2 if ("v7" in kind or "tpu7" in kind) else 1


def _choose_grid(M, K, n_tc):
    """Smallest grid split that (a) uses every TensorCore and (b) keeps one
    step's VMEM footprint (double-buffered bf16 IO + f32 matmul/pool temps)
    under a conservative budget.  M is always a multiple of 8."""
    budget = 20 * 1024 * 1024
    fallback = (1, M)
    for nb in range(1, M // 8 + 1):
        if M % nb or (M // nb) % 8:
            continue
        tm = M // nb
        step_bytes = (2 * 2 * (4 * tm * K + tm * LANE)        # bf16 in/out, 2x buffered
                      + 4 * (4 * tm * LANE + 2 * tm * LANE))  # f32 y + pool/epilogue temps
        if nb >= n_tc and step_bytes <= budget:
            return nb, tm
        fallback = (nb, tm)
    return fallback


def _im2col_3x3_pad1(x):
    """(B,H,W,C) -> (B,H,W,9C) patches, channel order (kh, kw, Cin)."""
    B, H, W, C = x.shape
    xp = jnp.pad(x, ((0, 0), (1, 1), (1, 1), (0, 0)))
    cols = [xp[:, di:di + H, dj:dj + W, :] for di in range(3) for dj in range(3)]
    return jnp.concatenate(cols, axis=-1)


def _pool_grouped_patches(x, cin, nb, spatial_major):
    """Group im2col patches by 2x2 pool window, pool-position major, and
    pre-flatten into (nb, 4*tm, K) grid blocks so the kernel needs no concat.

    Row order within each M-chunk is (b, ho, wo) when spatial_major=False
    (conv stages 1/2) and (ho, wo, b) when True (stage 3, so the fused dense
    head can slice per spatial position).  Channels are sliced to :cin inside
    this fusion (padded lanes of the previous stage are exactly zero).
    """
    x = x[..., :cin]
    B, H, W, C = x.shape
    Ho, Wo = H // 2, W // 2
    pt = _im2col_3x3_pad1(x)
    K = pt.shape[-1]
    p = pt.reshape(B, Ho, 2, Wo, 2, K)              # (b, ho, di, wo, dj, K)
    if spatial_major:
        p = p.transpose(2, 4, 1, 3, 0, 5)           # (di, dj, ho, wo, b, K)
    else:
        p = p.transpose(2, 4, 0, 1, 3, 5)           # (di, dj, b, ho, wo, K)
    M = B * Ho * Wo
    tm = M // nb
    p = p.reshape(4, nb, tm, K).transpose(1, 0, 2, 3)   # (nb, 4, tm, K)
    return p.reshape(nb, 4 * tm, K)                     # bf16 (x is bf16)


def _conv_stage(x_nhwc, cin, w_mat, b_mat, n_tc):
    """Conv2d(3,1,1)+ReLU+MaxPool(2) via the fused Pallas kernel (gridded)."""
    Bp, H, W, _ = x_nhwc.shape
    Ho, Wo = H // 2, W // 2
    M = Bp * Ho * Wo
    K = 9 * cin
    nb, tm = _choose_grid(M, K, n_tc)
    patches = _pool_grouped_patches(x_nhwc, cin, nb, spatial_major=False)

    out = pl.pallas_call(
        conv_relu_pool_kernel,
        grid=(nb,),
        in_specs=[
            pl.BlockSpec((1, 4 * tm, K), lambda i: (i, 0, 0)),
            pl.BlockSpec((K, LANE), lambda i: (0, 0)),   # weights stay resident
            pl.BlockSpec((1, LANE), lambda i: (0, 0)),
        ],
        out_specs=pl.BlockSpec((tm, LANE), lambda i: (i, 0)),
        out_shape=jax.ShapeDtypeStruct((M, LANE), jnp.bfloat16),
        compiler_params=pltpu.CompilerParams(
            dimension_semantics=("parallel",),
            vmem_limit_bytes=32 * 1024 * 1024),
    )(patches, w_mat, b_mat)
    # Keep the full 128-lane activation; the next stage slices :cin in its own
    # patch-builder fusion (padded channels are exactly zero).
    return out.reshape(Bp, Ho, Wo, LANE)


def _conv3_dense(x_nhwc, cin, w3, b3, w1, b1, w2, b2):
    """Fused conv3 stage + dense head in a single pallas_call (bf16 patches)."""
    Bp, H, W, _ = x_nhwc.shape
    Ho, Wo = H // 2, W // 2
    M3 = Ho * Wo * Bp
    K3 = 9 * cin
    patches = _pool_grouped_patches(x_nhwc, cin, 1, spatial_major=True)  # (1, 4*M3, K3)

    return pl.pallas_call(
        conv3_dense_kernel,
        grid=(1,),
        in_specs=[
            pl.BlockSpec((1, 4 * M3, K3), lambda i: (0, 0, 0)),
            pl.BlockSpec(w3.shape, lambda i: (0, 0)),
            pl.BlockSpec(b3.shape, lambda i: (0, 0)),
            pl.BlockSpec(w1.shape, lambda i: (0, 0)),
            pl.BlockSpec(b1.shape, lambda i: (0, 0)),
            pl.BlockSpec(w2.shape, lambda i: (0, 0)),
            pl.BlockSpec(b2.shape, lambda i: (0, 0)),
        ],
        out_specs=pl.BlockSpec((Bp, LANE), lambda i: (0, 0)),
        out_shape=jax.ShapeDtypeStruct((Bp, LANE), jnp.float32),
        compiler_params=pltpu.CompilerParams(
            dimension_semantics=("arbitrary",),
            vmem_limit_bytes=32 * 1024 * 1024),
    )(patches, w3, b3, w1, b1, w2, b2)


def net1_forward(x_nchw, kp):
    """Forward pass of Net1.  x_nchw: (B, 3, 24, 24) f32 -> (B, 10) f32."""
    B = x_nchw.shape[0]
    Bp = max(8, ((B + 7) // 8) * 8)                 # 8-aligned batch padding
    n_tc = _num_tensorcores()
    x = jnp.transpose(x_nchw, (0, 2, 3, 1)).astype(jnp.bfloat16)     # NCHW -> NHWC
    # Pad batch to a multiple of 8 and Cin 3 -> 4 (conv1 K becomes 36).
    x = jnp.pad(x, ((0, Bp - B), (0, 0), (0, 0), (0, 1)))

    a = _conv_stage(x, 4, kp["w1"], kp["b1"], n_tc)     # (Bp, 12, 12, 128)
    a = _conv_stage(a, 32, kp["w2"], kp["b2"], n_tc)    # (Bp,  6,  6, 128)
    out = _conv3_dense(a, 64, kp["w3"], kp["b3"],
                       kp["fc1_w"], kp["fc1_b"], kp["fc2_w"], kp["fc2_b"])
    return out[:B, :10]


# ------------------------ params (torch conventions) ------------------------

def init_params(key):
    """Parameters in PyTorch layout: conv (Cout,Cin,kh,kw), linear (out,in)."""
    ks = jax.random.split(key, 10)
    s = 0.05
    return {
        "conv1_w": jax.random.normal(ks[0], (32, 3, 3, 3), jnp.float32) * s,
        "conv1_b": jax.random.normal(ks[1], (32,), jnp.float32) * s,
        "conv2_w": jax.random.normal(ks[2], (64, 32, 3, 3), jnp.float32) * s,
        "conv2_b": jax.random.normal(ks[3], (64,), jnp.float32) * s,
        "conv3_w": jax.random.normal(ks[4], (64, 64, 3, 3), jnp.float32) * s,
        "conv3_b": jax.random.normal(ks[5], (64,), jnp.float32) * s,
        # fc1 input index is torch NCHW-flatten order: c*9 + h*3 + w
        "fc1_w": jax.random.normal(ks[6], (128, 576), jnp.float32) * s,
        "fc1_b": jax.random.normal(ks[7], (128,), jnp.float32) * s,
        "fc2_w": jax.random.normal(ks[8], (10, 128), jnp.float32) * s,
        "fc2_b": jax.random.normal(ks[9], (10,), jnp.float32) * s,
    }


def prepare_params(p):
    """One-time conversion to kernel layout: transpose/permute/pad + bf16 cast."""
    def conv_w(w, cin_pad, cout_pad):
        # (Cout,Cin,3,3) -> (9*cin_pad, cout_pad) bf16, rows ordered (kh,kw,Cin).
        cout, cin = w.shape[0], w.shape[1]
        m = jnp.transpose(w, (2, 3, 1, 0))                      # (kh, kw, cin, cout)
        m = jnp.pad(m, ((0, 0), (0, 0), (0, cin_pad - cin), (0, cout_pad - cout)))
        return m.reshape(9 * cin_pad, cout_pad).astype(jnp.bfloat16)

    def conv_b(b, pad_to):
        return jnp.pad(b, (0, pad_to - b.shape[0])).reshape(1, pad_to).astype(jnp.float32)

    # fc1: permute rows from torch (c,h,w) flatten order to (h,w,c) and pad the
    # channel index 64 -> 128 so every fc1 partial dot is lane-dense K=128.
    w1 = (p["fc1_w"].reshape(128, 64, 3, 3)      # (out, c, h, w)
          .transpose(2, 3, 1, 0))                # (h, w, c, out)
    w1 = jnp.pad(w1, ((0, 0), (0, 0), (0, LANE - 64), (0, 0)))
    w1 = w1.reshape(9 * LANE, 128).astype(jnp.bfloat16)
    b1 = p["fc1_b"].reshape(1, 128).astype(jnp.float32)
    # fc2: (10,128) -> (128,10), zero-pad output dim to 128 lanes.
    w2 = jnp.pad(p["fc2_w"].T, ((0, 0), (0, LANE - 10))).astype(jnp.bfloat16)
    b2 = jnp.pad(p["fc2_b"], (0, LANE - 10)).reshape(1, LANE).astype(jnp.float32)

    return {
        "w1": conv_w(p["conv1_w"], 4, LANE),  "b1": conv_b(p["conv1_b"], LANE),
        "w2": conv_w(p["conv2_w"], 32, LANE), "b2": conv_b(p["conv2_b"], LANE),
        "w3": conv_w(p["conv3_w"], 64, LANE), "b3": conv_b(p["conv3_b"], LANE),
        "fc1_w": w1, "fc1_b": b1, "fc2_w": w2, "fc2_b": b2,
    }


if __name__ == "__main__":
    key = jax.random.PRNGKey(0)
    pkey, xkey = jax.random.split(key)
    params = init_params(pkey)
    kparams = prepare_params(params)   # weights prepped (bf16/padded/permuted) once

    # Input implied by Linear(64*3*3, ...): (B, 3, 24, 24)
    x = jax.random.normal(xkey, (2, 3, 24, 24), jnp.float32)

    fwd = jax.jit(net1_forward)
    out = jax.block_until_ready(fwd(x, kparams))
    assert out.shape == (2, 10) and out.dtype == jnp.float32
    assert bool(jnp.all(jnp.isfinite(out)))
    print("KERNEL_OK")
</pallas_src>

<mosaic_0001>
module attributes {stable_mosaic.version = 11 : i64} {
  func.func @conv_relu_pool_kernel(%arg0: i32, %arg1: memref<1x4608x36xbf16, #tpu.memory_space<vmem>>, %arg2: memref<36x128xbf16, #tpu.memory_space<vmem>>, %arg3: memref<1x128xf32, #tpu.memory_space<vmem>>, %arg4: memref<1152x128xbf16, #tpu.memory_space<vmem>>) attributes {dimension_semantics = [#tpu.dimension_semantics<parallel>], iteration_bounds = array<i64: 1>, scalar_prefetch = 0 : i64, scratch_operands = 0 : i64, tpu.core_type = #tpu.core_type<tc>, window_params = [{transform_indices = @transform_0, window_bounds = array<i64: 1, 4608, 36>}, {pipeline_mode = #tpu.pipeline_mode<synchronous>, transform_indices = @transform_1, window_bounds = array<i64: 36, 128>}, {pipeline_mode = #tpu.pipeline_mode<synchronous>, transform_indices = @transform_2, window_bounds = array<i64: 1, 128>}, {transform_indices = @transform_3, window_bounds = array<i64: 1152, 128>}]} {
    %c0 = arith.constant 0 : index
    %c0_0 = arith.constant 0 : index
    %c0_1 = arith.constant 0 : index
    %0 = vector.load %arg1[%c0, %c0_0, %c0_1] : memref<1x4608x36xbf16, #tpu.memory_space<vmem>>, vector<1x4608x36xbf16>
    %1 = vector.shape_cast %0 : vector<1x4608x36xbf16> to vector<4608x36xbf16>
    %c0_2 = arith.constant 0 : index
    %c0_3 = arith.constant 0 : index
    %2 = vector.load %arg2[%c0_2, %c0_3] : memref<36x128xbf16, #tpu.memory_space<vmem>>, vector<36x128xbf16>
    %cst = arith.constant dense<0.000000e+00> : vector<4608x128xf32>
    %3 = tpu.matmul %1, %2, %cst {dimension_numbers = #tpu.dot_dimension_numbers<[1], [0], [0], [1], [0, 0, 1, 1], [], []>} : vector<4608x36xbf16>, vector<36x128xbf16>, vector<4608x128xf32> -> vector<4608x128xf32>
    %4 = vector.extract_strided_slice %3 {offsets = [0, 0], sizes = [1152, 128], strides = [1, 1]} : vector<4608x128xf32> to vector<1152x128xf32>
    %5 = vector.extract_strided_slice %3 {offsets = [1152, 0], sizes = [1152, 128], strides = [1, 1]} : vector<4608x128xf32> to vector<1152x128xf32>
    %6 = arith.maximumf %4, %5 : vector<1152x128xf32>
    %7 = vector.extract_strided_slice %3 {offsets = [2304, 0], sizes = [1152, 128], strides = [1, 1]} : vector<4608x128xf32> to vector<1152x128xf32>
    %8 = vector.extract_strided_slice %3 {offsets = [3456, 0], sizes = [1152, 128], strides = [1, 1]} : vector<4608x128xf32> to vector<1152x128xf32>
    %9 = arith.maximumf %7, %8 : vector<1152x128xf32>
    %10 = arith.maximumf %6, %9 : vector<1152x128xf32>
    %c0_4 = arith.constant 0 : index
    %c0_5 = arith.constant 0 : index
    %11 = vector.load %arg3[%c0_4, %c0_5] : memref<1x128xf32, #tpu.memory_space<vmem>>, vector<1x128xf32>
    %12 = vector.broadcast %11 : vector<1x128xf32> to vector<1152x128xf32>
    %13 = arith.addf %10, %12 : vector<1152x128xf32>
    %cst_6 = arith.constant 0.000000e+00 : f32
    %14 = vector.broadcast %cst_6 : f32 to vector<1152x128xf32>
    %15 = arith.maximumf %13, %14 : vector<1152x128xf32>
    %16 = arith.truncf %15 : vector<1152x128xf32> to vector<1152x128xbf16>
    %c0_7 = arith.constant 0 : index
    %c0_8 = arith.constant 0 : index
    %17 = vector.load %arg4[%c0_7, %c0_8] : memref<1152x128xbf16, #tpu.memory_space<vmem>>, vector<1152x128xbf16>
    tpu.vector_store %arg4[%c0_7, %c0_8], %16 {strides = array<i32>} : memref<1152x128xbf16, #tpu.memory_space<vmem>>, vector<1152x128xbf16>,
    return
  }
  func.func @transform_0(%arg0: i32) -> (i32, i32, i32) {
    %c0_i32 = arith.constant 0 : i32
    %c0_i32_0 = arith.constant 0 : i32
    %c0_i32_1 = arith.constant 0 : i32
    return %arg0, %c0_i32, %c0_i32_0 : i32, i32, i32
  }
  func.func @transform_1(%arg0: i32) -> (i32, i32) {
    %c0_i32 = arith.constant 0 : i32
    %c0_i32_0 = arith.constant 0 : i32
    %c0_i32_1 = arith.constant 0 : i32
    return %c0_i32, %c0_i32_0 : i32, i32
  }
  func.func @transform_2(%arg0: i32) -> (i32, i32) {
    %c0_i32 = arith.constant 0 : i32
    %c0_i32_0 = arith.constant 0 : i32
    %c0_i32_1 = arith.constant 0 : i32
    return %c0_i32, %c0_i32_0 : i32, i32
  }
  func.func @transform_3(%arg0: i32) -> (i32, i32) {
    %c0_i32 = arith.constant 0 : i32
    %c0_i32_0 = arith.constant 0 : i32
    return %arg0, %c0_i32 : i32, i32
  }
}

module attributes {stable_mosaic.version = 11 : i64} {
  func.func @conv_relu_pool_kernel(%arg0: i32, %arg1: memref<1x1152x288xbf16, #tpu.memory_space<vmem>>, %arg2: memref<288x128xbf16, #tpu.memory_space<vmem>>, %arg3: memref<1x128xf32, #tpu.memory_space<vmem>>, %arg4: memref<288x128xbf16, #tpu.memory_space<vmem>>) attributes {dimension_semantics = [#tpu.dimension_semantics<parallel>], iteration_bounds = array<i64: 1>, scalar_prefetch = 0 : i64, scratch_operands = 0 : i64, tpu.core_type = #tpu.core_type<tc>, window_params = [{transform_indices = @transform_0, window_bounds = array<i64: 1, 1152, 288>}, {pipeline_mode = #tpu.pipeline_mode<synchronous>, transform_indices = @transform_1, window_bounds = array<i64: 288, 128>}, {pipeline_mode = #tpu.pipeline_mode<synchronous>, transform_indices = @transform_2, window_bounds = array<i64: 1, 128>}, {transform_indices = @transform_3, window_bounds = array<i64: 288, 128>}]} {
    %c0 = arith.constant 0 : index
    %c0_0 = arith.constant 0 : index
    %c0_1 = arith.constant 0 : index
    %0 = vector.load %arg1[%c0, %c0_0, %c0_1] : memref<1x1152x288xbf16, #tpu.memory_space<vmem>>, vector<1x1152x288xbf16>
    %1 = vector.shape_cast %0 : vector<1x1152x288xbf16> to vector<1152x288xbf16>
    %c0_2 = arith.constant 0 : index
    %c0_3 = arith.constant 0 : index
    %2 = vector.load %arg2[%c0_2, %c0_3] : memref<288x128xbf16, #tpu.memory_space<vmem>>, vector<288x128xbf16>
    %cst = arith.constant dense<0.000000e+00> : vector<1152x128xf32>
    %3 = tpu.matmul %1, %2, %cst {dimension_numbers = #tpu.dot_dimension_numbers<[1], [0], [0], [1], [0, 0, 1, 1], [], []>} : vector<1152x288xbf16>, vector<288x128xbf16>, vector<1152x128xf32> -> vector<1152x128xf32>
    %4 = vector.extract_strided_slice %3 {offsets = [0, 0], sizes = [288, 128], strides = [1, 1]} : vector<1152x128xf32> to vector<288x128xf32>
    %5 = vector.extract_strided_slice %3 {offsets = [288, 0], sizes = [288, 128], strides = [1, 1]} : vector<1152x128xf32> to vector<288x128xf32>
    %6 = arith.maximumf %4, %5 : vector<288x128xf32>
    %7 = vector.extract_strided_slice %3 {offsets = [576, 0], sizes = [288, 128], strides = [1, 1]} : vector<1152x128xf32> to vector<288x128xf32>
    %8 = vector.extract_strided_slice %3 {offsets = [864, 0], sizes = [288, 128], strides = [1, 1]} : vector<1152x128xf32> to vector<288x128xf32>
    %9 = arith.maximumf %7, %8 : vector<288x128xf32>
    %10 = arith.maximumf %6, %9 : vector<288x128xf32>
    %c0_4 = arith.constant 0 : index
    %c0_5 = arith.constant 0 : index
    %11 = vector.load %arg3[%c0_4, %c0_5] : memref<1x128xf32, #tpu.memory_space<vmem>>, vector<1x128xf32>
    %12 = vector.broadcast %11 : vector<1x128xf32> to vector<288x128xf32>
    %13 = arith.addf %10, %12 : vector<288x128xf32>
    %cst_6 = arith.constant 0.000000e+00 : f32
    %14 = vector.broadcast %cst_6 : f32 to vector<288x128xf32>
    %15 = arith.maximumf %13, %14 : vector<288x128xf32>
    %16 = arith.truncf %15 : vector<288x128xf32> to vector<288x128xbf16>
    %c0_7 = arith.constant 0 : index
    %c0_8 = arith.constant 0 : index
    %17 = vector.load %arg4[%c0_7, %c0_8] : memref<288x128xbf16, #tpu.memory_space<vmem>>, vector<288x128xbf16>
    tpu.vector_store %arg4[%c0_7, %c0_8], %16 {strides = array<i32>} : memref<288x128xbf16, #tpu.memory_space<vmem>>, vector<288x128xbf16>,
    return
  }
  func.func @transform_0(%arg0: i32) -> (i32, i32, i32) {
    %c0_i32 = arith.constant 0 : i32
    %c0_i32_0 = arith.constant 0 : i32
    %c0_i32_1 = arith.constant 0 : i32
    return %arg0, %c0_i32, %c0_i32_0 : i32, i32, i32
  }
  func.func @transform_1(%arg0: i32) -> (i32, i32) {
    %c0_i32 = arith.constant 0 : i32
    %c0_i32_0 = arith.constant 0 : i32
    %c0_i32_1 = arith.constant 0 : i32
    return %c0_i32, %c0_i32_0 : i32, i32
  }
  func.func @transform_2(%arg0: i32) -> (i32, i32) {
    %c0_i32 = arith.constant 0 : i32
    %c0_i32_0 = arith.constant 0 : i32
    %c0_i32_1 = arith.constant 0 : i32
    return %c0_i32, %c0_i32_0 : i32, i32
  }
  func.func @transform_3(%arg0: i32) -> (i32, i32) {
    %c0_i32 = arith.constant 0 : i32
    %c0_i32_0 = arith.constant 0 : i32
    return %arg0, %c0_i32 : i32, i32
  }
}

module attributes {stable_mosaic.version = 11 : i64} {
  func.func @conv3_dense_kernel(%arg0: i32, %arg1: memref<1x288x576xbf16, #tpu.memory_space<vmem>>, %arg2: memref<576x128xbf16, #tpu.memory_space<vmem>>, %arg3: memref<1x128xf32, #tpu.memory_space<vmem>>, %arg4: memref<1152x128xbf16, #tpu.memory_space<vmem>>, %arg5: memref<1x128xf32, #tpu.memory_space<vmem>>, %arg6: memref<128x128xbf16, #tpu.memory_space<vmem>>, %arg7: memref<1x128xf32, #tpu.memory_space<vmem>>, %arg8: memref<8x128xf32, #tpu.memory_space<vmem>>) attributes {dimension_semantics = [#tpu.dimension_semantics<arbitrary>], iteration_bounds = array<i64: 1>, scalar_prefetch = 0 : i64, scratch_operands = 0 : i64, tpu.core_type = #tpu.core_type<tc>, window_params = [{pipeline_mode = #tpu.pipeline_mode<synchronous>, transform_indices = @transform_0, window_bounds = array<i64: 1, 288, 576>}, {pipeline_mode = #tpu.pipeline_mode<synchronous>, transform_indices = @transform_1, window_bounds = array<i64: 576, 128>}, {pipeline_mode = #tpu.pipeline_mode<synchronous>, transform_indices = @transform_2, window_bounds = array<i64: 1, 128>}, {pipeline_mode = #tpu.pipeline_mode<synchronous>, transform_indices = @transform_3, window_bounds = array<i64: 1152, 128>}, {pipeline_mode = #tpu.pipeline_mode<synchronous>, transform_indices = @transform_4, window_bounds = array<i64: 1, 128>}, {pipeline_mode = #tpu.pipeline_mode<synchronous>, transform_indices = @transform_5, window_bounds = array<i64: 128, 128>}, {pipeline_mode = #tpu.pipeline_mode<synchronous>, transform_indices = @transform_6, window_bounds = array<i64: 1, 128>}, {pipeline_mode = #tpu.pipeline_mode<synchronous>, transform_indices = @transform_7, window_bounds = array<i64: 8, 128>}]} {
    %c0 = arith.constant 0 : index
    %c0_0 = arith.constant 0 : index
    %c0_1 = arith.constant 0 : index
    %0 = vector.load %arg1[%c0, %c0_0, %c0_1] : memref<1x288x576xbf16, #tpu.memory_space<vmem>>, vector<1x288x576xbf16>
    %1 = vector.shape_cast %0 : vector<1x288x576xbf16> to vector<288x576xbf16>
    %c0_2 = arith.constant 0 : index
    %c0_3 = arith.constant 0 : index
    %2 = vector.load %arg2[%c0_2, %c0_3] : memref<576x128xbf16, #tpu.memory_space<vmem>>, vector<576x128xbf16>
    %cst = arith.constant dense<0.000000e+00> : vector<288x128xf32>
    %3 = tpu.matmul %1, %2, %cst {dimension_numbers = #tpu.dot_dimension_numbers<[1], [0], [0], [1], [0, 0, 1, 1], [], []>} : vector<288x576xbf16>, vector<576x128xbf16>, vector<288x128xf32> -> vector<288x128xf32>
    %4 = vector.extract_strided_slice %3 {offsets = [0, 0], sizes = [72, 128], strides = [1, 1]} : vector<288x128xf32> to vector<72x128xf32>
    %5 = vector.extract_strided_slice %3 {offsets = [72, 0], sizes = [72, 128], strides = [1, 1]} : vector<288x128xf32> to vector<72x128xf32>
    %6 = arith.maximumf %4, %5 : vector<72x128xf32>
    %7 = vector.extract_strided_slice %3 {offsets = [144, 0], sizes = [72, 128], strides = [1, 1]} : vector<288x128xf32> to vector<72x128xf32>
    %8 = vector.extract_strided_slice %3 {offsets = [216, 0], sizes = [72, 128], strides = [1, 1]} : vector<288x128xf32> to vector<72x128xf32>
    %9 = arith.maximumf %7, %8 : vector<72x128xf32>
    %10 = arith.maximumf %6, %9 : vector<72x128xf32>
    %c0_4 = arith.constant 0 : index
    %c0_5 = arith.constant 0 : index
    %11 = vector.load %arg3[%c0_4, %c0_5] : memref<1x128xf32, #tpu.memory_space<vmem>>, vector<1x128xf32>
    %12 = vector.broadcast %11 : vector<1x128xf32> to vector<72x128xf32>
    %13 = arith.addf %10, %12 : vector<72x128xf32>
    %cst_6 = arith.constant 0.000000e+00 : f32
    %14 = vector.broadcast %cst_6 : f32 to vector<72x128xf32>
    %15 = arith.maximumf %13, %14 : vector<72x128xf32>
    %c0_7 = arith.constant 0 : index
    %c0_8 = arith.constant 0 : index
    %16 = vector.load %arg4[%c0_7, %c0_8] : memref<1152x128xbf16, #tpu.memory_space<vmem>>, vector<1152x128xbf16>
    %cst_9 = arith.constant 0.000000e+00 : f32
    %17 = vector.broadcast %cst_9 : f32 to vector<8x128xf32>
    %18 = vector.extract_strided_slice %15 {offsets = [0, 0], sizes = [8, 128], strides = [1, 1]} : vector<72x128xf32> to vector<8x128xf32>
    %19 = arith.truncf %18 : vector<8x128xf32> to vector<8x128xbf16>
    %20 = vector.extract_strided_slice %16 {offsets = [0, 0], sizes = [128, 128], strides = [1, 1]} : vector<1152x128xbf16> to vector<128x128xbf16>
    %cst_10 = arith.constant dense<0.000000e+00> : vector<8x128xf32>
    %21 = tpu.matmul %19, %20, %cst_10 {dimension_numbers = #tpu.dot_dimension_numbers<[1], [0], [0], [1], [0, 0, 1, 1], [], []>} : vector<8x128xbf16>, vector<128x128xbf16>, vector<8x128xf32> -> vector<8x128xf32>
    %22 = arith.addf %17, %21 : vector<8x128xf32>
    %23 = vector.extract_strided_slice %15 {offsets = [8, 0], sizes = [8, 128], strides = [1, 1]} : vector<72x128xf32> to vector<8x128xf32>
    %24 = arith.truncf %23 : vector<8x128xf32> to vector<8x128xbf16>
    %25 = vector.extract_strided_slice %16 {offsets = [128, 0], sizes = [128, 128], strides = [1, 1]} : vector<1152x128xbf16> to vector<128x128xbf16>
    %cst_11 = arith.constant dense<0.000000e+00> : vector<8x128xf32>
    %26 = tpu.matmul %24, %25, %cst_11 {dimension_numbers = #tpu.dot_dimension_numbers<[1], [0], [0], [1], [0, 0, 1, 1], [], []>} : vector<8x128xbf16>, vector<128x128xbf16>, vector<8x128xf32> -> vector<8x128xf32>
    %27 = arith.addf %22, %26 : vector<8x128xf32>
    %28 = vector.extract_strided_slice %15 {offsets = [16, 0], sizes = [8, 128], strides = [1, 1]} : vector<72x128xf32> to vector<8x128xf32>
    %29 = arith.truncf %28 : vector<8x128xf32> to vector<8x128xbf16>
    %30 = vector.extract_strided_slice %16 {offsets = [256, 0], sizes = [128, 128], strides = [1, 1]} : vector<1152x128xbf16> to vector<128x128xbf16>
    %cst_12 = arith.constant dense<0.000000e+00> : vector<8x128xf32>
    %31 = tpu.matmul %29, %30, %cst_12 {dimension_numbers = #tpu.dot_dimension_numbers<[1], [0], [0], [1], [0, 0, 1, 1], [], []>} : vector<8x128xbf16>, vector<128x128xbf16>, vector<8x128xf32> -> vector<8x128xf32>
    %32 = arith.addf %27, %31 : vector<8x128xf32>
    %33 = vector.extract_strided_slice %15 {offsets = [24, 0], sizes = [8, 128], strides = [1, 1]} : vector<72x128xf32> to vector<8x128xf32>
    %34 = arith.truncf %33 : vector<8x128xf32> to vector<8x128xbf16>
    %35 = vector.extract_strided_slice %16 {offsets = [384, 0], sizes = [128, 128], strides = [1, 1]} : vector<1152x128xbf16> to vector<128x128xbf16>
    %cst_13 = arith.constant dense<0.000000e+00> : vector<8x128xf32>
    %36 = tpu.matmul %34, %35, %cst_13 {dimension_numbers = #tpu.dot_dimension_numbers<[1], [0], [0], [1], [0, 0, 1, 1], [], []>} : vector<8x128xbf16>, vector<128x128xbf16>, vector<8x128xf32> -> vector<8x128xf32>
    %37 = arith.addf %32, %36 : vector<8x128xf32>
    %38 = vector.extract_strided_slice %15 {offsets = [32, 0], sizes = [8, 128], strides = [1, 1]} : vector<72x128xf32> to vector<8x128xf32>
    %39 = arith.truncf %38 : vector<8x128xf32> to vector<8x128xbf16>
    %40 = vector.extract_strided_slice %16 {offsets = [512, 0], sizes = [128, 128], strides = [1, 1]} : vector<1152x128xbf16> to vector<128x128xbf16>
    %cst_14 = arith.constant dense<0.000000e+00> : vector<8x128xf32>
    %41 = tpu.matmul %39, %40, %cst_14 {dimension_numbers = #tpu.dot_dimension_numbers<[1], [0], [0], [1], [0, 0, 1, 1], [], []>} : vector<8x128xbf16>, vector<128x128xbf16>, vector<8x128xf32> -> vector<8x128xf32>
    %42 = arith.addf %37, %41 : vector<8x128xf32>
    %43 = vector.extract_strided_slice %15 {offsets = [40, 0], sizes = [8, 128], strides = [1, 1]} : vector<72x128xf32> to vector<8x128xf32>
    %44 = arith.truncf %43 : vector<8x128xf32> to vector<8x128xbf16>
    %45 = vector.extract_strided_slice %16 {offsets = [640, 0], sizes = [128, 128], strides = [1, 1]} : vector<1152x128xbf16> to vector<128x128xbf16>
    %cst_15 = arith.constant dense<0.000000e+00> : vector<8x128xf32>
    %46 = tpu.matmul %44, %45, %cst_15 {dimension_numbers = #tpu.dot_dimension_numbers<[1], [0], [0], [1], [0, 0, 1, 1], [], []>} : vector<8x128xbf16>, vector<128x128xbf16>, vector<8x128xf32> -> vector<8x128xf32>
    %47 = arith.addf %42, %46 : vector<8x128xf32>
    %48 = vector.extract_strided_slice %15 {offsets = [48, 0], sizes = [8, 128], strides = [1, 1]} : vector<72x128xf32> to vector<8x128xf32>
    %49 = arith.truncf %48 : vector<8x128xf32> to vector<8x128xbf16>
    %50 = vector.extract_strided_slice %16 {offsets = [768, 0], sizes = [128, 128], strides = [1, 1]} : vector<1152x128xbf16> to vector<128x128xbf16>
    %cst_16 = arith.constant dense<0.000000e+00> : vector<8x128xf32>
    %51 = tpu.matmul %49, %50, %cst_16 {dimension_numbers = #tpu.dot_dimension_numbers<[1], [0], [0], [1], [0, 0, 1, 1], [], []>} : vector<8x128xbf16>, vector<128x128xbf16>, vector<8x128xf32> -> vector<8x128xf32>
    %52 = arith.addf %47, %51 : vector<8x128xf32>
    %53 = vector.extract_strided_slice %15 {offsets = [56, 0], sizes = [8, 128], strides = [1, 1]} : vector<72x128xf32> to vector<8x128xf32>
    %54 = arith.truncf %53 : vector<8x128xf32> to vector<8x128xbf16>
    %55 = vector.extract_strided_slice %16 {offsets = [896, 0], sizes = [128, 128], strides = [1, 1]} : vector<1152x128xbf16> to vector<128x128xbf16>
    %cst_17 = arith.constant dense<0.000000e+00> : vector<8x128xf32>
    %56 = tpu.matmul %54, %55, %cst_17 {dimension_numbers = #tpu.dot_dimension_numbers<[1], [0], [0], [1], [0, 0, 1, 1], [], []>} : vector<8x128xbf16>, vector<128x128xbf16>, vector<8x128xf32> -> vector<8x128xf32>
    %57 = arith.addf %52, %56 : vector<8x128xf32>
    %58 = vector.extract_strided_slice %15 {offsets = [64, 0], sizes = [8, 128], strides = [1, 1]} : vector<72x128xf32> to vector<8x128xf32>
    %59 = arith.truncf %58 : vector<8x128xf32> to vector<8x128xbf16>
    %60 = vector.extract_strided_slice %16 {offsets = [1024, 0], sizes = [128, 128], strides = [1, 1]} : vector<1152x128xbf16> to vector<128x128xbf16>
    %cst_18 = arith.constant dense<0.000000e+00> : vector<8x128xf32>
    %61 = tpu.matmul %59, %60, %cst_18 {dimension_numbers = #tpu.dot_dimension_numbers<[1], [0], [0], [1], [0, 0, 1, 1], [], []>} : vector<8x128xbf16>, vector<128x128xbf16>, vector<8x128xf32> -> vector<8x128xf32>
    %62 = arith.addf %57, %61 : vector<8x128xf32>
    %c0_19 = arith.constant 0 : index
    %c0_20 = arith.constant 0 : index
    %63 = vector.load %arg5[%c0_19, %c0_20] : memref<1x128xf32, #tpu.memory_space<vmem>>, vector<1x128xf32>
    %64 = vector.broadcast %63 : vector<1x128xf32> to vector<8x128xf32>
    %65 = arith.addf %62, %64 : vector<8x128xf32>
    %cst_21 = arith.constant 0.000000e+00 : f32
    %66 = vector.broadcast %cst_21 : f32 to vector<8x128xf32>
    %67 = arith.maximumf %65, %66 : vector<8x128xf32>
    %68 = arith.truncf %67 : vector<8x128xf32> to vector<8x128xbf16>
    %c0_22 = arith.constant 0 : index
    %c0_23 = arith.constant 0 : index
    %69 = vector.load %arg6[%c0_22, %c0_23] : memref<128x128xbf16, #tpu.memory_space<vmem>>, vector<128x128xbf16>
    %cst_24 = arith.constant dense<0.000000e+00> : vector<8x128xf32>
    %70 = tpu.matmul %68, %69, %cst_24 {dimension_numbers = #tpu.dot_dimension_numbers<[1], [0], [0], [1], [0, 0, 1, 1], [], []>} : vector<8x128xbf16>, vector<128x128xbf16>, vector<8x128xf32> -> vector<8x128xf32>
    %c0_25 = arith.constant 0 : index
    %c0_26 = arith.constant 0 : index
    %71 = vector.load %arg7[%c0_25, %c0_26] : memref<1x128xf32, #tpu.memory_space<vmem>>, vector<1x128xf32>
    %72 = vector.broadcast %71 : vector<1x128xf32> to vector<8x128xf32>
    %73 = arith.addf %70, %72 : vector<8x128xf32>
    %c0_27 = arith.constant 0 : index
    %c0_28 = arith.constant 0 : index
    %74 = vector.load %arg8[%c0_27, %c0_28] : memref<8x128xf32, #tpu.memory_space<vmem>>, vector<8x128xf32>
    tpu.vector_store %arg8[%c0_27, %c0_28], %73 {strides = array<i32>} : memref<8x128xf32, #tpu.memory_space<vmem>>, vector<8x128xf32>,
    return
  }
  func.func @transform_0(%arg0: i32) -> (i32, i32, i32) {
    %c0_i32 = arith.constant 0 : i32
    %c0_i32_0 = arith.constant 0 : i32
    %c0_i32_1 = arith.constant 0 : i32
    %c0_i32_2 = arith.constant 0 : i32
    return %c0_i32, %c0_i32_0, %c0_i32_1 : i32, i32, i32
  }
  func.func @transform_1(%arg0: i32) -> (i32, i32) {
    %c0_i32 = arith.constant 0 : i32
    %c0_i32_0 = arith.constant 0 : i32
    %c0_i32_1 = arith.constant 0 : i32
    return %c0_i32, %c0_i32_0 : i32, i32
  }
  func.func @transform_2(%arg0: i32) -> (i32, i32) {
    %c0_i32 = arith.constant 0 : i32
    %c0_i32_0 = arith.constant 0 : i32
    %c0_i32_1 = arith.constant 0 : i32
    return %c0_i32, %c0_i32_0 : i32, i32
  }
  func.func @transform_3(%arg0: i32) -> (i32, i32) {
    %c0_i32 = arith.constant 0 : i32
    %c0_i32_0 = arith.constant 0 : i32
    %c0_i32_1 = arith.constant 0 : i32
    return %c0_i32, %c0_i32_0 : i32, i32
  }
  func.func @transform_4(%arg0: i32) -> (i32, i32) {
    %c0_i32 = arith.constant 0 : i32
    %c0_i32_0 = arith.constant 0 : i32
    %c0_i32_1 = arith.constant 0 : i32
    return %c0_i32, %c0_i32_0 : i32, i32
  }
  func.func @transform_5(%arg0: i32) -> (i32, i32) {
    %c0_i32 = arith.constant 0 : i32
    %c0_i32_0 = arith.constant 0 : i32
    %c0_i32_1 = arith.constant 0 : i32
    return %c0_i32, %c0_i32_0 : i32, i32
  }
  func.func @transform_6(%arg0: i32) -> (i32, i32) {
    %c0_i32 = arith.constant 0 : i32
    %c0_i32_0 = arith.constant 0 : i32
    %c0_i32_1 = arith.constant 0 : i32
    return %c0_i32, %c0_i32_0 : i32, i32
  }
  func.func @transform_7(%arg0: i32) -> (i32, i32) {
    %c0_i32 = arith.constant 0 : i32
    %c0_i32_0 = arith.constant 0 : i32
    %c0_i32_1 = arith.constant 0 : i32
    return %c0_i32, %c0_i32_0 : i32, i32
  }
}

</mosaic_0001>

<llo_original>
// kernel: net1_forward.3
$region0: #{net1_forward.3}
  #allocation0 [shape = 'u32[]', space=smem, size = 0x4, offset = 0x4, fixed_abs, tag = 'smem constant byte address 0x4 - core index']
  #allocation1 [shape = 'u32[72,128]{1,0:T(1,128)}', space=vmem, size = 0x9000, scoped, tag = 'internal scratch']
  %s0 = inlined_call_operand.vmem [shape: bf16[1,4608,36], index: 0, kind: input, shape index: {}]
  %s1 = inlined_call_operand.vmem [shape: bf16[36,128], index: 1, kind: input, shape index: {}]
  %s2 = inlined_call_operand.vmem [shape: f32[1,128], index: 2, kind: input, shape index: {}]
  %s3 = inlined_call_operand.vmem [shape: bf16[1152,128], index: 3, kind: output, shape index: {}]
  %s4 = sld [smem:[#allocation0]]
  $region22: #{net1_forward.3} parent=0
    _
  %s6 = ssub.s32 1, %s4
  %s7 = scalar_select 0, %s6, %s4
  // Predicated region
  $region2: #{net1_forward.3} parent=0 // pred_check
    _
  $region3: #{net1_forward.3} parent=0 // pred_check_branch
    %9 = sbr.rel (0) target = $region5
  $region4: #{net1_forward.3} parent=0 // pred_region
    _
  $region5: #{net1_forward.3} parent=0 // pred_fallthru
    _
  // Predicated region
  $region6: #{net1_forward.3} parent=0 // pred_check
    _
  $region7: #{net1_forward.3} parent=0 // pred_check_branch
    %11 = sbr.rel (0) target = $region9
  $region8: #{net1_forward.3} parent=0 // pred_region
    _
  $region9: #{net1_forward.3} parent=0 // pred_fallthru
    _
  // Predicated region
  $region10: #{net1_forward.3} parent=0 // pred_check
    _
  $region11: #{net1_forward.3} parent=0 // pred_check_branch
    %13 = sbr.rel (0) target = $region13
  $region12: #{net1_forward.3} parent=0 // pred_region
    _
  $region13: #{net1_forward.3} parent=0 // pred_fallthru
    _
  %v15 = vld [vmem:[%s0] sm:$0xf]
  %v16 = vld [vmem:[%s0 + $0x4] sm:$0xf]
  %v17 = vld [vmem:[%s0 + $0x8] sm:$0xf]
  %v18 = vld [vmem:[%s0 + $0xc] sm:$0xf]
  %v19 = vld [vmem:[%s0 + $0x10] sm:$0xf]
  %v20 = vld [vmem:[%s0 + $0x14] sm:$0xf]
  %v21 = vld [vmem:[%s0 + $0x18] sm:$0xf]
  %v22 = vld [vmem:[%s0 + $0x1c] sm:$0xf]
  %v23 = vld [vmem:[%s0 + $0x20] sm:$0xf]
  %v24 = vld [vmem:[%s0 + $0x24] sm:$0xf]
  %v25 = vld [vmem:[%s0 + $0x28] sm:$0xf]
  %v26 = vld [vmem:[%s0 + $0x2c] sm:$0xf]
  %v27 = vld [vmem:[%s0 + $0x30] sm:$0xf]
  %v28 = vld [vmem:[%s0 + $0x34] sm:$0xf]
  %v29 = vld [vmem:[%s0 + $0x38] sm:$0xf]
  %v30 = vld [vmem:[%s0 + $0x3c] sm:$0xf]
  %v31 = vld [vmem:[%s0 + $0x40] sm:$0xf]
  %v32 = vld [vmem:[%s0 + $0x44] sm:$0xf]
  %v33 = vld [vmem:[%s0 + $0x48] sm:$0xf]
  %v34 = vld [vmem:[%s0 + $0x4c] sm:$0xf]
  %v35 = vld [vmem:[%s0 + $0x50] sm:$0xf]
  %v36 = vld [vmem:[%s0 + $0x54] sm:$0xf]
  %v37 = vld [vmem:[%s0 + $0x58] sm:$0xf]
  %v38 = vld [vmem:[%s0 + $0x5c] sm:$0xf]
  %v39 = vld [vmem:[%s0 + $0x60] sm:$0xf]
  %v40 = vld [vmem:[%s0 + $0x64] sm:$0xf]
  %v41 = vld [vmem:[%s0 + $0x68] sm:$0xf]
  %v42 = vld [vmem:[%s0 + $0x6c] sm:$0xf]
  %v43 = vld [vmem:[%s0 + $0x70] sm:$0xf]
  %v44 = vld [vmem:[%s0 + $0x74] sm:$0xf]
  %v45 = vld [vmem:[%s0 + $0x78] sm:$0xf]
  %v46 = vld [vmem:[%s0 + $0x7c] sm:$0xf]
  %v47 = vld [vmem:[%s0 + $0x80] sm:$0xf]
  %v48 = vld [vmem:[%s0 + $0x84] sm:$0xf]
  %v49 = vld [vmem:[%s0 + $0x88] sm:$0xf]
  %v50 = vld [vmem:[%s0 + $0x8c] sm:$0xf]
  %v51 = vld [vmem:[%s0 + $0x90] sm:$0xf]
  %v52 = vld [vmem:[%s0 + $0x94] sm:$0xf]
  %v53 = vld [vmem:[%s0 + $0x98] sm:$0xf]
  %v54 = vld [vmem:[%s0 + $0x9c] sm:$0xf]
  %v55 = vld [vmem:[%s0 + $0xa0] sm:$0xf]
  %v56 = vld [vmem:[%s0 + $0xa4] sm:$0xf]
  %v57 = vld [vmem:[%s0 + $0xa8] sm:$0xf]
  %v58 = vld [vmem:[%s0 + $0xac] sm:$0xf]
  %v59 = vld [vmem:[%s0 + $0xb0] sm:$0xf]
  %v60 = vld [vmem:[%s0 + $0xb4] sm:$0xf]
  %v61 = vld [vmem:[%s0 + $0xb8] sm:$0xf]
  %v62 = vld [vmem:[%s0 + $0xbc] sm:$0xf]
  %v63 = vld [vmem:[%s0 + $0xc0] sm:$0xf]
  %v64 = vld [vmem:[%s0 + $0xc4] sm:$0xf]
  %v65 = vld [vmem:[%s0 + $0xc8] sm:$0xf]
  %v66 = vld [vmem:[%s0 + $0xcc] sm:$0xf]
  %v67 = vld [vmem:[%s0 + $0xd0] sm:$0xf]
  %v68 = vld [vmem:[%s0 + $0xd4] sm:$0xf]
  %v69 = vld [vmem:[%s0 + $0xd8] sm:$0xf]
  %v70 = vld [vmem:[%s0 + $0xdc] sm:$0xf]
  %v71 = vld [vmem:[%s0 + $0xe0] sm:$0xf]
  %v72 = vld [vmem:[%s0 + $0xe4] sm:$0xf]
  %v73 = vld [vmem:[%s0 + $0xe8] sm:$0xf]
  %v74 = vld [vmem:[%s0 + $0xec] sm:$0xf]
  %v75 = vld [vmem:[%s0 + $0xf0] sm:$0xf]
  %v76 = vld [vmem:[%s0 + $0xf4] sm:$0xf]
  %v77 = vld [vmem:[%s0 + $0xf8] sm:$0xf]
  %v78 = vld [vmem:[%s0 + $0xfc] sm:$0xf]
  %v79 = vld [vmem:[%s0 + $0x100] sm:$0xf]
  %v80 = vld [vmem:[%s0 + $0x104] sm:$0xf]
  %v81 = vld [vmem:[%s0 + $0x108] sm:$0xf]
  %v82 = vld [vmem:[%s0 + $0x10c] sm:$0xf]
  %v83 = vld [vmem:[%s0 + $0x110] sm:$0xf]
  %v84 = vld [vmem:[%s0 + $0x114] sm:$0xf]
  %v85 = vld [vmem:[%s0 + $0x118] sm:$0xf]
  %v86 = vld [vmem:[%s0 + $0x11c] sm:$0xf]
  %v87 = vld [vmem:[%s0 + $0x120] sm:$0xf]
  %v88 = vld [vmem:[%s0 + $0x124] sm:$0xf]
  %v89 = vld [vmem:[%s0 + $0x128] sm:$0xf]
  %v90 = vld [vmem:[%s0 + $0x12c] sm:$0xf]
  %v91 = vld [vmem:[%s0 + $0x130] sm:$0xf]
  %v92 = vld [vmem:[%s0 + $0x134] sm:$0xf]
  %v93 = vld [vmem:[%s0 + $0x138] sm:$0xf]
  %v94 = vld [vmem:[%s0 + $0x13c] sm:$0xf]
  %v95 = vld [vmem:[%s0 + $0x140] sm:$0xf]
  %v96 = vld [vmem:[%s0 + $0x144] sm:$0xf]
  %v97 = vld [vmem:[%s0 + $0x148] sm:$0xf]
  %v98 = vld [vmem:[%s0 + $0x14c] sm:$0xf]
  %v99 = vld [vmem:[%s0 + $0x150] sm:$0xf]
  %v100 = vld [vmem:[%s0 + $0x154] sm:$0xf]
  %v101 = vld [vmem:[%s0 + $0x158] sm:$0xf]
  %v102 = vld [vmem:[%s0 + $0x15c] sm:$0xf]
  %v103 = vld [vmem:[%s0 + $0x160] sm:$0xf]
  %v104 = vld [vmem:[%s0 + $0x164] sm:$0xf]
  %v105 = vld [vmem:[%s0 + $0x168] sm:$0xf]
  %v106 = vld [vmem:[%s0 + $0x16c] sm:$0xf]
  %v107 = vld [vmem:[%s0 + $0x170] sm:$0xf]
  %v108 = vld [vmem:[%s0 + $0x174] sm:$0xf]
  %v109 = vld [vmem:[%s0 + $0x178] sm:$0xf]
  %v110 = vld [vmem:[%s0 + $0x17c] sm:$0xf]
  %v111 = vld [vmem:[%s0 + $0x180] sm:$0xf]
  %v112 = vld [vmem:[%s0 + $0x184] sm:$0xf]
  %v113 = vld [vmem:[%s0 + $0x188] sm:$0xf]
  %v114 = vld [vmem:[%s0 + $0x18c] sm:$0xf]
  %v115 = vld [vmem:[%s0 + $0x190] sm:$0xf]
  %v116 = vld [vmem:[%s0 + $0x194] sm:$0xf]
  %v117 = vld [vmem:[%s0 + $0x198] sm:$0xf]
  %v118 = vld [vmem:[%s0 + $0x19c] sm:$0xf]
  %v119 = vld [vmem:[%s0 + $0x1a0] sm:$0xf]
  %v120 = vld [vmem:[%s0 + $0x1a4] sm:$0xf]
  %v121 = vld [vmem:[%s0 + $0x1a8] sm:$0xf]
  %v122 = vld [vmem:[%s0 + $0x1ac] sm:$0xf]
  %v123 = vld [vmem:[%s0 + $0x1b0] sm:$0xf]
  %v124 = vld [vmem:[%s0 + $0x1b4] sm:$0xf]
  %v125 = vld [vmem:[%s0 + $0x1b8] sm:$0xf]
  %v126 = vld [vmem:[%s0 + $0x1bc] sm:$0xf]
  %v127 = vld [vmem:[%s0 + $0x1c0] sm:$0xf]
  %v128 = vld [vmem:[%s0 + $0x1c4] sm:$0xf]
  %v129 = vld [vmem:[%s0 + $0x1c8] sm:$0xf]
  %v130 = vld [vmem:[%s0 + $0x1cc] sm:$0xf]
  %v131 = vld [vmem:[%s0 + $0x1d0] sm:$0xf]
  %v132 = vld [vmem:[%s0 + $0x1d4] sm:$0xf]
  %v133 = vld [vmem:[%s0 + $0x1d8] sm:$0xf]
  %v134 = vld [vmem:[%s0 + $0x1dc] sm:$0xf]
  %v135 = vld [vmem:[%s0 + $0x1e0] sm:$0xf]
  %v136 = vld [vmem:[%s0 + $0x1e4] sm:$0xf]
  %v137 = vld [vmem:[%s0 + $0x1e8] sm:$0xf]
  %v138 = vld [vmem:[%s0 + $0x1ec] sm:$0xf]
  %v139 = vld [vmem:[%s0 + $0x1f0] sm:$0xf]
  %v140 = vld [vmem:[%s0 + $0x1f4] sm:$0xf]
  %v141 = vld [vmem:[%s0 + $0x1f8] sm:$0xf]
  %v142 = vld [vmem:[%s0 + $0x1fc] sm:$0xf]
  %v143 = vld [vmem:[%s0 + $0x200] sm:$0xf]
  %v144 = vld [vmem:[%s0 + $0x204] sm:$0xf]
  %v145 = vld [vmem:[%s0 + $0x208] sm:$0xf]
  %v146 = vld [vmem:[%s0 + $0x20c] sm:$0xf]
  %v147 = vld [vmem:[%s0 + $0x210] sm:$0xf]
  %v148 = vld [vmem:[%s0 + $0x214] sm:$0xf]
  %v149 = vld [vmem:[%s0 + $0x218] sm:$0xf]
  %v150 = vld [vmem:[%s0 + $0x21c] sm:$0xf]
  %v151 = vld [vmem:[%s0 + $0x220] sm:$0xf]
  %v152 = vld [vmem:[%s0 + $0x224] sm:$0xf]
  %v153 = vld [vmem:[%s0 + $0x228] sm:$0xf]
  %v154 = vld [vmem:[%s0 + $0x22c] sm:$0xf]
  %v155 = vld [vmem:[%s0 + $0x230] sm:$0xf]
  %v156 = vld [vmem:[%s0 + $0x234] sm:$0xf]
  %v157 = vld [vmem:[%s0 + $0x238] sm:$0xf]
  %v158 = vld [vmem:[%s0 + $0x23c] sm:$0xf]
  %v159 = vld [vmem:[%s0 + $0x240] sm:$0xf]
  %v160 = vld [vmem:[%s0 + $0x244] sm:$0xf]
  %v161 = vld [vmem:[%s0 + $0x248] sm:$0xf]
  %v162 = vld [vmem:[%s0 + $0x24c] sm:$0xf]
  %v163 = vld [vmem:[%s0 + $0x250] sm:$0xf]
  %v164 = vld [vmem:[%s0 + $0x254] sm:$0xf]
  %v165 = vld [vmem:[%s0 + $0x258] sm:$0xf]
  %v166 = vld [vmem:[%s0 + $0x25c] sm:$0xf]
  %v167 = vld [vmem:[%s0 + $0x260] sm:$0xf]
  %v168 = vld [vmem:[%s0 + $0x264] sm:$0xf]
  %v169 = vld [vmem:[%s0 + $0x268] sm:$0xf]
  %v170 = vld [vmem:[%s0 + $0x26c] sm:$0xf]
  %v171 = vld [vmem:[%s0 + $0x270] sm:$0xf]
  %v172 = vld [vmem:[%s0 + $0x274] sm:$0xf]
  %v173 = vld [vmem:[%s0 + $0x278] sm:$0xf]
  %v174 = vld [vmem:[%s0 + $0x27c] sm:$0xf]
  %v175 = vld [vmem:[%s0 + $0x280] sm:$0xf]
  %v176 = vld [vmem:[%s0 + $0x284] sm:$0xf]
  %v177 = vld [vmem:[%s0 + $0x288] sm:$0xf]
  %v178 = vld [vmem:[%s0 + $0x28c] sm:$0xf]
  %v179 = vld [vmem:[%s0 + $0x290] sm:$0xf]
  %v180 = vld [vmem:[%s0 + $0x294] sm:$0xf]
  %v181 = vld [vmem:[%s0 + $0x298] sm:$0xf]
  %v182 = vld [vmem:[%s0 + $0x29c] sm:$0xf]
  %v183 = vld [vmem:[%s0 + $0x2a0] sm:$0xf]
  %v184 = vld [vmem:[%s0 + $0x2a4] sm:$0xf]
  %v185 = vld [vmem:[%s0 + $0x2a8] sm:$0xf]
  %v186 = vld [vmem:[%s0 + $0x2ac] sm:$0xf]
  %v187 = vld [vmem:[%s0 + $0x2b0] sm:$0xf]
  %v188 = vld [vmem:[%s0 + $0x2b4] sm:$0xf]
  %v189 = vld [vmem:[%s0 + $0x2b8] sm:$0xf]
  %v190 = vld [vmem:[%s0 + $0x2bc] sm:$0xf]
  %v191 = vld [vmem:[%s0 + $0x2c0] sm:$0xf]
  %v192 = vld [vmem:[%s0 + $0x2c4] sm:$0xf]
  %v193 = vld [vmem:[%s0 + $0x2c8] sm:$0xf]
  %v194 = vld [vmem:[%s0 + $0x2cc] sm:$0xf]
  %v195 = vld [vmem:[%s0 + $0x2d0] sm:$0xf]
  %v196 = vld [vmem:[%s0 + $0x2d4] sm:$0xf]
  %v197 = vld [vmem:[%s0 + $0x2d8] sm:$0xf]
  %v198 = vld [vmem:[%s0 + $0x2dc] sm:$0xf]
  %v199 = vld [vmem:[%s0 + $0x2e0] sm:$0xf]
  %v200 = vld [vmem:[%s0 + $0x2e4] sm:$0xf]
  %v201 = vld [vmem:[%s0 + $0x2e8] sm:$0xf]
  %v202 = vld [vmem:[%s0 + $0x2ec] sm:$0xf]
  %v203 = vld [vmem:[%s0 + $0x2f0] sm:$0xf]
  %v204 = vld [vmem:[%s0 + $0x2f4] sm:$0xf]
  %v205 = vld [vmem:[%s0 + $0x2f8] sm:$0xf]
  %v206 = vld [vmem:[%s0 + $0x2fc] sm:$0xf]
  %v207 = vld [vmem:[%s0 + $0x300] sm:$0xf]
  %v208 = vld [vmem:[%s0 + $0x304] sm:$0xf]
  %v209 = vld [vmem:[%s0 + $0x308] sm:$0xf]
  %v210 = vld [vmem:[%s0 + $0x30c] sm:$0xf]
  %v211 = vld [vmem:[%s0 + $0x310] sm:$0xf]
  %v212 = vld [vmem:[%s0 + $0x314] sm:$0xf]
  %v213 = vld [vmem:[%s0 + $0x318] sm:$0xf]
  %v214 = vld [vmem:[%s0 + $0x31c] sm:$0xf]
  %v215 = vld [vmem:[%s0 + $0x320] sm:$0xf]
  %v216 = vld [vmem:[%s0 + $0x324] sm:$0xf]
  %v217 = vld [vmem:[%s0 + $0x328] sm:$0xf]
  %v218 = vld [vmem:[%s0 + $0x32c] sm:$0xf]
  %v219 = vld [vmem:[%s0 + $0x330] sm:$0xf]
  %v220 = vld [vmem:[%s0 + $0x334] sm:$0xf]
  %v221 = vld [vmem:[%s0 + $0x338] sm:$0xf]
  %v222 = vld [vmem:[%s0 + $0x33c] sm:$0xf]
  %v223 = vld [vmem:[%s0 + $0x340] sm:$0xf]
  %v224 = vld [vmem:[%s0 + $0x344] sm:$0xf]
  %v225 = vld [vmem:[%s0 + $0x348] sm:$0xf]
  %v226 = vld [vmem:[%s0 + $0x34c] sm:$0xf]
  %v227 = vld [vmem:[%s0 + $0x350] sm:$0xf]
  %v228 = vld [vmem:[%s0 + $0x354] sm:$0xf]
  %v229 = vld [vmem:[%s0 + $0x358] sm:$0xf]
  %v230 = vld [vmem:[%s0 + $0x35c] sm:$0xf]
  %v231 = vld [vmem:[%s0 + $0x360] sm:$0xf]
  %v232 = vld [vmem:[%s0 + $0x364] sm:$0xf]
  %v233 = vld [vmem:[%s0 + $0x368] sm:$0xf]
  %v234 = vld [vmem:[%s0 + $0x36c] sm:$0xf]
  %v235 = vld [vmem:[%s0 + $0x370] sm:$0xf]
  %v236 = vld [vmem:[%s0 + $0x374] sm:$0xf]
  %v237 = vld [vmem:[%s0 + $0x378] sm:$0xf]
  %v238 = vld [vmem:[%s0 + $0x37c] sm:$0xf]
  %v239 = vld [vmem:[%s0 + $0x380] sm:$0xf]
  %v240 = vld [vmem:[%s0 + $0x384] sm:$0xf]
  %v241 = vld [vmem:[%s0 + $0x388] sm:$0xf]
  %v242 = vld [vmem:[%s0 + $0x38c] sm:$0xf]
  %v243 = vld [vmem:[%s0 + $0x390] sm:$0xf]
  %v244 = vld [vmem:[%s0 + $0x394] sm:$0xf]
  %v245 = vld [vmem:[%s0 + $0x398] sm:$0xf]
  %v246 = vld [vmem:[%s0 + $0x39c] sm:$0xf]
  %v247 = vld [vmem:[%s0 + $0x3a0] sm:$0xf]
  %v248 = vld [vmem:[%s0 + $0x3a4] sm:$0xf]
  %v249 = vld [vmem:[%s0 + $0x3a8] sm:$0xf]
  %v250 = vld [vmem:[%s0 + $0x3ac] sm:$0xf]
  %v251 = vld [vmem:[%s0 + $0x3b0] sm:$0xf]
  %v252 = vld [vmem:[%s0 + $0x3b4] sm:$0xf]
  %v253 = vld [vmem:[%s0 + $0x3b8] sm:$0xf]
  %v254 = vld [vmem:[%s0 + $0x3bc] sm:$0xf]
  %v255 = vld [vmem:[%s0 + $0x3c0] sm:$0xf]
  %v256 = vld [vmem:[%s0 + $0x3c4] sm:$0xf]
  %v257 = vld [vmem:[%s0 + $0x3c8] sm:$0xf]
  %v258 = vld [vmem:[%s0 + $0x3cc] sm:$0xf]
  %v259 = vld [vmem:[%s0 + $0x3d0] sm:$0xf]
  %v260 = vld [vmem:[%s0 + $0x3d4] sm:$0xf]
  %v261 = vld [vmem:[%s0 + $0x3d8] sm:$0xf]
  %v262 = vld [vmem:[%s0 + $0x3dc] sm:$0xf]
  %v263 = vld [vmem:[%s0 + $0x3e0] sm:$0xf]
  %v264 = vld [vmem:[%s0 + $0x3e4] sm:$0xf]
  %v265 = vld [vmem:[%s0 + $0x3e8] sm:$0xf]
  %v266 = vld [vmem:[%s0 + $0x3ec] sm:$0xf]
  %v267 = vld [vmem:[%s0 + $0x3f0] sm:$0xf]
  %v268 = vld [vmem:[%s0 + $0x3f4] sm:$0xf]
  %v269 = vld [vmem:[%s0 + $0x3f8] sm:$0xf]
  %v270 = vld [vmem:[%s0 + $0x3fc] sm:$0xf]
  %v271 = vld [vmem:[%s0 + $0x400] sm:$0xf]
  %v272 = vld [vmem:[%s0 + $0x404] sm:$0xf]
  %v273 = vld [vmem:[%s0 + $0x408] sm:$0xf]
  %v274 = vld [vmem:[%s0 + $0x40c] sm:$0xf]
  %v275 = vld [vmem:[%s0 + $0x410] sm:$0xf]
  %v276 = vld [vmem:[%s0 + $0x414] sm:$0xf]
  %v277 = vld [vmem:[%s0 + $0x418] sm:$0xf]
  %v278 = vld [vmem:[%s0 + $0x41c] sm:$0xf]
  %v279 = vld [vmem:[%s0 + $0x420] sm:$0xf]
  %v280 = vld [vmem:[%s0 + $0x424] sm:$0xf]
  %v281 = vld [vmem:[%s0 + $0x428] sm:$0xf]
  %v282 = vld [vmem:[%s0 + $0x42c] sm:$0xf]
  %v283 = vld [vmem:[%s0 + $0x430] sm:$0xf]
  %v284 = vld [vmem:[%s0 + $0x434] sm:$0xf]
  %v285 = vld [vmem:[%s0 + $0x438] sm:$0xf]
  %v286 = vld [vmem:[%s0 + $0x43c] sm:$0xf]
  %v287 = vld [vmem:[%s0 + $0x440] sm:$0xf]
  %v288 = vld [vmem:[%s0 + $0x444] sm:$0xf]
  %v289 = vld [vmem:[%s0 + $0x448] sm:$0xf]
  %v290 = vld [vmem:[%s0 + $0x44c] sm:$0xf]
  %v291 = vld [vmem:[%s0 + $0x450] sm:$0xf]
  %v292 = vld [vmem:[%s0 + $0x454] sm:$0xf]
  %v293 = vld [vmem:[%s0 + $0x458] sm:$0xf]
  %v294 = vld [vmem:[%s0 + $0x45c] sm:$0xf]
  %v295 = vld [vmem:[%s0 + $0x460] sm:$0xf]
  %v296 = vld [vmem:[%s0 + $0x464] sm:$0xf]
  %v297 = vld [vmem:[%s0 + $0x468] sm:$0xf]
  %v298 = vld [vmem:[%s0 + $0x46c] sm:$0xf]
  %v299 = vld [vmem:[%s0 + $0x470] sm:$0xf]
  %v300 = vld [vmem:[%s0 + $0x474] sm:$0xf]
  %v301 = vld [vmem:[%s0 + $0x478] sm:$0xf]
  %v302 = vld [vmem:[%s0 + $0x47c] sm:$0xf]
  %v303 = vld [vmem:[%s0 + $0x480] sm:$0xf]
  %v304 = vld [vmem:[%s0 + $0x484] sm:$0xf]
  %v305 = vld [vmem:[%s0 + $0x488] sm:$0xf]
  %v306 = vld [vmem:[%s0 + $0x48c] sm:$0xf]
  %v307 = vld [vmem:[%s0 + $0x490] sm:$0xf]
  %v308 = vld [vmem:[%s0 + $0x494] sm:$0xf]
  %v309 = vld [vmem:[%s0 + $0x498] sm:$0xf]
  %v310 = vld [vmem:[%s0 + $0x49c] sm:$0xf]
  %v311 = vld [vmem:[%s0 + $0x4a0] sm:$0xf]
  %v312 = vld [vmem:[%s0 + $0x4a4] sm:$0xf]
  %v313 = vld [vmem:[%s0 + $0x4a8] sm:$0xf]
  %v314 = vld [vmem:[%s0 + $0x4ac] sm:$0xf]
  %v315 = vld [vmem:[%s0 + $0x4b0] sm:$0xf]
  %v316 = vld [vmem:[%s0 + $0x4b4] sm:$0xf]
  %v317 = vld [vmem:[%s0 + $0x4b8] sm:$0xf]
  %v318 = vld [vmem:[%s0 + $0x4bc] sm:$0xf]
  %v319 = vld [vmem:[%s0 + $0x4c0] sm:$0xf]
  %v320 = vld [vmem:[%s0 + $0x4c4] sm:$0xf]
  %v321 = vld [vmem:[%s0 + $0x4c8] sm:$0xf]
  %v322 = vld [vmem:[%s0 + $0x4cc] sm:$0xf]
  %v323 = vld [vmem:[%s0 + $0x4d0] sm:$0xf]
  %v324 = vld [vmem:[%s0 + $0x4d4] sm:$0xf]
  %v325 = vld [vmem:[%s0 + $0x4d8] sm:$0xf]
  %v326 = vld [vmem:[%s0 + $0x4dc] sm:$0xf]
  %v327 = vld [vmem:[%s0 + $0x4e0] sm:$0xf]
  %v328 = vld [vmem:[%s0 + $0x4e4] sm:$0xf]
  %v329 = vld [vmem:[%s0 + $0x4e8] sm:$0xf]
  %v330 = vld [vmem:[%s0 + $0x4ec] sm:$0xf]
  %v331 = vld [vmem:[%s0 + $0x4f0] sm:$0xf]
  %v332 = vld [vmem:[%s0 + $0x4f4] sm:$0xf]
  %v333 = vld [vmem:[%s0 + $0x4f8] sm:$0xf]
  %v334 = vld [vmem:[%s0 + $0x4fc] sm:$0xf]
  %v335 = vld [vmem:[%s0 + $0x500] sm:$0xf]
  %v336 = vld [vmem:[%s0 + $0x504] sm:$0xf]
  %v337 = vld [vmem:[%s0 + $0x508] sm:$0xf]
  %v338 = vld [vmem:[%s0 + $0x50c] sm:$0xf]
  %v339 = vld [vmem:[%s0 + $0x510] sm:$0xf]
  %v340 = vld [vmem:[%s0 + $0x514] sm:$0xf]
  %v341 = vld [vmem:[%s0 + $0x518] sm:$0xf]
  %v342 = vld [vmem:[%s0 + $0x51c] sm:$0xf]
  %v343 = vld [vmem:[%s0 + $0x520] sm:$0xf]
  %v344 = vld [vmem:[%s0 + $0x524] sm:$0xf]
  %v345 = vld [vmem:[%s0 + $0x528] sm:$0xf]
  %v346 = vld [vmem:[%s0 + $0x52c] sm:$0xf]
  %v347 = vld [vmem:[%s0 + $0x530] sm:$0xf]
  %v348 = vld [vmem:[%s0 + $0x534] sm:$0xf]
  %v349 = vld [vmem:[%s0 + $0x538] sm:$0xf]
  %v350 = vld [vmem:[%s0 + $0x53c] sm:$0xf]
  %v351 = vld [vmem:[%s0 + $0x540] sm:$0xf]
  %v352 = vld [vmem:[%s0 + $0x544] sm:$0xf]
  %v353 = vld [vmem:[%s0 + $0x548] sm:$0xf]
  %v354 = vld [vmem:[%s0 + $0x54c] sm:$0xf]
  %v355 = vld [vmem:[%s0 + $0x550] sm:$0xf]
  %v356 = vld [vmem:[%s0 + $0x554] sm:$0xf]
  %v357 = vld [vmem:[%s0 + $0x558] sm:$0xf]
  %v358 = vld [vmem:[%s0 + $0x55c] sm:$0xf]
  %v359 = vld [vmem:[%s0 + $0x560] sm:$0xf]
  %v360 = vld [vmem:[%s0 + $0x564] sm:$0xf]
  %v361 = vld [vmem:[%s0 + $0x568] sm:$0xf]
  %v362 = vld [vmem:[%s0 + $0x56c] sm:$0xf]
  %v363 = vld [vmem:[%s0 + $0x570] sm:$0xf]
  %v364 = vld [vmem:[%s0 + $0x574] sm:$0xf]
  %v365 = vld [vmem:[%s0 + $0x578] sm:$0xf]
  %v366 = vld [vmem:[%s0 + $0x57c] sm:$0xf]
  %v367 = vld [vmem:[%s0 + $0x580] sm:$0xf]
  %v368 = vld [vmem:[%s0 + $0x584] sm:$0xf]
  %v369 = vld [vmem:[%s0 + $0x588] sm:$0xf]
  %v370 = vld [vmem:[%s0 + $0x58c] sm:$0xf]
  %v371 = vld [vmem:[%s0 + $0x590] sm:$0xf]
  %v372 = vld [vmem:[%s0 + $0x594] sm:$0xf]
  %v373 = vld [vmem:[%s0 + $0x598] sm:$0xf]
  %v374 = vld [vmem:[%s0 + $0x59c] sm:$0xf]
  %v375 = vld [vmem:[%s0 + $0x5a0] sm:$0xf]
  %v376 = vld [vmem:[%s0 + $0x5a4] sm:$0xf]
  %v377 = vld [vmem:[%s0 + $0x5a8] sm:$0xf]
  %v378 = vld [vmem:[%s0 + $0x5ac] sm:$0xf]
  %v379 = vld [vmem:[%s0 + $0x5b0] sm:$0xf]
  %v380 = vld [vmem:[%s0 + $0x5b4] sm:$0xf]
  %v381 = vld [vmem:[%s0 + $0x5b8] sm:$0xf]
  %v382 = vld [vmem:[%s0 + $0x5bc] sm:$0xf]
  %v383 = vld [vmem:[%s0 + $0x5c0] sm:$0xf]
  %v384 = vld [vmem:[%s0 + $0x5c4] sm:$0xf]
  %v385 = vld [vmem:[%s0 + $0x5c8] sm:$0xf]
  %v386 = vld [vmem:[%s0 + $0x5cc] sm:$0xf]
  %v387 = vld [vmem:[%s0 + $0x5d0] sm:$0xf]
  %v388 = vld [vmem:[%s0 + $0x5d4] sm:$0xf]
  %v389 = vld [vmem:[%s0 + $0x5d8] sm:$0xf]
  %v390 = vld [vmem:[%s0 + $0x5dc] sm:$0xf]
  %v391 = vld [vmem:[%s0 + $0x5e0] sm:$0xf]
  %v392 = vld [vmem:[%s0 + $0x5e4] sm:$0xf]
  %v393 = vld [vmem:[%s0 + $0x5e8] sm:$0xf]
  %v394 = vld [vmem:[%s0 + $0x5ec] sm:$0xf]
  %v395 = vld [vmem:[%s0 + $0x5f0] sm:$0xf]
  %v396 = vld [vmem:[%s0 + $0x5f4] sm:$0xf]
  %v397 = vld [vmem:[%s0 + $0x5f8] sm:$0xf]
  %v398 = vld [vmem:[%s0 + $0x5fc] sm:$0xf]
  %v399 = vld [vmem:[%s0 + $0x600] sm:$0xf]
  %v400 = vld [vmem:[%s0 + $0x604] sm:$0xf]
  %v401 = vld [vmem:[%s0 + $0x608] sm:$0xf]
  %v402 = vld [vmem:[%s0 + $0x60c] sm:$0xf]
  %v403 = vld [vmem:[%s0 + $0x610] sm:$0xf]
  %v404 = vld [vmem:[%s0 + $0x614] sm:$0xf]
  %v405 = vld [vmem:[%s0 + $0x618] sm:$0xf]
  %v406 = vld [vmem:[%s0 + $0x61c] sm:$0xf]
  %v407 = vld [vmem:[%s0 + $0x620] sm:$0xf]
  %v408 = vld [vmem:[%s0 + $0x624] sm:$0xf]
  %v409 = vld [vmem:[%s0 + $0x628] sm:$0xf]
  %v410 = vld [vmem:[%s0 + $0x62c] sm:$0xf]
  %v411 = vld [vmem:[%s0 + $0x630] sm:$0xf]
  %v412 = vld [vmem:[%s0 + $0x634] sm:$0xf]
  %v413 = vld [vmem:[%s0 + $0x638] sm:$0xf]
  %v414 = vld [vmem:[%s0 + $0x63c] sm:$0xf]
  %v415 = vld [vmem:[%s0 + $0x640] sm:$0xf]
  %v416 = vld [vmem:[%s0 + $0x644] sm:$0xf]
  %v417 = vld [vmem:[%s0 + $0x648] sm:$0xf]
  %v418 = vld [vmem:[%s0 + $0x64c] sm:$0xf]
  %v419 = vld [vmem:[%s0 + $0x650] sm:$0xf]
  %v420 = vld [vmem:[%s0 + $0x654] sm:$0xf]
  %v421 = vld [vmem:[%s0 + $0x658] sm:$0xf]
  %v422 = vld [vmem:[%s0 + $0x65c] sm:$0xf]
  %v423 = vld [vmem:[%s0 + $0x660] sm:$0xf]
  %v424 = vld [vmem:[%s0 + $0x664] sm:$0xf]
  %v425 = vld [vmem:[%s0 + $0x668] sm:$0xf]
  %v426 = vld [vmem:[%s0 + $0x66c] sm:$0xf]
  %v427 = vld [vmem:[%s0 + $0x670] sm:$0xf]
  %v428 = vld [vmem:[%s0 + $0x674] sm:$0xf]
  %v429 = vld [vmem:[%s0 + $0x678] sm:$0xf]
  %v430 = vld [vmem:[%s0 + $0x67c] sm:$0xf]
  %v431 = vld [vmem:[%s0 + $0x680] sm:$0xf]
  %v432 = vld [vmem:[%s0 + $0x684] sm:$0xf]
  %v433 = vld [vmem:[%s0 + $0x688] sm:$0xf]
  %v434 = vld [vmem:[%s0 + $0x68c] sm:$0xf]
  %v435 = vld [vmem:[%s0 + $0x690] sm:$0xf]
  %v436 = vld [vmem:[%s0 + $0x694] sm:$0xf]
  %v437 = vld [vmem:[%s0 + $0x698] sm:$0xf]
  %v438 = vld [vmem:[%s0 + $0x69c] sm:$0xf]
  %v439 = vld [vmem:[%s0 + $0x6a0] sm:$0xf]
  %v440 = vld [vmem:[%s0 + $0x6a4] sm:$0xf]
  %v441 = vld [vmem:[%s0 + $0x6a8] sm:$0xf]
  %v442 = vld [vmem:[%s0 + $0x6ac] sm:$0xf]
  %v443 = vld [vmem:[%s0 + $0x6b0] sm:$0xf]
  %v444 = vld [vmem:[%s0 + $0x6b4] sm:$0xf]
  %v445 = vld [vmem:[%s0 + $0x6b8] sm:$0xf]
  %v446 = vld [vmem:[%s0 + $0x6bc] sm:$0xf]
  %v447 = vld [vmem:[%s0 + $0x6c0] sm:$0xf]
  %v448 = vld [vmem:[%s0 + $0x6c4] sm:$0xf]
  %v449 = vld [vmem:[%s0 + $0x6c8] sm:$0xf]
  %v450 = vld [vmem:[%s0 + $0x6cc] sm:$0xf]
  %v451 = vld [vmem:[%s0 + $0x6d0] sm:$0xf]
  %v452 = vld [vmem:[%s0 + $0x6d4] sm:$0xf]
  %v453 = vld [vmem:[%s0 + $0x6d8] sm:$0xf]
  %v454 = vld [vmem:[%s0 + $0x6dc] sm:$0xf]
  %v455 = vld [vmem:[%s0 + $0x6e0] sm:$0xf]
  %v456 = vld [vmem:[%s0 + $0x6e4] sm:$0xf]
  %v457 = vld [vmem:[%s0 + $0x6e8] sm:$0xf]
  %v458 = vld [vmem:[%s0 + $0x6ec] sm:$0xf]
  %v459 = vld [vmem:[%s0 + $0x6f0] sm:$0xf]
  %v460 = vld [vmem:[%s0 + $0x6f4] sm:$0xf]
  %v461 = vld [vmem:[%s0 + $0x6f8] sm:$0xf]
  %v462 = vld [vmem:[%s0 + $0x6fc] sm:$0xf]
  %v463 = vld [vmem:[%s0 + $0x700] sm:$0xf]
  %v464 = vld [vmem:[%s0 + $0x704] sm:$0xf]
  %v465 = vld [vmem:[%s0 + $0x708] sm:$0xf]
  %v466 = vld [vmem:[%s0 + $0x70c] sm:$0xf]
  %v467 = vld [vmem:[%s0 + $0x710] sm:$0xf]
  %v468 = vld [vmem:[%s0 + $0x714] sm:$0xf]
  %v469 = vld [vmem:[%s0 + $0x718] sm:$0xf]
  %v470 = vld [vmem:[%s0 + $0x71c] sm:$0xf]
  %v471 = vld [vmem:[%s0 + $0x720] sm:$0xf]
  %v472 = vld [vmem:[%s0 + $0x724] sm:$0xf]
  %v473 = vld [vmem:[%s0 + $0x728] sm:$0xf]
  %v474 = vld [vmem:[%s0 + $0x72c] sm:$0xf]
  %v475 = vld [vmem:[%s0 + $0x730] sm:$0xf]
  %v476 = vld [vmem:[%s0 + $0x734] sm:$0xf]
  %v477 = vld [vmem:[%s0 + $0x738] sm:$0xf]
  %v478 = vld [vmem:[%s0 + $0x73c] sm:$0xf]
  %v479 = vld [vmem:[%s0 + $0x740] sm:$0xf]
  %v480 = vld [vmem:[%s0 + $0x744] sm:$0xf]
  %v481 = vld [vmem:[%s0 + $0x748] sm:$0xf]
  %v482 = vld [vmem:[%s0 + $0x74c] sm:$0xf]
  %v483 = vld [vmem:[%s0 + $0x750] sm:$0xf]
  %v484 = vld [vmem:[%s0 + $0x754] sm:$0xf]
  %v485 = vld [vmem:[%s0 + $0x758] sm:$0xf]
  %v486 = vld [vmem:[%s0 + $0x75c] sm:$0xf]
  %v487 = vld [vmem:[%s0 + $0x760] sm:$0xf]
  %v488 = vld [vmem:[%s0 + $0x764] sm:$0xf]
  %v489 = vld [vmem:[%s0 + $0x768] sm:$0xf]
  %v490 = vld [vmem:[%s0 + $0x76c] sm:$0xf]
  %v491 = vld [vmem:[%s0 + $0x770] sm:$0xf]
  %v492 = vld [vmem:[%s0 + $0x774] sm:$0xf]
  %v493 = vld [vmem:[%s0 + $0x778] sm:$0xf]
  %v494 = vld [vmem:[%s0 + $0x77c] sm:$0xf]
  %v495 = vld [vmem:[%s0 + $0x780] sm:$0xf]
  %v496 = vld [vmem:[%s0 + $0x784] sm:$0xf]
  %v497 = vld [vmem:[%s0 + $0x788] sm:$0xf]
  %v498 = vld [vmem:[%s0 + $0x78c] sm:$0xf]
  %v499 = vld [vmem:[%s0 + $0x790] sm:$0xf]
  %v500 = vld [vmem:[%s0 + $0x794] sm:$0xf]
  %v501 = vld [vmem:[%s0 + $0x798] sm:$0xf]
  %v502 = vld [vmem:[%s0 + $0x79c] sm:$0xf]
  %v503 = vld [vmem:[%s0 + $0x7a0] sm:$0xf]
  %v504 = vld [vmem:[%s0 + $0x7a4] sm:$0xf]
  %v505 = vld [vmem:[%s0 + $0x7a8] sm:$0xf]
  %v506 = vld [vmem:[%s0 + $0x7ac] sm:$0xf]
  %v507 = vld [vmem:[%s0 + $0x7b0] sm:$0xf]
  %v508 = vld [vmem:[%s0 + $0x7b4] sm:$0xf]
  %v509 = vld [vmem:[%s0 + $0x7b8] sm:$0xf]
  %v510 = vld [vmem:[%s0 + $0x7bc] sm:$0xf]
  %v511 = vld [vmem:[%s0 + $0x7c0] sm:$0xf]
  %v512 = vld [vmem:[%s0 + $0x7c4] sm:$0xf]
  %v513 = vld [vmem:[%s0 + $0x7c8] sm:$0xf]
  %v514 = vld [vmem:[%s0 + $0x7cc] sm:$0xf]
  %v515 = vld [vmem:[%s0 + $0x7d0] sm:$0xf]
  %v516 = vld [vmem:[%s0 + $0x7d4] sm:$0xf]
  %v517 = vld [vmem:[%s0 + $0x7d8] sm:$0xf]
  %v518 = vld [vmem:[%s0 + $0x7dc] sm:$0xf]
  %v519 = vld [vmem:[%s0 + $0x7e0] sm:$0xf]
  %v520 = vld [vmem:[%s0 + $0x7e4] sm:$0xf]
  %v521 = vld [vmem:[%s0 + $0x7e8] sm:$0xf]
  %v522 = vld [vmem:[%s0 + $0x7ec] sm:$0xf]
  %v523 = vld [vmem:[%s0 + $0x7f0] sm:$0xf]
  %v524 = vld [vmem:[%s0 + $0x7f4] sm:$0xf]
  %v525 = vld [vmem:[%s0 + $0x7f8] sm:$0xf]
  %v526 = vld [vmem:[%s0 + $0x7fc] sm:$0xf]
  %v527 = vld [vmem:[%s0 + $0x800] sm:$0xf]
  %v528 = vld [vmem:[%s0 + $0x804] sm:$0xf]
  %v529 = vld [vmem:[%s0 + $0x808] sm:$0xf]
  %v530 = vld [vmem:[%s0 + $0x80c] sm:$0xf]
  %v531 = vld [vmem:[%s0 + $0x810] sm:$0xf]
  %v532 = vld [vmem:[%s0 + $0x814] sm:$0xf]
  %v533 = vld [vmem:[%s0 + $0x818] sm:$0xf]
  %v534 = vld [vmem:[%s0 + $0x81c] sm:$0xf]
  %v535 = vld [vmem:[%s0 + $0x820] sm:$0xf]
  %v536 = vld [vmem:[%s0 + $0x824] sm:$0xf]
  %v537 = vld [vmem:[%s0 + $0x828] sm:$0xf]
  %v538 = vld [vmem:[%s0 + $0x82c] sm:$0xf]
  %v539 = vld [vmem:[%s0 + $0x830] sm:$0xf]
  %v540 = vld [vmem:[%s0 + $0x834] sm:$0xf]
  %v541 = vld [vmem:[%s0 + $0x838] sm:$0xf]
  %v542 = vld [vmem:[%s0 + $0x83c] sm:$0xf]
  %v543 = vld [vmem:[%s0 + $0x840] sm:$0xf]
  %v544 = vld [vmem:[%s0 + $0x844] sm:$0xf]
  %v545 = vld [vmem:[%s0 + $0x848] sm:$0xf]
  %v546 = vld [vmem:[%s0 + $0x84c] sm:$0xf]
  %v547 = vld [vmem:[%s0 + $0x850] sm:$0xf]
  %v548 = vld [vmem:[%s0 + $0x854] sm:$0xf]
  %v549 = vld [vmem:[%s0 + $0x858] sm:$0xf]
  %v550 = vld [vmem:[%s0 + $0x85c] sm:$0xf]
  %v551 = vld [vmem:[%s0 + $0x860] sm:$0xf]
  %v552 = vld [vmem:[%s0 + $0x864] sm:$0xf]
  %v553 = vld [vmem:[%s0 + $0x868] sm:$0xf]
  %v554 = vld [vmem:[%s0 + $0x86c] sm:$0xf]
  %v555 = vld [vmem:[%s0 + $0x870] sm:$0xf]
  %v556 = vld [vmem:[%s0 + $0x874] sm:$0xf]
  %v557 = vld [vmem:[%s0 + $0x878] sm:$0xf]
  %v558 = vld [vmem:[%s0 + $0x87c] sm:$0xf]
  %v559 = vld [vmem:[%s0 + $0x880] sm:$0xf]
  %v560 = vld [vmem:[%s0 + $0x884] sm:$0xf]
  %v561 = vld [vmem:[%s0 + $0x888] sm:$0xf]
  %v562 = vld [vmem:[%s0 + $0x88c] sm:$0xf]
  %v563 = vld [vmem:[%s0 + $0x890] sm:$0xf]
  %v564 = vld [vmem:[%s0 + $0x894] sm:$0xf]
  %v565 = vld [vmem:[%s0 + $0x898] sm:$0xf]
  %v566 = vld [vmem:[%s0 + $0x89c] sm:$0xf]
  %v567 = vld [vmem:[%s0 + $0x8a0] sm:$0xf]
  %v568 = vld [vmem:[%s0 + $0x8a4] sm:$0xf]
  %v569 = vld [vmem:[%s0 + $0x8a8] sm:$0xf]
  %v570 = vld [vmem:[%s0 + $0x8ac] sm:$0xf]
  %v571 = vld [vmem:[%s0 + $0x8b0] sm:$0xf]
  %v572 = vld [vmem:[%s0 + $0x8b4] sm:$0xf]
  %v573 = vld [vmem:[%s0 + $0x8b8] sm:$0xf]
  %v574 = vld [vmem:[%s0 + $0x8bc] sm:$0xf]
  %v575 = vld [vmem:[%s0 + $0x8c0] sm:$0xf]
  %v576 = vld [vmem:[%s0 + $0x8c4] sm:$0xf]
  %v577 = vld [vmem:[%s0 + $0x8c8] sm:$0xf]
  %v578 = vld [vmem:[%s0 + $0x8cc] sm:$0xf]
  %v579 = vld [vmem:[%s0 + $0x8d0] sm:$0xf]
  %v580 = vld [vmem:[%s0 + $0x8d4] sm:$0xf]
  %v581 = vld [vmem:[%s0 + $0x8d8] sm:$0xf]
  %v582 = vld [vmem:[%s0 + $0x8dc] sm:$0xf]
  %v583 = vld [vmem:[%s0 + $0x8e0] sm:$0xf]
  %v584 = vld [vmem:[%s0 + $0x8e4] sm:$0xf]
  %v585 = vld [vmem:[%s0 + $0x8e8] sm:$0xf]
  %v586 = vld [vmem:[%s0 + $0x8ec] sm:$0xf]
  %v587 = vld [vmem:[%s0 + $0x8f0] sm:$0xf]
  %v588 = vld [vmem:[%s0 + $0x8f4] sm:$0xf]
  %v589 = vld [vmem:[%s0 + $0x8f8] sm:$0xf]
  %v590 = vld [vmem:[%s0 + $0x8fc] sm:$0xf]
  %v591 = vld [vmem:[%s1] sm:$0xf]
  %v592 = vld [vmem:[%s1 + $0x4] sm:$0xf]
  %v593 = vld [vmem:[%s1 + $0x8] sm:$0xf]
  %v594 = vld [vmem:[%s1 + $0xc] sm:$0xf]
  %v595 = vld [vmem:[%s1 + $0x10] sm:$0x3]
  %v1172 = vunpack.c.l.b16 %v15
  %v1173 = vunpack.c.l.b16 %v16
  %v1174 = vunpack.c.l.b16 %v17
  %v1175 = vunpack.c.l.b16 %v18
  %v1176 = vunpack.c.l.b16 %v19
  %v1177 = vunpack.c.l.b16 %v20
  %v1178 = vunpack.c.l.b16 %v21
  %v1179 = vunpack.c.l.b16 %v22
  %v1180 = vunpack.c.l.b16 %v23
  %v1181 = vunpack.c.l.b16 %v24
  %v1182 = vunpack.c.l.b16 %v25
  %v1183 = vunpack.c.l.b16 %v26
  %v1184 = vunpack.c.l.b16 %v27
  %v1185 = vunpack.c.l.b16 %v28
  %v1186 = vunpack.c.l.b16 %v29
  %v1187 = vunpack.c.l.b16 %v30
  %v1188 = vunpack.c.l.b16 %v31
  %v1189 = vunpack.c.l.b16 %v32
  %v1190 = vunpack.c.l.b16 %v33
  %v1191 = vunpack.c.l.b16 %v34
  %v1192 = vunpack.c.l.b16 %v35
  %v1193 = vunpack.c.l.b16 %v36
  %v1194 = vunpack.c.l.b16 %v37
  %v1195 = vunpack.c.l.b16 %v38
  %v1196 = vunpack.c.l.b16 %v39
  %v1197 = vunpack.c.l.b16 %v40
  %v1198 = vunpack.c.l.b16 %v41
  %v1199 = vunpack.c.l.b16 %v42
  %v1200 = vunpack.c.l.b16 %v43
  %v1201 = vunpack.c.l.b16 %v44
  %v1202 = vunpack.c.l.b16 %v45
  %v1203 = vunpack.c.l.b16 %v46
  %v1204 = vunpack.c.l.b16 %v47
  %v1205 = vunpack.c.l.b16 %v48
  %v1206 = vunpack.c.l.b16 %v49
  %v1207 = vunpack.c.l.b16 %v50
  %v1208 = vunpack.c.l.b16 %v51
  %v1209 = vunpack.c.l.b16 %v52
  %v1210 = vunpack.c.l.b16 %v53
  %v1211 = vunpack.c.l.b16 %v54
  %v1212 = vunpack.c.l.b16 %v55
  %v1213 = vunpack.c.l.b16 %v56
  %v1214 = vunpack.c.l.b16 %v57
  %v1215 = vunpack.c.l.b16 %v58
  %v1216 = vunpack.c.l.b16 %v59
  %v1217 = vunpack.c.l.b16 %v60
  %v1218 = vunpack.c.l.b16 %v61
  %v1219 = vunpack.c.l.b16 %v62
  %v1220 = vunpack.c.l.b16 %v63
  %v1221 = vunpack.c.l.b16 %v64
  %v1222 = vunpack.c.l.b16 %v65
  %v1223 = vunpack.c.l.b16 %v66
  %v1224 = vunpack.c.l.b16 %v67
  %v1225 = vunpack.c.l.b16 %v68
  %v1226 = vunpack.c.l.b16 %v69
  %v1227 = vunpack.c.l.b16 %v70
  %v1228 = vunpack.c.l.b16 %v71
  %v1229 = vunpack.c.l.b16 %v72
  %v1230 = vunpack.c.l.b16 %v73
  %v1231 = vunpack.c.l.b16 %v74
  %v1232 = vunpack.c.l.b16 %v75
  %v1233 = vunpack.c.l.b16 %v76
  %v1234 = vunpack.c.l.b16 %v77
  %v1235 = vunpack.c.l.b16 %v78
  %v1236 = vunpack.c.l.b16 %v79
  %v1237 = vunpack.c.l.b16 %v80
  %v1238 = vunpack.c.l.b16 %v81
  %v1239 = vunpack.c.l.b16 %v82
  %v1240 = vunpack.c.l.b16 %v83
  %v1241 = vunpack.c.l.b16 %v84
  %v1242 = vunpack.c.l.b16 %v85
  %v1243 = vunpack.c.l.b16 %v86
  %v1244 = vunpack.c.l.b16 %v87
  %v1245 = vunpack.c.l.b16 %v88
  %v1246 = vunpack.c.l.b16 %v89
  %v1247 = vunpack.c.l.b16 %v90
  %v1248 = vunpack.c.l.b16 %v91
  %v1249 = vunpack.c.l.b16 %v92
  %v1250 = vunpack.c.l.b16 %v93
  %v1251 = vunpack.c.l.b16 %v94
  %v1252 = vunpack.c.l.b16 %v95
  %v1253 = vunpack.c.l.b16 %v96
  %v1254 = vunpack.c.l.b16 %v97
  %v1255 = vunpack.c.l.b16 %v98
  %v1256 = vunpack.c.l.b16 %v99
  %v1257 = vunpack.c.l.b16 %v100
  %v1258 = vunpack.c.l.b16 %v101
  %v1259 = vunpack.c.l.b16 %v102
  %v1260 = vunpack.c.l.b16 %v103
  %v1261 = vunpack.c.l.b16 %v104
  %v1262 = vunpack.c.l.b16 %v105
  %v1263 = vunpack.c.l.b16 %v106
  %v1264 = vunpack.c.l.b16 %v107
  %v1265 = vunpack.c.l.b16 %v108
  %v1266 = vunpack.c.l.b16 %v109
  %v1267 = vunpack.c.l.b16 %v110
  %v1268 = vunpack.c.l.b16 %v111
  %v1269 = vunpack.c.l.b16 %v112
  %v1270 = vunpack.c.l.b16 %v113
  %v1271 = vunpack.c.l.b16 %v114
  %v1272 = vunpack.c.l.b16 %v115
  %v1273 = vunpack.c.l.b16 %v116
  %v1274 = vunpack.c.l.b16 %v117
  %v1275 = vunpack.c.l.b16 %v118
  %v1276 = vunpack.c.l.b16 %v119
  %v1277 = vunpack.c.l.b16 %v120
  %v1278 = vunpack.c.l.b16 %v121
  %v1279 = vunpack.c.l.b16 %v122
  %v1280 = vunpack.c.l.b16 %v123
  %v1281 = vunpack.c.l.b16 %v124
  %v1282 = vunpack.c.l.b16 %v125
  %v1283 = vunpack.c.l.b16 %v126
  %v1284 = vunpack.c.l.b16 %v127
  %v1285 = vunpack.c.l.b16 %v128
  %v1286 = vunpack.c.l.b16 %v129
  %v1287 = vunpack.c.l.b16 %v130
  %v1288 = vunpack.c.l.b16 %v131
  %v1289 = vunpack.c.l.b16 %v132
  %v1290 = vunpack.c.l.b16 %v133
  %v1291 = vunpack.c.l.b16 %v134
  %v1292 = vunpack.c.l.b16 %v135
  %v1293 = vunpack.c.l.b16 %v136
  %v1294 = vunpack.c.l.b16 %v137
  %v1295 = vunpack.c.l.b16 %v138
  %v1296 = vunpack.c.l.b16 %v139
  %v1297 = vunpack.c.l.b16 %v140
  %v1298 = vunpack.c.l.b16 %v141
  %v1299 = vunpack.c.l.b16 %v142
  %v1300 = vunpack.c.l.b16 %v143
  %v1301 = vunpack.c.l.b16 %v144
  %v1302 = vunpack.c.l.b16 %v145
  %v1303 = vunpack.c.l.b16 %v146
  %v1304 = vunpack.c.l.b16 %v147
  %v1305 = vunpack.c.l.b16 %v148
  %v1306 = vunpack.c.l.b16 %v149
  %v1307 = vunpack.c.l.b16 %v150
  %v1308 = vunpack.c.l.b16 %v151
  %v1309 = vunpack.c.l.b16 %v152
  %v1310 = vunpack.c.l.b16 %v153
  %v1311 = vunpack.c.l.b16 %v154
  %v1312 = vunpack.c.l.b16 %v155
  %v1313 = vunpack.c.l.b16 %v156
  %v1314 = vunpack.c.l.b16 %v157
  %v1315 = vunpack.c.l.b16 %v158
  %v1316 = vunpack.c.l.b16 %v159
  %v1317 = vunpack.c.l.b16 %v160
  %v1318 = vunpack.c.l.b16 %v161
  %v1319 = vunpack.c.l.b16 %v162
  %v1320 = vunpack.c.l.b16 %v163
  %v1321 = vunpack.c.l.b16 %v164
  %v1322 = vunpack.c.l.b16 %v165
  %v1323 = vunpack.c.l.b16 %v166
  %v1324 = vunpack.c.l.b16 %v167
  %v1325 = vunpack.c.l.b16 %v168
  %v1326 = vunpack.c.l.b16 %v169
  %v1327 = vunpack.c.l.b16 %v170
  %v1328 = vunpack.c.l.b16 %v171
  %v1329 = vunpack.c.l.b16 %v172
  %v1330 = vunpack.c.l.b16 %v173
  %v1331 = vunpack.c.l.b16 %v174
  %v1332 = vunpack.c.l.b16 %v175
  %v1333 = vunpack.c.l.b16 %v176
  %v1334 = vunpack.c.l.b16 %v177
  %v1335 = vunpack.c.l.b16 %v178
  %v1336 = vunpack.c.l.b16 %v179
  %v1337 = vunpack.c.l.b16 %v180
  %v1338 = vunpack.c.l.b16 %v181
  %v1339 = vunpack.c.l.b16 %v182
  %v1340 = vunpack.c.l.b16 %v183
  %v1341 = vunpack.c.l.b16 %v184
  %v1342 = vunpack.c.l.b16 %v185
  %v1343 = vunpack.c.l.b16 %v186
  %v1344 = vunpack.c.l.b16 %v187
  %v1345 = vunpack.c.l.b16 %v188
  %v1346 = vunpack.c.l.b16 %v189
  %v1347 = vunpack.c.l.b16 %v190
  %v1348 = vunpack.c.l.b16 %v191
  %v1349 = vunpack.c.l.b16 %v192
  %v1350 = vunpack.c.l.b16 %v193
  %v1351 = vunpack.c.l.b16 %v194
  %v1352 = vunpack.c.l.b16 %v195
  %v1353 = vunpack.c.l.b16 %v196
  %v1354 = vunpack.c.l.b16 %v197
  %v1355 = vunpack.c.l.b16 %v198
  %v1356 = vunpack.c.l.b16 %v199
  %v1357 = vunpack.c.l.b16 %v200
  %v1358 = vunpack.c.l.b16 %v201
  %v1359 = vunpack.c.l.b16 %v202
  %v1360 = vunpack.c.l.b16 %v203
  %v1361 = vunpack.c.l.b16 %v204
  %v1362 = vunpack.c.l.b16 %v205
  %v1363 = vunpack.c.l.b16 %v206
  %v1364 = vunpack.c.l.b16 %v207
  %v1365 = vunpack.c.l.b16 %v208
  %v1366 = vunpack.c.l.b16 %v209
  %v1367 = vunpack.c.l.b16 %v210
  %v1368 = vunpack.c.l.b16 %v211
  %v1369 = vunpack.c.l.b16 %v212
  %v1370 = vunpack.c.l.b16 %v213
  %v1371 = vunpack.c.l.b16 %v214
  %v1372 = vunpack.c.l.b16 %v215
  %v1373 = vunpack.c.l.b16 %v216
  %v1374 = vunpack.c.l.b16 %v217
  %v1375 = vunpack.c.l.b16 %v218
  %v1376 = vunpack.c.l.b16 %v219
  %v1377 = vunpack.c.l.b16 %v220
  %v1378 = vunpack.c.l.b16 %v221
  %v1379 = vunpack.c.l.b16 %v222
  %v1380 = vunpack.c.l.b16 %v223
  %v1381 = vunpack.c.l.b16 %v224
  %v1382 = vunpack.c.l.b16 %v225
  %v1383 = vunpack.c.l.b16 %v226
  %v1384 = vunpack.c.l.b16 %v227
  %v1385 = vunpack.c.l.b16 %v228
  %v1386 = vunpack.c.l.b16 %v229
  %v1387 = vunpack.c.l.b16 %v230
  %v1388 = vunpack.c.l.b16 %v231
  %v1389 = vunpack.c.l.b16 %v232
  %v1390 = vunpack.c.l.b16 %v233
  %v1391 = vunpack.c.l.b16 %v234
  %v1392 = vunpack.c.l.b16 %v235
  %v1393 = vunpack.c.l.b16 %v236
  %v1394 = vunpack.c.l.b16 %v237
  %v1395 = vunpack.c.l.b16 %v238
  %v1396 = vunpack.c.l.b16 %v239
  %v1397 = vunpack.c.l.b16 %v240
  %v1398 = vunpack.c.l.b16 %v241
  %v1399 = vunpack.c.l.b16 %v242
  %v1400 = vunpack.c.l.b16 %v243
  %v1401 = vunpack.c.l.b16 %v244
  %v1402 = vunpack.c.l.b16 %v245
  %v1403 = vunpack.c.l.b16 %v246
  %v1404 = vunpack.c.l.b16 %v247
  %v1405 = vunpack.c.l.b16 %v248
  %v1406 = vunpack.c.l.b16 %v249
  %v1407 = vunpack.c.l.b16 %v250
  %v1408 = vunpack.c.l.b16 %v251
  %v1409 = vunpack.c.l.b16 %v252
  %v1410 = vunpack.c.l.b16 %v253
  %v1411 = vunpack.c.l.b16 %v254
  %v1412 = vunpack.c.l.b16 %v255
  %v1413 = vunpack.c.l.b16 %v256
  %v1414 = vunpack.c.l.b16 %v257
  %v1415 = vunpack.c.l.b16 %v258
  %v1416 = vunpack.c.l.b16 %v259
  %v1417 = vunpack.c.l.b16 %v260
  %v1418 = vunpack.c.l.b16 %v261
  %v1419 = vunpack.c.l.b16 %v262
  %v1420 = vunpack.c.l.b16 %v263
  %v1421 = vunpack.c.l.b16 %v264
  %v1422 = vunpack.c.l.b16 %v265
  %v1423 = vunpack.c.l.b16 %v266
  %v1424 = vunpack.c.l.b16 %v267
  %v1425 = vunpack.c.l.b16 %v268
  %v1426 = vunpack.c.l.b16 %v269
  %v1427 = vunpack.c.l.b16 %v270
  %v1428 = vunpack.c.l.b16 %v271
  %v1429 = vunpack.c.l.b16 %v272
  %v1430 = vunpack.c.l.b16 %v273
  %v1431 = vunpack.c.l.b16 %v274
  %v1432 = vunpack.c.l.b16 %v275
  %v1433 = vunpack.c.l.b16 %v276
  %v1434 = vunpack.c.l.b16 %v277
  %v1435 = vunpack.c.l.b16 %v278
  %v1436 = vunpack.c.l.b16 %v279
  %v1437 = vunpack.c.l.b16 %v280
  %v1438 = vunpack.c.l.b16 %v281
  %v1439 = vunpack.c.l.b16 %v282
  %v1440 = vunpack.c.l.b16 %v283
  %v1441 = vunpack.c.l.b16 %v284
  %v1442 = vunpack.c.l.b16 %v285
  %v1443 = vunpack.c.l.b16 %v286
  %v1444 = vunpack.c.l.b16 %v287
  %v1445 = vunpack.c.l.b16 %v288
  %v1446 = vunpack.c.l.b16 %v289
  %v1447 = vunpack.c.l.b16 %v290
  %v1448 = vunpack.c.l.b16 %v291
  %v1449 = vunpack.c.l.b16 %v292
  %v1450 = vunpack.c.l.b16 %v293
  %v1451 = vunpack.c.l.b16 %v294
  %v1452 = vunpack.c.l.b16 %v295
  %v1453 = vunpack.c.l.b16 %v296
  %v1454 = vunpack.c.l.b16 %v297
  %v1455 = vunpack.c.l.b16 %v298
  %v1456 = vunpack.c.l.b16 %v299
  %v1457 = vunpack.c.l.b16 %v300
  %v1458 = vunpack.c.l.b16 %v301
  %v1459 = vunpack.c.l.b16 %v302
  %v1460 = vunpack.c.l.b16 %v303
  %v1461 = vunpack.c.l.b16 %v304
  %v1462 = vunpack.c.l.b16 %v305
  %v1463 = vunpack.c.l.b16 %v306
  %v1464 = vunpack.c.l.b16 %v307
  %v1465 = vunpack.c.l.b16 %v308
  %v1466 = vunpack.c.l.b16 %v309
  %v1467 = vunpack.c.l.b16 %v310
  %v1468 = vunpack.c.l.b16 %v311
  %v1469 = vunpack.c.l.b16 %v312
  %v1470 = vunpack.c.l.b16 %v313
  %v1471 = vunpack.c.l.b16 %v314
  %v1472 = vunpack.c.l.b16 %v315
  %v1473 = vunpack.c.l.b16 %v316
  %v1474 = vunpack.c.l.b16 %v317
  %v1475 = vunpack.c.l.b16 %v318
  %v1476 = vunpack.c.l.b16 %v319
  %v1477 = vunpack.c.l.b16 %v320
  %v1478 = vunpack.c.l.b16 %v321
  %v1479 = vunpack.c.l.b16 %v322
  %v1480 = vunpack.c.l.b16 %v323
  %v1481 = vunpack.c.l.b16 %v324
  %v1482 = vunpack.c.l.b16 %v325
  %v1483 = vunpack.c.l.b16 %v326
  %v1484 = vunpack.c.l.b16 %v327
  %v1485 = vunpack.c.l.b16 %v328
  %v1486 = vunpack.c.l.b16 %v329
  %v1487 = vunpack.c.l.b16 %v330
  %v1488 = vunpack.c.l.b16 %v331
  %v1489 = vunpack.c.l.b16 %v332
  %v1490 = vunpack.c.l.b16 %v333
  %v1491 = vunpack.c.l.b16 %v334
  %v1492 = vunpack.c.l.b16 %v335
  %v1493 = vunpack.c.l.b16 %v336
  %v1494 = vunpack.c.l.b16 %v337
  %v1495 = vunpack.c.l.b16 %v338
  %v1496 = vunpack.c.l.b16 %v339
  %v1497 = vunpack.c.l.b16 %v340
  %v1498 = vunpack.c.l.b16 %v341
  %v1499 = vunpack.c.l.b16 %v342
  %v1500 = vunpack.c.l.b16 %v343
  %v1501 = vunpack.c.l.b16 %v344
  %v1502 = vunpack.c.l.b16 %v345
  %v1503 = vunpack.c.l.b16 %v346
  %v1504 = vunpack.c.l.b16 %v347
  %v1505 = vunpack.c.l.b16 %v348
  %v1506 = vunpack.c.l.b16 %v349
  %v1507 = vunpack.c.l.b16 %v350
  %v1508 = vunpack.c.l.b16 %v351
  %v1509 = vunpack.c.l.b16 %v352
  %v1510 = vunpack.c.l.b16 %v353
  %v1511 = vunpack.c.l.b16 %v354
  %v1512 = vunpack.c.l.b16 %v355
  %v1513 = vunpack.c.l.b16 %v356
  %v1514 = vunpack.c.l.b16 %v357
  %v1515 = vunpack.c.l.b16 %v358
  %v1516 = vunpack.c.l.b16 %v359
  %v1517 = vunpack.c.l.b16 %v360
  %v1518 = vunpack.c.l.b16 %v361
  %v1519 = vunpack.c.l.b16 %v362
  %v1520 = vunpack.c.l.b16 %v363
  %v1521 = vunpack.c.l.b16 %v364
  %v1522 = vunpack.c.l.b16 %v365
  %v1523 = vunpack.c.l.b16 %v366
  %v1524 = vunpack.c.l.b16 %v367
  %v1525 = vunpack.c.l.b16 %v368
  %v1526 = vunpack.c.l.b16 %v369
  %v1527 = vunpack.c.l.b16 %v370
  %v1528 = vunpack.c.l.b16 %v371
  %v1529 = vunpack.c.l.b16 %v372
  %v1530 = vunpack.c.l.b16 %v373
  %v1531 = vunpack.c.l.b16 %v374
  %v1532 = vunpack.c.l.b16 %v375
  %v1533 = vunpack.c.l.b16 %v376
  %v1534 = vunpack.c.l.b16 %v377
  %v1535 = vunpack.c.l.b16 %v378
  %v1536 = vunpack.c.l.b16 %v379
  %v1537 = vunpack.c.l.b16 %v380
  %v1538 = vunpack.c.l.b16 %v381
  %v1539 = vunpack.c.l.b16 %v382
  %v1540 = vunpack.c.l.b16 %v383
  %v1541 = vunpack.c.l.b16 %v384
  %v1542 = vunpack.c.l.b16 %v385
  %v1543 = vunpack.c.l.b16 %v386
  %v1544 = vunpack.c.l.b16 %v387
  %v1545 = vunpack.c.l.b16 %v388
  %v1546 = vunpack.c.l.b16 %v389
  %v1547 = vunpack.c.l.b16 %v390
  %v1548 = vunpack.c.l.b16 %v391
  %v1549 = vunpack.c.l.b16 %v392
  %v1550 = vunpack.c.l.b16 %v393
  %v1551 = vunpack.c.l.b16 %v394
  %v1552 = vunpack.c.l.b16 %v395
  %v1553 = vunpack.c.l.b16 %v396
  %v1554 = vunpack.c.l.b16 %v397
  %v1555 = vunpack.c.l.b16 %v398
  %v1556 = vunpack.c.l.b16 %v399
  %v1557 = vunpack.c.l.b16 %v400
  %v1558 = vunpack.c.l.b16 %v401
  %v1559 = vunpack.c.l.b16 %v402
  %v1560 = vunpack.c.l.b16 %v403
  %v1561 = vunpack.c.l.b16 %v404
  %v1562 = vunpack.c.l.b16 %v405
  %v1563 = vunpack.c.l.b16 %v406
  %v1564 = vunpack.c.l.b16 %v407
  %v1565 = vunpack.c.l.b16 %v408
  %v1566 = vunpack.c.l.b16 %v409
  %v1567 = vunpack.c.l.b16 %v410
  %v1568 = vunpack.c.l.b16 %v411
  %v1569 = vunpack.c.l.b16 %v412
  %v1570 = vunpack.c.l.b16 %v413
  %v1571 = vunpack.c.l.b16 %v414
  %v1572 = vunpack.c.l.b16 %v415
  %v1573 = vunpack.c.l.b16 %v416
  %v1574 = vunpack.c.l.b16 %v417
  %v1575 = vunpack.c.l.b16 %v418
  %v1576 = vunpack.c.l.b16 %v419
  %v1577 = vunpack.c.l.b16 %v420
  %v1578 = vunpack.c.l.b16 %v421
  %v1579 = vunpack.c.l.b16 %v422
  %v1580 = vunpack.c.l.b16 %v423
  %v1581 = vunpack.c.l.b16 %v424
  %v1582 = vunpack.c.l.b16 %v425
  %v1583 = vunpack.c.l.b16 %v426
  %v1584 = vunpack.c.l.b16 %v427
  %v1585 = vunpack.c.l.b16 %v428
  %v1586 = vunpack.c.l.b16 %v429
  %v1587 = vunpack.c.l.b16 %v430
  %v1588 = vunpack.c.l.b16 %v431
  %v1589 = vunpack.c.l.b16 %v432
  %v1590 = vunpack.c.l.b16 %v433
  %v1591 = vunpack.c.l.b16 %v434
  %v1592 = vunpack.c.l.b16 %v435
  %v1593 = vunpack.c.l.b16 %v436
  %v1594 = vunpack.c.l.b16 %v437
  %v1595 = vunpack.c.l.b16 %v438
  %v1596 = vunpack.c.l.b16 %v439
  %v1597 = vunpack.c.l.b16 %v440
  %v1598 = vunpack.c.l.b16 %v441
  %v1599 = vunpack.c.l.b16 %v442
  %v1600 = vunpack.c.l.b16 %v443
  %v1601 = vunpack.c.l.b16 %v444
  %v1602 = vunpack.c.l.b16 %v445
  %v1603 = vunpack.c.l.b16 %v446
  %v1604 = vunpack.c.l.b16 %v447
  %v1605 = vunpack.c.l.b16 %v448
  %v1606 = vunpack.c.l.b16 %v449
  %v1607 = vunpack.c.l.b16 %v450
  %v1608 = vunpack.c.l.b16 %v451
  %v1609 = vunpack.c.l.b16 %v452
  %v1610 = vunpack.c.l.b16 %v453
  %v1611 = vunpack.c.l.b16 %v454
  %v1612 = vunpack.c.l.b16 %v455
  %v1613 = vunpack.c.l.b16 %v456
  %v1614 = vunpack.c.l.b16 %v457
  %v1615 = vunpack.c.l.b16 %v458
  %v1616 = vunpack.c.l.b16 %v459
  %v1617 = vunpack.c.l.b16 %v460
  %v1618 = vunpack.c.l.b16 %v461
  %v1619 = vunpack.c.l.b16 %v462
  %v1620 = vunpack.c.l.b16 %v463
  %v1621 = vunpack.c.l.b16 %v464
  %v1622 = vunpack.c.l.b16 %v465
  %v1623 = vunpack.c.l.b16 %v466
  %v1624 = vunpack.c.l.b16 %v467
  %v1625 = vunpack.c.l.b16 %v468
  %v1626 = vunpack.c.l.b16 %v469
  %v1627 = vunpack.c.l.b16 %v470
  %v1628 = vunpack.c.l.b16 %v471
  %v1629 = vunpack.c.l.b16 %v472
  %v1630 = vunpack.c.l.b16 %v473
  %v1631 = vunpack.c.l.b16 %v474
  %v1632 = vunpack.c.l.b16 %v475
  %v1633 = vunpack.c.l.b16 %v476
  %v1634 = vunpack.c.l.b16 %v477
  %v1635 = vunpack.c.l.b16 %v478
  %v1636 = vunpack.c.l.b16 %v479
  %v1637 = vunpack.c.l.b16 %v480
  %v1638 = vunpack.c.l.b16 %v481
  %v1639 = vunpack.c.l.b16 %v482
  %v1640 = vunpack.c.l.b16 %v483
  %v1641 = vunpack.c.l.b16 %v484
  %v1642 = vunpack.c.l.b16 %v485
  %v1643 = vunpack.c.l.b16 %v486
  %v1644 = vunpack.c.l.b16 %v487
  %v1645 = vunpack.c.l.b16 %v488
  %v1646 = vunpack.c.l.b16 %v489
  %v1647 = vunpack.c.l.b16 %v490
  %v1648 = vunpack.c.l.b16 %v491
  %v1649 = vunpack.c.l.b16 %v492
  %v1650 = vunpack.c.l.b16 %v493
  %v1651 = vunpack.c.l.b16 %v494
  %v1652 = vunpack.c.l.b16 %v495
  %v1653 = vunpack.c.l.b16 %v496
  %v1654 = vunpack.c.l.b16 %v497
  %v1655 = vunpack.c.l.b16 %v498
  %v1656 = vunpack.c.l.b16 %v499
  %v1657 = vunpack.c.l.b16 %v500
  %v1658 = vunpack.c.l.b16 %v501
  %v1659 = vunpack.c.l.b16 %v502
  %v1660 = vunpack.c.l.b16 %v503
  %v1661 = vunpack.c.l.b16 %v504
  %v1662 = vunpack.c.l.b16 %v505
  %v1663 = vunpack.c.l.b16 %v506
  %v1664 = vunpack.c.l.b16 %v507
  %v1665 = vunpack.c.l.b16 %v508
  %v1666 = vunpack.c.l.b16 %v509
  %v1667 = vunpack.c.l.b16 %v510
  %v1668 = vunpack.c.l.b16 %v511
  %v1669 = vunpack.c.l.b16 %v512
  %v1670 = vunpack.c.l.b16 %v513
  %v1671 = vunpack.c.l.b16 %v514
  %v1672 = vunpack.c.l.b16 %v515
  %v1673 = vunpack.c.l.b16 %v516
  %v1674 = vunpack.c.l.b16 %v517
  %v1675 = vunpack.c.l.b16 %v518
  %v1676 = vunpack.c.l.b16 %v519
  %v1677 = vunpack.c.l.b16 %v520
  %v1678 = vunpack.c.l.b16 %v521
  %v1679 = vunpack.c.l.b16 %v522
  %v1680 = vunpack.c.l.b16 %v523
  %v1681 = vunpack.c.l.b16 %v524
  %v1682 = vunpack.c.l.b16 %v525
  %v1683 = vunpack.c.l.b16 %v526
  %v1684 = vunpack.c.l.b16 %v527
  %v1685 = vunpack.c.l.b16 %v528
  %v1686 = vunpack.c.l.b16 %v529
  %v1687 = vunpack.c.l.b16 %v530
  %v1688 = vunpack.c.l.b16 %v531
  %v1689 = vunpack.c.l.b16 %v532
  %v1690 = vunpack.c.l.b16 %v533
  %v1691 = vunpack.c.l.b16 %v534
  %v1692 = vunpack.c.l.b16 %v535
  %v1693 = vunpack.c.l.b16 %v536
  %v1694 = vunpack.c.l.b16 %v537
  %v1695 = vunpack.c.l.b16 %v538
  %v1696 = vunpack.c.l.b16 %v539
  %v1697 = vunpack.c.l.b16 %v540
  %v1698 = vunpack.c.l.b16 %v541
  %v1699 = vunpack.c.l.b16 %v542
  %v1700 = vunpack.c.l.b16 %v543
  %v1701 = vunpack.c.l.b16 %v544
  %v1702 = vunpack.c.l.b16 %v545
  %v1703 = vunpack.c.l.b16 %v546
  %v1704 = vunpack.c.l.b16 %v547
  %v1705 = vunpack.c.l.b16 %v548
  %v1706 = vunpack.c.l.b16 %v549
  %v1707 = vunpack.c.l.b16 %v550
  %v1708 = vunpack.c.l.b16 %v551
  %v1709 = vunpack.c.l.b16 %v552
  %v1710 = vunpack.c.l.b16 %v553
  %v1711 = vunpack.c.l.b16 %v554
  %v1712 = vunpack.c.l.b16 %v555
  %v1713 = vunpack.c.l.b16 %v556
  %v1714 = vunpack.c.l.b16 %v557
  %v1715 = vunpack.c.l.b16 %v558
  %v1716 = vunpack.c.l.b16 %v559
  %v1717 = vunpack.c.l.b16 %v560
  %v1718 = vunpack.c.l.b16 %v561
  %v1719 = vunpack.c.l.b16 %v562
  %v1720 = vunpack.c.l.b16 %v563
  %v1721 = vunpack.c.l.b16 %v564
  %v1722 = vunpack.c.l.b16 %v565
  %v1723 = vunpack.c.l.b16 %v566
  %v1724 = vunpack.c.l.b16 %v567
  %v1725 = vunpack.c.l.b16 %v568
  %v1726 = vunpack.c.l.b16 %v569
  %v1727 = vunpack.c.l.b16 %v570
  %v1728 = vunpack.c.l.b16 %v571
  %v1729 = vunpack.c.l.b16 %v572
  %v1730 = vunpack.c.l.b16 %v573
  %v1731 = vunpack.c.l.b16 %v574
  %v1732 = vunpack.c.l.b16 %v575
  %v1733 = vunpack.c.l.b16 %v576
  %v1734 = vunpack.c.l.b16 %v577
  %v1735 = vunpack.c.l.b16 %v578
  %v1736 = vunpack.c.l.b16 %v579
  %v1737 = vunpack.c.l.b16 %v580
  %v1738 = vunpack.c.l.b16 %v581
  %v1739 = vunpack.c.l.b16 %v582
  %v1740 = vunpack.c.l.b16 %v583
  %v1741 = vunpack.c.l.b16 %v584
  %v1742 = vunpack.c.l.b16 %v585
  %v1743 = vunpack.c.l.b16 %v586
  %v1744 = vunpack.c.l.b16 %v587
  %v1745 = vunpack.c.l.b16 %v588
  %v1746 = vunpack.c.l.b16 %v589
  %v1747 = vunpack.c.l.b16 %v590
  %v1748 = vpack.c.b16 %v1173, %v1172
  %v1749 = vpack.c.b16 %v1175, %v1174
  %v1750 = vpack.c.b16 %v1177, %v1176
  %v1751 = vpack.c.b16 %v1179, %v1178
  %v1752 = vpack.c.b16 %v1181, %v1180
  %v1753 = vpack.c.b16 %v1183, %v1182
  %v1754 = vpack.c.b16 %v1185, %v1184
  %v1755 = vpack.c.b16 %v1187, %v1186
  %v1756 = vpack.c.b16 %v1189, %v1188
  %v1757 = vpack.c.b16 %v1191, %v1190
  %v1758 = vpack.c.b16 %v1193, %v1192
  %v1759 = vpack.c.b16 %v1195, %v1194
  %v1760 = vpack.c.b16 %v1197, %v1196
  %v1761 = vpack.c.b16 %v1199, %v1198
  %v1762 = vpack.c.b16 %v1201, %v1200
  %v1763 = vpack.c.b16 %v1203, %v1202
  %v1764 = vpack.c.b16 %v1205, %v1204
  %v1765 = vpack.c.b16 %v1207, %v1206
  %v1766 = vpack.c.b16 %v1209, %v1208
  %v1767 = vpack.c.b16 %v1211, %v1210
  %v1768 = vpack.c.b16 %v1213, %v1212
  %v1769 = vpack.c.b16 %v1215, %v1214
  %v1770 = vpack.c.b16 %v1217, %v1216
  %v1771 = vpack.c.b16 %v1219, %v1218
  %v1772 = vpack.c.b16 %v1221, %v1220
  %v1773 = vpack.c.b16 %v1223, %v1222
  %v1774 = vpack.c.b16 %v1225, %v1224
  %v1775 = vpack.c.b16 %v1227, %v1226
  %v1776 = vpack.c.b16 %v1229, %v1228
  %v1777 = vpack.c.b16 %v1231, %v1230
  %v1778 = vpack.c.b16 %v1233, %v1232
  %v1779 = vpack.c.b16 %v1235, %v1234
  %v1780 = vpack.c.b16 %v1237, %v1236
  %v1781 = vpack.c.b16 %v1239, %v1238
  %v1782 = vpack.c.b16 %v1241, %v1240
  %v1783 = vpack.c.b16 %v1243, %v1242
  %v1784 = vpack.c.b16 %v1245, %v1244
  %v1785 = vpack.c.b16 %v1247, %v1246
  %v1786 = vpack.c.b16 %v1249, %v1248
  %v1787 = vpack.c.b16 %v1251, %v1250
  %v1788 = vpack.c.b16 %v1253, %v1252
  %v1789 = vpack.c.b16 %v1255, %v1254
  %v1790 = vpack.c.b16 %v1257, %v1256
  %v1791 = vpack.c.b16 %v1259, %v1258
  %v1792 = vpack.c.b16 %v1261, %v1260
  %v1793 = vpack.c.b16 %v1263, %v1262
  %v1794 = vpack.c.b16 %v1265, %v1264
  %v1795 = vpack.c.b16 %v1267, %v1266
  %v1796 = vpack.c.b16 %v1269, %v1268
  %v1797 = vpack.c.b16 %v1271, %v1270
  %v1798 = vpack.c.b16 %v1273, %v1272
  %v1799 = vpack.c.b16 %v1275, %v1274
  %v1800 = vpack.c.b16 %v1277, %v1276
  %v1801 = vpack.c.b16 %v1279, %v1278
  %v1802 = vpack.c.b16 %v1281, %v1280
  %v1803 = vpack.c.b16 %v1283, %v1282
  %v1804 = vpack.c.b16 %v1285, %v1284
  %v1805 = vpack.c.b16 %v1287, %v1286
  %v1806 = vpack.c.b16 %v1289, %v1288
  %v1807 = vpack.c.b16 %v1291, %v1290
  %v1808 = vpack.c.b16 %v1293, %v1292
  %v1809 = vpack.c.b16 %v1295, %v1294
  %v1810 = vpack.c.b16 %v1297, %v1296
  %v1811 = vpack.c.b16 %v1299, %v1298
  %v1812 = vpack.c.b16 %v1301, %v1300
  %v1813 = vpack.c.b16 %v1303, %v1302
  %v1814 = vpack.c.b16 %v1305, %v1304
  %v1815 = vpack.c.b16 %v1307, %v1306
  %v1816 = vpack.c.b16 %v1309, %v1308
  %v1817 = vpack.c.b16 %v1311, %v1310
  %v1818 = vpack.c.b16 %v1313, %v1312
  %v1819 = vpack.c.b16 %v1315, %v1314
  %v1820 = vpack.c.b16 %v1317, %v1316
  %v1821 = vpack.c.b16 %v1319, %v1318
  %v1822 = vpack.c.b16 %v1321, %v1320
  %v1823 = vpack.c.b16 %v1323, %v1322
  %v1824 = vpack.c.b16 %v1325, %v1324
  %v1825 = vpack.c.b16 %v1327, %v1326
  %v1826 = vpack.c.b16 %v1329, %v1328
  %v1827 = vpack.c.b16 %v1331, %v1330
  %v1828 = vpack.c.b16 %v1333, %v1332
  %v1829 = vpack.c.b16 %v1335, %v1334
  %v1830 = vpack.c.b16 %v1337, %v1336
  %v1831 = vpack.c.b16 %v1339, %v1338
  %v1832 = vpack.c.b16 %v1341, %v1340
  %v1833 = vpack.c.b16 %v1343, %v1342
  %v1834 = vpack.c.b16 %v1345, %v1344
  %v1835 = vpack.c.b16 %v1347, %v1346
  %v1836 = vpack.c.b16 %v1349, %v1348
  %v1837 = vpack.c.b16 %v1351, %v1350
  %v1838 = vpack.c.b16 %v1353, %v1352
  %v1839 = vpack.c.b16 %v1355, %v1354
  %v1840 = vpack.c.b16 %v1357, %v1356
  %v1841 = vpack.c.b16 %v1359, %v1358
  %v1842 = vpack.c.b16 %v1361, %v1360
  %v1843 = vpack.c.b16 %v1363, %v1362
  %v1844 = vpack.c.b16 %v1365, %v1364
  %v1845 = vpack.c.b16 %v1367, %v1366
  %v1846 = vpack.c.b16 %v1369, %v1368
  %v1847 = vpack.c.b16 %v1371, %v1370
  %v1848 = vpack.c.b16 %v1373, %v1372
  %v1849 = vpack.c.b16 %v1375, %v1374
  %v1850 = vpack.c.b16 %v1377, %v1376
  %v1851 = vpack.c.b16 %v1379, %v1378
  %v1852 = vpack.c.b16 %v1381, %v1380
  %v1853 = vpack.c.b16 %v1383, %v1382
  %v1854 = vpack.c.b16 %v1385, %v1384
  %v1855 = vpack.c.b16 %v1387, %v1386
  %v1856 = vpack.c.b16 %v1389, %v1388
  %v1857 = vpack.c.b16 %v1391, %v1390
  %v1858 = vpack.c.b16 %v1393, %v1392
  %v1859 = vpack.c.b16 %v1395, %v1394
  %v1860 = vpack.c.b16 %v1397, %v1396
  %v1861 = vpack.c.b16 %v1399, %v1398
  %v1862 = vpack.c.b16 %v1401, %v1400
  %v1863 = vpack.c.b16 %v1403, %v1402
  %v1864 = vpack.c.b16 %v1405, %v1404
  %v1865 = vpack.c.b16 %v1407, %v1406
  %v1866 = vpack.c.b16 %v1409, %v1408
  %v1867 = vpack.c.b16 %v1411, %v1410
  %v1868 = vpack.c.b16 %v1413, %v1412
  %v1869 = vpack.c.b16 %v1415, %v1414
  %v1870 = vpack.c.b16 %v1417, %v1416
  %v1871 = vpack.c.b16 %v1419, %v1418
  %v1872 = vpack.c.b16 %v1421, %v1420
  %v1873 = vpack.c.b16 %v1423, %v1422
  %v1874 = vpack.c.b16 %v1425, %v1424
  %v1875 = vpack.c.b16 %v1427, %v1426
  %v1876 = vpack.c.b16 %v1429, %v1428
  %v1877 = vpack.c.b16 %v1431, %v1430
  %v1878 = vpack.c.b16 %v1433, %v1432
  %v1879 = vpack.c.b16 %v1435, %v1434
  %v1880 = vpack.c.b16 %v1437, %v1436
  %v1881 = vpack.c.b16 %v1439, %v1438
  %v1882 = vpack.c.b16 %v1441, %v1440
  %v1883 = vpack.c.b16 %v1443, %v1442
  %v1884 = vpack.c.b16 %v1445, %v1444
  %v1885 = vpack.c.b16 %v1447, %v1446
  %v1886 = vpack.c.b16 %v1449, %v1448
  %v1887 = vpack.c.b16 %v1451, %v1450
  %v1888 = vpack.c.b16 %v1453, %v1452
  %v1889 = vpack.c.b16 %v1455, %v1454
  %v1890 = vpack.c.b16 %v1457, %v1456
  %v1891 = vpack.c.b16 %v1459, %v1458
  %v1892 = vpack.c.b16 %v1461, %v1460
  %v1893 = vpack.c.b16 %v1463, %v1462
  %v1894 = vpack.c.b16 %v1465, %v1464
  %v1895 = vpack.c.b16 %v1467, %v1466
  %v1896 = vpack.c.b16 %v1469, %v1468
  %v1897 = vpack.c.b16 %v1471, %v1470
  %v1898 = vpack.c.b16 %v1473, %v1472
  %v1899 = vpack.c.b16 %v1475, %v1474
  %v1900 = vpack.c.b16 %v1477, %v1476
  %v1901 = vpack.c.b16 %v1479, %v1478
  %v1902 = vpack.c.b16 %v1481, %v1480
  %v1903 = vpack.c.b16 %v1483, %v1482
  %v1904 = vpack.c.b16 %v1485, %v1484
  %v1905 = vpack.c.b16 %v1487, %v1486
  %v1906 = vpack.c.b16 %v1489, %v1488
  %v1907 = vpack.c.b16 %v1491, %v1490
  %v1908 = vpack.c.b16 %v1493, %v1492
  %v1909 = vpack.c.b16 %v1495, %v1494
  %v1910 = vpack.c.b16 %v1497, %v1496
  %v1911 = vpack.c.b16 %v1499, %v1498
  %v1912 = vpack.c.b16 %v1501, %v1500
  %v1913 = vpack.c.b16 %v1503, %v1502
  %v1914 = vpack.c.b16 %v1505, %v1504
  %v1915 = vpack.c.b16 %v1507, %v1506
  %v1916 = vpack.c.b16 %v1509, %v1508
  %v1917 = vpack.c.b16 %v1511, %v1510
  %v1918 = vpack.c.b16 %v1513, %v1512
  %v1919 = vpack.c.b16 %v1515, %v1514
  %v1920 = vpack.c.b16 %v1517, %v1516
  %v1921 = vpack.c.b16 %v1519, %v1518
  %v1922 = vpack.c.b16 %v1521, %v1520
  %v1923 = vpack.c.b16 %v1523, %v1522
  %v1924 = vpack.c.b16 %v1525, %v1524
  %v1925 = vpack.c.b16 %v1527, %v1526
  %v1926 = vpack.c.b16 %v1529, %v1528
  %v1927 = vpack.c.b16 %v1531, %v1530
  %v1928 = vpack.c.b16 %v1533, %v1532
  %v1929 = vpack.c.b16 %v1535, %v1534
  %v1930 = vpack.c.b16 %v1537, %v1536
  %v1931 = vpack.c.b16 %v1539, %v1538
  %v1932 = vpack.c.b16 %v1541, %v1540
  %v1933 = vpack.c.b16 %v1543, %v1542
  %v1934 = vpack.c.b16 %v1545, %v1544
  %v1935 = vpack.c.b16 %v1547, %v1546
  %v1936 = vpack.c.b16 %v1549, %v1548
  %v1937 = vpack.c.b16 %v1551, %v1550
  %v1938 = vpack.c.b16 %v1553, %v1552
  %v1939 = vpack.c.b16 %v1555, %v1554
  %v1940 = vpack.c.b16 %v1557, %v1556
  %v1941 = vpack.c.b16 %v1559, %v1558
  %v1942 = vpack.c.b16 %v1561, %v1560
  %v1943 = vpack.c.b16 %v1563, %v1562
  %v1944 = vpack.c.b16 %v1565, %v1564
  %v1945 = vpack.c.b16 %v1567, %v1566
  %v1946 = vpack.c.b16 %v1569, %v1568
  %v1947 = vpack.c.b16 %v1571, %v1570
  %v1948 = vpack.c.b16 %v1573, %v1572
  %v1949 = vpack.c.b16 %v1575, %v1574
  %v1950 = vpack.c.b16 %v1577, %v1576
  %v1951 = vpack.c.b16 %v1579, %v1578
  %v1952 = vpack.c.b16 %v1581, %v1580
  %v1953 = vpack.c.b16 %v1583, %v1582
  %v1954 = vpack.c.b16 %v1585, %v1584
  %v1955 = vpack.c.b16 %v1587, %v1586
  %v1956 = vpack.c.b16 %v1589, %v1588
  %v1957 = vpack.c.b16 %v1591, %v1590
  %v1958 = vpack.c.b16 %v1593, %v1592
  %v1959 = vpack.c.b16 %v1595, %v1594
  %v1960 = vpack.c.b16 %v1597, %v1596
  %v1961 = vpack.c.b16 %v1599, %v1598
  %v1962 = vpack.c.b16 %v1601, %v1600
  %v1963 = vpack.c.b16 %v1603, %v1602
  %v1964 = vpack.c.b16 %v1605, %v1604
  %v1965 = vpack.c.b16 %v1607, %v1606
  %v1966 = vpack.c.b16 %v1609, %v1608
  %v1967 = vpack.c.b16 %v1611, %v1610
  %v1968 = vpack.c.b16 %v1613, %v1612
  %v1969 = vpack.c.b16 %v1615, %v1614
  %v1970 = vpack.c.b16 %v1617, %v1616
  %v1971 = vpack.c.b16 %v1619, %v1618
  %v1972 = vpack.c.b16 %v1621, %v1620
  %v1973 = vpack.c.b16 %v1623, %v1622
  %v1974 = vpack.c.b16 %v1625, %v1624
  %v1975 = vpack.c.b16 %v1627, %v1626
  %v1976 = vpack.c.b16 %v1629, %v1628
  %v1977 = vpack.c.b16 %v1631, %v1630
  %v1978 = vpack.c.b16 %v1633, %v1632
  %v1979 = vpack.c.b16 %v1635, %v1634
  %v1980 = vpack.c.b16 %v1637, %v1636
  %v1981 = vpack.c.b16 %v1639, %v1638
  %v1982 = vpack.c.b16 %v1641, %v1640
  %v1983 = vpack.c.b16 %v1643, %v1642
  %v1984 = vpack.c.b16 %v1645, %v1644
  %v1985 = vpack.c.b16 %v1647, %v1646
  %v1986 = vpack.c.b16 %v1649, %v1648
  %v1987 = vpack.c.b16 %v1651, %v1650
  %v1988 = vpack.c.b16 %v1653, %v1652
  %v1989 = vpack.c.b16 %v1655, %v1654
  %v1990 = vpack.c.b16 %v1657, %v1656
  %v1991 = vpack.c.b16 %v1659, %v1658
  %v1992 = vpack.c.b16 %v1661, %v1660
  %v1993 = vpack.c.b16 %v1663, %v1662
  %v1994 = vpack.c.b16 %v1665, %v1664
  %v1995 = vpack.c.b16 %v1667, %v1666
  %v1996 = vpack.c.b16 %v1669, %v1668
  %v1997 = vpack.c.b16 %v1671, %v1670
  %v1998 = vpack.c.b16 %v1673, %v1672
  %v1999 = vpack.c.b16 %v1675, %v1674
  %v2000 = vpack.c.b16 %v1677, %v1676
  %v2001 = vpack.c.b16 %v1679, %v1678
  %v2002 = vpack.c.b16 %v1681, %v1680
  %v2003 = vpack.c.b16 %v1683, %v1682
  %v2004 = vpack.c.b16 %v1685, %v1684
  %v2005 = vpack.c.b16 %v1687, %v1686
  %v2006 = vpack.c.b16 %v1689, %v1688
  %v2007 = vpack.c.b16 %v1691, %v1690
  %v2008 = vpack.c.b16 %v1693, %v1692
  %v2009 = vpack.c.b16 %v1695, %v1694
  %v2010 = vpack.c.b16 %v1697, %v1696
  %v2011 = vpack.c.b16 %v1699, %v1698
  %v2012 = vpack.c.b16 %v1701, %v1700
  %v2013 = vpack.c.b16 %v1703, %v1702
  %v2014 = vpack.c.b16 %v1705, %v1704
  %v2015 = vpack.c.b16 %v1707, %v1706
  %v2016 = vpack.c.b16 %v1709, %v1708
  %v2017 = vpack.c.b16 %v1711, %v1710
  %v2018 = vpack.c.b16 %v1713, %v1712
  %v2019 = vpack.c.b16 %v1715, %v1714
  %v2020 = vpack.c.b16 %v1717, %v1716
  %v2021 = vpack.c.b16 %v1719, %v1718
  %v2022 = vpack.c.b16 %v1721, %v1720
  %v2023 = vpack.c.b16 %v1723, %v1722
  %v2024 = vpack.c.b16 %v1725, %v1724
  %v2025 = vpack.c.b16 %v1727, %v1726
  %v2026 = vpack.c.b16 %v1729, %v1728
  %v2027 = vpack.c.b16 %v1731, %v1730
  %v2028 = vpack.c.b16 %v1733, %v1732
  %v2029 = vpack.c.b16 %v1735, %v1734
  %v2030 = vpack.c.b16 %v1737, %v1736
  %v2031 = vpack.c.b16 %v1739, %v1738
  %v2032 = vpack.c.b16 %v1741, %v1740
  %v2033 = vpack.c.b16 %v1743, %v1742
  %v2034 = vpack.c.b16 %v1745, %v1744
  %v2035 = vpack.c.b16 %v1747, %v1746
  %v2041 = vunpack.c.l.b16 %v591
  %v2042 = vunpack.c.l.b16 %v592
  %v2043 = vunpack.c.l.b16 %v593
  %v2044 = vunpack.c.l.b16 %v594
  %v2045 = vunpack.c.l.b16 %v595
  %v2046 = vpack.c.b16 %v2042, %v2041
  %v2047 = vpack.c.b16 %v2044, %v2043
  %v2048 = vpack.c.b16 %v2045, %v2045
  %vm2051 = vcmask 293888
  %v2053 = vsel %vm2051, %v1748, 0
  %v2056 = vsel %vm2051, %v1749, 0
  %v2059 = vsel %vm2051, %v1750, 0
  %v2062 = vsel %vm2051, %v1751, 0
  %v2065 = vsel %vm2051, %v1752, 0
  %v2068 = vsel %vm2051, %v1753, 0
  %v2071 = vsel %vm2051, %v1754, 0
  %v2074 = vsel %vm2051, %v1755, 0
  %v2077 = vsel %vm2051, %v1756, 0
  %v2080 = vsel %vm2051, %v1757, 0
  %v2083 = vsel %vm2051, %v1758, 0
  %v2086 = vsel %vm2051, %v1759, 0
  %v2089 = vsel %vm2051, %v1760, 0
  %v2092 = vsel %vm2051, %v1761, 0
  %v2095 = vsel %vm2051, %v1762, 0
  %v2098 = vsel %vm2051, %v1763, 0
  %v2101 = vsel %vm2051, %v1764, 0
  %v2104 = vsel %vm2051, %v1765, 0
  %v2107 = vsel %vm2051, %v1766, 0
  %v2110 = vsel %vm2051, %v1767, 0
  %v2113 = vsel %vm2051, %v1768, 0
  %v2116 = vsel %vm2051, %v1769, 0
  %v2119 = vsel %vm2051, %v1770, 0
  %v2122 = vsel %vm2051, %v1771, 0
  %v2125 = vsel %vm2051, %v1772, 0
  %v2128 = vsel %vm2051, %v1773, 0
  %v2131 = vsel %vm2051, %v1774, 0
  %v2134 = vsel %vm2051, %v1775, 0
  %v2137 = vsel %vm2051, %v1776, 0
  %v2140 = vsel %vm2051, %v1777, 0
  %v2143 = vsel %vm2051, %v1778, 0
  %v2146 = vsel %vm2051, %v1779, 0
  %v2149 = vsel %vm2051, %v1780, 0
  %v2152 = vsel %vm2051, %v1781, 0
  %v2155 = vsel %vm2051, %v1782, 0
  %v2158 = vsel %vm2051, %v1783, 0
  %v2161 = vsel %vm2051, %v1784, 0
  %v2164 = vsel %vm2051, %v1785, 0
  %v2167 = vsel %vm2051, %v1786, 0
  %v2170 = vsel %vm2051, %v1787, 0
  %v2173 = vsel %vm2051, %v1788, 0
  %v2176 = vsel %vm2051, %v1789, 0
  %v2179 = vsel %vm2051, %v1790, 0
  %v2182 = vsel %vm2051, %v1791, 0
  %v2185 = vsel %vm2051, %v1792, 0
  %v2188 = vsel %vm2051, %v1793, 0
  %v2191 = vsel %vm2051, %v1794, 0
  %v2194 = vsel %vm2051, %v1795, 0
  %v2197 = vsel %vm2051, %v1796, 0
  %v2200 = vsel %vm2051, %v1797, 0
  %v2203 = vsel %vm2051, %v1798, 0
  %v2206 = vsel %vm2051, %v1799, 0
  %v2209 = vsel %vm2051, %v1800, 0
  %v2212 = vsel %vm2051, %v1801, 0
  %v2215 = vsel %vm2051, %v1802, 0
  %v2218 = vsel %vm2051, %v1803, 0
  %v2221 = vsel %vm2051, %v1804, 0
  %v2224 = vsel %vm2051, %v1805, 0
  %v2227 = vsel %vm2051, %v1806, 0
  %v2230 = vsel %vm2051, %v1807, 0
  %v2233 = vsel %vm2051, %v1808, 0
  %v2236 = vsel %vm2051, %v1809, 0
  %v2239 = vsel %vm2051, %v1810, 0
  %v2242 = vsel %vm2051, %v1811, 0
  %v2245 = vsel %vm2051, %v1812, 0
  %v2248 = vsel %vm2051, %v1813, 0
  %v2251 = vsel %vm2051, %v1814, 0
  %v2254 = vsel %vm2051, %v1815, 0
  %v2257 = vsel %vm2051, %v1816, 0
  %v2260 = vsel %vm2051, %v1817, 0
  %v2263 = vsel %vm2051, %v1818, 0
  %v2266 = vsel %vm2051, %v1819, 0
  %v2269 = vsel %vm2051, %v1820, 0
  %v2272 = vsel %vm2051, %v1821, 0
  %v2275 = vsel %vm2051, %v1822, 0
  %v2278 = vsel %vm2051, %v1823, 0
  %v2281 = vsel %vm2051, %v1824, 0
  %v2284 = vsel %vm2051, %v1825, 0
  %v2287 = vsel %vm2051, %v1826, 0
  %v2290 = vsel %vm2051, %v1827, 0
  %v2293 = vsel %vm2051, %v1828, 0
  %v2296 = vsel %vm2051, %v1829, 0
  %v2299 = vsel %vm2051, %v1830, 0
  %v2302 = vsel %vm2051, %v1831, 0
  %v2305 = vsel %vm2051, %v1832, 0
  %v2308 = vsel %vm2051, %v1833, 0
  %v2311 = vsel %vm2051, %v1834, 0
  %v2314 = vsel %vm2051, %v1835, 0
  %v2317 = vsel %vm2051, %v1836, 0
  %v2320 = vsel %vm2051, %v1837, 0
  %v2323 = vsel %vm2051, %v1838, 0
  %v2326 = vsel %vm2051, %v1839, 0
  %v2329 = vsel %vm2051, %v1840, 0
  %v2332 = vsel %vm2051, %v1841, 0
  %v2335 = vsel %vm2051, %v1842, 0
  %v2338 = vsel %vm2051, %v1843, 0
  %v2341 = vsel %vm2051, %v1844, 0
  %v2344 = vsel %vm2051, %v1845, 0
  %v2347 = vsel %vm2051, %v1846, 0
  %v2350 = vsel %vm2051, %v1847, 0
  %v2353 = vsel %vm2051, %v1848, 0
  %v2356 = vsel %vm2051, %v1849, 0
  %v2359 = vsel %vm2051, %v1850, 0
  %v2362 = vsel %vm2051, %v1851, 0
  %v2365 = vsel %vm2051, %v1852, 0
  %v2368 = vsel %vm2051, %v1853, 0
  %v2371 = vsel %vm2051, %v1854, 0
  %v2374 = vsel %vm2051, %v1855, 0
  %v2377 = vsel %vm2051, %v1856, 0
  %v2380 = vsel %vm2051, %v1857, 0
  %v2383 = vsel %vm2051, %v1858, 0
  %v2386 = vsel %vm2051, %v1859, 0
  %v2389 = vsel %vm2051, %v1860, 0
  %v2392 = vsel %vm2051, %v1861, 0
  %v2395 = vsel %vm2051, %v1862, 0
  %v2398 = vsel %vm2051, %v1863, 0
  %v2401 = vsel %vm2051, %v1864, 0
  %v2404 = vsel %vm2051, %v1865, 0
  %v2407 = vsel %vm2051, %v1866, 0
  %v2410 = vsel %vm2051, %v1867, 0
  %v2413 = vsel %vm2051, %v1868, 0
  %v2416 = vsel %vm2051, %v1869, 0
  %v2419 = vsel %vm2051, %v1870, 0
  %v2422 = vsel %vm2051, %v1871, 0
  %v2425 = vsel %vm2051, %v1872, 0
  %v2428 = vsel %vm2051, %v1873, 0
  %v2431 = vsel %vm2051, %v1874, 0
  %v2434 = vsel %vm2051, %v1875, 0
  %v2437 = vsel %vm2051, %v1876, 0
  %v2440 = vsel %vm2051, %v1877, 0
  %v2443 = vsel %vm2051, %v1878, 0
  %v2446 = vsel %vm2051, %v1879, 0
  %v2449 = vsel %vm2051, %v1880, 0
  %v2452 = vsel %vm2051, %v1881, 0
  %v2455 = vsel %vm2051, %v1882, 0
  %v2458 = vsel %vm2051, %v1883, 0
  %v2461 = vsel %vm2051, %v1884, 0
  %v2464 = vsel %vm2051, %v1885, 0
  %v2467 = vsel %vm2051, %v1886, 0
  %v2470 = vsel %vm2051, %v1887, 0
  %v2473 = vsel %vm2051, %v1888, 0
  %v2476 = vsel %vm2051, %v1889, 0
  %v2479 = vsel %vm2051, %v1890, 0
  %v2482 = vsel %vm2051, %v1891, 0
  %v2485 = vsel %vm2051, %v1892, 0
  %v2488 = vsel %vm2051, %v1893, 0
  %v2491 = vsel %vm2051, %v1894, 0
  %v2494 = vsel %vm2051, %v1895, 0
  %v2497 = vsel %vm2051, %v1896, 0
  %v2500 = vsel %vm2051, %v1897, 0
  %v2503 = vsel %vm2051, %v1898, 0
  %v2506 = vsel %vm2051, %v1899, 0
  %v2509 = vsel %vm2051, %v1900, 0
  %v2512 = vsel %vm2051, %v1901, 0
  %v2515 = vsel %vm2051, %v1902, 0
  %v2518 = vsel %vm2051, %v1903, 0
  %v2521 = vsel %vm2051, %v1904, 0
  %v2524 = vsel %vm2051, %v1905, 0
  %v2527 = vsel %vm2051, %v1906, 0
  %v2530 = vsel %vm2051, %v1907, 0
  %v2533 = vsel %vm2051, %v1908, 0
  %v2536 = vsel %vm2051, %v1909, 0
  %v2539 = vsel %vm2051, %v1910, 0
  %v2542 = vsel %vm2051, %v1911, 0
  %v2545 = vsel %vm2051, %v1912, 0
  %v2548 = vsel %vm2051, %v1913, 0
  %v2551 = vsel %vm2051, %v1914, 0
  %v2554 = vsel %vm2051, %v1915, 0
  %v2557 = vsel %vm2051, %v1916, 0
  %v2560 = vsel %vm2051, %v1917, 0
  %v2563 = vsel %vm2051, %v1918, 0
  %v2566 = vsel %vm2051, %v1919, 0
  %v2569 = vsel %vm2051, %v1920, 0
  %v2572 = vsel %vm2051, %v1921, 0
  %v2575 = vsel %vm2051, %v1922, 0
  %v2578 = vsel %vm2051, %v1923, 0
  %v2581 = vsel %vm2051, %v1924, 0
  %v2584 = vsel %vm2051, %v1925, 0
  %v2587 = vsel %vm2051, %v1926, 0
  %v2590 = vsel %vm2051, %v1927, 0
  %v2593 = vsel %vm2051, %v1928, 0
  %v2596 = vsel %vm2051, %v1929, 0
  %v2599 = vsel %vm2051, %v1930, 0
  %v2602 = vsel %vm2051, %v1931, 0
  %v2605 = vsel %vm2051, %v1932, 0
  %v2608 = vsel %vm2051, %v1933, 0
  %v2611 = vsel %vm2051, %v1934, 0
  %v2614 = vsel %vm2051, %v1935, 0
  %v2617 = vsel %vm2051, %v1936, 0
  %v2620 = vsel %vm2051, %v1937, 0
  %v2623 = vsel %vm2051, %v1938, 0
  %v2626 = vsel %vm2051, %v1939, 0
  %v2629 = vsel %vm2051, %v1940, 0
  %v2632 = vsel %vm2051, %v1941, 0
  %v2635 = vsel %vm2051, %v1942, 0
  %v2638 = vsel %vm2051, %v1943, 0
  %v2641 = vsel %vm2051, %v1944, 0
  %v2644 = vsel %vm2051, %v1945, 0
  %v2647 = vsel %vm2051, %v1946, 0
  %v2650 = vsel %vm2051, %v1947, 0
  %v2653 = vsel %vm2051, %v1948, 0
  %v2656 = vsel %vm2051, %v1949, 0
  %v2659 = vsel %vm2051, %v1950, 0
  %v2662 = vsel %vm2051, %v1951, 0
  %v2665 = vsel %vm2051, %v1952, 0
  %v2668 = vsel %vm2051, %v1953, 0
  %v2671 = vsel %vm2051, %v1954, 0
  %v2674 = vsel %vm2051, %v1955, 0
  %v2677 = vsel %vm2051, %v1956, 0
  %v2680 = vsel %vm2051, %v1957, 0
  %v2683 = vsel %vm2051, %v1958, 0
  %v2686 = vsel %vm2051, %v1959, 0
  %v2689 = vsel %vm2051, %v1960, 0
  %v2692 = vsel %vm2051, %v1961, 0
  %v2695 = vsel %vm2051, %v1962, 0
  %v2698 = vsel %vm2051, %v1963, 0
  %v2701 = vsel %vm2051, %v1964, 0
  %v2704 = vsel %vm2051, %v1965, 0
  %v2707 = vsel %vm2051, %v1966, 0
  %v2710 = vsel %vm2051, %v1967, 0
  %v2713 = vsel %vm2051, %v1968, 0
  %v2716 = vsel %vm2051, %v1969, 0
  %v2719 = vsel %vm2051, %v1970, 0
  %v2722 = vsel %vm2051, %v1971, 0
  %v2725 = vsel %vm2051, %v1972, 0
  %v2728 = vsel %vm2051, %v1973, 0
  %v2731 = vsel %vm2051, %v1974, 0
  %v2734 = vsel %vm2051, %v1975, 0
  %v2737 = vsel %vm2051, %v1976, 0
  %v2740 = vsel %vm2051, %v1977, 0
  %v2743 = vsel %vm2051, %v1978, 0
  %v2746 = vsel %vm2051, %v1979, 0
  %v2749 = vsel %vm2051, %v1980, 0
  %v2752 = vsel %vm2051, %v1981, 0
  %v2755 = vsel %vm2051, %v1982, 0
  %v2758 = vsel %vm2051, %v1983, 0
  %v2761 = vsel %vm2051, %v1984, 0
  %v2764 = vsel %vm2051, %v1985, 0
  %v2767 = vsel %vm2051, %v1986, 0
  %v2770 = vsel %vm2051, %v1987, 0
  %v2773 = vsel %vm2051, %v1988, 0
  %v2776 = vsel %vm2051, %v1989, 0
  %v2779 = vsel %vm2051, %v1990, 0
  %v2782 = vsel %vm2051, %v1991, 0
  %v2785 = vsel %vm2051, %v1992, 0
  %v2788 = vsel %vm2051, %v1993, 0
  %v2791 = vsel %vm2051, %v1994, 0
  %v2794 = vsel %vm2051, %v1995, 0
  %v2797 = vsel %vm2051, %v1996, 0
  %v2800 = vsel %vm2051, %v1997, 0
  %v2803 = vsel %vm2051, %v1998, 0
  %v2806 = vsel %vm2051, %v1999, 0
  %v2809 = vsel %vm2051, %v2000, 0
  %v2812 = vsel %vm2051, %v2001, 0
  %v2815 = vsel %vm2051, %v2002, 0
  %v2818 = vsel %vm2051, %v2003, 0
  %v2821 = vsel %vm2051, %v2004, 0
  %v2824 = vsel %vm2051, %v2005, 0
  %v2827 = vsel %vm2051, %v2006, 0
  %v2830 = vsel %vm2051, %v2007, 0
  %v2833 = vsel %vm2051, %v2008, 0
  %v2836 = vsel %vm2051, %v2009, 0
  %v2839 = vsel %vm2051, %v2010, 0
  %v2842 = vsel %vm2051, %v2011, 0
  %v2845 = vsel %vm2051, %v2012, 0
  %v2848 = vsel %vm2051, %v2013, 0
  %v2851 = vsel %vm2051, %v2014, 0
  %v2854 = vsel %vm2051, %v2015, 0
  %v2857 = vsel %vm2051, %v2016, 0
  %v2860 = vsel %vm2051, %v2017, 0
  %v2863 = vsel %vm2051, %v2018, 0
  %v2866 = vsel %vm2051, %v2019, 0
  %v2869 = vsel %vm2051, %v2020, 0
  %v2872 = vsel %vm2051, %v2021, 0
  %v2875 = vsel %vm2051, %v2022, 0
  %v2878 = vsel %vm2051, %v2023, 0
  %v2881 = vsel %vm2051, %v2024, 0
  %v2884 = vsel %vm2051, %v2025, 0
  %v2887 = vsel %vm2051, %v2026, 0
  %v2890 = vsel %vm2051, %v2027, 0
  %v2893 = vsel %vm2051, %v2028, 0
  %v2896 = vsel %vm2051, %v2029, 0
  %v2899 = vsel %vm2051, %v2030, 0
  %v2902 = vsel %vm2051, %v2031, 0
  %v2905 = vsel %vm2051, %v2032, 0
  %v2908 = vsel %vm2051, %v2033, 0
  %v2911 = vsel %vm2051, %v2034, 0
  %v2914 = vsel %vm2051, %v2035, 0
  %vm2916 = vcmask 1041408
  %v2918 = vsel %vm2916, %v2048, 0
  %2920 = vmatpush.bf16.msra.mxu0 0
  %2921 = vmatpush.bf16.msra.mxu0 0
  %2922 = vmatpush.bf16.msra.mxu0 0
  %2923 = vmatpush.bf16.msra.mxu0 0
  %2924 = vmatpush.bf16.msra.mxu0 0
  %2925 = vmatpush.bf16.msra.mxu0 %v2918
  %2926 = vmatpush.bf16.msra.mxu0 %v2047
  %2927 = vmatpush.bf16.msra.mxu0 %v2046
  %2928 = vmatmul.bf16.gmra.mxu0 %v2053
  %v2929 = vpop.f32.mrf.mxu0
  %v2930 = vadd.f32 0.0, %v2929
  %v2931 = vpop.f32.mrf.mxu0
  %v2932 = vadd.f32 0.0, %v2931
  %2933 = vmatmul.bf16.gmra.mxu0 %v2056
  %v2934 = vpop.f32.mrf.mxu0
  %v2935 = vadd.f32 0.0, %v2934
  %v2936 = vpop.f32.mrf.mxu0
  %v2937 = vadd.f32 0.0, %v2936
  %2938 = vmatmul.bf16.gmra.mxu0 %v2059
  %v2939 = vpop.f32.mrf.mxu0
  %v2940 = vadd.f32 0.0, %v2939
  %v2941 = vpop.f32.mrf.mxu0
  %v2942 = vadd.f32 0.0, %v2941
  %2943 = vmatmul.bf16.gmra.mxu0 %v2062
  %v2944 = vpop.f32.mrf.mxu0
  %v2945 = vadd.f32 0.0, %v2944
  %v2946 = vpop.f32.mrf.mxu0
  %v2947 = vadd.f32 0.0, %v2946
  %2948 = vmatmul.bf16.gmra.mxu0 %v2065
  %v2949 = vpop.f32.mrf.mxu0
  %v2950 = vadd.f32 0.0, %v2949
  %v2951 = vpop.f32.mrf.mxu0
  %v2952 = vadd.f32 0.0, %v2951
  %2953 = vmatmul.bf16.gmra.mxu0 %v2068
  %v2954 = vpop.f32.mrf.mxu0
  %v2955 = vadd.f32 0.0, %v2954
  %v2956 = vpop.f32.mrf.mxu0
  %v2957 = vadd.f32 0.0, %v2956
  %2958 = vmatmul.bf16.gmra.mxu0 %v2071
  %v2959 = vpop.f32.mrf.mxu0
  %v2960 = vadd.f32 0.0, %v2959
  %v2961 = vpop.f32.mrf.mxu0
  %v2962 = vadd.f32 0.0, %v2961
  %2963 = vmatmul.bf16.gmra.mxu0 %v2074
  %v2964 = vpop.f32.mrf.mxu0
  %v2965 = vadd.f32 0.0, %v2964
  %v2966 = vpop.f32.mrf.mxu0
  %v2967 = vadd.f32 0.0, %v2966
  %2968 = vmatmul.bf16.gmra.mxu0 %v2077
  %v2969 = vpop.f32.mrf.mxu0
  %v2970 = vadd.f32 0.0, %v2969
  %v2971 = vpop.f32.mrf.mxu0
  %v2972 = vadd.f32 0.0, %v2971
  %2973 = vmatmul.bf16.gmra.mxu0 %v2080
  %v2974 = vpop.f32.mrf.mxu0
  %v2975 = vadd.f32 0.0, %v2974
  %v2976 = vpop.f32.mrf.mxu0
  %v2977 = vadd.f32 0.0, %v2976
  %2978 = vmatmul.bf16.gmra.mxu0 %v2083
  %v2979 = vpop.f32.mrf.mxu0
  %v2980 = vadd.f32 0.0, %v2979
  %v2981 = vpop.f32.mrf.mxu0
  %v2982 = vadd.f32 0.0, %v2981
  %2983 = vmatmul.bf16.gmra.mxu0 %v2086
  %v2984 = vpop.f32.mrf.mxu0
  %v2985 = vadd.f32 0.0, %v2984
  %v2986 = vpop.f32.mrf.mxu0
  %v2987 = vadd.f32 0.0, %v2986
  %2988 = vmatmul.bf16.gmra.mxu0 %v2089
  %v2989 = vpop.f32.mrf.mxu0
  %v2990 = vadd.f32 0.0, %v2989
  %v2991 = vpop.f32.mrf.mxu0
  %v2992 = vadd.f32 0.0, %v2991
  %2993 = vmatmul.bf16.gmra.mxu0 %v2092
  %v2994 = vpop.f32.mrf.mxu0
  %v2995 = vadd.f32 0.0, %v2994
  %v2996 = vpop.f32.mrf.mxu0
  %v2997 = vadd.f32 0.0, %v2996
  %2998 = vmatmul.bf16.gmra.mxu0 %v2095
  %v2999 = vpop.f32.mrf.mxu0
  %v3000 = vadd.f32 0.0, %v2999
  %v3001 = vpop.f32.mrf.mxu0
  %v3002 = vadd.f32 0.0, %v3001
  %3003 = vmatmul.bf16.gmra.mxu0 %v2098
  %v3004 = vpop.f32.mrf.mxu0
  %v3005 = vadd.f32 0.0, %v3004
  %v3006 = vpop.f32.mrf.mxu0
  %v3007 = vadd.f32 0.0, %v3006
  %3008 = vmatmul.bf16.gmra.mxu0 %v2101
  %v3009 = vpop.f32.mrf.mxu0
  %v3010 = vadd.f32 0.0, %v3009
  %v3011 = vpop.f32.mrf.mxu0
  %v3012 = vadd.f32 0.0, %v3011
  %3013 = vmatmul.bf16.gmra.mxu0 %v2104
  %v3014 = vpop.f32.mrf.mxu0
  %v3015 = vadd.f32 0.0, %v3014
  %v3016 = vpop.f32.mrf.mxu0
  %v3017 = vadd.f32 0.0, %v3016
  %3018 = vmatmul.bf16.gmra.mxu0 %v2107
  %v3019 = vpop.f32.mrf.mxu0
  %v3020 = vadd.f32 0.0, %v3019
  %v3021 = vpop.f32.mrf.mxu0
  %v3022 = vadd.f32 0.0, %v3021
  %3023 = vmatmul.bf16.gmra.mxu0 %v2110
  %v3024 = vpop.f32.mrf.mxu0
  %v3025 = vadd.f32 0.0, %v3024
  %v3026 = vpop.f32.mrf.mxu0
  %v3027 = vadd.f32 0.0, %v3026
  %3028 = vmatmul.bf16.gmra.mxu0 %v2113
  %v3029 = vpop.f32.mrf.mxu0
  %v3030 = vadd.f32 0.0, %v3029
  %v3031 = vpop.f32.mrf.mxu0
  %v3032 = vadd.f32 0.0, %v3031
  %3033 = vmatmul.bf16.gmra.mxu0 %v2116
  %v3034 = vpop.f32.mrf.mxu0
  %v3035 = vadd.f32 0.0, %v3034
  %v3036 = vpop.f32.mrf.mxu0
  %v3037 = vadd.f32 0.0, %v3036
  %3038 = vmatmul.bf16.gmra.mxu0 %v2119
  %v3039 = vpop.f32.mrf.mxu0
  %v3040 = vadd.f32 0.0, %v3039
  %v3041 = vpop.f32.mrf.mxu0
  %v3042 = vadd.f32 0.0, %v3041
  %3043 = vmatmul.bf16.gmra.mxu0 %v2122
  %v3044 = vpop.f32.mrf.mxu0
  %v3045 = vadd.f32 0.0, %v3044
  %v3046 = vpop.f32.mrf.mxu0
  %v3047 = vadd.f32 0.0, %v3046
  %3048 = vmatmul.bf16.gmra.mxu0 %v2125
  %v3049 = vpop.f32.mrf.mxu0
  %v3050 = vadd.f32 0.0, %v3049
  %v3051 = vpop.f32.mrf.mxu0
  %v3052 = vadd.f32 0.0, %v3051
  %3053 = vmatmul.bf16.gmra.mxu0 %v2128
  %v3054 = vpop.f32.mrf.mxu0
  %v3055 = vadd.f32 0.0, %v3054
  %v3056 = vpop.f32.mrf.mxu0
  %v3057 = vadd.f32 0.0, %v3056
  %3058 = vmatmul.bf16.gmra.mxu0 %v2131
  %v3059 = vpop.f32.mrf.mxu0
  %v3060 = vadd.f32 0.0, %v3059
  %v3061 = vpop.f32.mrf.mxu0
  %v3062 = vadd.f32 0.0, %v3061
  %3063 = vmatmul.bf16.gmra.mxu0 %v2134
  %v3064 = vpop.f32.mrf.mxu0
  %v3065 = vadd.f32 0.0, %v3064
  %v3066 = vpop.f32.mrf.mxu0
  %v3067 = vadd.f32 0.0, %v3066
  %3068 = vmatmul.bf16.gmra.mxu0 %v2137
  %v3069 = vpop.f32.mrf.mxu0
  %v3070 = vadd.f32 0.0, %v3069
  %v3071 = vpop.f32.mrf.mxu0
  %v3072 = vadd.f32 0.0, %v3071
  %3073 = vmatmul.bf16.gmra.mxu0 %v2140
  %v3074 = vpop.f32.mrf.mxu0
  %v3075 = vadd.f32 0.0, %v3074
  %v3076 = vpop.f32.mrf.mxu0
  %v3077 = vadd.f32 0.0, %v3076
  %3078 = vmatmul.bf16.gmra.mxu0 %v2143
  %v3079 = vpop.f32.mrf.mxu0
  %v3080 = vadd.f32 0.0, %v3079
  %v3081 = vpop.f32.mrf.mxu0
  %v3082 = vadd.f32 0.0, %v3081
  %3083 = vmatmul.bf16.gmra.mxu0 %v2146
  %v3084 = vpop.f32.mrf.mxu0
  %v3085 = vadd.f32 0.0, %v3084
  %v3086 = vpop.f32.mrf.mxu0
  %v3087 = vadd.f32 0.0, %v3086
  %3088 = vmatmul.bf16.gmra.mxu0 %v2149
  %v3089 = vpop.f32.mrf.mxu0
  %v3090 = vadd.f32 0.0, %v3089
  %v3091 = vpop.f32.mrf.mxu0
  %v3092 = vadd.f32 0.0, %v3091
  %3093 = vmatmul.bf16.gmra.mxu0 %v2152
  %v3094 = vpop.f32.mrf.mxu0
  %v3095 = vadd.f32 0.0, %v3094
  %v3096 = vpop.f32.mrf.mxu0
  %v3097 = vadd.f32 0.0, %v3096
  %3098 = vmatmul.bf16.gmra.mxu0 %v2155
  %v3099 = vpop.f32.mrf.mxu0
  %v3100 = vadd.f32 0.0, %v3099
  %v3101 = vpop.f32.mrf.mxu0
  %v3102 = vadd.f32 0.0, %v3101
  %3103 = vmatmul.bf16.gmra.mxu0 %v2158
  %v3104 = vpop.f32.mrf.mxu0
  %v3105 = vadd.f32 0.0, %v3104
  %v3106 = vpop.f32.mrf.mxu0
  %v3107 = vadd.f32 0.0, %v3106
  %3108 = vmatmul.bf16.gmra.mxu0 %v2161
  %v3109 = vpop.f32.mrf.mxu0
  %v3110 = vadd.f32 0.0, %v3109
  %v3111 = vpop.f32.mrf.mxu0
  %v3112 = vadd.f32 0.0, %v3111
  %3113 = vmatmul.bf16.gmra.mxu0 %v2164
  %v3114 = vpop.f32.mrf.mxu0
  %v3115 = vadd.f32 0.0, %v3114
  %v3116 = vpop.f32.mrf.mxu0
  %v3117 = vadd.f32 0.0, %v3116
  %3118 = vmatmul.bf16.gmra.mxu0 %v2167
  %v3119 = vpop.f32.mrf.mxu0
  %v3120 = vadd.f32 0.0, %v3119
  %v3121 = vpop.f32.mrf.mxu0
  %v3122 = vadd.f32 0.0, %v3121
  %3123 = vmatmul.bf16.gmra.mxu0 %v2170
  %v3124 = vpop.f32.mrf.mxu0
  %v3125 = vadd.f32 0.0, %v3124
  %v3126 = vpop.f32.mrf.mxu0
  %v3127 = vadd.f32 0.0, %v3126
  %3128 = vmatmul.bf16.gmra.mxu0 %v2173
  %v3129 = vpop.f32.mrf.mxu0
  %v3130 = vadd.f32 0.0, %v3129
  %v3131 = vpop.f32.mrf.mxu0
  %v3132 = vadd.f32 0.0, %v3131
  %3133 = vmatmul.bf16.gmra.mxu0 %v2176
  %v3134 = vpop.f32.mrf.mxu0
  %v3135 = vadd.f32 0.0, %v3134
  %v3136 = vpop.f32.mrf.mxu0
  %v3137 = vadd.f32 0.0, %v3136
  %3138 = vmatmul.bf16.gmra.mxu0 %v2179
  %v3139 = vpop.f32.mrf.mxu0
  %v3140 = vadd.f32 0.0, %v3139
  %v3141 = vpop.f32.mrf.mxu0
  %v3142 = vadd.f32 0.0, %v3141
  %3143 = vmatmul.bf16.gmra.mxu0 %v2182
  %v3144 = vpop.f32.mrf.mxu0
  %v3145 = vadd.f32 0.0, %v3144
  %v3146 = vpop.f32.mrf.mxu0
  %v3147 = vadd.f32 0.0, %v3146
  %3148 = vmatmul.bf16.gmra.mxu0 %v2185
  %v3149 = vpop.f32.mrf.mxu0
  %v3150 = vadd.f32 0.0, %v3149
  %v3151 = vpop.f32.mrf.mxu0
  %v3152 = vadd.f32 0.0, %v3151
  %3153 = vmatmul.bf16.gmra.mxu0 %v2188
  %v3154 = vpop.f32.mrf.mxu0
  %v3155 = vadd.f32 0.0, %v3154
  %v3156 = vpop.f32.mrf.mxu0
  %v3157 = vadd.f32 0.0, %v3156
  %3158 = vmatmul.bf16.gmra.mxu0 %v2191
  %v3159 = vpop.f32.mrf.mxu0
  %v3160 = vadd.f32 0.0, %v3159
  %v3161 = vpop.f32.mrf.mxu0
  %v3162 = vadd.f32 0.0, %v3161
  %3163 = vmatmul.bf16.gmra.mxu0 %v2194
  %v3164 = vpop.f32.mrf.mxu0
  %v3165 = vadd.f32 0.0, %v3164
  %v3166 = vpop.f32.mrf.mxu0
  %v3167 = vadd.f32 0.0, %v3166
  %3168 = vmatmul.bf16.gmra.mxu0 %v2197
  %v3169 = vpop.f32.mrf.mxu0
  %v3170 = vadd.f32 0.0, %v3169
  %v3171 = vpop.f32.mrf.mxu0
  %v3172 = vadd.f32 0.0, %v3171
  %3173 = vmatmul.bf16.gmra.mxu0 %v2200
  %v3174 = vpop.f32.mrf.mxu0
  %v3175 = vadd.f32 0.0, %v3174
  %v3176 = vpop.f32.mrf.mxu0
  %v3177 = vadd.f32 0.0, %v3176
  %3178 = vmatmul.bf16.gmra.mxu0 %v2203
  %v3179 = vpop.f32.mrf.mxu0
  %v3180 = vadd.f32 0.0, %v3179
  %v3181 = vpop.f32.mrf.mxu0
  %v3182 = vadd.f32 0.0, %v3181
  %3183 = vmatmul.bf16.gmra.mxu0 %v2206
  %v3184 = vpop.f32.mrf.mxu0
  %v3185 = vadd.f32 0.0, %v3184
  %v3186 = vpop.f32.mrf.mxu0
  %v3187 = vadd.f32 0.0, %v3186
  %3188 = vmatmul.bf16.gmra.mxu0 %v2209
  %v3189 = vpop.f32.mrf.mxu0
  %v3190 = vadd.f32 0.0, %v3189
  %v3191 = vpop.f32.mrf.mxu0
  %v3192 = vadd.f32 0.0, %v3191
  %3193 = vmatmul.bf16.gmra.mxu0 %v2212
  %v3194 = vpop.f32.mrf.mxu0
  %v3195 = vadd.f32 0.0, %v3194
  %v3196 = vpop.f32.mrf.mxu0
  %v3197 = vadd.f32 0.0, %v3196
  %3198 = vmatmul.bf16.gmra.mxu0 %v2215
  %v3199 = vpop.f32.mrf.mxu0
  %v3200 = vadd.f32 0.0, %v3199
  %v3201 = vpop.f32.mrf.mxu0
  %v3202 = vadd.f32 0.0, %v3201
  %3203 = vmatmul.bf16.gmra.mxu0 %v2218
  %v3204 = vpop.f32.mrf.mxu0
  %v3205 = vadd.f32 0.0, %v3204
  %v3206 = vpop.f32.mrf.mxu0
  %v3207 = vadd.f32 0.0, %v3206
  %3208 = vmatmul.bf16.gmra.mxu0 %v2221
  %v3209 = vpop.f32.mrf.mxu0
  %v3210 = vadd.f32 0.0, %v3209
  %v3211 = vpop.f32.mrf.mxu0
  %v3212 = vadd.f32 0.0, %v3211
  %3213 = vmatmul.bf16.gmra.mxu0 %v2224
  %v3214 = vpop.f32.mrf.mxu0
  %v3215 = vadd.f32 0.0, %v3214
  %v3216 = vpop.f32.mrf.mxu0
  %v3217 = vadd.f32 0.0, %v3216
  %3218 = vmatmul.bf16.gmra.mxu0 %v2227
  %v3219 = vpop.f32.mrf.mxu0
  %v3220 = vadd.f32 0.0, %v3219
  %v3221 = vpop.f32.mrf.mxu0
  %v3222 = vadd.f32 0.0, %v3221
  %3223 = vmatmul.bf16.gmra.mxu0 %v2230
  %v3224 = vpop.f32.mrf.mxu0
  %v3225 = vadd.f32 0.0, %v3224
  %v3226 = vpop.f32.mrf.mxu0
  %v3227 = vadd.f32 0.0, %v3226
  %3228 = vmatmul.bf16.gmra.mxu0 %v2233
  %v3229 = vpop.f32.mrf.mxu0
  %v3230 = vadd.f32 0.0, %v3229
  %v3231 = vpop.f32.mrf.mxu0
  %v3232 = vadd.f32 0.0, %v3231
  %3233 = vmatmul.bf16.gmra.mxu0 %v2236
  %v3234 = vpop.f32.mrf.mxu0
  %v3235 = vadd.f32 0.0, %v3234
  %v3236 = vpop.f32.mrf.mxu0
  %v3237 = vadd.f32 0.0, %v3236
  %3238 = vmatmul.bf16.gmra.mxu0 %v2239
  %v3239 = vpop.f32.mrf.mxu0
  %v3240 = vadd.f32 0.0, %v3239
  %v3241 = vpop.f32.mrf.mxu0
  %v3242 = vadd.f32 0.0, %v3241
  %3243 = vmatmul.bf16.gmra.mxu0 %v2242
  %v3244 = vpop.f32.mrf.mxu0
  %v3245 = vadd.f32 0.0, %v3244
  %v3246 = vpop.f32.mrf.mxu0
  %v3247 = vadd.f32 0.0, %v3246
  %3248 = vmatmul.bf16.gmra.mxu0 %v2245
  %v3249 = vpop.f32.mrf.mxu0
  %v3250 = vadd.f32 0.0, %v3249
  %v3251 = vpop.f32.mrf.mxu0
  %v3252 = vadd.f32 0.0, %v3251
  %3253 = vmatmul.bf16.gmra.mxu0 %v2248
  %v3254 = vpop.f32.mrf.mxu0
  %v3255 = vadd.f32 0.0, %v3254
  %v3256 = vpop.f32.mrf.mxu0
  %v3257 = vadd.f32 0.0, %v3256
  %3258 = vmatmul.bf16.gmra.mxu0 %v2251
  %v3259 = vpop.f32.mrf.mxu0
  %v3260 = vadd.f32 0.0, %v3259
  %v3261 = vpop.f32.mrf.mxu0
  %v3262 = vadd.f32 0.0, %v3261
  %3263 = vmatmul.bf16.gmra.mxu0 %v2254
  %v3264 = vpop.f32.mrf.mxu0
  %v3265 = vadd.f32 0.0, %v3264
  %v3266 = vpop.f32.mrf.mxu0
  %v3267 = vadd.f32 0.0, %v3266
  %3268 = vmatmul.bf16.gmra.mxu0 %v2257
  %v3269 = vpop.f32.mrf.mxu0
  %v3270 = vadd.f32 0.0, %v3269
  %v3271 = vpop.f32.mrf.mxu0
  %v3272 = vadd.f32 0.0, %v3271
  %3273 = vmatmul.bf16.gmra.mxu0 %v2260
  %v3274 = vpop.f32.mrf.mxu0
  %v3275 = vadd.f32 0.0, %v3274
  %v3276 = vpop.f32.mrf.mxu0
  %v3277 = vadd.f32 0.0, %v3276
  %3278 = vmatmul.bf16.gmra.mxu0 %v2263
  %v3279 = vpop.f32.mrf.mxu0
  %v3280 = vadd.f32 0.0, %v3279
  %v3281 = vpop.f32.mrf.mxu0
  %v3282 = vadd.f32 0.0, %v3281
  %3283 = vmatmul.bf16.gmra.mxu0 %v2266
  %v3284 = vpop.f32.mrf.mxu0
  %v3285 = vadd.f32 0.0, %v3284
  %v3286 = vpop.f32.mrf.mxu0
  %v3287 = vadd.f32 0.0, %v3286
  %3288 = vmatmul.bf16.gmra.mxu0 %v2269
  %v3289 = vpop.f32.mrf.mxu0
  %v3290 = vadd.f32 0.0, %v3289
  %v3291 = vpop.f32.mrf.mxu0
  %v3292 = vadd.f32 0.0, %v3291
  %3293 = vmatmul.bf16.gmra.mxu0 %v2272
  %v3294 = vpop.f32.mrf.mxu0
  %v3295 = vadd.f32 0.0, %v3294
  %v3296 = vpop.f32.mrf.mxu0
  %v3297 = vadd.f32 0.0, %v3296
  %3298 = vmatmul.bf16.gmra.mxu0 %v2275
  %v3299 = vpop.f32.mrf.mxu0
  %v3300 = vadd.f32 0.0, %v3299
  %v3301 = vpop.f32.mrf.mxu0
  %v3302 = vadd.f32 0.0, %v3301
  %3303 = vmatmul.bf16.gmra.mxu0 %v2278
  %v3304 = vpop.f32.mrf.mxu0
  %v3305 = vadd.f32 0.0, %v3304
  %v3306 = vpop.f32.mrf.mxu0
  %v3307 = vadd.f32 0.0, %v3306
  %3308 = vmatmul.bf16.gmra.mxu0 %v2281
  %v3309 = vpop.f32.mrf.mxu0
  %v3310 = vadd.f32 0.0, %v3309
  %v3311 = vpop.f32.mrf.mxu0
  %v3312 = vadd.f32 0.0, %v3311
  %3313 = vmatmul.bf16.gmra.mxu0 %v2284
  %v3314 = vpop.f32.mrf.mxu0
  %v3315 = vadd.f32 0.0, %v3314
  %v3316 = vpop.f32.mrf.mxu0
  %v3317 = vadd.f32 0.0, %v3316
  %3318 = vmatmul.bf16.gmra.mxu0 %v2287
  %v3319 = vpop.f32.mrf.mxu0
  %v3320 = vadd.f32 0.0, %v3319
  %v3321 = vpop.f32.mrf.mxu0
  %v3322 = vadd.f32 0.0, %v3321
  %3323 = vmatmul.bf16.gmra.mxu0 %v2290
  %v3324 = vpop.f32.mrf.mxu0
  %v3325 = vadd.f32 0.0, %v3324
  %v3326 = vpop.f32.mrf.mxu0
  %v3327 = vadd.f32 0.0, %v3326
  %3328 = vmatmul.bf16.gmra.mxu0 %v2293
  %v3329 = vpop.f32.mrf.mxu0
  %v3330 = vadd.f32 0.0, %v3329
  %v3331 = vpop.f32.mrf.mxu0
  %v3332 = vadd.f32 0.0, %v3331
  %3333 = vmatmul.bf16.gmra.mxu0 %v2296
  %v3334 = vpop.f32.mrf.mxu0
  %v3335 = vadd.f32 0.0, %v3334
  %v3336 = vpop.f32.mrf.mxu0
  %v3337 = vadd.f32 0.0, %v3336
  %3338 = vmatmul.bf16.gmra.mxu0 %v2299
  %v3339 = vpop.f32.mrf.mxu0
  %v3340 = vadd.f32 0.0, %v3339
  %v3341 = vpop.f32.mrf.mxu0
  %v3342 = vadd.f32 0.0, %v3341
  %3343 = vmatmul.bf16.gmra.mxu0 %v2302
  %v3344 = vpop.f32.mrf.mxu0
  %v3345 = vadd.f32 0.0, %v3344
  %v3346 = vpop.f32.mrf.mxu0
  %v3347 = vadd.f32 0.0, %v3346
  %3348 = vmatmul.bf16.gmra.mxu0 %v2305
  %v3349 = vpop.f32.mrf.mxu0
  %v3350 = vadd.f32 0.0, %v3349
  %v3351 = vpop.f32.mrf.mxu0
  %v3352 = vadd.f32 0.0, %v3351
  %3353 = vmatmul.bf16.gmra.mxu0 %v2308
  %v3354 = vpop.f32.mrf.mxu0
  %v3355 = vadd.f32 0.0, %v3354
  %v3356 = vpop.f32.mrf.mxu0
  %v3357 = vadd.f32 0.0, %v3356
  %3358 = vmatmul.bf16.gmra.mxu0 %v2311
  %v3359 = vpop.f32.mrf.mxu0
  %v3360 = vadd.f32 0.0, %v3359
  %v3361 = vpop.f32.mrf.mxu0
  %v3362 = vadd.f32 0.0, %v3361
  %3363 = vmatmul.bf16.gmra.mxu0 %v2314
  %v3364 = vpop.f32.mrf.mxu0
  %v3365 = vadd.f32 0.0, %v3364
  %v3366 = vpop.f32.mrf.mxu0
  %v3367 = vadd.f32 0.0, %v3366
  %3368 = vmatmul.bf16.gmra.mxu0 %v2317
  %v3369 = vpop.f32.mrf.mxu0
  %v3370 = vadd.f32 0.0, %v3369
  %v3371 = vpop.f32.mrf.mxu0
  %v3372 = vadd.f32 0.0, %v3371
  %3373 = vmatmul.bf16.gmra.mxu0 %v2320
  %v3374 = vpop.f32.mrf.mxu0
  %v3375 = vadd.f32 0.0, %v3374
  %v3376 = vpop.f32.mrf.mxu0
  %v3377 = vadd.f32 0.0, %v3376
  %3378 = vmatmul.bf16.gmra.mxu0 %v2323
  %v3379 = vpop.f32.mrf.mxu0
  %v3380 = vadd.f32 0.0, %v3379
  %v3381 = vpop.f32.mrf.mxu0
  %v3382 = vadd.f32 0.0, %v3381
  %3383 = vmatmul.bf16.gmra.mxu0 %v2326
  %v3384 = vpop.f32.mrf.mxu0
  %v3385 = vadd.f32 0.0, %v3384
  %v3386 = vpop.f32.mrf.mxu0
  %v3387 = vadd.f32 0.0, %v3386
  %3388 = vmatmul.bf16.gmra.mxu0 %v2329
  %v3389 = vpop.f32.mrf.mxu0
  %v3390 = vadd.f32 0.0, %v3389
  %v3391 = vpop.f32.mrf.mxu0
  %v3392 = vadd.f32 0.0, %v3391
  %3393 = vmatmul.bf16.gmra.mxu0 %v2332
  %v3394 = vpop.f32.mrf.mxu0
  %v3395 = vadd.f32 0.0, %v3394
  %v3396 = vpop.f32.mrf.mxu0
  %v3397 = vadd.f32 0.0, %v3396
  %3398 = vmatmul.bf16.gmra.mxu0 %v2335
  %v3399 = vpop.f32.mrf.mxu0
  %v3400 = vadd.f32 0.0, %v3399
  %v3401 = vpop.f32.mrf.mxu0
  %v3402 = vadd.f32 0.0, %v3401
  %3403 = vmatmul.bf16.gmra.mxu0 %v2338
  %v3404 = vpop.f32.mrf.mxu0
  %v3405 = vadd.f32 0.0, %v3404
  %v3406 = vpop.f32.mrf.mxu0
  %v3407 = vadd.f32 0.0, %v3406
  %3408 = vmatmul.bf16.gmra.mxu0 %v2341
  %v3409 = vpop.f32.mrf.mxu0
  %v3410 = vadd.f32 0.0, %v3409
  %v3411 = vpop.f32.mrf.mxu0
  %v3412 = vadd.f32 0.0, %v3411
  %3413 = vmatmul.bf16.gmra.mxu0 %v2344
  %v3414 = vpop.f32.mrf.mxu0
  %v3415 = vadd.f32 0.0, %v3414
  %v3416 = vpop.f32.mrf.mxu0
  %v3417 = vadd.f32 0.0, %v3416
  %3418 = vmatmul.bf16.gmra.mxu0 %v2347
  %v3419 = vpop.f32.mrf.mxu0
  %v3420 = vadd.f32 0.0, %v3419
  %v3421 = vpop.f32.mrf.mxu0
  %v3422 = vadd.f32 0.0, %v3421
  %3423 = vmatmul.bf16.gmra.mxu0 %v2350
  %v3424 = vpop.f32.mrf.mxu0
  %v3425 = vadd.f32 0.0, %v3424
  %v3426 = vpop.f32.mrf.mxu0
  %v3427 = vadd.f32 0.0, %v3426
  %3428 = vmatmul.bf16.gmra.mxu0 %v2353
  %v3429 = vpop.f32.mrf.mxu0
  %v3430 = vadd.f32 0.0, %v3429
  %v3431 = vpop.f32.mrf.mxu0
  %v3432 = vadd.f32 0.0, %v3431
  %3433 = vmatmul.bf16.gmra.mxu0 %v2356
  %v3434 = vpop.f32.mrf.mxu0
  %v3435 = vadd.f32 0.0, %v3434
  %v3436 = vpop.f32.mrf.mxu0
  %v3437 = vadd.f32 0.0, %v3436
  %3438 = vmatmul.bf16.gmra.mxu0 %v2359
  %v3439 = vpop.f32.mrf.mxu0
  %v3440 = vadd.f32 0.0, %v3439
  %v3441 = vpop.f32.mrf.mxu0
  %v3442 = vadd.f32 0.0, %v3441
  %3443 = vmatmul.bf16.gmra.mxu0 %v2362
  %v3444 = vpop.f32.mrf.mxu0
  %v3445 = vadd.f32 0.0, %v3444
  %v3446 = vpop.f32.mrf.mxu0
  %v3447 = vadd.f32 0.0, %v3446
  %3448 = vmatmul.bf16.gmra.mxu0 %v2365
  %v3449 = vpop.f32.mrf.mxu0
  %v3450 = vadd.f32 0.0, %v3449
  %v3451 = vpop.f32.mrf.mxu0
  %v3452 = vadd.f32 0.0, %v3451
  %3453 = vmatmul.bf16.gmra.mxu0 %v2368
  %v3454 = vpop.f32.mrf.mxu0
  %v3455 = vadd.f32 0.0, %v3454
  %v3456 = vpop.f32.mrf.mxu0
  %v3457 = vadd.f32 0.0, %v3456
  %3458 = vmatmul.bf16.gmra.mxu0 %v2371
  %v3459 = vpop.f32.mrf.mxu0
  %v3460 = vadd.f32 0.0, %v3459
  %v3461 = vpop.f32.mrf.mxu0
  %v3462 = vadd.f32 0.0, %v3461
  %3463 = vmatmul.bf16.gmra.mxu0 %v2374
  %v3464 = vpop.f32.mrf.mxu0
  %v3465 = vadd.f32 0.0, %v3464
  %v3466 = vpop.f32.mrf.mxu0
  %v3467 = vadd.f32 0.0, %v3466
  %3468 = vmatmul.bf16.gmra.mxu0 %v2377
  %v3469 = vpop.f32.mrf.mxu0
  %v3470 = vadd.f32 0.0, %v3469
  %v3471 = vpop.f32.mrf.mxu0
  %v3472 = vadd.f32 0.0, %v3471
  %3473 = vmatmul.bf16.gmra.mxu0 %v2380
  %v3474 = vpop.f32.mrf.mxu0
  %v3475 = vadd.f32 0.0, %v3474
  %v3476 = vpop.f32.mrf.mxu0
  %v3477 = vadd.f32 0.0, %v3476
  %3478 = vmatmul.bf16.gmra.mxu0 %v2383
  %v3479 = vpop.f32.mrf.mxu0
  %v3480 = vadd.f32 0.0, %v3479
  %v3481 = vpop.f32.mrf.mxu0
  %v3482 = vadd.f32 0.0, %v3481
  %3483 = vmatmul.bf16.gmra.mxu0 %v2386
  %v3484 = vpop.f32.mrf.mxu0
  %v3485 = vadd.f32 0.0, %v3484
  %v3486 = vpop.f32.mrf.mxu0
  %v3487 = vadd.f32 0.0, %v3486
  %3488 = vmatmul.bf16.gmra.mxu0 %v2389
  %v3489 = vpop.f32.mrf.mxu0
  %v3490 = vadd.f32 0.0, %v3489
  %v3491 = vpop.f32.mrf.mxu0
  %v3492 = vadd.f32 0.0, %v3491
  %3493 = vmatmul.bf16.gmra.mxu0 %v2392
  %v3494 = vpop.f32.mrf.mxu0
  %v3495 = vadd.f32 0.0, %v3494
  %v3496 = vpop.f32.mrf.mxu0
  %v3497 = vadd.f32 0.0, %v3496
  %3498 = vmatmul.bf16.gmra.mxu0 %v2395
  %v3499 = vpop.f32.mrf.mxu0
  %v3500 = vadd.f32 0.0, %v3499
  %v3501 = vpop.f32.mrf.mxu0
  %v3502 = vadd.f32 0.0, %v3501
  %3503 = vmatmul.bf16.gmra.mxu0 %v2398
  %v3504 = vpop.f32.mrf.mxu0
  %v3505 = vadd.f32 0.0, %v3504
  %v3506 = vpop.f32.mrf.mxu0
  %v3507 = vadd.f32 0.0, %v3506
  %3508 = vmatmul.bf16.gmra.mxu0 %v2401
  %v3509 = vpop.f32.mrf.mxu0
  %v3510 = vadd.f32 0.0, %v3509
  %v3511 = vpop.f32.mrf.mxu0
  %v3512 = vadd.f32 0.0, %v3511
  %3513 = vmatmul.bf16.gmra.mxu0 %v2404
  %v3514 = vpop.f32.mrf.mxu0
  %v3515 = vadd.f32 0.0, %v3514
  %v3516 = vpop.f32.mrf.mxu0
  %v3517 = vadd.f32 0.0, %v3516
  %3518 = vmatmul.bf16.gmra.mxu0 %v2407
  %v3519 = vpop.f32.mrf.mxu0
  %v3520 = vadd.f32 0.0, %v3519
  %v3521 = vpop.f32.mrf.mxu0
  %v3522 = vadd.f32 0.0, %v3521
  %3523 = vmatmul.bf16.gmra.mxu0 %v2410
  %v3524 = vpop.f32.mrf.mxu0
  %v3525 = vadd.f32 0.0, %v3524
  %v3526 = vpop.f32.mrf.mxu0
  %v3527 = vadd.f32 0.0, %v3526
  %3528 = vmatmul.bf16.gmra.mxu0 %v2413
  %v3529 = vpop.f32.mrf.mxu0
  %v3530 = vadd.f32 0.0, %v3529
  %v3531 = vpop.f32.mrf.mxu0
  %v3532 = vadd.f32 0.0, %v3531
  %3533 = vmatmul.bf16.gmra.mxu0 %v2416
  %v3534 = vpop.f32.mrf.mxu0
  %v3535 = vadd.f32 0.0, %v3534
  %v3536 = vpop.f32.mrf.mxu0
  %v3537 = vadd.f32 0.0, %v3536
  %3538 = vmatmul.bf16.gmra.mxu0 %v2419
  %v3539 = vpop.f32.mrf.mxu0
  %v3540 = vadd.f32 0.0, %v3539
  %v3541 = vpop.f32.mrf.mxu0
  %v3542 = vadd.f32 0.0, %v3541
  %3543 = vmatmul.bf16.gmra.mxu0 %v2422
  %v3544 = vpop.f32.mrf.mxu0
  %v3545 = vadd.f32 0.0, %v3544
  %v3546 = vpop.f32.mrf.mxu0
  %v3547 = vadd.f32 0.0, %v3546
  %3548 = vmatmul.bf16.gmra.mxu0 %v2425
  %v3549 = vpop.f32.mrf.mxu0
  %v3550 = vadd.f32 0.0, %v3549
  %v3551 = vpop.f32.mrf.mxu0
  %v3552 = vadd.f32 0.0, %v3551
  %3553 = vmatmul.bf16.gmra.mxu0 %v2428
  %v3554 = vpop.f32.mrf.mxu0
  %v3555 = vadd.f32 0.0, %v3554
  %v3556 = vpop.f32.mrf.mxu0
  %v3557 = vadd.f32 0.0, %v3556
  %3558 = vmatmul.bf16.gmra.mxu0 %v2431
  %v3559 = vpop.f32.mrf.mxu0
  %v3560 = vadd.f32 0.0, %v3559
  %v3561 = vpop.f32.mrf.mxu0
  %v3562 = vadd.f32 0.0, %v3561
  %3563 = vmatmul.bf16.gmra.mxu0 %v2434
  %v3564 = vpop.f32.mrf.mxu0
  %v3565 = vadd.f32 0.0, %v3564
  %v3566 = vpop.f32.mrf.mxu0
  %v3567 = vadd.f32 0.0, %v3566
  %3568 = vmatmul.bf16.gmra.mxu0 %v2437
  %v3569 = vpop.f32.mrf.mxu0
  %v3570 = vadd.f32 0.0, %v3569
  %v3571 = vpop.f32.mrf.mxu0
  %v3572 = vadd.f32 0.0, %v3571
  %3573 = vmatmul.bf16.gmra.mxu0 %v2440
  %v3574 = vpop.f32.mrf.mxu0
  %v3575 = vadd.f32 0.0, %v3574
  %v3576 = vpop.f32.mrf.mxu0
  %v3577 = vadd.f32 0.0, %v3576
  %3578 = vmatmul.bf16.gmra.mxu0 %v2443
  %v3579 = vpop.f32.mrf.mxu0
  %v3580 = vadd.f32 0.0, %v3579
  %v3581 = vpop.f32.mrf.mxu0
  %v3582 = vadd.f32 0.0, %v3581
  %3583 = vmatmul.bf16.gmra.mxu0 %v2446
  %v3584 = vpop.f32.mrf.mxu0
  %v3585 = vadd.f32 0.0, %v3584
  %v3586 = vpop.f32.mrf.mxu0
  %v3587 = vadd.f32 0.0, %v3586
  %3588 = vmatmul.bf16.gmra.mxu0 %v2449
  %v3589 = vpop.f32.mrf.mxu0
  %v3590 = vadd.f32 0.0, %v3589
  %v3591 = vpop.f32.mrf.mxu0
  %v3592 = vadd.f32 0.0, %v3591
  %3593 = vmatmul.bf16.gmra.mxu0 %v2452
  %v3594 = vpop.f32.mrf.mxu0
  %v3595 = vadd.f32 0.0, %v3594
  %v3596 = vpop.f32.mrf.mxu0
  %v3597 = vadd.f32 0.0, %v3596
  %3598 = vmatmul.bf16.gmra.mxu0 %v2455
  %v3599 = vpop.f32.mrf.mxu0
  %v3600 = vadd.f32 0.0, %v3599
  %v3601 = vpop.f32.mrf.mxu0
  %v3602 = vadd.f32 0.0, %v3601
  %3603 = vmatmul.bf16.gmra.mxu0 %v2458
  %v3604 = vpop.f32.mrf.mxu0
  %v3605 = vadd.f32 0.0, %v3604
  %v3606 = vpop.f32.mrf.mxu0
  %v3607 = vadd.f32 0.0, %v3606
  %3608 = vmatmul.bf16.gmra.mxu0 %v2461
  %v3609 = vpop.f32.mrf.mxu0
  %v3610 = vadd.f32 0.0, %v3609
  %v3611 = vpop.f32.mrf.mxu0
  %v3612 = vadd.f32 0.0, %v3611
  %3613 = vmatmul.bf16.gmra.mxu0 %v2464
  %v3614 = vpop.f32.mrf.mxu0
  %v3615 = vadd.f32 0.0, %v3614
  %v3616 = vpop.f32.mrf.mxu0
  %v3617 = vadd.f32 0.0, %v3616
  %3618 = vmatmul.bf16.gmra.mxu0 %v2467
  %v3619 = vpop.f32.mrf.mxu0
  %v3620 = vadd.f32 0.0, %v3619
  %v3621 = vpop.f32.mrf.mxu0
  %v3622 = vadd.f32 0.0, %v3621
  %3623 = vmatmul.bf16.gmra.mxu0 %v2470
  %v3624 = vpop.f32.mrf.mxu0
  %v3625 = vadd.f32 0.0, %v3624
  %v3626 = vpop.f32.mrf.mxu0
  %v3627 = vadd.f32 0.0, %v3626
  %3628 = vmatmul.bf16.gmra.mxu0 %v2473
  %v3629 = vpop.f32.mrf.mxu0
  %v3630 = vadd.f32 0.0, %v3629
  %v3631 = vpop.f32.mrf.mxu0
  %v3632 = vadd.f32 0.0, %v3631
  %3633 = vmatmul.bf16.gmra.mxu0 %v2476
  %v3634 = vpop.f32.mrf.mxu0
  %v3635 = vadd.f32 0.0, %v3634
  %v3636 = vpop.f32.mrf.mxu0
  %v3637 = vadd.f32 0.0, %v3636
  %3638 = vmatmul.bf16.gmra.mxu0 %v2479
  %v3639 = vpop.f32.mrf.mxu0
  %v3640 = vadd.f32 0.0, %v3639
  %v3641 = vpop.f32.mrf.mxu0
  %v3642 = vadd.f32 0.0, %v3641
  %3643 = vmatmul.bf16.gmra.mxu0 %v2482
  %v3644 = vpop.f32.mrf.mxu0
  %v3645 = vadd.f32 0.0, %v3644
  %v3646 = vpop.f32.mrf.mxu0
  %v3647 = vadd.f32 0.0, %v3646
  %3648 = vmatmul.bf16.gmra.mxu0 %v2485
  %v3649 = vpop.f32.mrf.mxu0
  %v3650 = vadd.f32 0.0, %v3649
  %v3651 = vpop.f32.mrf.mxu0
  %v3652 = vadd.f32 0.0, %v3651
  %3653 = vmatmul.bf16.gmra.mxu0 %v2488
  %v3654 = vpop.f32.mrf.mxu0
  %v3655 = vadd.f32 0.0, %v3654
  %v3656 = vpop.f32.mrf.mxu0
  %v3657 = vadd.f32 0.0, %v3656
  %3658 = vmatmul.bf16.gmra.mxu0 %v2491
  %v3659 = vpop.f32.mrf.mxu0
  %v3660 = vadd.f32 0.0, %v3659
  %v3661 = vpop.f32.mrf.mxu0
  %v3662 = vadd.f32 0.0, %v3661
  %3663 = vmatmul.bf16.gmra.mxu0 %v2494
  %v3664 = vpop.f32.mrf.mxu0
  %v3665 = vadd.f32 0.0, %v3664
  %v3666 = vpop.f32.mrf.mxu0
  %v3667 = vadd.f32 0.0, %v3666
  %3668 = vmatmul.bf16.gmra.mxu0 %v2497
  %v3669 = vpop.f32.mrf.mxu0
  %v3670 = vadd.f32 0.0, %v3669
  %v3671 = vpop.f32.mrf.mxu0
  %v3672 = vadd.f32 0.0, %v3671
  %3673 = vmatmul.bf16.gmra.mxu0 %v2500
  %v3674 = vpop.f32.mrf.mxu0
  %v3675 = vadd.f32 0.0, %v3674
  %v3676 = vpop.f32.mrf.mxu0
  %v3677 = vadd.f32 0.0, %v3676
  %3678 = vmatmul.bf16.gmra.mxu0 %v2503
  %v3679 = vpop.f32.mrf.mxu0
  %v3680 = vadd.f32 0.0, %v3679
  %v3681 = vpop.f32.mrf.mxu0
  %v3682 = vadd.f32 0.0, %v3681
  %3683 = vmatmul.bf16.gmra.mxu0 %v2506
  %v3684 = vpop.f32.mrf.mxu0
  %v3685 = vadd.f32 0.0, %v3684
  %v3686 = vpop.f32.mrf.mxu0
  %v3687 = vadd.f32 0.0, %v3686
  %3688 = vmatmul.bf16.gmra.mxu0 %v2509
  %v3689 = vpop.f32.mrf.mxu0
  %v3690 = vadd.f32 0.0, %v3689
  %v3691 = vpop.f32.mrf.mxu0
  %v3692 = vadd.f32 0.0, %v3691
  %3693 = vmatmul.bf16.gmra.mxu0 %v2512
  %v3694 = vpop.f32.mrf.mxu0
  %v3695 = vadd.f32 0.0, %v3694
  %v3696 = vpop.f32.mrf.mxu0
  %v3697 = vadd.f32 0.0, %v3696
  %3698 = vmatmul.bf16.gmra.mxu0 %v2515
  %v3699 = vpop.f32.mrf.mxu0
  %v3700 = vadd.f32 0.0, %v3699
  %v3701 = vpop.f32.mrf.mxu0
  %v3702 = vadd.f32 0.0, %v3701
  %3703 = vmatmul.bf16.gmra.mxu0 %v2518
  %v3704 = vpop.f32.mrf.mxu0
  %v3705 = vadd.f32 0.0, %v3704
  %v3706 = vpop.f32.mrf.mxu0
  %v3707 = vadd.f32 0.0, %v3706
  %3708 = vmatmul.bf16.gmra.mxu0 %v2521
  %v3709 = vpop.f32.mrf.mxu0
  %v3710 = vadd.f32 0.0, %v3709
  %v3711 = vpop.f32.mrf.mxu0
  %v3712 = vadd.f32 0.0, %v3711
  %3713 = vmatmul.bf16.gmra.mxu0 %v2524
  %v3714 = vpop.f32.mrf.mxu0
  %v3715 = vadd.f32 0.0, %v3714
  %v3716 = vpop.f32.mrf.mxu0
  %v3717 = vadd.f32 0.0, %v3716
  %3718 = vmatmul.bf16.gmra.mxu0 %v2527
  %v3719 = vpop.f32.mrf.mxu0
  %v3720 = vadd.f32 0.0, %v3719
  %v3721 = vpop.f32.mrf.mxu0
  %v3722 = vadd.f32 0.0, %v3721
  %3723 = vmatmul.bf16.gmra.mxu0 %v2530
  %v3724 = vpop.f32.mrf.mxu0
  %v3725 = vadd.f32 0.0, %v3724
  %v3726 = vpop.f32.mrf.mxu0
  %v3727 = vadd.f32 0.0, %v3726
  %3728 = vmatmul.bf16.gmra.mxu0 %v2533
  %v3729 = vpop.f32.mrf.mxu0
  %v3730 = vadd.f32 0.0, %v3729
  %v3731 = vpop.f32.mrf.mxu0
  %v3732 = vadd.f32 0.0, %v3731
  %3733 = vmatmul.bf16.gmra.mxu0 %v2536
  %v3734 = vpop.f32.mrf.mxu0
  %v3735 = vadd.f32 0.0, %v3734
  %v3736 = vpop.f32.mrf.mxu0
  %v3737 = vadd.f32 0.0, %v3736
  %3738 = vmatmul.bf16.gmra.mxu0 %v2539
  %v3739 = vpop.f32.mrf.mxu0
  %v3740 = vadd.f32 0.0, %v3739
  %v3741 = vpop.f32.mrf.mxu0
  %v3742 = vadd.f32 0.0, %v3741
  %3743 = vmatmul.bf16.gmra.mxu0 %v2542
  %v3744 = vpop.f32.mrf.mxu0
  %v3745 = vadd.f32 0.0, %v3744
  %v3746 = vpop.f32.mrf.mxu0
  %v3747 = vadd.f32 0.0, %v3746
  %3748 = vmatmul.bf16.gmra.mxu0 %v2545
  %v3749 = vpop.f32.mrf.mxu0
  %v3750 = vadd.f32 0.0, %v3749
  %v3751 = vpop.f32.mrf.mxu0
  %v3752 = vadd.f32 0.0, %v3751
  %3753 = vmatmul.bf16.gmra.mxu0 %v2548
  %v3754 = vpop.f32.mrf.mxu0
  %v3755 = vadd.f32 0.0, %v3754
  %v3756 = vpop.f32.mrf.mxu0
  %v3757 = vadd.f32 0.0, %v3756
  %3758 = vmatmul.bf16.gmra.mxu0 %v2551
  %v3759 = vpop.f32.mrf.mxu0
  %v3760 = vadd.f32 0.0, %v3759
  %v3761 = vpop.f32.mrf.mxu0
  %v3762 = vadd.f32 0.0, %v3761
  %3763 = vmatmul.bf16.gmra.mxu0 %v2554
  %v3764 = vpop.f32.mrf.mxu0
  %v3765 = vadd.f32 0.0, %v3764
  %v3766 = vpop.f32.mrf.mxu0
  %v3767 = vadd.f32 0.0, %v3766
  %3768 = vmatmul.bf16.gmra.mxu0 %v2557
  %v3769 = vpop.f32.mrf.mxu0
  %v3770 = vadd.f32 0.0, %v3769
  %v3771 = vpop.f32.mrf.mxu0
  %v3772 = vadd.f32 0.0, %v3771
  %3773 = vmatmul.bf16.gmra.mxu0 %v2560
  %v3774 = vpop.f32.mrf.mxu0
  %v3775 = vadd.f32 0.0, %v3774
  %v3776 = vpop.f32.mrf.mxu0
  %v3777 = vadd.f32 0.0, %v3776
  %3778 = vmatmul.bf16.gmra.mxu0 %v2563
  %v3779 = vpop.f32.mrf.mxu0
  %v3780 = vadd.f32 0.0, %v3779
  %v3781 = vpop.f32.mrf.mxu0
  %v3782 = vadd.f32 0.0, %v3781
  %3783 = vmatmul.bf16.gmra.mxu0 %v2566
  %v3784 = vpop.f32.mrf.mxu0
  %v3785 = vadd.f32 0.0, %v3784
  %v3786 = vpop.f32.mrf.mxu0
  %v3787 = vadd.f32 0.0, %v3786
  %3788 = vmatmul.bf16.gmra.mxu0 %v2569
  %v3789 = vpop.f32.mrf.mxu0
  %v3790 = vadd.f32 0.0, %v3789
  %v3791 = vpop.f32.mrf.mxu0
  %v3792 = vadd.f32 0.0, %v3791
  %3793 = vmatmul.bf16.gmra.mxu0 %v2572
  %v3794 = vpop.f32.mrf.mxu0
  %v3795 = vadd.f32 0.0, %v3794
  %v3796 = vpop.f32.mrf.mxu0
  %v3797 = vadd.f32 0.0, %v3796
  %3798 = vmatmul.bf16.gmra.mxu0 %v2575
  %v3799 = vpop.f32.mrf.mxu0
  %v3800 = vadd.f32 0.0, %v3799
  %v3801 = vpop.f32.mrf.mxu0
  %v3802 = vadd.f32 0.0, %v3801
  %3803 = vmatmul.bf16.gmra.mxu0 %v2578
  %v3804 = vpop.f32.mrf.mxu0
  %v3805 = vadd.f32 0.0, %v3804
  %v3806 = vpop.f32.mrf.mxu0
  %v3807 = vadd.f32 0.0, %v3806
  %3808 = vmatmul.bf16.gmra.mxu0 %v2581
  %v3809 = vpop.f32.mrf.mxu0
  %v3810 = vadd.f32 0.0, %v3809
  %v3811 = vpop.f32.mrf.mxu0
  %v3812 = vadd.f32 0.0, %v3811
  %3813 = vmatmul.bf16.gmra.mxu0 %v2584
  %v3814 = vpop.f32.mrf.mxu0
  %v3815 = vadd.f32 0.0, %v3814
  %v3816 = vpop.f32.mrf.mxu0
  %v3817 = vadd.f32 0.0, %v3816
  %3818 = vmatmul.bf16.gmra.mxu0 %v2587
  %v3819 = vpop.f32.mrf.mxu0
  %v3820 = vadd.f32 0.0, %v3819
  %v3821 = vpop.f32.mrf.mxu0
  %v3822 = vadd.f32 0.0, %v3821
  %3823 = vmatmul.bf16.gmra.mxu0 %v2590
  %v3824 = vpop.f32.mrf.mxu0
  %v3825 = vadd.f32 0.0, %v3824
  %v3826 = vpop.f32.mrf.mxu0
  %v3827 = vadd.f32 0.0, %v3826
  %3828 = vmatmul.bf16.gmra.mxu0 %v2593
  %v3829 = vpop.f32.mrf.mxu0
  %v3830 = vadd.f32 0.0, %v3829
  %v3831 = vpop.f32.mrf.mxu0
  %v3832 = vadd.f32 0.0, %v3831
  %3833 = vmatmul.bf16.gmra.mxu0 %v2596
  %v3834 = vpop.f32.mrf.mxu0
  %v3835 = vadd.f32 0.0, %v3834
  %v3836 = vpop.f32.mrf.mxu0
  %v3837 = vadd.f32 0.0, %v3836
  %3838 = vmatmul.bf16.gmra.mxu0 %v2599
  %v3839 = vpop.f32.mrf.mxu0
  %v3840 = vadd.f32 0.0, %v3839
  %v3841 = vpop.f32.mrf.mxu0
  %v3842 = vadd.f32 0.0, %v3841
  %3843 = vmatmul.bf16.gmra.mxu0 %v2602
  %v3844 = vpop.f32.mrf.mxu0
  %v3845 = vadd.f32 0.0, %v3844
  %v3846 = vpop.f32.mrf.mxu0
  %v3847 = vadd.f32 0.0, %v3846
  %3848 = vmatmul.bf16.gmra.mxu0 %v2605
  %v3849 = vpop.f32.mrf.mxu0
  %v3850 = vadd.f32 0.0, %v3849
  %v3851 = vpop.f32.mrf.mxu0
  %v3852 = vadd.f32 0.0, %v3851
  %3853 = vmatmul.bf16.gmra.mxu0 %v2608
  %v3854 = vpop.f32.mrf.mxu0
  %v3855 = vadd.f32 0.0, %v3854
  %v3856 = vpop.f32.mrf.mxu0
  %v3857 = vadd.f32 0.0, %v3856
  %3858 = vmatmul.bf16.gmra.mxu0 %v2611
  %v3859 = vpop.f32.mrf.mxu0
  %v3860 = vadd.f32 0.0, %v3859
  %v3861 = vpop.f32.mrf.mxu0
  %v3862 = vadd.f32 0.0, %v3861
  %3863 = vmatmul.bf16.gmra.mxu0 %v2614
  %v3864 = vpop.f32.mrf.mxu0
  %v3865 = vadd.f32 0.0, %v3864
  %v3866 = vpop.f32.mrf.mxu0
  %v3867 = vadd.f32 0.0, %v3866
  %3868 = vmatmul.bf16.gmra.mxu0 %v2617
  %v3869 = vpop.f32.mrf.mxu0
  %v3870 = vadd.f32 0.0, %v3869
  %v3871 = vpop.f32.mrf.mxu0
  %v3872 = vadd.f32 0.0, %v3871
  %3873 = vmatmul.bf16.gmra.mxu0 %v2620
  %v3874 = vpop.f32.mrf.mxu0
  %v3875 = vadd.f32 0.0, %v3874
  %v3876 = vpop.f32.mrf.mxu0
  %v3877 = vadd.f32 0.0, %v3876
  %3878 = vmatmul.bf16.gmra.mxu0 %v2623
  %v3879 = vpop.f32.mrf.mxu0
  %v3880 = vadd.f32 0.0, %v3879
  %v3881 = vpop.f32.mrf.mxu0
  %v3882 = vadd.f32 0.0, %v3881
  %3883 = vmatmul.bf16.gmra.mxu0 %v2626
  %v3884 = vpop.f32.mrf.mxu0
  %v3885 = vadd.f32 0.0, %v3884
  %v3886 = vpop.f32.mrf.mxu0
  %v3887 = vadd.f32 0.0, %v3886
  %3888 = vmatmul.bf16.gmra.mxu0 %v2629
  %v3889 = vpop.f32.mrf.mxu0
  %v3890 = vadd.f32 0.0, %v3889
  %v3891 = vpop.f32.mrf.mxu0
  %v3892 = vadd.f32 0.0, %v3891
  %3893 = vmatmul.bf16.gmra.mxu0 %v2632
  %v3894 = vpop.f32.mrf.mxu0
  %v3895 = vadd.f32 0.0, %v3894
  %v3896 = vpop.f32.mrf.mxu0
  %v3897 = vadd.f32 0.0, %v3896
  %3898 = vmatmul.bf16.gmra.mxu0 %v2635
  %v3899 = vpop.f32.mrf.mxu0
  %v3900 = vadd.f32 0.0, %v3899
  %v3901 = vpop.f32.mrf.mxu0
  %v3902 = vadd.f32 0.0, %v3901
  %3903 = vmatmul.bf16.gmra.mxu0 %v2638
  %v3904 = vpop.f32.mrf.mxu0
  %v3905 = vadd.f32 0.0, %v3904
  %v3906 = vpop.f32.mrf.mxu0
  %v3907 = vadd.f32 0.0, %v3906
  %3908 = vmatmul.bf16.gmra.mxu0 %v2641
  %v3909 = vpop.f32.mrf.mxu0
  %v3910 = vadd.f32 0.0, %v3909
  %v3911 = vpop.f32.mrf.mxu0
  %v3912 = vadd.f32 0.0, %v3911
  %3913 = vmatmul.bf16.gmra.mxu0 %v2644
  %v3914 = vpop.f32.mrf.mxu0
  %v3915 = vadd.f32 0.0, %v3914
  %v3916 = vpop.f32.mrf.mxu0
  %v3917 = vadd.f32 0.0, %v3916
  %3918 = vmatmul.bf16.gmra.mxu0 %v2647
  %v3919 = vpop.f32.mrf.mxu0
  %v3920 = vadd.f32 0.0, %v3919
  %v3921 = vpop.f32.mrf.mxu0
  %v3922 = vadd.f32 0.0, %v3921
  %3923 = vmatmul.bf16.gmra.mxu0 %v2650
  %v3924 = vpop.f32.mrf.mxu0
  %v3925 = vadd.f32 0.0, %v3924
  %v3926 = vpop.f32.mrf.mxu0
  %v3927 = vadd.f32 0.0, %v3926
  %3928 = vmatmul.bf16.gmra.mxu0 %v2653
  %v3929 = vpop.f32.mrf.mxu0
  %v3930 = vadd.f32 0.0, %v3929
  %v3931 = vpop.f32.mrf.mxu0
  %v3932 = vadd.f32 0.0, %v3931
  %3933 = vmatmul.bf16.gmra.mxu0 %v2656
  %v3934 = vpop.f32.mrf.mxu0
  %v3935 = vadd.f32 0.0, %v3934
  %v3936 = vpop.f32.mrf.mxu0
  %v3937 = vadd.f32 0.0, %v3936
  %3938 = vmatmul.bf16.gmra.mxu0 %v2659
  %v3939 = vpop.f32.mrf.mxu0
  %v3940 = vadd.f32 0.0, %v3939
  %v3941 = vpop.f32.mrf.mxu0
  %v3942 = vadd.f32 0.0, %v3941
  %3943 = vmatmul.bf16.gmra.mxu0 %v2662
  %v3944 = vpop.f32.mrf.mxu0
  %v3945 = vadd.f32 0.0, %v3944
  %v3946 = vpop.f32.mrf.mxu0
  %v3947 = vadd.f32 0.0, %v3946
  %3948 = vmatmul.bf16.gmra.mxu0 %v2665
  %v3949 = vpop.f32.mrf.mxu0
  %v3950 = vadd.f32 0.0, %v3949
  %v3951 = vpop.f32.mrf.mxu0
  %v3952 = vadd.f32 0.0, %v3951
  %3953 = vmatmul.bf16.gmra.mxu0 %v2668
  %v3954 = vpop.f32.mrf.mxu0
  %v3955 = vadd.f32 0.0, %v3954
  %v3956 = vpop.f32.mrf.mxu0
  %v3957 = vadd.f32 0.0, %v3956
  %3958 = vmatmul.bf16.gmra.mxu0 %v2671
  %v3959 = vpop.f32.mrf.mxu0
  %v3960 = vadd.f32 0.0, %v3959
  %v3961 = vpop.f32.mrf.mxu0
  %v3962 = vadd.f32 0.0, %v3961
  %3963 = vmatmul.bf16.gmra.mxu0 %v2674
  %v3964 = vpop.f32.mrf.mxu0
  %v3965 = vadd.f32 0.0, %v3964
  %v3966 = vpop.f32.mrf.mxu0
  %v3967 = vadd.f32 0.0, %v3966
  %3968 = vmatmul.bf16.gmra.mxu0 %v2677
  %v3969 = vpop.f32.mrf.mxu0
  %v3970 = vadd.f32 0.0, %v3969
  %v3971 = vpop.f32.mrf.mxu0
  %v3972 = vadd.f32 0.0, %v3971
  %3973 = vmatmul.bf16.gmra.mxu0 %v2680
  %v3974 = vpop.f32.mrf.mxu0
  %v3975 = vadd.f32 0.0, %v3974
  %v3976 = vpop.f32.mrf.mxu0
  %v3977 = vadd.f32 0.0, %v3976
  %3978 = vmatmul.bf16.gmra.mxu0 %v2683
  %v3979 = vpop.f32.mrf.mxu0
  %v3980 = vadd.f32 0.0, %v3979
  %v3981 = vpop.f32.mrf.mxu0
  %v3982 = vadd.f32 0.0, %v3981
  %3983 = vmatmul.bf16.gmra.mxu0 %v2686
  %v3984 = vpop.f32.mrf.mxu0
  %v3985 = vadd.f32 0.0, %v3984
  %v3986 = vpop.f32.mrf.mxu0
  %v3987 = vadd.f32 0.0, %v3986
  %3988 = vmatmul.bf16.gmra.mxu0 %v2689
  %v3989 = vpop.f32.mrf.mxu0
  %v3990 = vadd.f32 0.0, %v3989
  %v3991 = vpop.f32.mrf.mxu0
  %v3992 = vadd.f32 0.0, %v3991
  %3993 = vmatmul.bf16.gmra.mxu0 %v2692
  %v3994 = vpop.f32.mrf.mxu0
  %v3995 = vadd.f32 0.0, %v3994
  %v3996 = vpop.f32.mrf.mxu0
  %v3997 = vadd.f32 0.0, %v3996
  %3998 = vmatmul.bf16.gmra.mxu0 %v2695
  %v3999 = vpop.f32.mrf.mxu0
  %v4000 = vadd.f32 0.0, %v3999
  %v4001 = vpop.f32.mrf.mxu0
  %v4002 = vadd.f32 0.0, %v4001
  %4003 = vmatmul.bf16.gmra.mxu0 %v2698
  %v4004 = vpop.f32.mrf.mxu0
  %v4005 = vadd.f32 0.0, %v4004
  %v4006 = vpop.f32.mrf.mxu0
  %v4007 = vadd.f32 0.0, %v4006
  %4008 = vmatmul.bf16.gmra.mxu0 %v2701
  %v4009 = vpop.f32.mrf.mxu0
  %v4010 = vadd.f32 0.0, %v4009
  %v4011 = vpop.f32.mrf.mxu0
  %v4012 = vadd.f32 0.0, %v4011
  %4013 = vmatmul.bf16.gmra.mxu0 %v2704
  %v4014 = vpop.f32.mrf.mxu0
  %v4015 = vadd.f32 0.0, %v4014
  %v4016 = vpop.f32.mrf.mxu0
  %v4017 = vadd.f32 0.0, %v4016
  %4018 = vmatmul.bf16.gmra.mxu0 %v2707
  %v4019 = vpop.f32.mrf.mxu0
  %v4020 = vadd.f32 0.0, %v4019
  %v4021 = vpop.f32.mrf.mxu0
  %v4022 = vadd.f32 0.0, %v4021
  %4023 = vmatmul.bf16.gmra.mxu0 %v2710
  %v4024 = vpop.f32.mrf.mxu0
  %v4025 = vadd.f32 0.0, %v4024
  %v4026 = vpop.f32.mrf.mxu0
  %v4027 = vadd.f32 0.0, %v4026
  %4028 = vmatmul.bf16.gmra.mxu0 %v2713
  %v4029 = vpop.f32.mrf.mxu0
  %v4030 = vadd.f32 0.0, %v4029
  %v4031 = vpop.f32.mrf.mxu0
  %v4032 = vadd.f32 0.0, %v4031
  %4033 = vmatmul.bf16.gmra.mxu0 %v2716
  %v4034 = vpop.f32.mrf.mxu0
  %v4035 = vadd.f32 0.0, %v4034
  %v4036 = vpop.f32.mrf.mxu0
  %v4037 = vadd.f32 0.0, %v4036
  %4038 = vmatmul.bf16.gmra.mxu0 %v2719
  %v4039 = vpop.f32.mrf.mxu0
  %v4040 = vadd.f32 0.0, %v4039
  %v4041 = vpop.f32.mrf.mxu0
  %v4042 = vadd.f32 0.0, %v4041
  %4043 = vmatmul.bf16.gmra.mxu0 %v2722
  %v4044 = vpop.f32.mrf.mxu0
  %v4045 = vadd.f32 0.0, %v4044
  %v4046 = vpop.f32.mrf.mxu0
  %v4047 = vadd.f32 0.0, %v4046
  %4048 = vmatmul.bf16.gmra.mxu0 %v2725
  %v4049 = vpop.f32.mrf.mxu0
  %v4050 = vadd.f32 0.0, %v4049
  %v4051 = vpop.f32.mrf.mxu0
  %v4052 = vadd.f32 0.0, %v4051
  %4053 = vmatmul.bf16.gmra.mxu0 %v2728
  %v4054 = vpop.f32.mrf.mxu0
  %v4055 = vadd.f32 0.0, %v4054
  %v4056 = vpop.f32.mrf.mxu0
  %v4057 = vadd.f32 0.0, %v4056
  %4058 = vmatmul.bf16.gmra.mxu0 %v2731
  %v4059 = vpop.f32.mrf.mxu0
  %v4060 = vadd.f32 0.0, %v4059
  %v4061 = vpop.f32.mrf.mxu0
  %v4062 = vadd.f32 0.0, %v4061
  %4063 = vmatmul.bf16.gmra.mxu0 %v2734
  %v4064 = vpop.f32.mrf.mxu0
  %v4065 = vadd.f32 0.0, %v4064
  %v4066 = vpop.f32.mrf.mxu0
  %v4067 = vadd.f32 0.0, %v4066
  %4068 = vmatmul.bf16.gmra.mxu0 %v2737
  %v4069 = vpop.f32.mrf.mxu0
  %v4070 = vadd.f32 0.0, %v4069
  %v4071 = vpop.f32.mrf.mxu0
  %v4072 = vadd.f32 0.0, %v4071
  %4073 = vmatmul.bf16.gmra.mxu0 %v2740
  %v4074 = vpop.f32.mrf.mxu0
  %v4075 = vadd.f32 0.0, %v4074
  %v4076 = vpop.f32.mrf.mxu0
  %v4077 = vadd.f32 0.0, %v4076
  %4078 = vmatmul.bf16.gmra.mxu0 %v2743
  %v4079 = vpop.f32.mrf.mxu0
  %v4080 = vadd.f32 0.0, %v4079
  %v4081 = vpop.f32.mrf.mxu0
  %v4082 = vadd.f32 0.0, %v4081
  %4083 = vmatmul.bf16.gmra.mxu0 %v2746
  %v4084 = vpop.f32.mrf.mxu0
  %v4085 = vadd.f32 0.0, %v4084
  %v4086 = vpop.f32.mrf.mxu0
  %v4087 = vadd.f32 0.0, %v4086
  %4088 = vmatmul.bf16.gmra.mxu0 %v2749
  %v4089 = vpop.f32.mrf.mxu0
  %v4090 = vadd.f32 0.0, %v4089
  %v4091 = vpop.f32.mrf.mxu0
  %v4092 = vadd.f32 0.0, %v4091
  %4093 = vmatmul.bf16.gmra.mxu0 %v2752
  %v4094 = vpop.f32.mrf.mxu0
  %v4095 = vadd.f32 0.0, %v4094
  %v4096 = vpop.f32.mrf.mxu0
  %v4097 = vadd.f32 0.0, %v4096
  %4098 = vmatmul.bf16.gmra.mxu0 %v2755
  %v4099 = vpop.f32.mrf.mxu0
  %v4100 = vadd.f32 0.0, %v4099
  %v4101 = vpop.f32.mrf.mxu0
  %v4102 = vadd.f32 0.0, %v4101
  %4103 = vmatmul.bf16.gmra.mxu0 %v2758
  %v4104 = vpop.f32.mrf.mxu0
  %v4105 = vadd.f32 0.0, %v4104
  %v4106 = vpop.f32.mrf.mxu0
  %v4107 = vadd.f32 0.0, %v4106
  %4108 = vmatmul.bf16.gmra.mxu0 %v2761
  %v4109 = vpop.f32.mrf.mxu0
  %v4110 = vadd.f32 0.0, %v4109
  %v4111 = vpop.f32.mrf.mxu0
  %v4112 = vadd.f32 0.0, %v4111
  %4113 = vmatmul.bf16.gmra.mxu0 %v2764
  %v4114 = vpop.f32.mrf.mxu0
  %v4115 = vadd.f32 0.0, %v4114
  %v4116 = vpop.f32.mrf.mxu0
  %v4117 = vadd.f32 0.0, %v4116
  %4118 = vmatmul.bf16.gmra.mxu0 %v2767
  %v4119 = vpop.f32.mrf.mxu0
  %v4120 = vadd.f32 0.0, %v4119
  %v4121 = vpop.f32.mrf.mxu0
  %v4122 = vadd.f32 0.0, %v4121
  %4123 = vmatmul.bf16.gmra.mxu0 %v2770
  %v4124 = vpop.f32.mrf.mxu0
  %v4125 = vadd.f32 0.0, %v4124
  %v4126 = vpop.f32.mrf.mxu0
  %v4127 = vadd.f32 0.0, %v4126
  %4128 = vmatmul.bf16.gmra.mxu0 %v2773
  %v4129 = vpop.f32.mrf.mxu0
  %v4130 = vadd.f32 0.0, %v4129
  %v4131 = vpop.f32.mrf.mxu0
  %v4132 = vadd.f32 0.0, %v4131
  %4133 = vmatmul.bf16.gmra.mxu0 %v2776
  %v4134 = vpop.f32.mrf.mxu0
  %v4135 = vadd.f32 0.0, %v4134
  %v4136 = vpop.f32.mrf.mxu0
  %v4137 = vadd.f32 0.0, %v4136
  %4138 = vmatmul.bf16.gmra.mxu0 %v2779
  %v4139 = vpop.f32.mrf.mxu0
  %v4140 = vadd.f32 0.0, %v4139
  %v4141 = vpop.f32.mrf.mxu0
  %v4142 = vadd.f32 0.0, %v4141
  %4143 = vmatmul.bf16.gmra.mxu0 %v2782
  %v4144 = vpop.f32.mrf.mxu0
  %v4145 = vadd.f32 0.0, %v4144
  %v4146 = vpop.f32.mrf.mxu0
  %v4147 = vadd.f32 0.0, %v4146
  %4148 = vmatmul.bf16.gmra.mxu0 %v2785
  %v4149 = vpop.f32.mrf.mxu0
  %v4150 = vadd.f32 0.0, %v4149
  %v4151 = vpop.f32.mrf.mxu0
  %v4152 = vadd.f32 0.0, %v4151
  %4153 = vmatmul.bf16.gmra.mxu0 %v2788
  %v4154 = vpop.f32.mrf.mxu0
  %v4155 = vadd.f32 0.0, %v4154
  %v4156 = vpop.f32.mrf.mxu0
  %v4157 = vadd.f32 0.0, %v4156
  %4158 = vmatmul.bf16.gmra.mxu0 %v2791
  %v4159 = vpop.f32.mrf.mxu0
  %v4160 = vadd.f32 0.0, %v4159
  %v4161 = vpop.f32.mrf.mxu0
  %v4162 = vadd.f32 0.0, %v4161
  %4163 = vmatmul.bf16.gmra.mxu0 %v2794
  %v4164 = vpop.f32.mrf.mxu0
  %v4165 = vadd.f32 0.0, %v4164
  %v4166 = vpop.f32.mrf.mxu0
  %v4167 = vadd.f32 0.0, %v4166
  %4168 = vmatmul.bf16.gmra.mxu0 %v2797
  %v4169 = vpop.f32.mrf.mxu0
  %v4170 = vadd.f32 0.0, %v4169
  %v4171 = vpop.f32.mrf.mxu0
  %v4172 = vadd.f32 0.0, %v4171
  %4173 = vmatmul.bf16.gmra.mxu0 %v2800
  %v4174 = vpop.f32.mrf.mxu0
  %v4175 = vadd.f32 0.0, %v4174
  %v4176 = vpop.f32.mrf.mxu0
  %v4177 = vadd.f32 0.0, %v4176
  %4178 = vmatmul.bf16.gmra.mxu0 %v2803
  %v4179 = vpop.f32.mrf.mxu0
  %v4180 = vadd.f32 0.0, %v4179
  %v4181 = vpop.f32.mrf.mxu0
  %v4182 = vadd.f32 0.0, %v4181
  %4183 = vmatmul.bf16.gmra.mxu0 %v2806
  %v4184 = vpop.f32.mrf.mxu0
  %v4185 = vadd.f32 0.0, %v4184
  %v4186 = vpop.f32.mrf.mxu0
  %v4187 = vadd.f32 0.0, %v4186
  %4188 = vmatmul.bf16.gmra.mxu0 %v2809
  %v4189 = vpop.f32.mrf.mxu0
  %v4190 = vadd.f32 0.0, %v4189
  %v4191 = vpop.f32.mrf.mxu0
  %v4192 = vadd.f32 0.0, %v4191
  %4193 = vmatmul.bf16.gmra.mxu0 %v2812
  %v4194 = vpop.f32.mrf.mxu0
  %v4195 = vadd.f32 0.0, %v4194
  %v4196 = vpop.f32.mrf.mxu0
  %v4197 = vadd.f32 0.0, %v4196
  %4198 = vmatmul.bf16.gmra.mxu0 %v2815
  %v4199 = vpop.f32.mrf.mxu0
  %v4200 = vadd.f32 0.0, %v4199
  %v4201 = vpop.f32.mrf.mxu0
  %v4202 = vadd.f32 0.0, %v4201
  %4203 = vmatmul.bf16.gmra.mxu0 %v2818
  %v4204 = vpop.f32.mrf.mxu0
  %v4205 = vadd.f32 0.0, %v4204
  %v4206 = vpop.f32.mrf.mxu0
  %v4207 = vadd.f32 0.0, %v4206
  %4208 = vmatmul.bf16.gmra.mxu0 %v2821
  %v4209 = vpop.f32.mrf.mxu0
  %v4210 = vadd.f32 0.0, %v4209
  %v4211 = vpop.f32.mrf.mxu0
  %v4212 = vadd.f32 0.0, %v4211
  %4213 = vmatmul.bf16.gmra.mxu0 %v2824
  %v4214 = vpop.f32.mrf.mxu0
  %v4215 = vadd.f32 0.0, %v4214
  %v4216 = vpop.f32.mrf.mxu0
  %v4217 = vadd.f32 0.0, %v4216
  %4218 = vmatmul.bf16.gmra.mxu0 %v2827
  %v4219 = vpop.f32.mrf.mxu0
  %v4220 = vadd.f32 0.0, %v4219
  %v4221 = vpop.f32.mrf.mxu0
  %v4222 = vadd.f32 0.0, %v4221
  %4223 = vmatmul.bf16.gmra.mxu0 %v2830
  %v4224 = vpop.f32.mrf.mxu0
  %v4225 = vadd.f32 0.0, %v4224
  %v4226 = vpop.f32.mrf.mxu0
  %v4227 = vadd.f32 0.0, %v4226
  %4228 = vmatmul.bf16.gmra.mxu0 %v2833
  %v4229 = vpop.f32.mrf.mxu0
  %v4230 = vadd.f32 0.0, %v4229
  %v4231 = vpop.f32.mrf.mxu0
  %v4232 = vadd.f32 0.0, %v4231
  %4233 = vmatmul.bf16.gmra.mxu0 %v2836
  %v4234 = vpop.f32.mrf.mxu0
  %v4235 = vadd.f32 0.0, %v4234
  %v4236 = vpop.f32.mrf.mxu0
  %v4237 = vadd.f32 0.0, %v4236
  %4238 = vmatmul.bf16.gmra.mxu0 %v2839
  %v4239 = vpop.f32.mrf.mxu0
  %v4240 = vadd.f32 0.0, %v4239
  %v4241 = vpop.f32.mrf.mxu0
  %v4242 = vadd.f32 0.0, %v4241
  %4243 = vmatmul.bf16.gmra.mxu0 %v2842
  %v4244 = vpop.f32.mrf.mxu0
  %v4245 = vadd.f32 0.0, %v4244
  %v4246 = vpop.f32.mrf.mxu0
  %v4247 = vadd.f32 0.0, %v4246
  %4248 = vmatmul.bf16.gmra.mxu0 %v2845
  %v4249 = vpop.f32.mrf.mxu0
  %v4250 = vadd.f32 0.0, %v4249
  %v4251 = vpop.f32.mrf.mxu0
  %v4252 = vadd.f32 0.0, %v4251
  %4253 = vmatmul.bf16.gmra.mxu0 %v2848
  %v4254 = vpop.f32.mrf.mxu0
  %v4255 = vadd.f32 0.0, %v4254
  %v4256 = vpop.f32.mrf.mxu0
  %v4257 = vadd.f32 0.0, %v4256
  %4258 = vmatmul.bf16.gmra.mxu0 %v2851
  %v4259 = vpop.f32.mrf.mxu0
  %v4260 = vadd.f32 0.0, %v4259
  %v4261 = vpop.f32.mrf.mxu0
  %v4262 = vadd.f32 0.0, %v4261
  %4263 = vmatmul.bf16.gmra.mxu0 %v2854
  %v4264 = vpop.f32.mrf.mxu0
  %v4265 = vadd.f32 0.0, %v4264
  %v4266 = vpop.f32.mrf.mxu0
  %v4267 = vadd.f32 0.0, %v4266
  %4268 = vmatmul.bf16.gmra.mxu0 %v2857
  %v4269 = vpop.f32.mrf.mxu0
  %v4270 = vadd.f32 0.0, %v4269
  %v4271 = vpop.f32.mrf.mxu0
  %v4272 = vadd.f32 0.0, %v4271
  %4273 = vmatmul.bf16.gmra.mxu0 %v2860
  %v4274 = vpop.f32.mrf.mxu0
  %v4275 = vadd.f32 0.0, %v4274
  %v4276 = vpop.f32.mrf.mxu0
  %v4277 = vadd.f32 0.0, %v4276
  %4278 = vmatmul.bf16.gmra.mxu0 %v2863
  %v4279 = vpop.f32.mrf.mxu0
  %v4280 = vadd.f32 0.0, %v4279
  %v4281 = vpop.f32.mrf.mxu0
  %v4282 = vadd.f32 0.0, %v4281
  %4283 = vmatmul.bf16.gmra.mxu0 %v2866
  %v4284 = vpop.f32.mrf.mxu0
  %v4285 = vadd.f32 0.0, %v4284
  %v4286 = vpop.f32.mrf.mxu0
  %v4287 = vadd.f32 0.0, %v4286
  %4288 = vmatmul.bf16.gmra.mxu0 %v2869
  %v4289 = vpop.f32.mrf.mxu0
  %v4290 = vadd.f32 0.0, %v4289
  %v4291 = vpop.f32.mrf.mxu0
  %v4292 = vadd.f32 0.0, %v4291
  %4293 = vmatmul.bf16.gmra.mxu0 %v2872
  %v4294 = vpop.f32.mrf.mxu0
  %v4295 = vadd.f32 0.0, %v4294
  %v4296 = vpop.f32.mrf.mxu0
  %v4297 = vadd.f32 0.0, %v4296
  %4298 = vmatmul.bf16.gmra.mxu0 %v2875
  %v4299 = vpop.f32.mrf.mxu0
  %v4300 = vadd.f32 0.0, %v4299
  %v4301 = vpop.f32.mrf.mxu0
  %v4302 = vadd.f32 0.0, %v4301
  %4303 = vmatmul.bf16.gmra.mxu0 %v2878
  %v4304 = vpop.f32.mrf.mxu0
  %v4305 = vadd.f32 0.0, %v4304
  %v4306 = vpop.f32.mrf.mxu0
  %v4307 = vadd.f32 0.0, %v4306
  %4308 = vmatmul.bf16.gmra.mxu0 %v2881
  %v4309 = vpop.f32.mrf.mxu0
  %v4310 = vadd.f32 0.0, %v4309
  %v4311 = vpop.f32.mrf.mxu0
  %v4312 = vadd.f32 0.0, %v4311
  %4313 = vmatmul.bf16.gmra.mxu0 %v2884
  %v4314 = vpop.f32.mrf.mxu0
  %v4315 = vadd.f32 0.0, %v4314
  %v4316 = vpop.f32.mrf.mxu0
  %v4317 = vadd.f32 0.0, %v4316
  %4318 = vmatmul.bf16.gmra.mxu0 %v2887
  %v4319 = vpop.f32.mrf.mxu0
  %v4320 = vadd.f32 0.0, %v4319
  %v4321 = vpop.f32.mrf.mxu0
  %v4322 = vadd.f32 0.0, %v4321
  %4323 = vmatmul.bf16.gmra.mxu0 %v2890
  %v4324 = vpop.f32.mrf.mxu0
  %v4325 = vadd.f32 0.0, %v4324
  %v4326 = vpop.f32.mrf.mxu0
  %v4327 = vadd.f32 0.0, %v4326
  %4328 = vmatmul.bf16.gmra.mxu0 %v2893
  %v4329 = vpop.f32.mrf.mxu0
  %v4330 = vadd.f32 0.0, %v4329
  %v4331 = vpop.f32.mrf.mxu0
  %v4332 = vadd.f32 0.0, %v4331
  %4333 = vmatmul.bf16.gmra.mxu0 %v2896
  %v4334 = vpop.f32.mrf.mxu0
  %v4335 = vadd.f32 0.0, %v4334
  %v4336 = vpop.f32.mrf.mxu0
  %v4337 = vadd.f32 0.0, %v4336
  %4338 = vmatmul.bf16.gmra.mxu0 %v2899
  %v4339 = vpop.f32.mrf.mxu0
  %v4340 = vadd.f32 0.0, %v4339
  %v4341 = vpop.f32.mrf.mxu0
  %v4342 = vadd.f32 0.0, %v4341
  %4343 = vmatmul.bf16.gmra.mxu0 %v2902
  %v4344 = vpop.f32.mrf.mxu0
  %v4345 = vadd.f32 0.0, %v4344
  %v4346 = vpop.f32.mrf.mxu0
  %v4347 = vadd.f32 0.0, %v4346
  %4348 = vmatmul.bf16.gmra.mxu0 %v2905
  %v4349 = vpop.f32.mrf.mxu0
  %v4350 = vadd.f32 0.0, %v4349
  %v4351 = vpop.f32.mrf.mxu0
  %v4352 = vadd.f32 0.0, %v4351
  %4353 = vmatmul.bf16.gmra.mxu0 %v2908
  %v4354 = vpop.f32.mrf.mxu0
  %v4355 = vadd.f32 0.0, %v4354
  %v4356 = vpop.f32.mrf.mxu0
  %v4357 = vadd.f32 0.0, %v4356
  %4358 = vmatmul.bf16.gmra.mxu0 %v2911
  %v4359 = vpop.f32.mrf.mxu0
  %v4360 = vadd.f32 0.0, %v4359
  %v4361 = vpop.f32.mrf.mxu0
  %v4362 = vadd.f32 0.0, %v4361
  %4363 = vmatmul.bf16.gmra.mxu0 %v2914
  %v4364 = vpop.f32.mrf.mxu0
  %v4365 = vadd.f32 0.0, %v4364
  %v4366 = vpop.f32.mrf.mxu0
  %v4367 = vadd.f32 0.0, %v4366
  %4368 = vdwg.mxu0
  %v4369 = vmax.f32 %v2930, %v3290
  %v4370 = vmax.f32 %v2932, %v3292
  %v4371 = vmax.f32 %v2935, %v3295
  %v4372 = vmax.f32 %v2937, %v3297
  %v4373 = vmax.f32 %v2940, %v3300
  %v4374 = vmax.f32 %v2942, %v3302
  %v4375 = vmax.f32 %v2945, %v3305
  %v4376 = vmax.f32 %v2947, %v3307
  %v4377 = vmax.f32 %v2950, %v3310
  %v4378 = vmax.f32 %v2952, %v3312
  %v4379 = vmax.f32 %v2955, %v3315
  %v4380 = vmax.f32 %v2957, %v3317
  %v4381 = vmax.f32 %v2960, %v3320
  %v4382 = vmax.f32 %v2962, %v3322
  %v4383 = vmax.f32 %v2965, %v3325
  %v4384 = vmax.f32 %v2967, %v3327
  %v4385 = vmax.f32 %v2970, %v3330
  %v4386 = vmax.f32 %v2972, %v3332
  %v4387 = vmax.f32 %v2975, %v3335
  %v4388 = vmax.f32 %v2977, %v3337
  %v4389 = vmax.f32 %v2980, %v3340
  %v4390 = vmax.f32 %v2982, %v3342
  %v4391 = vmax.f32 %v2985, %v3345
  %v4392 = vmax.f32 %v2987, %v3347
  %v4393 = vmax.f32 %v2990, %v3350
  %v4394 = vmax.f32 %v2992, %v3352
  %v4395 = vmax.f32 %v2995, %v3355
  %v4396 = vmax.f32 %v2997, %v3357
  %v4397 = vmax.f32 %v3000, %v3360
  %v4398 = vmax.f32 %v3002, %v3362
  %v4399 = vmax.f32 %v3005, %v3365
  %v4400 = vmax.f32 %v3007, %v3367
  %v4401 = vmax.f32 %v3010, %v3370
  %v4402 = vmax.f32 %v3012, %v3372
  %v4403 = vmax.f32 %v3015, %v3375
  %v4404 = vmax.f32 %v3017, %v3377
  %v4405 = vmax.f32 %v3020, %v3380
  %v4406 = vmax.f32 %v3022, %v3382
  %v4407 = vmax.f32 %v3025, %v3385
  %v4408 = vmax.f32 %v3027, %v3387
  %v4409 = vmax.f32 %v3030, %v3390
  %v4410 = vmax.f32 %v3032, %v3392
  %v4411 = vmax.f32 %v3035, %v3395
  %v4412 = vmax.f32 %v3037, %v3397
  %v4413 = vmax.f32 %v3040, %v3400
  %v4414 = vmax.f32 %v3042, %v3402
  %v4415 = vmax.f32 %v3045, %v3405
  %v4416 = vmax.f32 %v3047, %v3407
  %v4417 = vmax.f32 %v3050, %v3410
  %v4418 = vmax.f32 %v3052, %v3412
  %v4419 = vmax.f32 %v3055, %v3415
  %v4420 = vmax.f32 %v3057, %v3417
  %v4421 = vmax.f32 %v3060, %v3420
  %v4422 = vmax.f32 %v3062, %v3422
  %v4423 = vmax.f32 %v3065, %v3425
  %v4424 = vmax.f32 %v3067, %v3427
  %v4425 = vmax.f32 %v3070, %v3430
  %v4426 = vmax.f32 %v3072, %v3432
  %v4427 = vmax.f32 %v3075, %v3435
  %v4428 = vmax.f32 %v3077, %v3437
  %v4429 = vmax.f32 %v3080, %v3440
  %v4430 = vmax.f32 %v3082, %v3442
  %v4431 = vmax.f32 %v3085, %v3445
  %v4432 = vmax.f32 %v3087, %v3447
  %v4433 = vmax.f32 %v3090, %v3450
  %v4434 = vmax.f32 %v3092, %v3452
  %v4435 = vmax.f32 %v3095, %v3455
  %v4436 = vmax.f32 %v3097, %v3457
  %v4437 = vmax.f32 %v3100, %v3460
  %v4438 = vmax.f32 %v3102, %v3462
  %v4439 = vmax.f32 %v3105, %v3465
  %v4440 = vmax.f32 %v3107, %v3467
  %v4441 = vmax.f32 %v3110, %v3470
  %v4442 = vmax.f32 %v3112, %v3472
  %v4443 = vmax.f32 %v3115, %v3475
  %v4444 = vmax.f32 %v3117, %v3477
  %v4445 = vmax.f32 %v3120, %v3480
  %v4446 = vmax.f32 %v3122, %v3482
  %v4447 = vmax.f32 %v3125, %v3485
  %v4448 = vmax.f32 %v3127, %v3487
  %v4449 = vmax.f32 %v3130, %v3490
  %v4450 = vmax.f32 %v3132, %v3492
  %v4451 = vmax.f32 %v3135, %v3495
  %v4452 = vmax.f32 %v3137, %v3497
  %v4453 = vmax.f32 %v3140, %v3500
  %v4454 = vmax.f32 %v3142, %v3502
  %v4455 = vmax.f32 %v3145, %v3505
  %v4456 = vmax.f32 %v3147, %v3507
  %v4457 = vmax.f32 %v3150, %v3510
  %v4458 = vmax.f32 %v3152, %v3512
  %v4459 = vmax.f32 %v3155, %v3515
  %v4460 = vmax.f32 %v3157, %v3517
  %v4461 = vmax.f32 %v3160, %v3520
  %v4462 = vmax.f32 %v3162, %v3522
  %v4463 = vmax.f32 %v3165, %v3525
  %v4464 = vmax.f32 %v3167, %v3527
  %v4465 = vmax.f32 %v3170, %v3530
  %v4466 = vmax.f32 %v3172, %v3532
  %v4467 = vmax.f32 %v3175, %v3535
  %v4468 = vmax.f32 %v3177, %v3537
  %v4469 = vmax.f32 %v3180, %v3540
  %v4470 = vmax.f32 %v3182, %v3542
  %v4471 = vmax.f32 %v3185, %v3545
  %v4472 = vmax.f32 %v3187, %v3547
  %v4473 = vmax.f32 %v3190, %v3550
  %v4474 = vmax.f32 %v3192, %v3552
  %v4475 = vmax.f32 %v3195, %v3555
  %v4476 = vmax.f32 %v3197, %v3557
  %v4477 = vmax.f32 %v3200, %v3560
  %v4478 = vmax.f32 %v3202, %v3562
  %v4479 = vmax.f32 %v3205, %v3565
  %v4480 = vmax.f32 %v3207, %v3567
  %v4481 = vmax.f32 %v3210, %v3570
  %v4482 = vmax.f32 %v3212, %v3572
  %v4483 = vmax.f32 %v3215, %v3575
  %v4484 = vmax.f32 %v3217, %v3577
  %v4485 = vmax.f32 %v3220, %v3580
  %v4486 = vmax.f32 %v3222, %v3582
  %v4487 = vmax.f32 %v3225, %v3585
  %v4488 = vmax.f32 %v3227, %v3587
  %v4489 = vmax.f32 %v3230, %v3590
  %v4490 = vmax.f32 %v3232, %v3592
  %v4491 = vmax.f32 %v3235, %v3595
  %v4492 = vmax.f32 %v3237, %v3597
  %v4493 = vmax.f32 %v3240, %v3600
  %v4494 = vmax.f32 %v3242, %v3602
  %v4495 = vmax.f32 %v3245, %v3605
  %v4496 = vmax.f32 %v3247, %v3607
  %v4497 = vmax.f32 %v3250, %v3610
  %v4498 = vmax.f32 %v3252, %v3612
  %v4499 = vmax.f32 %v3255, %v3615
  %v4500 = vmax.f32 %v3257, %v3617
  %v4501 = vmax.f32 %v3260, %v3620
  %v4502 = vmax.f32 %v3262, %v3622
  %v4503 = vmax.f32 %v3265, %v3625
  %v4504 = vmax.f32 %v3267, %v3627
  %v4505 = vmax.f32 %v3270, %v3630
  %v4506 = vmax.f32 %v3272, %v3632
  %v4507 = vmax.f32 %v3275, %v3635
  %v4508 = vmax.f32 %v3277, %v3637
  %v4509 = vmax.f32 %v3280, %v3640
  %v4510 = vmax.f32 %v3282, %v3642
  %v4511 = vmax.f32 %v3285, %v3645
  %v4512 = vmax.f32 %v3287, %v3647
  %v4513 = vmax.f32 %v3650, %v4010
  %v4514 = vmax.f32 %v3652, %v4012
  %v4515 = vmax.f32 %v3655, %v4015
  %v4516 = vmax.f32 %v3657, %v4017
  %v4517 = vmax.f32 %v3660, %v4020
  %v4518 = vmax.f32 %v3662, %v4022
  %v4519 = vmax.f32 %v3665, %v4025
  %v4520 = vmax.f32 %v3667, %v4027
  %v4521 = vmax.f32 %v3670, %v4030
  %v4522 = vmax.f32 %v3672, %v4032
  %v4523 = vmax.f32 %v3675, %v4035
  %v4524 = vmax.f32 %v3677, %v4037
  %v4525 = vmax.f32 %v3680, %v4040
  %v4526 = vmax.f32 %v3682, %v4042
  %v4527 = vmax.f32 %v3685, %v4045
  %v4528 = vmax.f32 %v3687, %v4047
  %v4529 = vmax.f32 %v3690, %v4050
  %v4530 = vmax.f32 %v3692, %v4052
  %v4531 = vmax.f32 %v3695, %v4055
  %v4532 = vmax.f32 %v3697, %v4057
  %v4533 = vmax.f32 %v3700, %v4060
  %v4534 = vmax.f32 %v3702, %v4062
  %v4535 = vmax.f32 %v3705, %v4065
  %v4536 = vmax.f32 %v3707, %v4067
  %v4537 = vmax.f32 %v3710, %v4070
  %v4538 = vmax.f32 %v3712, %v4072
  %v4539 = vmax.f32 %v3715, %v4075
  %v4540 = vmax.f32 %v3717, %v4077
  %v4541 = vmax.f32 %v3720, %v4080
  %v4542 = vmax.f32 %v3722, %v4082
  %v4543 = vmax.f32 %v3725, %v4085
  %v4544 = vmax.f32 %v3727, %v4087
  %v4545 = vmax.f32 %v3730, %v4090
  %v4546 = vmax.f32 %v3732, %v4092
  %v4547 = vmax.f32 %v3735, %v4095
  %v4548 = vmax.f32 %v3737, %v4097
  %v4549 = vmax.f32 %v3740, %v4100
  %v4550 = vmax.f32 %v3742, %v4102
  %v4551 = vmax.f32 %v3745, %v4105
  %v4552 = vmax.f32 %v3747, %v4107
  %v4553 = vmax.f32 %v3750, %v4110
  %v4554 = vmax.f32 %v3752, %v4112
  %v4555 = vmax.f32 %v3755, %v4115
  %v4556 = vmax.f32 %v3757, %v4117
  %v4557 = vmax.f32 %v3760, %v4120
  %v4558 = vmax.f32 %v3762, %v4122
  %v4559 = vmax.f32 %v3765, %v4125
  %v4560 = vmax.f32 %v3767, %v4127
  %v4561 = vmax.f32 %v3770, %v4130
  %v4562 = vmax.f32 %v3772, %v4132
  %v4563 = vmax.f32 %v3775, %v4135
  %v4564 = vmax.f32 %v3777, %v4137
  %v4565 = vmax.f32 %v3780, %v4140
  %v4566 = vmax.f32 %v3782, %v4142
  %v4567 = vmax.f32 %v3785, %v4145
  %v4568 = vmax.f32 %v3787, %v4147
  %v4569 = vmax.f32 %v3790, %v4150
  %v4570 = vmax.f32 %v3792, %v4152
  %v4571 = vmax.f32 %v3795, %v4155
  %v4572 = vmax.f32 %v3797, %v4157
  %v4573 = vmax.f32 %v3800, %v4160
  %v4574 = vmax.f32 %v3802, %v4162
  %v4575 = vmax.f32 %v3805, %v4165
  %v4576 = vmax.f32 %v3807, %v4167
  %v4577 = vmax.f32 %v3810, %v4170
  %v4578 = vmax.f32 %v3812, %v4172
  %v4579 = vmax.f32 %v3815, %v4175
  %v4580 = vmax.f32 %v3817, %v4177
  %v4581 = vmax.f32 %v3820, %v4180
  %v4582 = vmax.f32 %v3822, %v4182
  %v4583 = vmax.f32 %v3825, %v4185
  %v4584 = vmax.f32 %v3827, %v4187
  %v4585 = vmax.f32 %v3830, %v4190
  %v4586 = vmax.f32 %v3832, %v4192
  %v4587 = vmax.f32 %v3835, %v4195
  %v4588 = vmax.f32 %v3837, %v4197
  %v4589 = vmax.f32 %v3840, %v4200
  %v4590 = vmax.f32 %v3842, %v4202
  %v4591 = vmax.f32 %v3845, %v4205
  %v4592 = vmax.f32 %v3847, %v4207
  %v4593 = vmax.f32 %v3850, %v4210
  %v4594 = vmax.f32 %v3852, %v4212
  %v4595 = vmax.f32 %v3855, %v4215
  %v4596 = vmax.f32 %v3857, %v4217
  %v4597 = vmax.f32 %v3860, %v4220
  %v4598 = vmax.f32 %v3862, %v4222
  %v4599 = vmax.f32 %v3865, %v4225
  %v4600 = vmax.f32 %v3867, %v4227
  %v4601 = vmax.f32 %v3870, %v4230
  %v4602 = vmax.f32 %v3872, %v4232
  %v4603 = vmax.f32 %v3875, %v4235
  %v4604 = vmax.f32 %v3877, %v4237
  %v4605 = vmax.f32 %v3880, %v4240
  %v4606 = vmax.f32 %v3882, %v4242
  %v4607 = vmax.f32 %v3885, %v4245
  %v4608 = vmax.f32 %v3887, %v4247
  %v4609 = vmax.f32 %v3890, %v4250
  %v4610 = vmax.f32 %v3892, %v4252
  %v4611 = vmax.f32 %v3895, %v4255
  %v4612 = vmax.f32 %v3897, %v4257
  %v4613 = vmax.f32 %v3900, %v4260
  %v4614 = vmax.f32 %v3902, %v4262
  %v4615 = vmax.f32 %v3905, %v4265
  %v4616 = vmax.f32 %v3907, %v4267
  %v4617 = vmax.f32 %v3910, %v4270
  %v4618 = vmax.f32 %v3912, %v4272
  %v4619 = vmax.f32 %v3915, %v4275
  %v4620 = vmax.f32 %v3917, %v4277
  %v4621 = vmax.f32 %v3920, %v4280
  %v4622 = vmax.f32 %v3922, %v4282
  %v4623 = vmax.f32 %v3925, %v4285
  %v4624 = vmax.f32 %v3927, %v4287
  %v4625 = vmax.f32 %v3930, %v4290
  %v4626 = vmax.f32 %v3932, %v4292
  %v4627 = vmax.f32 %v3935, %v4295
  %v4628 = vmax.f32 %v3937, %v4297
  %v4629 = vmax.f32 %v3940, %v4300
  %v4630 = vmax.f32 %v3942, %v4302
  %v4631 = vmax.f32 %v3945, %v4305
  %v4632 = vmax.f32 %v3947, %v4307
  %v4633 = vmax.f32 %v3950, %v4310
  %v4634 = vmax.f32 %v3952, %v4312
  %v4635 = vmax.f32 %v3955, %v4315
  %v4636 = vmax.f32 %v3957, %v4317
  %v4637 = vmax.f32 %v3960, %v4320
  %v4638 = vmax.f32 %v3962, %v4322
  %v4639 = vmax.f32 %v3965, %v4325
  %v4640 = vmax.f32 %v3967, %v4327
  %v4641 = vmax.f32 %v3970, %v4330
  %v4642 = vmax.f32 %v3972, %v4332
  %v4643 = vmax.f32 %v3975, %v4335
  %v4644 = vmax.f32 %v3977, %v4337
  %v4645 = vmax.f32 %v3980, %v4340
  %v4646 = vmax.f32 %v3982, %v4342
  %v4647 = vmax.f32 %v3985, %v4345
  %v4648 = vmax.f32 %v3987, %v4347
  %v4649 = vmax.f32 %v3990, %v4350
  %v4650 = vmax.f32 %v3992, %v4352
  %v4651 = vmax.f32 %v3995, %v4355
  %v4652 = vmax.f32 %v3997, %v4357
  %v4653 = vmax.f32 %v4000, %v4360
  %v4654 = vmax.f32 %v4002, %v4362
  %v4655 = vmax.f32 %v4005, %v4365
  %v4656 = vmax.f32 %v4007, %v4367
  %v4657 = vmax.f32 %v4369, %v4513
  %v4658 = vmax.f32 %v4370, %v4514
  %v4659 = vmax.f32 %v4371, %v4515
  %v4660 = vmax.f32 %v4372, %v4516
  %v4661 = vmax.f32 %v4373, %v4517
  %v4662 = vmax.f32 %v4374, %v4518
  %v4663 = vmax.f32 %v4375, %v4519
  %v4664 = vmax.f32 %v4376, %v4520
  %v4665 = vmax.f32 %v4377, %v4521
  %v4666 = vmax.f32 %v4378, %v4522
  %v4667 = vmax.f32 %v4379, %v4523
  %v4668 = vmax.f32 %v4380, %v4524
  %v4669 = vmax.f32 %v4381, %v4525
  %v4670 = vmax.f32 %v4382, %v4526
  %v4671 = vmax.f32 %v4383, %v4527
  %v4672 = vmax.f32 %v4384, %v4528
  %v4673 = vmax.f32 %v4385, %v4529
  %v4674 = vmax.f32 %v4386, %v4530
  %v4675 = vmax.f32 %v4387, %v4531
  %v4676 = vmax.f32 %v4388, %v4532
  %v4677 = vmax.f32 %v4389, %v4533
  %v4678 = vmax.f32 %v4390, %v4534
  %v4679 = vmax.f32 %v4391, %v4535
  %v4680 = vmax.f32 %v4392, %v4536
  %v4681 = vmax.f32 %v4393, %v4537
  %v4682 = vmax.f32 %v4394, %v4538
  %v4683 = vmax.f32 %v4395, %v4539
  %v4684 = vmax.f32 %v4396, %v4540
  %v4685 = vmax.f32 %v4397, %v4541
  %v4686 = vmax.f32 %v4398, %v4542
  %v4687 = vmax.f32 %v4399, %v4543
  %v4688 = vmax.f32 %v4400, %v4544
  %v4689 = vmax.f32 %v4401, %v4545
  %v4690 = vmax.f32 %v4402, %v4546
  %v4691 = vmax.f32 %v4403, %v4547
  %v4692 = vmax.f32 %v4404, %v4548
  %v4693 = vmax.f32 %v4405, %v4549
  %v4694 = vmax.f32 %v4406, %v4550
  %v4695 = vmax.f32 %v4407, %v4551
  %v4696 = vmax.f32 %v4408, %v4552
  %v4697 = vmax.f32 %v4409, %v4553
  %v4698 = vmax.f32 %v4410, %v4554
  %v4699 = vmax.f32 %v4411, %v4555
  %v4700 = vmax.f32 %v4412, %v4556
  %v4701 = vmax.f32 %v4413, %v4557
  %v4702 = vmax.f32 %v4414, %v4558
  %v4703 = vmax.f32 %v4415, %v4559
  %v4704 = vmax.f32 %v4416, %v4560
  %v4705 = vmax.f32 %v4417, %v4561
  %v4706 = vmax.f32 %v4418, %v4562
  %v4707 = vmax.f32 %v4419, %v4563
  %v4708 = vmax.f32 %v4420, %v4564
  %v4709 = vmax.f32 %v4421, %v4565
  %v4710 = vmax.f32 %v4422, %v4566
  %v4711 = vmax.f32 %v4423, %v4567
  %v4712 = vmax.f32 %v4424, %v4568
  %v4713 = vmax.f32 %v4425, %v4569
  %v4714 = vmax.f32 %v4426, %v4570
  %v4715 = vmax.f32 %v4427, %v4571
  %v4716 = vmax.f32 %v4428, %v4572
  %v4717 = vmax.f32 %v4429, %v4573
  %v4718 = vmax.f32 %v4430, %v4574
  %v4719 = vmax.f32 %v4431, %v4575
  %v4720 = vmax.f32 %v4432, %v4576
  %v4721 = vmax.f32 %v4433, %v4577
  %v4722 = vmax.f32 %v4434, %v4578
  %v4723 = vmax.f32 %v4435, %v4579
  %v4724 = vmax.f32 %v4436, %v4580
  %v4725 = vmax.f32 %v4437, %v4581
  %v4726 = vmax.f32 %v4438, %v4582
  %v4727 = vmax.f32 %v4439, %v4583
  %v4728 = vmax.f32 %v4440, %v4584
  %v4729 = vmax.f32 %v4441, %v4585
  %v4730 = vmax.f32 %v4442, %v4586
  %v4731 = vmax.f32 %v4443, %v4587
  %v4732 = vmax.f32 %v4444, %v4588
  %v4733 = vmax.f32 %v4445, %v4589
  %v4734 = vmax.f32 %v4446, %v4590
  %v4735 = vmax.f32 %v4447, %v4591
  %v4736 = vmax.f32 %v4448, %v4592
  %v4737 = vmax.f32 %v4449, %v4593
  %v4738 = vmax.f32 %v4450, %v4594
  %v4739 = vmax.f32 %v4451, %v4595
  %v4740 = vmax.f32 %v4452, %v4596
  %v4741 = vmax.f32 %v4453, %v4597
  %v4742 = vmax.f32 %v4454, %v4598
  %v4743 = vmax.f32 %v4455, %v4599
  %v4744 = vmax.f32 %v4456, %v4600
  %v4745 = vmax.f32 %v4457, %v4601
  %v4746 = vmax.f32 %v4458, %v4602
  %v4747 = vmax.f32 %v4459, %v4603
  %v4748 = vmax.f32 %v4460, %v4604
  %v4749 = vmax.f32 %v4461, %v4605
  %v4750 = vmax.f32 %v4462, %v4606
  %v4751 = vmax.f32 %v4463, %v4607
  %v4752 = vmax.f32 %v4464, %v4608
  %v4753 = vmax.f32 %v4465, %v4609
  %v4754 = vmax.f32 %v4466, %v4610
  %v4755 = vmax.f32 %v4467, %v4611
  %v4756 = vmax.f32 %v4468, %v4612
  %v4757 = vmax.f32 %v4469, %v4613
  %v4758 = vmax.f32 %v4470, %v4614
  %v4759 = vmax.f32 %v4471, %v4615
  %v4760 = vmax.f32 %v4472, %v4616
  %v4761 = vmax.f32 %v4473, %v4617
  %v4762 = vmax.f32 %v4474, %v4618
  %v4763 = vmax.f32 %v4475, %v4619
  %v4764 = vmax.f32 %v4476, %v4620
  %v4765 = vmax.f32 %v4477, %v4621
  %v4766 = vmax.f32 %v4478, %v4622
  %v4767 = vmax.f32 %v4479, %v4623
  %v4768 = vmax.f32 %v4480, %v4624
  %v4769 = vmax.f32 %v4481, %v4625
  %v4770 = vmax.f32 %v4482, %v4626
  %v4771 = vmax.f32 %v4483, %v4627
  %v4772 = vmax.f32 %v4484, %v4628
  %v4773 = vmax.f32 %v4485, %v4629
  %v4774 = vmax.f32 %v4486, %v4630
  %v4775 = vmax.f32 %v4487, %v4631
  %v4776 = vmax.f32 %v4488, %v4632
  %v4777 = vmax.f32 %v4489, %v4633
  %v4778 = vmax.f32 %v4490, %v4634
  %v4779 = vmax.f32 %v4491, %v4635
  %v4780 = vmax.f32 %v4492, %v4636
  %v4781 = vmax.f32 %v4493, %v4637
  %v4782 = vmax.f32 %v4494, %v4638
  %v4783 = vmax.f32 %v4495, %v4639
  %v4784 = vmax.f32 %v4496, %v4640
  %v4785 = vmax.f32 %v4497, %v4641
  %v4786 = vmax.f32 %v4498, %v4642
  %v4787 = vmax.f32 %v4499, %v4643
  %v4788 = vmax.f32 %v4500, %v4644
  %v4789 = vmax.f32 %v4501, %v4645
  %v4790 = vmax.f32 %v4502, %v4646
  %v4791 = vmax.f32 %v4503, %v4647
  %v4792 = vmax.f32 %v4504, %v4648
  %v4793 = vmax.f32 %v4505, %v4649
  %v4794 = vmax.f32 %v4506, %v4650
  %v4795 = vmax.f32 %v4507, %v4651
  %v4796 = vmax.f32 %v4508, %v4652
  %v4797 = vmax.f32 %v4509, %v4653
  %v4798 = vmax.f32 %v4510, %v4654
  %v4799 = vmax.f32 %v4511, %v4655
  %v4800 = vmax.f32 %v4512, %v4656
  %v4801 = vld [vmem:[%s2] sm:$0x1]
  %v4803 = vperm.slane %v4801, 0
  %v4805 = vadd.f32 %v4657, %v4803
  %v4806 = vadd.f32 %v4658, %v4803
  %v4807 = vadd.f32 %v4659, %v4803
  %v4808 = vadd.f32 %v4660, %v4803
  %v4809 = vadd.f32 %v4661, %v4803
  %v4810 = vadd.f32 %v4662, %v4803
  %v4811 = vadd.f32 %v4663, %v4803
  %v4812 = vadd.f32 %v4664, %v4803
  %v4813 = vadd.f32 %v4665, %v4803
  %v4814 = vadd.f32 %v4666, %v4803
  %v4815 = vadd.f32 %v4667, %v4803
  %v4816 = vadd.f32 %v4668, %v4803
  %v4817 = vadd.f32 %v4669, %v4803
  %v4818 = vadd.f32 %v4670, %v4803
  %v4819 = vadd.f32 %v4671, %v4803
  %v4820 = vadd.f32 %v4672, %v4803
  %v4821 = vadd.f32 %v4673, %v4803
  %v4822 = vadd.f32 %v4674, %v4803
  %v4823 = vadd.f32 %v4675, %v4803
  %v4824 = vadd.f32 %v4676, %v4803
  %v4825 = vadd.f32 %v4677, %v4803
  %v4826 = vadd.f32 %v4678, %v4803
  %v4827 = vadd.f32 %v4679, %v4803
  %v4828 = vadd.f32 %v4680, %v4803
  %v4829 = vadd.f32 %v4681, %v4803
  %v4830 = vadd.f32 %v4682, %v4803
  %v4831 = vadd.f32 %v4683, %v4803
  %v4832 = vadd.f32 %v4684, %v4803
  %v4833 = vadd.f32 %v4685, %v4803
  %v4834 = vadd.f32 %v4686, %v4803
  %v4835 = vadd.f32 %v4687, %v4803
  %v4836 = vadd.f32 %v4688, %v4803
  %v4837 = vadd.f32 %v4689, %v4803
  %v4838 = vadd.f32 %v4690, %v4803
  %v4839 = vadd.f32 %v4691, %v4803
  %v4840 = vadd.f32 %v4692, %v4803
  %v4841 = vadd.f32 %v4693, %v4803
  %v4842 = vadd.f32 %v4694, %v4803
  %v4843 = vadd.f32 %v4695, %v4803
  %v4844 = vadd.f32 %v4696, %v4803
  %v4845 = vadd.f32 %v4697, %v4803
  %v4846 = vadd.f32 %v4698, %v4803
  %v4847 = vadd.f32 %v4699, %v4803
  %v4848 = vadd.f32 %v4700, %v4803
  %v4849 = vadd.f32 %v4701, %v4803
  %v4850 = vadd.f32 %v4702, %v4803
  %v4851 = vadd.f32 %v4703, %v4803
  %v4852 = vadd.f32 %v4704, %v4803
  %v4853 = vadd.f32 %v4705, %v4803
  %v4854 = vadd.f32 %v4706, %v4803
  %v4855 = vadd.f32 %v4707, %v4803
  %v4856 = vadd.f32 %v4708, %v4803
  %v4857 = vadd.f32 %v4709, %v4803
  %v4858 = vadd.f32 %v4710, %v4803
  %v4859 = vadd.f32 %v4711, %v4803
  %v4860 = vadd.f32 %v4712, %v4803
  %v4861 = vadd.f32 %v4713, %v4803
  %v4862 = vadd.f32 %v4714, %v4803
  %v4863 = vadd.f32 %v4715, %v4803
  %v4864 = vadd.f32 %v4716, %v4803
  %v4865 = vadd.f32 %v4717, %v4803
  %v4866 = vadd.f32 %v4718, %v4803
  %v4867 = vadd.f32 %v4719, %v4803
  %v4868 = vadd.f32 %v4720, %v4803
  %v4869 = vadd.f32 %v4721, %v4803
  %v4870 = vadd.f32 %v4722, %v4803
  %v4871 = vadd.f32 %v4723, %v4803
  %v4872 = vadd.f32 %v4724, %v4803
  %v4873 = vadd.f32 %v4725, %v4803
  %v4874 = vadd.f32 %v4726, %v4803
  %v4875 = vadd.f32 %v4727, %v4803
  %v4876 = vadd.f32 %v4728, %v4803
  %v4877 = vadd.f32 %v4729, %v4803
  %v4878 = vadd.f32 %v4730, %v4803
  %v4879 = vadd.f32 %v4731, %v4803
  %v4880 = vadd.f32 %v4732, %v4803
  %v4881 = vadd.f32 %v4733, %v4803
  %v4882 = vadd.f32 %v4734, %v4803
  %v4883 = vadd.f32 %v4735, %v4803
  %v4884 = vadd.f32 %v4736, %v4803
  %v4885 = vadd.f32 %v4737, %v4803
  %v4886 = vadd.f32 %v4738, %v4803
  %v4887 = vadd.f32 %v4739, %v4803
  %v4888 = vadd.f32 %v4740, %v4803
  %v4889 = vadd.f32 %v4741, %v4803
  %v4890 = vadd.f32 %v4742, %v4803
  %v4891 = vadd.f32 %v4743, %v4803
  %v4892 = vadd.f32 %v4744, %v4803
  %v4893 = vadd.f32 %v4745, %v4803
  %v4894 = vadd.f32 %v4746, %v4803
  %v4895 = vadd.f32 %v4747, %v4803
  %v4896 = vadd.f32 %v4748, %v4803
  %v4897 = vadd.f32 %v4749, %v4803
  %v4898 = vadd.f32 %v4750, %v4803
  %v4899 = vadd.f32 %v4751, %v4803
  %v4900 = vadd.f32 %v4752, %v4803
  %v4901 = vadd.f32 %v4753, %v4803
  %v4902 = vadd.f32 %v4754, %v4803
  %v4903 = vadd.f32 %v4755, %v4803
  %v4904 = vadd.f32 %v4756, %v4803
  %v4905 = vadd.f32 %v4757, %v4803
  %v4906 = vadd.f32 %v4758, %v4803
  %v4907 = vadd.f32 %v4759, %v4803
  %v4908 = vadd.f32 %v4760, %v4803
  %v4909 = vadd.f32 %v4761, %v4803
  %v4910 = vadd.f32 %v4762, %v4803
  %v4911 = vadd.f32 %v4763, %v4803
  %v4912 = vadd.f32 %v4764, %v4803
  %v4913 = vadd.f32 %v4765, %v4803
  %v4914 = vadd.f32 %v4766, %v4803
  %v4915 = vadd.f32 %v4767, %v4803
  %v4916 = vadd.f32 %v4768, %v4803
  %v4917 = vadd.f32 %v4769, %v4803
  %v4918 = vadd.f32 %v4770, %v4803
  %v4919 = vadd.f32 %v4771, %v4803
  %v4920 = vadd.f32 %v4772, %v4803
  %v4921 = vadd.f32 %v4773, %v4803
  %v4922 = vadd.f32 %v4774, %v4803
  %v4923 = vadd.f32 %v4775, %v4803
  %v4924 = vadd.f32 %v4776, %v4803
  %v4925 = vadd.f32 %v4777, %v4803
  %v4926 = vadd.f32 %v4778, %v4803
  %v4927 = vadd.f32 %v4779, %v4803
  %v4928 = vadd.f32 %v4780, %v4803
  %v4929 = vadd.f32 %v4781, %v4803
  %v4930 = vadd.f32 %v4782, %v4803
  %v4931 = vadd.f32 %v4783, %v4803
  %v4932 = vadd.f32 %v4784, %v4803
  %v4933 = vadd.f32 %v4785, %v4803
  %v4934 = vadd.f32 %v4786, %v4803
  %v4935 = vadd.f32 %v4787, %v4803
  %v4936 = vadd.f32 %v4788, %v4803
  %v4937 = vadd.f32 %v4789, %v4803
  %v4938 = vadd.f32 %v4790, %v4803
  %v4939 = vadd.f32 %v4791, %v4803
  %v4940 = vadd.f32 %v4792, %v4803
  %v4941 = vadd.f32 %v4793, %v4803
  %v4942 = vadd.f32 %v4794, %v4803
  %v4943 = vadd.f32 %v4795, %v4803
  %v4944 = vadd.f32 %v4796, %v4803
  %v4945 = vadd.f32 %v4797, %v4803
  %v4946 = vadd.f32 %v4798, %v4803
  %v4947 = vadd.f32 %v4799, %v4803
  %v4948 = vadd.f32 %v4800, %v4803
  %v4949 = vmax.f32 %v4805, 0.0
  %v4950 = vmax.f32 %v4806, 0.0
  %v4951 = vmax.f32 %v4807, 0.0
  %v4952 = vmax.f32 %v4808, 0.0
  %v4953 = vmax.f32 %v4809, 0.0
  %v4954 = vmax.f32 %v4810, 0.0
  %v4955 = vmax.f32 %v4811, 0.0
  %v4956 = vmax.f32 %v4812, 0.0
  %v4957 = vmax.f32 %v4813, 0.0
  %v4958 = vmax.f32 %v4814, 0.0
  %v4959 = vmax.f32 %v4815, 0.0
  %v4960 = vmax.f32 %v4816, 0.0
  %v4961 = vmax.f32 %v4817, 0.0
  %v4962 = vmax.f32 %v4818, 0.0
  %v4963 = vmax.f32 %v4819, 0.0
  %v4964 = vmax.f32 %v4820, 0.0
  %v4965 = vmax.f32 %v4821, 0.0
  %v4966 = vmax.f32 %v4822, 0.0
  %v4967 = vmax.f32 %v4823, 0.0
  %v4968 = vmax.f32 %v4824, 0.0
  %v4969 = vmax.f32 %v4825, 0.0
  %v4970 = vmax.f32 %v4826, 0.0
  %v4971 = vmax.f32 %v4827, 0.0
  %v4972 = vmax.f32 %v4828, 0.0
  %v4973 = vmax.f32 %v4829, 0.0
  %v4974 = vmax.f32 %v4830, 0.0
  %v4975 = vmax.f32 %v4831, 0.0
  %v4976 = vmax.f32 %v4832, 0.0
  %v4977 = vmax.f32 %v4833, 0.0
  %v4978 = vmax.f32 %v4834, 0.0
  %v4979 = vmax.f32 %v4835, 0.0
  %v4980 = vmax.f32 %v4836, 0.0
  %v4981 = vmax.f32 %v4837, 0.0
  %v4982 = vmax.f32 %v4838, 0.0
  %v4983 = vmax.f32 %v4839, 0.0
  %v4984 = vmax.f32 %v4840, 0.0
  %v4985 = vmax.f32 %v4841, 0.0
  %v4986 = vmax.f32 %v4842, 0.0
  %v4987 = vmax.f32 %v4843, 0.0
  %v4988 = vmax.f32 %v4844, 0.0
  %v4989 = vmax.f32 %v4845, 0.0
  %v4990 = vmax.f32 %v4846, 0.0
  %v4991 = vmax.f32 %v4847, 0.0
  %v4992 = vmax.f32 %v4848, 0.0
  %v4993 = vmax.f32 %v4849, 0.0
  %v4994 = vmax.f32 %v4850, 0.0
  %v4995 = vmax.f32 %v4851, 0.0
  %v4996 = vmax.f32 %v4852, 0.0
  %v4997 = vmax.f32 %v4853, 0.0
  %v4998 = vmax.f32 %v4854, 0.0
  %v4999 = vmax.f32 %v4855, 0.0
  %v5000 = vmax.f32 %v4856, 0.0
  %v5001 = vmax.f32 %v4857, 0.0
  %v5002 = vmax.f32 %v4858, 0.0
  %v5003 = vmax.f32 %v4859, 0.0
  %v5004 = vmax.f32 %v4860, 0.0
  %v5005 = vmax.f32 %v4861, 0.0
  %v5006 = vmax.f32 %v4862, 0.0
  %v5007 = vmax.f32 %v4863, 0.0
  %v5008 = vmax.f32 %v4864, 0.0
  %v5009 = vmax.f32 %v4865, 0.0
  %v5010 = vmax.f32 %v4866, 0.0
  %v5011 = vmax.f32 %v4867, 0.0
  %v5012 = vmax.f32 %v4868, 0.0
  %v5013 = vmax.f32 %v4869, 0.0
  %v5014 = vmax.f32 %v4870, 0.0
  %v5015 = vmax.f32 %v4871, 0.0
  %v5016 = vmax.f32 %v4872, 0.0
  %v5017 = vmax.f32 %v4873, 0.0
  %v5018 = vmax.f32 %v4874, 0.0
  %v5019 = vmax.f32 %v4875, 0.0
  %v5020 = vmax.f32 %v4876, 0.0
  %v5021 = vmax.f32 %v4877, 0.0
  %v5022 = vmax.f32 %v4878, 0.0
  %v5023 = vmax.f32 %v4879, 0.0
  %v5024 = vmax.f32 %v4880, 0.0
  %v5025 = vmax.f32 %v4881, 0.0
  %v5026 = vmax.f32 %v4882, 0.0
  %v5027 = vmax.f32 %v4883, 0.0
  %v5028 = vmax.f32 %v4884, 0.0
  %v5029 = vmax.f32 %v4885, 0.0
  %v5030 = vmax.f32 %v4886, 0.0
  %v5031 = vmax.f32 %v4887, 0.0
  %v5032 = vmax.f32 %v4888, 0.0
  %v5033 = vmax.f32 %v4889, 0.0
  %v5034 = vmax.f32 %v4890, 0.0
  %v5035 = vmax.f32 %v4891, 0.0
  %v5036 = vmax.f32 %v4892, 0.0
  %v5037 = vmax.f32 %v4893, 0.0
  %v5038 = vmax.f32 %v4894, 0.0
  %v5039 = vmax.f32 %v4895, 0.0
  %v5040 = vmax.f32 %v4896, 0.0
  %v5041 = vmax.f32 %v4897, 0.0
  %v5042 = vmax.f32 %v4898, 0.0
  %v5043 = vmax.f32 %v4899, 0.0
  %v5044 = vmax.f32 %v4900, 0.0
  %v5045 = vmax.f32 %v4901, 0.0
  %v5046 = vmax.f32 %v4902, 0.0
  %v5047 = vmax.f32 %v4903, 0.0
  %v5048 = vmax.f32 %v4904, 0.0
  %v5049 = vmax.f32 %v4905, 0.0
  %v5050 = vmax.f32 %v4906, 0.0
  %v5051 = vmax.f32 %v4907, 0.0
  %v5052 = vmax.f32 %v4908, 0.0
  %v5053 = vmax.f32 %v4909, 0.0
  %v5054 = vmax.f32 %v4910, 0.0
  %v5055 = vmax.f32 %v4911, 0.0
  %v5056 = vmax.f32 %v4912, 0.0
  %v5057 = vmax.f32 %v4913, 0.0
  %v5058 = vmax.f32 %v4914, 0.0
  %v5059 = vmax.f32 %v4915, 0.0
  %v5060 = vmax.f32 %v4916, 0.0
  %v5061 = vmax.f32 %v4917, 0.0
  %v5062 = vmax.f32 %v4918, 0.0
  %v5063 = vmax.f32 %v4919, 0.0
  %v5064 = vmax.f32 %v4920, 0.0
  %v5065 = vmax.f32 %v4921, 0.0
  %v5066 = vmax.f32 %v4922, 0.0
  %v5067 = vmax.f32 %v4923, 0.0
  %v5068 = vmax.f32 %v4924, 0.0
  %v5069 = vmax.f32 %v4925, 0.0
  %v5070 = vmax.f32 %v4926, 0.0
  %v5071 = vmax.f32 %v4927, 0.0
  %v5072 = vmax.f32 %v4928, 0.0
  %v5073 = vmax.f32 %v4929, 0.0
  %v5074 = vmax.f32 %v4930, 0.0
  %v5075 = vmax.f32 %v4931, 0.0
  %v5076 = vmax.f32 %v4932, 0.0
  %v5077 = vmax.f32 %v4933, 0.0
  %v5078 = vmax.f32 %v4934, 0.0
  %v5079 = vmax.f32 %v4935, 0.0
  %v5080 = vmax.f32 %v4936, 0.0
  %v5081 = vmax.f32 %v4937, 0.0
  %v5082 = vmax.f32 %v4938, 0.0
  %v5083 = vmax.f32 %v4939, 0.0
  %v5084 = vmax.f32 %v4940, 0.0
  %v5085 = vmax.f32 %v4941, 0.0
  %v5086 = vmax.f32 %v4942, 0.0
  %v5087 = vmax.f32 %v4943, 0.0
  %v5088 = vmax.f32 %v4944, 0.0
  %v5089 = vmax.f32 %v4945, 0.0
  %v5090 = vmax.f32 %v4946, 0.0
  %v5091 = vmax.f32 %v4947, 0.0
  %v5092 = vmax.f32 %v4948, 0.0
  %v5093 = vpack.c.bf16 %v4949, %v4949
  %v5094 = vpack.c.bf16 %v4950, %v4950
  %v5095 = vpack.c.bf16 %v4951, %v4951
  %v5096 = vpack.c.bf16 %v4952, %v4952
  %v5097 = vpack.c.bf16 %v4953, %v4953
  %v5098 = vpack.c.bf16 %v4954, %v4954
  %v5099 = vpack.c.bf16 %v4955, %v4955
  %v5100 = vpack.c.bf16 %v4956, %v4956
  %v5101 = vpack.c.bf16 %v4957, %v4957
  %v5102 = vpack.c.bf16 %v4958, %v4958
  %v5103 = vpack.c.bf16 %v4959, %v4959
  %v5104 = vpack.c.bf16 %v4960, %v4960
  %v5105 = vpack.c.bf16 %v4961, %v4961
  %v5106 = vpack.c.bf16 %v4962, %v4962
  %v5107 = vpack.c.bf16 %v4963, %v4963
  %v5108 = vpack.c.bf16 %v4964, %v4964
  %v5109 = vpack.c.bf16 %v4965, %v4965
  %v5110 = vpack.c.bf16 %v4966, %v4966
  %v5111 = vpack.c.bf16 %v4967, %v4967
  %v5112 = vpack.c.bf16 %v4968, %v4968
  %v5113 = vpack.c.bf16 %v4969, %v4969
  %v5114 = vpack.c.bf16 %v4970, %v4970
  %v5115 = vpack.c.bf16 %v4971, %v4971
  %v5116 = vpack.c.bf16 %v4972, %v4972
  %v5117 = vpack.c.bf16 %v4973, %v4973
  %v5118 = vpack.c.bf16 %v4974, %v4974
  %v5119 = vpack.c.bf16 %v4975, %v4975
  %v5120 = vpack.c.bf16 %v4976, %v4976
  %v5121 = vpack.c.bf16 %v4977, %v4977
  %v5122 = vpack.c.bf16 %v4978, %v4978
  %v5123 = vpack.c.bf16 %v4979, %v4979
  %v5124 = vpack.c.bf16 %v4980, %v4980
  %v5125 = vpack.c.bf16 %v4981, %v4981
  %v5126 = vpack.c.bf16 %v4982, %v4982
  %v5127 = vpack.c.bf16 %v4983, %v4983
  %v5128 = vpack.c.bf16 %v4984, %v4984
  %v5129 = vpack.c.bf16 %v4985, %v4985
  %v5130 = vpack.c.bf16 %v4986, %v4986
  %v5131 = vpack.c.bf16 %v4987, %v4987
  %v5132 = vpack.c.bf16 %v4988, %v4988
  %v5133 = vpack.c.bf16 %v4989, %v4989
  %v5134 = vpack.c.bf16 %v4990, %v4990
  %v5135 = vpack.c.bf16 %v4991, %v4991
  %v5136 = vpack.c.bf16 %v4992, %v4992
  %v5137 = vpack.c.bf16 %v4993, %v4993
  %v5138 = vpack.c.bf16 %v4994, %v4994
  %v5139 = vpack.c.bf16 %v4995, %v4995
  %v5140 = vpack.c.bf16 %v4996, %v4996
  %v5141 = vpack.c.bf16 %v4997, %v4997
  %v5142 = vpack.c.bf16 %v4998, %v4998
  %v5143 = vpack.c.bf16 %v4999, %v4999
  %v5144 = vpack.c.bf16 %v5000, %v5000
  %v5145 = vpack.c.bf16 %v5001, %v5001
  %v5146 = vpack.c.bf16 %v5002, %v5002
  %v5147 = vpack.c.bf16 %v5003, %v5003
  %v5148 = vpack.c.bf16 %v5004, %v5004
  %v5149 = vpack.c.bf16 %v5005, %v5005
  %v5150 = vpack.c.bf16 %v5006, %v5006
  %v5151 = vpack.c.bf16 %v5007, %v5007
  %v5152 = vpack.c.bf16 %v5008, %v5008
  %v5153 = vpack.c.bf16 %v5009, %v5009
  %v5154 = vpack.c.bf16 %v5010, %v5010
  %v5155 = vpack.c.bf16 %v5011, %v5011
  %v5156 = vpack.c.bf16 %v5012, %v5012
  %v5157 = vpack.c.bf16 %v5013, %v5013
  %v5158 = vpack.c.bf16 %v5014, %v5014
  %v5159 = vpack.c.bf16 %v5015, %v5015
  %v5160 = vpack.c.bf16 %v5016, %v5016
  %v5161 = vpack.c.bf16 %v5017, %v5017
  %v5162 = vpack.c.bf16 %v5018, %v5018
  %v5163 = vpack.c.bf16 %v5019, %v5019
  %v5164 = vpack.c.bf16 %v5020, %v5020
  %v5165 = vpack.c.bf16 %v5021, %v5021
  %v5166 = vpack.c.bf16 %v5022, %v5022
  %v5167 = vpack.c.bf16 %v5023, %v5023
  %v5168 = vpack.c.bf16 %v5024, %v5024
  %v5169 = vpack.c.bf16 %v5025, %v5025
  %v5170 = vpack.c.bf16 %v5026, %v5026
  %v5171 = vpack.c.bf16 %v5027, %v5027
  %v5172 = vpack.c.bf16 %v5028, %v5028
  %v5173 = vpack.c.bf16 %v5029, %v5029
  %v5174 = vpack.c.bf16 %v5030, %v5030
  %v5175 = vpack.c.bf16 %v5031, %v5031
  %v5176 = vpack.c.bf16 %v5032, %v5032
  %v5177 = vpack.c.bf16 %v5033, %v5033
  %v5178 = vpack.c.bf16 %v5034, %v5034
  %v5179 = vpack.c.bf16 %v5035, %v5035
  %v5180 = vpack.c.bf16 %v5036, %v5036
  %v5181 = vpack.c.bf16 %v5037, %v5037
  %v5182 = vpack.c.bf16 %v5038, %v5038
  %v5183 = vpack.c.bf16 %v5039, %v5039
  %v5184 = vpack.c.bf16 %v5040, %v5040
  %v5185 = vpack.c.bf16 %v5041, %v5041
  %v5186 = vpack.c.bf16 %v5042, %v5042
  %v5187 = vpack.c.bf16 %v5043, %v5043
  %v5188 = vpack.c.bf16 %v5044, %v5044
  %v5189 = vpack.c.bf16 %v5045, %v5045
  %v5190 = vpack.c.bf16 %v5046, %v5046
  %v5191 = vpack.c.bf16 %v5047, %v5047
  %v5192 = vpack.c.bf16 %v5048, %v5048
  %v5193 = vpack.c.bf16 %v5049, %v5049
  %v5194 = vpack.c.bf16 %v5050, %v5050
  %v5195 = vpack.c.bf16 %v5051, %v5051
  %v5196 = vpack.c.bf16 %v5052, %v5052
  %v5197 = vpack.c.bf16 %v5053, %v5053
  %v5198 = vpack.c.bf16 %v5054, %v5054
  %v5199 = vpack.c.bf16 %v5055, %v5055
  %v5200 = vpack.c.bf16 %v5056, %v5056
  %v5201 = vpack.c.bf16 %v5057, %v5057
  %v5202 = vpack.c.bf16 %v5058, %v5058
  %v5203 = vpack.c.bf16 %v5059, %v5059
  %v5204 = vpack.c.bf16 %v5060, %v5060
  %v5205 = vpack.c.bf16 %v5061, %v5061
  %v5206 = vpack.c.bf16 %v5062, %v5062
  %v5207 = vpack.c.bf16 %v5063, %v5063
  %v5208 = vpack.c.bf16 %v5064, %v5064
  %v5209 = vpack.c.bf16 %v5065, %v5065
  %v5210 = vpack.c.bf16 %v5066, %v5066
  %v5211 = vpack.c.bf16 %v5067, %v5067
  %v5212 = vpack.c.bf16 %v5068, %v5068
  %v5213 = vpack.c.bf16 %v5069, %v5069
  %v5214 = vpack.c.bf16 %v5070, %v5070
  %v5215 = vpack.c.bf16 %v5071, %v5071
  %v5216 = vpack.c.bf16 %v5072, %v5072
  %v5217 = vpack.c.bf16 %v5073, %v5073
  %v5218 = vpack.c.bf16 %v5074, %v5074
  %v5219 = vpack.c.bf16 %v5075, %v5075
  %v5220 = vpack.c.bf16 %v5076, %v5076
  %v5221 = vpack.c.bf16 %v5077, %v5077
  %v5222 = vpack.c.bf16 %v5078, %v5078
  %v5223 = vpack.c.bf16 %v5079, %v5079
  %v5224 = vpack.c.bf16 %v5080, %v5080
  %v5225 = vpack.c.bf16 %v5081, %v5081
  %v5226 = vpack.c.bf16 %v5082, %v5082
  %v5227 = vpack.c.bf16 %v5083, %v5083
  %v5228 = vpack.c.bf16 %v5084, %v5084
  %v5229 = vpack.c.bf16 %v5085, %v5085
  %v5230 = vpack.c.bf16 %v5086, %v5086
  %v5231 = vpack.c.bf16 %v5087, %v5087
  %v5232 = vpack.c.bf16 %v5088, %v5088
  %v5233 = vpack.c.bf16 %v5089, %v5089
  %v5234 = vpack.c.bf16 %v5090, %v5090
  %v5235 = vpack.c.bf16 %v5091, %v5091
  %v5236 = vpack.c.bf16 %v5092, %v5092
  %5237 = vst [vmem:[%s3] sm:$0xf] %v5093
  %5238 = vst [vmem:[%s3 + $0x4] sm:$0xf] %v5094
  %5239 = vst [vmem:[%s3 + $0x8] sm:$0xf] %v5095
  %5240 = vst [vmem:[%s3 + $0xc] sm:$0xf] %v5096
  %5241 = vst [vmem:[%s3 + $0x10] sm:$0xf] %v5097
  %5242 = vst [vmem:[%s3 + $0x14] sm:$0xf] %v5098
  %5243 = vst [vmem:[%s3 + $0x18] sm:$0xf] %v5099
  %5244 = vst [vmem:[%s3 + $0x1c] sm:$0xf] %v5100
  %5245 = vst [vmem:[%s3 + $0x20] sm:$0xf] %v5101
  %5246 = vst [vmem:[%s3 + $0x24] sm:$0xf] %v5102
  %5247 = vst [vmem:[%s3 + $0x28] sm:$0xf] %v5103
  %5248 = vst [vmem:[%s3 + $0x2c] sm:$0xf] %v5104
  %5249 = vst [vmem:[%s3 + $0x30] sm:$0xf] %v5105
  %5250 = vst [vmem:[%s3 + $0x34] sm:$0xf] %v5106
  %5251 = vst [vmem:[%s3 + $0x38] sm:$0xf] %v5107
  %5252 = vst [vmem:[%s3 + $0x3c] sm:$0xf] %v5108
  %5253 = vst [vmem:[%s3 + $0x40] sm:$0xf] %v5109
  %5254 = vst [vmem:[%s3 + $0x44] sm:$0xf] %v5110
  %5255 = vst [vmem:[%s3 + $0x48] sm:$0xf] %v5111
  %5256 = vst [vmem:[%s3 + $0x4c] sm:$0xf] %v5112
  %5257 = vst [vmem:[%s3 + $0x50] sm:$0xf] %v5113
  %5258 = vst [vmem:[%s3 + $0x54] sm:$0xf] %v5114
  %5259 = vst [vmem:[%s3 + $0x58] sm:$0xf] %v5115
  %5260 = vst [vmem:[%s3 + $0x5c] sm:$0xf] %v5116
  %5261 = vst [vmem:[%s3 + $0x60] sm:$0xf] %v5117
  %5262 = vst [vmem:[%s3 + $0x64] sm:$0xf] %v5118
  %5263 = vst [vmem:[%s3 + $0x68] sm:$0xf] %v5119
  %5264 = vst [vmem:[%s3 + $0x6c] sm:$0xf] %v5120
  %5265 = vst [vmem:[%s3 + $0x70] sm:$0xf] %v5121
  %5266 = vst [vmem:[%s3 + $0x74] sm:$0xf] %v5122
  %5267 = vst [vmem:[%s3 + $0x78] sm:$0xf] %v5123
  %5268 = vst [vmem:[%s3 + $0x7c] sm:$0xf] %v5124
  %5269 = vst [vmem:[%s3 + $0x80] sm:$0xf] %v5125
  %5270 = vst [vmem:[%s3 + $0x84] sm:$0xf] %v5126
  %5271 = vst [vmem:[%s3 + $0x88] sm:$0xf] %v5127
  %5272 = vst [vmem:[%s3 + $0x8c] sm:$0xf] %v5128
  %5273 = vst [vmem:[%s3 + $0x90] sm:$0xf] %v5129
  %5274 = vst [vmem:[%s3 + $0x94] sm:$0xf] %v5130
  %5275 = vst [vmem:[%s3 + $0x98] sm:$0xf] %v5131
  %5276 = vst [vmem:[%s3 + $0x9c] sm:$0xf] %v5132
  %5277 = vst [vmem:[%s3 + $0xa0] sm:$0xf] %v5133
  %5278 = vst [vmem:[%s3 + $0xa4] sm:$0xf] %v5134
  %5279 = vst [vmem:[%s3 + $0xa8] sm:$0xf] %v5135
  %5280 = vst [vmem:[%s3 + $0xac] sm:$0xf] %v5136
  %5281 = vst [vmem:[%s3 + $0xb0] sm:$0xf] %v5137
  %5282 = vst [vmem:[%s3 + $0xb4] sm:$0xf] %v5138
  %5283 = vst [vmem:[%s3 + $0xb8] sm:$0xf] %v5139
  %5284 = vst [vmem:[%s3 + $0xbc] sm:$0xf] %v5140
  %5285 = vst [vmem:[%s3 + $0xc0] sm:$0xf] %v5141
  %5286 = vst [vmem:[%s3 + $0xc4] sm:$0xf] %v5142
  %5287 = vst [vmem:[%s3 + $0xc8] sm:$0xf] %v5143
  %5288 = vst [vmem:[%s3 + $0xcc] sm:$0xf] %v5144
  %5289 = vst [vmem:[%s3 + $0xd0] sm:$0xf] %v5145
  %5290 = vst [vmem:[%s3 + $0xd4] sm:$0xf] %v5146
  %5291 = vst [vmem:[%s3 + $0xd8] sm:$0xf] %v5147
  %5292 = vst [vmem:[%s3 + $0xdc] sm:$0xf] %v5148
  %5293 = vst [vmem:[%s3 + $0xe0] sm:$0xf] %v5149
  %5294 = vst [vmem:[%s3 + $0xe4] sm:$0xf] %v5150
  %5295 = vst [vmem:[%s3 + $0xe8] sm:$0xf] %v5151
  %5296 = vst [vmem:[%s3 + $0xec] sm:$0xf] %v5152
  %5297 = vst [vmem:[%s3 + $0xf0] sm:$0xf] %v5153
  %5298 = vst [vmem:[%s3 + $0xf4] sm:$0xf] %v5154
  %5299 = vst [vmem:[%s3 + $0xf8] sm:$0xf] %v5155
  %5300 = vst [vmem:[%s3 + $0xfc] sm:$0xf] %v5156
  %5301 = vst [vmem:[%s3 + $0x100] sm:$0xf] %v5157
  %5302 = vst [vmem:[%s3 + $0x104] sm:$0xf] %v5158
  %5303 = vst [vmem:[%s3 + $0x108] sm:$0xf] %v5159
  %5304 = vst [vmem:[%s3 + $0x10c] sm:$0xf] %v5160
  %5305 = vst [vmem:[%s3 + $0x110] sm:$0xf] %v5161
  %5306 = vst [vmem:[%s3 + $0x114] sm:$0xf] %v5162
  %5307 = vst [vmem:[%s3 + $0x118] sm:$0xf] %v5163
  %5308 = vst [vmem:[%s3 + $0x11c] sm:$0xf] %v5164
  %5309 = vst [vmem:[%s3 + $0x120] sm:$0xf] %v5165
  %5310 = vst [vmem:[%s3 + $0x124] sm:$0xf] %v5166
  %5311 = vst [vmem:[%s3 + $0x128] sm:$0xf] %v5167
  %5312 = vst [vmem:[%s3 + $0x12c] sm:$0xf] %v5168
  %5313 = vst [vmem:[%s3 + $0x130] sm:$0xf] %v5169
  %5314 = vst [vmem:[%s3 + $0x134] sm:$0xf] %v5170
  %5315 = vst [vmem:[%s3 + $0x138] sm:$0xf] %v5171
  %5316 = vst [vmem:[%s3 + $0x13c] sm:$0xf] %v5172
  %5317 = vst [vmem:[%s3 + $0x140] sm:$0xf] %v5173
  %5318 = vst [vmem:[%s3 + $0x144] sm:$0xf] %v5174
  %5319 = vst [vmem:[%s3 + $0x148] sm:$0xf] %v5175
  %5320 = vst [vmem:[%s3 + $0x14c] sm:$0xf] %v5176
  %5321 = vst [vmem:[%s3 + $0x150] sm:$0xf] %v5177
  %5322 = vst [vmem:[%s3 + $0x154] sm:$0xf] %v5178
  %5323 = vst [vmem:[%s3 + $0x158] sm:$0xf] %v5179
  %5324 = vst [vmem:[%s3 + $0x15c] sm:$0xf] %v5180
  %5325 = vst [vmem:[%s3 + $0x160] sm:$0xf] %v5181
  %5326 = vst [vmem:[%s3 + $0x164] sm:$0xf] %v5182
  %5327 = vst [vmem:[%s3 + $0x168] sm:$0xf] %v5183
  %5328 = vst [vmem:[%s3 + $0x16c] sm:$0xf] %v5184
  %5329 = vst [vmem:[%s3 + $0x170] sm:$0xf] %v5185
  %5330 = vst [vmem:[%s3 + $0x174] sm:$0xf] %v5186
  %5331 = vst [vmem:[%s3 + $0x178] sm:$0xf] %v5187
  %5332 = vst [vmem:[%s3 + $0x17c] sm:$0xf] %v5188
  %5333 = vst [vmem:[%s3 + $0x180] sm:$0xf] %v5189
  %5334 = vst [vmem:[%s3 + $0x184] sm:$0xf] %v5190
  %5335 = vst [vmem:[%s3 + $0x188] sm:$0xf] %v5191
  %5336 = vst [vmem:[%s3 + $0x18c] sm:$0xf] %v5192
  %5337 = vst [vmem:[%s3 + $0x190] sm:$0xf] %v5193
  %5338 = vst [vmem:[%s3 + $0x194] sm:$0xf] %v5194
  %5339 = vst [vmem:[%s3 + $0x198] sm:$0xf] %v5195
  %5340 = vst [vmem:[%s3 + $0x19c] sm:$0xf] %v5196
  %5341 = vst [vmem:[%s3 + $0x1a0] sm:$0xf] %v5197
  %5342 = vst [vmem:[%s3 + $0x1a4] sm:$0xf] %v5198
  %5343 = vst [vmem:[%s3 + $0x1a8] sm:$0xf] %v5199
  %5344 = vst [vmem:[%s3 + $0x1ac] sm:$0xf] %v5200
  %5345 = vst [vmem:[%s3 + $0x1b0] sm:$0xf] %v5201
  %5346 = vst [vmem:[%s3 + $0x1b4] sm:$0xf] %v5202
  %5347 = vst [vmem:[%s3 + $0x1b8] sm:$0xf] %v5203
  %5348 = vst [vmem:[%s3 + $0x1bc] sm:$0xf] %v5204
  %5349 = vst [vmem:[%s3 + $0x1c0] sm:$0xf] %v5205
  %5350 = vst [vmem:[%s3 + $0x1c4] sm:$0xf] %v5206
  %5351 = vst [vmem:[%s3 + $0x1c8] sm:$0xf] %v5207
  %5352 = vst [vmem:[%s3 + $0x1cc] sm:$0xf] %v5208
  %5353 = vst [vmem:[%s3 + $0x1d0] sm:$0xf] %v5209
  %5354 = vst [vmem:[%s3 + $0x1d4] sm:$0xf] %v5210
  %5355 = vst [vmem:[%s3 + $0x1d8] sm:$0xf] %v5211
  %5356 = vst [vmem:[%s3 + $0x1dc] sm:$0xf] %v5212
  %5357 = vst [vmem:[%s3 + $0x1e0] sm:$0xf] %v5213
  %5358 = vst [vmem:[%s3 + $0x1e4] sm:$0xf] %v5214
  %5359 = vst [vmem:[%s3 + $0x1e8] sm:$0xf] %v5215
  %5360 = vst [vmem:[%s3 + $0x1ec] sm:$0xf] %v5216
  %5361 = vst [vmem:[%s3 + $0x1f0] sm:$0xf] %v5217
  %5362 = vst [vmem:[%s3 + $0x1f4] sm:$0xf] %v5218
  %5363 = vst [vmem:[%s3 + $0x1f8] sm:$0xf] %v5219
  %5364 = vst [vmem:[%s3 + $0x1fc] sm:$0xf] %v5220
  %5365 = vst [vmem:[%s3 + $0x200] sm:$0xf] %v5221
  %5366 = vst [vmem:[%s3 + $0x204] sm:$0xf] %v5222
  %5367 = vst [vmem:[%s3 + $0x208] sm:$0xf] %v5223
  %5368 = vst [vmem:[%s3 + $0x20c] sm:$0xf] %v5224
  %5369 = vst [vmem:[%s3 + $0x210] sm:$0xf] %v5225
  %5370 = vst [vmem:[%s3 + $0x214] sm:$0xf] %v5226
  %5371 = vst [vmem:[%s3 + $0x218] sm:$0xf] %v5227
  %5372 = vst [vmem:[%s3 + $0x21c] sm:$0xf] %v5228
  %5373 = vst [vmem:[%s3 + $0x220] sm:$0xf] %v5229
  %5374 = vst [vmem:[%s3 + $0x224] sm:$0xf] %v5230
  %5375 = vst [vmem:[%s3 + $0x228] sm:$0xf] %v5231
  %5376 = vst [vmem:[%s3 + $0x22c] sm:$0xf] %v5232
  %5377 = vst [vmem:[%s3 + $0x230] sm:$0xf] %v5233
  %5378 = vst [vmem:[%s3 + $0x234] sm:$0xf] %v5234
  %5379 = vst [vmem:[%s3 + $0x238] sm:$0xf] %v5235
  %5380 = vst [vmem:[%s3 + $0x23c] sm:$0xf] %v5236
  // Predicated region
  $region14: #{net1_forward.3} parent=0 // pred_check
    _
  $region15: #{net1_forward.3} parent=0 // pred_check_branch
    %5382 = sbr.rel (0) target = $region17
  $region16: #{net1_forward.3} parent=0 // pred_region
    _
  $region17: #{net1_forward.3} parent=0 // pred_fallthru
    _
  // Predicated region
  $region18: #{net1_forward.3} parent=0 // pred_check
    _
  $region19: #{net1_forward.3} parent=0 // pred_check_branch
    %5384 = sbr.rel (0) target = $region21
  $region20: #{net1_forward.3} parent=0 // pred_region
    _
  $region21: #{net1_forward.3} parent=0 // pred_fallthru
    _

// kernel: net1_forward.4
$region0: #{net1_forward.4}
  #allocation0 [shape = 'u32[]', space=smem, size = 0x4, offset = 0x4, fixed_abs, tag = 'smem constant byte address 0x4 - core index']
  #allocation1 [shape = 'u32[72,128]{1,0:T(1,128)}', space=vmem, size = 0x9000, scoped, tag = 'internal scratch']
  %s0 = inlined_call_operand.vmem [shape: bf16[1,1152,288], index: 0, kind: input, shape index: {}]
  %s1 = inlined_call_operand.vmem [shape: bf16[288,128], index: 1, kind: input, shape index: {}]
  %s2 = inlined_call_operand.vmem [shape: f32[1,128], index: 2, kind: input, shape index: {}]
  %s3 = inlined_call_operand.vmem [shape: bf16[288,128], index: 3, kind: output, shape index: {}]
  %s4 = sld [smem:[#allocation0]]
  $region22: #{net1_forward.4} parent=0
    _
  %s6 = ssub.s32 1, %s4
  %s7 = scalar_select 0, %s6, %s4
  // Predicated region
  $region2: #{net1_forward.4} parent=0 // pred_check
    _
  $region3: #{net1_forward.4} parent=0 // pred_check_branch
    %9 = sbr.rel (0) target = $region5
  $region4: #{net1_forward.4} parent=0 // pred_region
    _
  $region5: #{net1_forward.4} parent=0 // pred_fallthru
    _
  // Predicated region
  $region6: #{net1_forward.4} parent=0 // pred_check
    _
  $region7: #{net1_forward.4} parent=0 // pred_check_branch
    %11 = sbr.rel (0) target = $region9
  $region8: #{net1_forward.4} parent=0 // pred_region
    _
  $region9: #{net1_forward.4} parent=0 // pred_fallthru
    _
  // Predicated region
  $region10: #{net1_forward.4} parent=0 // pred_check
    _
  $region11: #{net1_forward.4} parent=0 // pred_check_branch
    %13 = sbr.rel (0) target = $region13
  $region12: #{net1_forward.4} parent=0 // pred_region
    _
  $region13: #{net1_forward.4} parent=0 // pred_fallthru
    _
  %v15 = vld [vmem:[%s0] sm:$0xff]
  %v16 = vld [vmem:[%s0 + $0x8] sm:$0xf]
  %v17 = vld [vmem:[%s0 + $0xc] sm:$0xff]
  %v18 = vld [vmem:[%s0 + $0x14] sm:$0xf]
  %v19 = vld [vmem:[%s0 + $0x18] sm:$0xff]
  %v20 = vld [vmem:[%s0 + $0x20] sm:$0xf]
  %v21 = vld [vmem:[%s0 + $0x24] sm:$0xff]
  %v22 = vld [vmem:[%s0 + $0x2c] sm:$0xf]
  %v23 = vld [vmem:[%s0 + $0x30] sm:$0xff]
  %v24 = vld [vmem:[%s0 + $0x38] sm:$0xf]
  %v25 = vld [vmem:[%s0 + $0x3c] sm:$0xff]
  %v26 = vld [vmem:[%s0 + $0x44] sm:$0xf]
  %v27 = vld [vmem:[%s0 + $0x48] sm:$0xff]
  %v28 = vld [vmem:[%s0 + $0x50] sm:$0xf]
  %v29 = vld [vmem:[%s0 + $0x54] sm:$0xff]
  %v30 = vld [vmem:[%s0 + $0x5c] sm:$0xf]
  %v31 = vld [vmem:[%s0 + $0x60] sm:$0xff]
  %v32 = vld [vmem:[%s0 + $0x68] sm:$0xf]
  %v33 = vld [vmem:[%s0 + $0x6c] sm:$0xff]
  %v34 = vld [vmem:[%s0 + $0x74] sm:$0xf]
  %v35 = vld [vmem:[%s0 + $0x78] sm:$0xff]
  %v36 = vld [vmem:[%s0 + $0x80] sm:$0xf]
  %v37 = vld [vmem:[%s0 + $0x84] sm:$0xff]
  %v38 = vld [vmem:[%s0 + $0x8c] sm:$0xf]
  %v39 = vld [vmem:[%s0 + $0x90] sm:$0xff]
  %v40 = vld [vmem:[%s0 + $0x98] sm:$0xf]
  %v41 = vld [vmem:[%s0 + $0x9c] sm:$0xff]
  %v42 = vld [vmem:[%s0 + $0xa4] sm:$0xf]
  %v43 = vld [vmem:[%s0 + $0xa8] sm:$0xff]
  %v44 = vld [vmem:[%s0 + $0xb0] sm:$0xf]
  %v45 = vld [vmem:[%s0 + $0xb4] sm:$0xff]
  %v46 = vld [vmem:[%s0 + $0xbc] sm:$0xf]
  %v47 = vld [vmem:[%s0 + $0xc0] sm:$0xff]
  %v48 = vld [vmem:[%s0 + $0xc8] sm:$0xf]
  %v49 = vld [vmem:[%s0 + $0xcc] sm:$0xff]
  %v50 = vld [vmem:[%s0 + $0xd4] sm:$0xf]
  %v51 = vld [vmem:[%s0 + $0xd8] sm:$0xff]
  %v52 = vld [vmem:[%s0 + $0xe0] sm:$0xf]
  %v53 = vld [vmem:[%s0 + $0xe4] sm:$0xff]
  %v54 = vld [vmem:[%s0 + $0xec] sm:$0xf]
  %v55 = vld [vmem:[%s0 + $0xf0] sm:$0xff]
  %v56 = vld [vmem:[%s0 + $0xf8] sm:$0xf]
  %v57 = vld [vmem:[%s0 + $0xfc] sm:$0xff]
  %v58 = vld [vmem:[%s0 + $0x104] sm:$0xf]
  %v59 = vld [vmem:[%s0 + $0x108] sm:$0xff]
  %v60 = vld [vmem:[%s0 + $0x110] sm:$0xf]
  %v61 = vld [vmem:[%s0 + $0x114] sm:$0xff]
  %v62 = vld [vmem:[%s0 + $0x11c] sm:$0xf]
  %v63 = vld [vmem:[%s0 + $0x120] sm:$0xff]
  %v64 = vld [vmem:[%s0 + $0x128] sm:$0xf]
  %v65 = vld [vmem:[%s0 + $0x12c] sm:$0xff]
  %v66 = vld [vmem:[%s0 + $0x134] sm:$0xf]
  %v67 = vld [vmem:[%s0 + $0x138] sm:$0xff]
  %v68 = vld [vmem:[%s0 + $0x140] sm:$0xf]
  %v69 = vld [vmem:[%s0 + $0x144] sm:$0xff]
  %v70 = vld [vmem:[%s0 + $0x14c] sm:$0xf]
  %v71 = vld [vmem:[%s0 + $0x150] sm:$0xff]
  %v72 = vld [vmem:[%s0 + $0x158] sm:$0xf]
  %v73 = vld [vmem:[%s0 + $0x15c] sm:$0xff]
  %v74 = vld [vmem:[%s0 + $0x164] sm:$0xf]
  %v75 = vld [vmem:[%s0 + $0x168] sm:$0xff]
  %v76 = vld [vmem:[%s0 + $0x170] sm:$0xf]
  %v77 = vld [vmem:[%s0 + $0x174] sm:$0xff]
  %v78 = vld [vmem:[%s0 + $0x17c] sm:$0xf]
  %v79 = vld [vmem:[%s0 + $0x180] sm:$0xff]
  %v80 = vld [vmem:[%s0 + $0x188] sm:$0xf]
  %v81 = vld [vmem:[%s0 + $0x18c] sm:$0xff]
  %v82 = vld [vmem:[%s0 + $0x194] sm:$0xf]
  %v83 = vld [vmem:[%s0 + $0x198] sm:$0xff]
  %v84 = vld [vmem:[%s0 + $0x1a0] sm:$0xf]
  %v85 = vld [vmem:[%s0 + $0x1a4] sm:$0xff]
  %v86 = vld [vmem:[%s0 + $0x1ac] sm:$0xf]
  %v87 = vld [vmem:[%s0 + $0x1b0] sm:$0xff]
  %v88 = vld [vmem:[%s0 + $0x1b8] sm:$0xf]
  %v89 = vld [vmem:[%s0 + $0x1bc] sm:$0xff]
  %v90 = vld [vmem:[%s0 + $0x1c4] sm:$0xf]
  %v91 = vld [vmem:[%s0 + $0x1c8] sm:$0xff]
  %v92 = vld [vmem:[%s0 + $0x1d0] sm:$0xf]
  %v93 = vld [vmem:[%s0 + $0x1d4] sm:$0xff]
  %v94 = vld [vmem:[%s0 + $0x1dc] sm:$0xf]
  %v95 = vld [vmem:[%s0 + $0x1e0] sm:$0xff]
  %v96 = vld [vmem:[%s0 + $0x1e8] sm:$0xf]
  %v97 = vld [vmem:[%s0 + $0x1ec] sm:$0xff]
  %v98 = vld [vmem:[%s0 + $0x1f4] sm:$0xf]
  %v99 = vld [vmem:[%s0 + $0x1f8] sm:$0xff]
  %v100 = vld [vmem:[%s0 + $0x200] sm:$0xf]
  %v101 = vld [vmem:[%s0 + $0x204] sm:$0xff]
  %v102 = vld [vmem:[%s0 + $0x20c] sm:$0xf]
  %v103 = vld [vmem:[%s0 + $0x210] sm:$0xff]
  %v104 = vld [vmem:[%s0 + $0x218] sm:$0xf]
  %v105 = vld [vmem:[%s0 + $0x21c] sm:$0xff]
  %v106 = vld [vmem:[%s0 + $0x224] sm:$0xf]
  %v107 = vld [vmem:[%s0 + $0x228] sm:$0xff]
  %v108 = vld [vmem:[%s0 + $0x230] sm:$0xf]
  %v109 = vld [vmem:[%s0 + $0x234] sm:$0xff]
  %v110 = vld [vmem:[%s0 + $0x23c] sm:$0xf]
  %v111 = vld [vmem:[%s0 + $0x240] sm:$0xff]
  %v112 = vld [vmem:[%s0 + $0x248] sm:$0xf]
  %v113 = vld [vmem:[%s0 + $0x24c] sm:$0xff]
  %v114 = vld [vmem:[%s0 + $0x254] sm:$0xf]
  %v115 = vld [vmem:[%s0 + $0x258] sm:$0xff]
  %v116 = vld [vmem:[%s0 + $0x260] sm:$0xf]
  %v117 = vld [vmem:[%s0 + $0x264] sm:$0xff]
  %v118 = vld [vmem:[%s0 + $0x26c] sm:$0xf]
  %v119 = vld [vmem:[%s0 + $0x270] sm:$0xff]
  %v120 = vld [vmem:[%s0 + $0x278] sm:$0xf]
  %v121 = vld [vmem:[%s0 + $0x27c] sm:$0xff]
  %v122 = vld [vmem:[%s0 + $0x284] sm:$0xf]
  %v123 = vld [vmem:[%s0 + $0x288] sm:$0xff]
  %v124 = vld [vmem:[%s0 + $0x290] sm:$0xf]
  %v125 = vld [vmem:[%s0 + $0x294] sm:$0xff]
  %v126 = vld [vmem:[%s0 + $0x29c] sm:$0xf]
  %v127 = vld [vmem:[%s0 + $0x2a0] sm:$0xff]
  %v128 = vld [vmem:[%s0 + $0x2a8] sm:$0xf]
  %v129 = vld [vmem:[%s0 + $0x2ac] sm:$0xff]
  %v130 = vld [vmem:[%s0 + $0x2b4] sm:$0xf]
  %v131 = vld [vmem:[%s0 + $0x2b8] sm:$0xff]
  %v132 = vld [vmem:[%s0 + $0x2c0] sm:$0xf]
  %v133 = vld [vmem:[%s0 + $0x2c4] sm:$0xff]
  %v134 = vld [vmem:[%s0 + $0x2cc] sm:$0xf]
  %v135 = vld [vmem:[%s0 + $0x2d0] sm:$0xff]
  %v136 = vld [vmem:[%s0 + $0x2d8] sm:$0xf]
  %v137 = vld [vmem:[%s0 + $0x2dc] sm:$0xff]
  %v138 = vld [vmem:[%s0 + $0x2e4] sm:$0xf]
  %v139 = vld [vmem:[%s0 + $0x2e8] sm:$0xff]
  %v140 = vld [vmem:[%s0 + $0x2f0] sm:$0xf]
  %v141 = vld [vmem:[%s0 + $0x2f4] sm:$0xff]
  %v142 = vld [vmem:[%s0 + $0x2fc] sm:$0xf]
  %v143 = vld [vmem:[%s0 + $0x300] sm:$0xff]
  %v144 = vld [vmem:[%s0 + $0x308] sm:$0xf]
  %v145 = vld [vmem:[%s0 + $0x30c] sm:$0xff]
  %v146 = vld [vmem:[%s0 + $0x314] sm:$0xf]
  %v147 = vld [vmem:[%s0 + $0x318] sm:$0xff]
  %v148 = vld [vmem:[%s0 + $0x320] sm:$0xf]
  %v149 = vld [vmem:[%s0 + $0x324] sm:$0xff]
  %v150 = vld [vmem:[%s0 + $0x32c] sm:$0xf]
  %v151 = vld [vmem:[%s0 + $0x330] sm:$0xff]
  %v152 = vld [vmem:[%s0 + $0x338] sm:$0xf]
  %v153 = vld [vmem:[%s0 + $0x33c] sm:$0xff]
  %v154 = vld [vmem:[%s0 + $0x344] sm:$0xf]
  %v155 = vld [vmem:[%s0 + $0x348] sm:$0xff]
  %v156 = vld [vmem:[%s0 + $0x350] sm:$0xf]
  %v157 = vld [vmem:[%s0 + $0x354] sm:$0xff]
  %v158 = vld [vmem:[%s0 + $0x35c] sm:$0xf]
  %v159 = vld [vmem:[%s0 + $0x360] sm:$0xff]
  %v160 = vld [vmem:[%s0 + $0x368] sm:$0xf]
  %v161 = vld [vmem:[%s0 + $0x36c] sm:$0xff]
  %v162 = vld [vmem:[%s0 + $0x374] sm:$0xf]
  %v163 = vld [vmem:[%s0 + $0x378] sm:$0xff]
  %v164 = vld [vmem:[%s0 + $0x380] sm:$0xf]
  %v165 = vld [vmem:[%s0 + $0x384] sm:$0xff]
  %v166 = vld [vmem:[%s0 + $0x38c] sm:$0xf]
  %v167 = vld [vmem:[%s0 + $0x390] sm:$0xff]
  %v168 = vld [vmem:[%s0 + $0x398] sm:$0xf]
  %v169 = vld [vmem:[%s0 + $0x39c] sm:$0xff]
  %v170 = vld [vmem:[%s0 + $0x3a4] sm:$0xf]
  %v171 = vld [vmem:[%s0 + $0x3a8] sm:$0xff]
  %v172 = vld [vmem:[%s0 + $0x3b0] sm:$0xf]
  %v173 = vld [vmem:[%s0 + $0x3b4] sm:$0xff]
  %v174 = vld [vmem:[%s0 + $0x3bc] sm:$0xf]
  %v175 = vld [vmem:[%s0 + $0x3c0] sm:$0xff]
  %v176 = vld [vmem:[%s0 + $0x3c8] sm:$0xf]
  %v177 = vld [vmem:[%s0 + $0x3cc] sm:$0xff]
  %v178 = vld [vmem:[%s0 + $0x3d4] sm:$0xf]
  %v179 = vld [vmem:[%s0 + $0x3d8] sm:$0xff]
  %v180 = vld [vmem:[%s0 + $0x3e0] sm:$0xf]
  %v181 = vld [vmem:[%s0 + $0x3e4] sm:$0xff]
  %v182 = vld [vmem:[%s0 + $0x3ec] sm:$0xf]
  %v183 = vld [vmem:[%s0 + $0x3f0] sm:$0xff]
  %v184 = vld [vmem:[%s0 + $0x3f8] sm:$0xf]
  %v185 = vld [vmem:[%s0 + $0x3fc] sm:$0xff]
  %v186 = vld [vmem:[%s0 + $0x404] sm:$0xf]
  %v187 = vld [vmem:[%s0 + $0x408] sm:$0xff]
  %v188 = vld [vmem:[%s0 + $0x410] sm:$0xf]
  %v189 = vld [vmem:[%s0 + $0x414] sm:$0xff]
  %v190 = vld [vmem:[%s0 + $0x41c] sm:$0xf]
  %v191 = vld [vmem:[%s0 + $0x420] sm:$0xff]
  %v192 = vld [vmem:[%s0 + $0x428] sm:$0xf]
  %v193 = vld [vmem:[%s0 + $0x42c] sm:$0xff]
  %v194 = vld [vmem:[%s0 + $0x434] sm:$0xf]
  %v195 = vld [vmem:[%s0 + $0x438] sm:$0xff]
  %v196 = vld [vmem:[%s0 + $0x440] sm:$0xf]
  %v197 = vld [vmem:[%s0 + $0x444] sm:$0xff]
  %v198 = vld [vmem:[%s0 + $0x44c] sm:$0xf]
  %v199 = vld [vmem:[%s0 + $0x450] sm:$0xff]
  %v200 = vld [vmem:[%s0 + $0x458] sm:$0xf]
  %v201 = vld [vmem:[%s0 + $0x45c] sm:$0xff]
  %v202 = vld [vmem:[%s0 + $0x464] sm:$0xf]
  %v203 = vld [vmem:[%s0 + $0x468] sm:$0xff]
  %v204 = vld [vmem:[%s0 + $0x470] sm:$0xf]
  %v205 = vld [vmem:[%s0 + $0x474] sm:$0xff]
  %v206 = vld [vmem:[%s0 + $0x47c] sm:$0xf]
  %v207 = vld [vmem:[%s0 + $0x480] sm:$0xff]
  %v208 = vld [vmem:[%s0 + $0x488] sm:$0xf]
  %v209 = vld [vmem:[%s0 + $0x48c] sm:$0xff]
  %v210 = vld [vmem:[%s0 + $0x494] sm:$0xf]
  %v211 = vld [vmem:[%s0 + $0x498] sm:$0xff]
  %v212 = vld [vmem:[%s0 + $0x4a0] sm:$0xf]
  %v213 = vld [vmem:[%s0 + $0x4a4] sm:$0xff]
  %v214 = vld [vmem:[%s0 + $0x4ac] sm:$0xf]
  %v215 = vld [vmem:[%s0 + $0x4b0] sm:$0xff]
  %v216 = vld [vmem:[%s0 + $0x4b8] sm:$0xf]
  %v217 = vld [vmem:[%s0 + $0x4bc] sm:$0xff]
  %v218 = vld [vmem:[%s0 + $0x4c4] sm:$0xf]
  %v219 = vld [vmem:[%s0 + $0x4c8] sm:$0xff]
  %v220 = vld [vmem:[%s0 + $0x4d0] sm:$0xf]
  %v221 = vld [vmem:[%s0 + $0x4d4] sm:$0xff]
  %v222 = vld [vmem:[%s0 + $0x4dc] sm:$0xf]
  %v223 = vld [vmem:[%s0 + $0x4e0] sm:$0xff]
  %v224 = vld [vmem:[%s0 + $0x4e8] sm:$0xf]
  %v225 = vld [vmem:[%s0 + $0x4ec] sm:$0xff]
  %v226 = vld [vmem:[%s0 + $0x4f4] sm:$0xf]
  %v227 = vld [vmem:[%s0 + $0x4f8] sm:$0xff]
  %v228 = vld [vmem:[%s0 + $0x500] sm:$0xf]
  %v229 = vld [vmem:[%s0 + $0x504] sm:$0xff]
  %v230 = vld [vmem:[%s0 + $0x50c] sm:$0xf]
  %v231 = vld [vmem:[%s0 + $0x510] sm:$0xff]
  %v232 = vld [vmem:[%s0 + $0x518] sm:$0xf]
  %v233 = vld [vmem:[%s0 + $0x51c] sm:$0xff]
  %v234 = vld [vmem:[%s0 + $0x524] sm:$0xf]
  %v235 = vld [vmem:[%s0 + $0x528] sm:$0xff]
  %v236 = vld [vmem:[%s0 + $0x530] sm:$0xf]
  %v237 = vld [vmem:[%s0 + $0x534] sm:$0xff]
  %v238 = vld [vmem:[%s0 + $0x53c] sm:$0xf]
  %v239 = vld [vmem:[%s0 + $0x540] sm:$0xff]
  %v240 = vld [vmem:[%s0 + $0x548] sm:$0xf]
  %v241 = vld [vmem:[%s0 + $0x54c] sm:$0xff]
  %v242 = vld [vmem:[%s0 + $0x554] sm:$0xf]
  %v243 = vld [vmem:[%s0 + $0x558] sm:$0xff]
  %v244 = vld [vmem:[%s0 + $0x560] sm:$0xf]
  %v245 = vld [vmem:[%s0 + $0x564] sm:$0xff]
  %v246 = vld [vmem:[%s0 + $0x56c] sm:$0xf]
  %v247 = vld [vmem:[%s0 + $0x570] sm:$0xff]
  %v248 = vld [vmem:[%s0 + $0x578] sm:$0xf]
  %v249 = vld [vmem:[%s0 + $0x57c] sm:$0xff]
  %v250 = vld [vmem:[%s0 + $0x584] sm:$0xf]
  %v251 = vld [vmem:[%s0 + $0x588] sm:$0xff]
  %v252 = vld [vmem:[%s0 + $0x590] sm:$0xf]
  %v253 = vld [vmem:[%s0 + $0x594] sm:$0xff]
  %v254 = vld [vmem:[%s0 + $0x59c] sm:$0xf]
  %v255 = vld [vmem:[%s0 + $0x5a0] sm:$0xff]
  %v256 = vld [vmem:[%s0 + $0x5a8] sm:$0xf]
  %v257 = vld [vmem:[%s0 + $0x5ac] sm:$0xff]
  %v258 = vld [vmem:[%s0 + $0x5b4] sm:$0xf]
  %v259 = vld [vmem:[%s0 + $0x5b8] sm:$0xff]
  %v260 = vld [vmem:[%s0 + $0x5c0] sm:$0xf]
  %v261 = vld [vmem:[%s0 + $0x5c4] sm:$0xff]
  %v262 = vld [vmem:[%s0 + $0x5cc] sm:$0xf]
  %v263 = vld [vmem:[%s0 + $0x5d0] sm:$0xff]
  %v264 = vld [vmem:[%s0 + $0x5d8] sm:$0xf]
  %v265 = vld [vmem:[%s0 + $0x5dc] sm:$0xff]
  %v266 = vld [vmem:[%s0 + $0x5e4] sm:$0xf]
  %v267 = vld [vmem:[%s0 + $0x5e8] sm:$0xff]
  %v268 = vld [vmem:[%s0 + $0x5f0] sm:$0xf]
  %v269 = vld [vmem:[%s0 + $0x5f4] sm:$0xff]
  %v270 = vld [vmem:[%s0 + $0x5fc] sm:$0xf]
  %v271 = vld [vmem:[%s0 + $0x600] sm:$0xff]
  %v272 = vld [vmem:[%s0 + $0x608] sm:$0xf]
  %v273 = vld [vmem:[%s0 + $0x60c] sm:$0xff]
  %v274 = vld [vmem:[%s0 + $0x614] sm:$0xf]
  %v275 = vld [vmem:[%s0 + $0x618] sm:$0xff]
  %v276 = vld [vmem:[%s0 + $0x620] sm:$0xf]
  %v277 = vld [vmem:[%s0 + $0x624] sm:$0xff]
  %v278 = vld [vmem:[%s0 + $0x62c] sm:$0xf]
  %v279 = vld [vmem:[%s0 + $0x630] sm:$0xff]
  %v280 = vld [vmem:[%s0 + $0x638] sm:$0xf]
  %v281 = vld [vmem:[%s0 + $0x63c] sm:$0xff]
  %v282 = vld [vmem:[%s0 + $0x644] sm:$0xf]
  %v283 = vld [vmem:[%s0 + $0x648] sm:$0xff]
  %v284 = vld [vmem:[%s0 + $0x650] sm:$0xf]
  %v285 = vld [vmem:[%s0 + $0x654] sm:$0xff]
  %v286 = vld [vmem:[%s0 + $0x65c] sm:$0xf]
  %v287 = vld [vmem:[%s0 + $0x660] sm:$0xff]
  %v288 = vld [vmem:[%s0 + $0x668] sm:$0xf]
  %v289 = vld [vmem:[%s0 + $0x66c] sm:$0xff]
  %v290 = vld [vmem:[%s0 + $0x674] sm:$0xf]
  %v291 = vld [vmem:[%s0 + $0x678] sm:$0xff]
  %v292 = vld [vmem:[%s0 + $0x680] sm:$0xf]
  %v293 = vld [vmem:[%s0 + $0x684] sm:$0xff]
  %v294 = vld [vmem:[%s0 + $0x68c] sm:$0xf]
  %v295 = vld [vmem:[%s0 + $0x690] sm:$0xff]
  %v296 = vld [vmem:[%s0 + $0x698] sm:$0xf]
  %v297 = vld [vmem:[%s0 + $0x69c] sm:$0xff]
  %v298 = vld [vmem:[%s0 + $0x6a4] sm:$0xf]
  %v299 = vld [vmem:[%s0 + $0x6a8] sm:$0xff]
  %v300 = vld [vmem:[%s0 + $0x6b0] sm:$0xf]
  %v301 = vld [vmem:[%s0 + $0x6b4] sm:$0xff]
  %v302 = vld [vmem:[%s0 + $0x6bc] sm:$0xf]
  %v303 = vld [vmem:[%s1] sm:$0xf]
  %v304 = vld [vmem:[%s1 + $0x4] sm:$0xf]
  %v305 = vld [vmem:[%s1 + $0x8] sm:$0xf]
  %v306 = vld [vmem:[%s1 + $0xc] sm:$0xf]
  %v307 = vld [vmem:[%s1 + $0x10] sm:$0xf]
  %v308 = vld [vmem:[%s1 + $0x14] sm:$0xf]
  %v309 = vld [vmem:[%s1 + $0x18] sm:$0xf]
  %v310 = vld [vmem:[%s1 + $0x1c] sm:$0xf]
  %v311 = vld [vmem:[%s1 + $0x20] sm:$0xf]
  %v312 = vld [vmem:[%s1 + $0x24] sm:$0xf]
  %v313 = vld [vmem:[%s1 + $0x28] sm:$0xf]
  %v314 = vld [vmem:[%s1 + $0x2c] sm:$0xf]
  %v315 = vld [vmem:[%s1 + $0x30] sm:$0xf]
  %v316 = vld [vmem:[%s1 + $0x34] sm:$0xf]
  %v317 = vld [vmem:[%s1 + $0x38] sm:$0xf]
  %v318 = vld [vmem:[%s1 + $0x3c] sm:$0xf]
  %v319 = vld [vmem:[%s1 + $0x40] sm:$0xf]
  %v320 = vld [vmem:[%s1 + $0x44] sm:$0xf]
  %v321 = vld [vmem:[%s1 + $0x48] sm:$0xf]
  %v322 = vld [vmem:[%s1 + $0x4c] sm:$0xf]
  %v323 = vld [vmem:[%s1 + $0x50] sm:$0xf]
  %v324 = vld [vmem:[%s1 + $0x54] sm:$0xf]
  %v325 = vld [vmem:[%s1 + $0x58] sm:$0xf]
  %v326 = vld [vmem:[%s1 + $0x5c] sm:$0xf]
  %v327 = vld [vmem:[%s1 + $0x60] sm:$0xf]
  %v328 = vld [vmem:[%s1 + $0x64] sm:$0xf]
  %v329 = vld [vmem:[%s1 + $0x68] sm:$0xf]
  %v330 = vld [vmem:[%s1 + $0x6c] sm:$0xf]
  %v331 = vld [vmem:[%s1 + $0x70] sm:$0xf]
  %v332 = vld [vmem:[%s1 + $0x74] sm:$0xf]
  %v333 = vld [vmem:[%s1 + $0x78] sm:$0xf]
  %v334 = vld [vmem:[%s1 + $0x7c] sm:$0xf]
  %v335 = vld [vmem:[%s1 + $0x80] sm:$0xf]
  %v336 = vld [vmem:[%s1 + $0x84] sm:$0xf]
  %v337 = vld [vmem:[%s1 + $0x88] sm:$0xf]
  %v338 = vld [vmem:[%s1 + $0x8c] sm:$0xf]
  %v627 = vunpack.c.l.b16 %v15
  %v628 = vunpack.c.h.b16 %v15
  %v629 = vunpack.c.l.b16 %v16
  %v630 = vunpack.c.l.b16 %v17
  %v631 = vunpack.c.h.b16 %v17
  %v632 = vunpack.c.l.b16 %v18
  %v633 = vunpack.c.l.b16 %v19
  %v634 = vunpack.c.h.b16 %v19
  %v635 = vunpack.c.l.b16 %v20
  %v636 = vunpack.c.l.b16 %v21
  %v637 = vunpack.c.h.b16 %v21
  %v638 = vunpack.c.l.b16 %v22
  %v639 = vunpack.c.l.b16 %v23
  %v640 = vunpack.c.h.b16 %v23
  %v641 = vunpack.c.l.b16 %v24
  %v642 = vunpack.c.l.b16 %v25
  %v643 = vunpack.c.h.b16 %v25
  %v644 = vunpack.c.l.b16 %v26
  %v645 = vunpack.c.l.b16 %v27
  %v646 = vunpack.c.h.b16 %v27
  %v647 = vunpack.c.l.b16 %v28
  %v648 = vunpack.c.l.b16 %v29
  %v649 = vunpack.c.h.b16 %v29
  %v650 = vunpack.c.l.b16 %v30
  %v651 = vunpack.c.l.b16 %v31
  %v652 = vunpack.c.h.b16 %v31
  %v653 = vunpack.c.l.b16 %v32
  %v654 = vunpack.c.l.b16 %v33
  %v655 = vunpack.c.h.b16 %v33
  %v656 = vunpack.c.l.b16 %v34
  %v657 = vunpack.c.l.b16 %v35
  %v658 = vunpack.c.h.b16 %v35
  %v659 = vunpack.c.l.b16 %v36
  %v660 = vunpack.c.l.b16 %v37
  %v661 = vunpack.c.h.b16 %v37
  %v662 = vunpack.c.l.b16 %v38
  %v663 = vunpack.c.l.b16 %v39
  %v664 = vunpack.c.h.b16 %v39
  %v665 = vunpack.c.l.b16 %v40
  %v666 = vunpack.c.l.b16 %v41
  %v667 = vunpack.c.h.b16 %v41
  %v668 = vunpack.c.l.b16 %v42
  %v669 = vunpack.c.l.b16 %v43
  %v670 = vunpack.c.h.b16 %v43
  %v671 = vunpack.c.l.b16 %v44
  %v672 = vunpack.c.l.b16 %v45
  %v673 = vunpack.c.h.b16 %v45
  %v674 = vunpack.c.l.b16 %v46
  %v675 = vunpack.c.l.b16 %v47
  %v676 = vunpack.c.h.b16 %v47
  %v677 = vunpack.c.l.b16 %v48
  %v678 = vunpack.c.l.b16 %v49
  %v679 = vunpack.c.h.b16 %v49
  %v680 = vunpack.c.l.b16 %v50
  %v681 = vunpack.c.l.b16 %v51
  %v682 = vunpack.c.h.b16 %v51
  %v683 = vunpack.c.l.b16 %v52
  %v684 = vunpack.c.l.b16 %v53
  %v685 = vunpack.c.h.b16 %v53
  %v686 = vunpack.c.l.b16 %v54
  %v687 = vunpack.c.l.b16 %v55
  %v688 = vunpack.c.h.b16 %v55
  %v689 = vunpack.c.l.b16 %v56
  %v690 = vunpack.c.l.b16 %v57
  %v691 = vunpack.c.h.b16 %v57
  %v692 = vunpack.c.l.b16 %v58
  %v693 = vunpack.c.l.b16 %v59
  %v694 = vunpack.c.h.b16 %v59
  %v695 = vunpack.c.l.b16 %v60
  %v696 = vunpack.c.l.b16 %v61
  %v697 = vunpack.c.h.b16 %v61
  %v698 = vunpack.c.l.b16 %v62
  %v699 = vunpack.c.l.b16 %v63
  %v700 = vunpack.c.h.b16 %v63
  %v701 = vunpack.c.l.b16 %v64
  %v702 = vunpack.c.l.b16 %v65
  %v703 = vunpack.c.h.b16 %v65
  %v704 = vunpack.c.l.b16 %v66
  %v705 = vunpack.c.l.b16 %v67
  %v706 = vunpack.c.h.b16 %v67
  %v707 = vunpack.c.l.b16 %v68
  %v708 = vunpack.c.l.b16 %v69
  %v709 = vunpack.c.h.b16 %v69
  %v710 = vunpack.c.l.b16 %v70
  %v711 = vunpack.c.l.b16 %v71
  %v712 = vunpack.c.h.b16 %v71
  %v713 = vunpack.c.l.b16 %v72
  %v714 = vunpack.c.l.b16 %v73
  %v715 = vunpack.c.h.b16 %v73
  %v716 = vunpack.c.l.b16 %v74
  %v717 = vunpack.c.l.b16 %v75
  %v718 = vunpack.c.h.b16 %v75
  %v719 = vunpack.c.l.b16 %v76
  %v720 = vunpack.c.l.b16 %v77
  %v721 = vunpack.c.h.b16 %v77
  %v722 = vunpack.c.l.b16 %v78
  %v723 = vunpack.c.l.b16 %v79
  %v724 = vunpack.c.h.b16 %v79
  %v725 = vunpack.c.l.b16 %v80
  %v726 = vunpack.c.l.b16 %v81
  %v727 = vunpack.c.h.b16 %v81
  %v728 = vunpack.c.l.b16 %v82
  %v729 = vunpack.c.l.b16 %v83
  %v730 = vunpack.c.h.b16 %v83
  %v731 = vunpack.c.l.b16 %v84
  %v732 = vunpack.c.l.b16 %v85
  %v733 = vunpack.c.h.b16 %v85
  %v734 = vunpack.c.l.b16 %v86
  %v735 = vunpack.c.l.b16 %v87
  %v736 = vunpack.c.h.b16 %v87
  %v737 = vunpack.c.l.b16 %v88
  %v738 = vunpack.c.l.b16 %v89
  %v739 = vunpack.c.h.b16 %v89
  %v740 = vunpack.c.l.b16 %v90
  %v741 = vunpack.c.l.b16 %v91
  %v742 = vunpack.c.h.b16 %v91
  %v743 = vunpack.c.l.b16 %v92
  %v744 = vunpack.c.l.b16 %v93
  %v745 = vunpack.c.h.b16 %v93
  %v746 = vunpack.c.l.b16 %v94
  %v747 = vunpack.c.l.b16 %v95
  %v748 = vunpack.c.h.b16 %v95
  %v749 = vunpack.c.l.b16 %v96
  %v750 = vunpack.c.l.b16 %v97
  %v751 = vunpack.c.h.b16 %v97
  %v752 = vunpack.c.l.b16 %v98
  %v753 = vunpack.c.l.b16 %v99
  %v754 = vunpack.c.h.b16 %v99
  %v755 = vunpack.c.l.b16 %v100
  %v756 = vunpack.c.l.b16 %v101
  %v757 = vunpack.c.h.b16 %v101
  %v758 = vunpack.c.l.b16 %v102
  %v759 = vunpack.c.l.b16 %v103
  %v760 = vunpack.c.h.b16 %v103
  %v761 = vunpack.c.l.b16 %v104
  %v762 = vunpack.c.l.b16 %v105
  %v763 = vunpack.c.h.b16 %v105
  %v764 = vunpack.c.l.b16 %v106
  %v765 = vunpack.c.l.b16 %v107
  %v766 = vunpack.c.h.b16 %v107
  %v767 = vunpack.c.l.b16 %v108
  %v768 = vunpack.c.l.b16 %v109
  %v769 = vunpack.c.h.b16 %v109
  %v770 = vunpack.c.l.b16 %v110
  %v771 = vunpack.c.l.b16 %v111
  %v772 = vunpack.c.h.b16 %v111
  %v773 = vunpack.c.l.b16 %v112
  %v774 = vunpack.c.l.b16 %v113
  %v775 = vunpack.c.h.b16 %v113
  %v776 = vunpack.c.l.b16 %v114
  %v777 = vunpack.c.l.b16 %v115
  %v778 = vunpack.c.h.b16 %v115
  %v779 = vunpack.c.l.b16 %v116
  %v780 = vunpack.c.l.b16 %v117
  %v781 = vunpack.c.h.b16 %v117
  %v782 = vunpack.c.l.b16 %v118
  %v783 = vunpack.c.l.b16 %v119
  %v784 = vunpack.c.h.b16 %v119
  %v785 = vunpack.c.l.b16 %v120
  %v786 = vunpack.c.l.b16 %v121
  %v787 = vunpack.c.h.b16 %v121
  %v788 = vunpack.c.l.b16 %v122
  %v789 = vunpack.c.l.b16 %v123
  %v790 = vunpack.c.h.b16 %v123
  %v791 = vunpack.c.l.b16 %v124
  %v792 = vunpack.c.l.b16 %v125
  %v793 = vunpack.c.h.b16 %v125
  %v794 = vunpack.c.l.b16 %v126
  %v795 = vunpack.c.l.b16 %v127
  %v796 = vunpack.c.h.b16 %v127
  %v797 = vunpack.c.l.b16 %v128
  %v798 = vunpack.c.l.b16 %v129
  %v799 = vunpack.c.h.b16 %v129
  %v800 = vunpack.c.l.b16 %v130
  %v801 = vunpack.c.l.b16 %v131
  %v802 = vunpack.c.h.b16 %v131
  %v803 = vunpack.c.l.b16 %v132
  %v804 = vunpack.c.l.b16 %v133
  %v805 = vunpack.c.h.b16 %v133
  %v806 = vunpack.c.l.b16 %v134
  %v807 = vunpack.c.l.b16 %v135
  %v808 = vunpack.c.h.b16 %v135
  %v809 = vunpack.c.l.b16 %v136
  %v810 = vunpack.c.l.b16 %v137
  %v811 = vunpack.c.h.b16 %v137
  %v812 = vunpack.c.l.b16 %v138
  %v813 = vunpack.c.l.b16 %v139
  %v814 = vunpack.c.h.b16 %v139
  %v815 = vunpack.c.l.b16 %v140
  %v816 = vunpack.c.l.b16 %v141
  %v817 = vunpack.c.h.b16 %v141
  %v818 = vunpack.c.l.b16 %v142
  %v819 = vunpack.c.l.b16 %v143
  %v820 = vunpack.c.h.b16 %v143
  %v821 = vunpack.c.l.b16 %v144
  %v822 = vunpack.c.l.b16 %v145
  %v823 = vunpack.c.h.b16 %v145
  %v824 = vunpack.c.l.b16 %v146
  %v825 = vunpack.c.l.b16 %v147
  %v826 = vunpack.c.h.b16 %v147
  %v827 = vunpack.c.l.b16 %v148
  %v828 = vunpack.c.l.b16 %v149
  %v829 = vunpack.c.h.b16 %v149
  %v830 = vunpack.c.l.b16 %v150
  %v831 = vunpack.c.l.b16 %v151
  %v832 = vunpack.c.h.b16 %v151
  %v833 = vunpack.c.l.b16 %v152
  %v834 = vunpack.c.l.b16 %v153
  %v835 = vunpack.c.h.b16 %v153
  %v836 = vunpack.c.l.b16 %v154
  %v837 = vunpack.c.l.b16 %v155
  %v838 = vunpack.c.h.b16 %v155
  %v839 = vunpack.c.l.b16 %v156
  %v840 = vunpack.c.l.b16 %v157
  %v841 = vunpack.c.h.b16 %v157
  %v842 = vunpack.c.l.b16 %v158
  %v843 = vunpack.c.l.b16 %v159
  %v844 = vunpack.c.h.b16 %v159
  %v845 = vunpack.c.l.b16 %v160
  %v846 = vunpack.c.l.b16 %v161
  %v847 = vunpack.c.h.b16 %v161
  %v848 = vunpack.c.l.b16 %v162
  %v849 = vunpack.c.l.b16 %v163
  %v850 = vunpack.c.h.b16 %v163
  %v851 = vunpack.c.l.b16 %v164
  %v852 = vunpack.c.l.b16 %v165
  %v853 = vunpack.c.h.b16 %v165
  %v854 = vunpack.c.l.b16 %v166
  %v855 = vunpack.c.l.b16 %v167
  %v856 = vunpack.c.h.b16 %v167
  %v857 = vunpack.c.l.b16 %v168
  %v858 = vunpack.c.l.b16 %v169
  %v859 = vunpack.c.h.b16 %v169
  %v860 = vunpack.c.l.b16 %v170
  %v861 = vunpack.c.l.b16 %v171
  %v862 = vunpack.c.h.b16 %v171
  %v863 = vunpack.c.l.b16 %v172
  %v864 = vunpack.c.l.b16 %v173
  %v865 = vunpack.c.h.b16 %v173
  %v866 = vunpack.c.l.b16 %v174
  %v867 = vunpack.c.l.b16 %v175
  %v868 = vunpack.c.h.b16 %v175
  %v869 = vunpack.c.l.b16 %v176
  %v870 = vunpack.c.l.b16 %v177
  %v871 = vunpack.c.h.b16 %v177
  %v872 = vunpack.c.l.b16 %v178
  %v873 = vunpack.c.l.b16 %v179
  %v874 = vunpack.c.h.b16 %v179
  %v875 = vunpack.c.l.b16 %v180
  %v876 = vunpack.c.l.b16 %v181
  %v877 = vunpack.c.h.b16 %v181
  %v878 = vunpack.c.l.b16 %v182
  %v879 = vunpack.c.l.b16 %v183
  %v880 = vunpack.c.h.b16 %v183
  %v881 = vunpack.c.l.b16 %v184
  %v882 = vunpack.c.l.b16 %v185
  %v883 = vunpack.c.h.b16 %v185
  %v884 = vunpack.c.l.b16 %v186
  %v885 = vunpack.c.l.b16 %v187
  %v886 = vunpack.c.h.b16 %v187
  %v887 = vunpack.c.l.b16 %v188
  %v888 = vunpack.c.l.b16 %v189
  %v889 = vunpack.c.h.b16 %v189
  %v890 = vunpack.c.l.b16 %v190
  %v891 = vunpack.c.l.b16 %v191
  %v892 = vunpack.c.h.b16 %v191
  %v893 = vunpack.c.l.b16 %v192
  %v894 = vunpack.c.l.b16 %v193
  %v895 = vunpack.c.h.b16 %v193
  %v896 = vunpack.c.l.b16 %v194
  %v897 = vunpack.c.l.b16 %v195
  %v898 = vunpack.c.h.b16 %v195
  %v899 = vunpack.c.l.b16 %v196
  %v900 = vunpack.c.l.b16 %v197
  %v901 = vunpack.c.h.b16 %v197
  %v902 = vunpack.c.l.b16 %v198
  %v903 = vunpack.c.l.b16 %v199
  %v904 = vunpack.c.h.b16 %v199
  %v905 = vunpack.c.l.b16 %v200
  %v906 = vunpack.c.l.b16 %v201
  %v907 = vunpack.c.h.b16 %v201
  %v908 = vunpack.c.l.b16 %v202
  %v909 = vunpack.c.l.b16 %v203
  %v910 = vunpack.c.h.b16 %v203
  %v911 = vunpack.c.l.b16 %v204
  %v912 = vunpack.c.l.b16 %v205
  %v913 = vunpack.c.h.b16 %v205
  %v914 = vunpack.c.l.b16 %v206
  %v915 = vunpack.c.l.b16 %v207
  %v916 = vunpack.c.h.b16 %v207
  %v917 = vunpack.c.l.b16 %v208
  %v918 = vunpack.c.l.b16 %v209
  %v919 = vunpack.c.h.b16 %v209
  %v920 = vunpack.c.l.b16 %v210
  %v921 = vunpack.c.l.b16 %v211
  %v922 = vunpack.c.h.b16 %v211
  %v923 = vunpack.c.l.b16 %v212
  %v924 = vunpack.c.l.b16 %v213
  %v925 = vunpack.c.h.b16 %v213
  %v926 = vunpack.c.l.b16 %v214
  %v927 = vunpack.c.l.b16 %v215
  %v928 = vunpack.c.h.b16 %v215
  %v929 = vunpack.c.l.b16 %v216
  %v930 = vunpack.c.l.b16 %v217
  %v931 = vunpack.c.h.b16 %v217
  %v932 = vunpack.c.l.b16 %v218
  %v933 = vunpack.c.l.b16 %v219
  %v934 = vunpack.c.h.b16 %v219
  %v935 = vunpack.c.l.b16 %v220
  %v936 = vunpack.c.l.b16 %v221
  %v937 = vunpack.c.h.b16 %v221
  %v938 = vunpack.c.l.b16 %v222
  %v939 = vunpack.c.l.b16 %v223
  %v940 = vunpack.c.h.b16 %v223
  %v941 = vunpack.c.l.b16 %v224
  %v942 = vunpack.c.l.b16 %v225
  %v943 = vunpack.c.h.b16 %v225
  %v944 = vunpack.c.l.b16 %v226
  %v945 = vunpack.c.l.b16 %v227
  %v946 = vunpack.c.h.b16 %v227
  %v947 = vunpack.c.l.b16 %v228
  %v948 = vunpack.c.l.b16 %v229
  %v949 = vunpack.c.h.b16 %v229
  %v950 = vunpack.c.l.b16 %v230
  %v951 = vunpack.c.l.b16 %v231
  %v952 = vunpack.c.h.b16 %v231
  %v953 = vunpack.c.l.b16 %v232
  %v954 = vunpack.c.l.b16 %v233
  %v955 = vunpack.c.h.b16 %v233
  %v956 = vunpack.c.l.b16 %v234
  %v957 = vunpack.c.l.b16 %v235
  %v958 = vunpack.c.h.b16 %v235
  %v959 = vunpack.c.l.b16 %v236
  %v960 = vunpack.c.l.b16 %v237
  %v961 = vunpack.c.h.b16 %v237
  %v962 = vunpack.c.l.b16 %v238
  %v963 = vunpack.c.l.b16 %v239
  %v964 = vunpack.c.h.b16 %v239
  %v965 = vunpack.c.l.b16 %v240
  %v966 = vunpack.c.l.b16 %v241
  %v967 = vunpack.c.h.b16 %v241
  %v968 = vunpack.c.l.b16 %v242
  %v969 = vunpack.c.l.b16 %v243
  %v970 = vunpack.c.h.b16 %v243
  %v971 = vunpack.c.l.b16 %v244
  %v972 = vunpack.c.l.b16 %v245
  %v973 = vunpack.c.h.b16 %v245
  %v974 = vunpack.c.l.b16 %v246
  %v975 = vunpack.c.l.b16 %v247
  %v976 = vunpack.c.h.b16 %v247
  %v977 = vunpack.c.l.b16 %v248
  %v978 = vunpack.c.l.b16 %v249
  %v979 = vunpack.c.h.b16 %v249
  %v980 = vunpack.c.l.b16 %v250
  %v981 = vunpack.c.l.b16 %v251
  %v982 = vunpack.c.h.b16 %v251
  %v983 = vunpack.c.l.b16 %v252
  %v984 = vunpack.c.l.b16 %v253
  %v985 = vunpack.c.h.b16 %v253
  %v986 = vunpack.c.l.b16 %v254
  %v987 = vunpack.c.l.b16 %v255
  %v988 = vunpack.c.h.b16 %v255
  %v989 = vunpack.c.l.b16 %v256
  %v990 = vunpack.c.l.b16 %v257
  %v991 = vunpack.c.h.b16 %v257
  %v992 = vunpack.c.l.b16 %v258
  %v993 = vunpack.c.l.b16 %v259
  %v994 = vunpack.c.h.b16 %v259
  %v995 = vunpack.c.l.b16 %v260
  %v996 = vunpack.c.l.b16 %v261
  %v997 = vunpack.c.h.b16 %v261
  %v998 = vunpack.c.l.b16 %v262
  %v999 = vunpack.c.l.b16 %v263
  %v1000 = vunpack.c.h.b16 %v263
  %v1001 = vunpack.c.l.b16 %v264
  %v1002 = vunpack.c.l.b16 %v265
  %v1003 = vunpack.c.h.b16 %v265
  %v1004 = vunpack.c.l.b16 %v266
  %v1005 = vunpack.c.l.b16 %v267
  %v1006 = vunpack.c.h.b16 %v267
  %v1007 = vunpack.c.l.b16 %v268
  %v1008 = vunpack.c.l.b16 %v269
  %v1009 = vunpack.c.h.b16 %v269
  %v1010 = vunpack.c.l.b16 %v270
  %v1011 = vunpack.c.l.b16 %v271
  %v1012 = vunpack.c.h.b16 %v271
  %v1013 = vunpack.c.l.b16 %v272
  %v1014 = vunpack.c.l.b16 %v273
  %v1015 = vunpack.c.h.b16 %v273
  %v1016 = vunpack.c.l.b16 %v274
  %v1017 = vunpack.c.l.b16 %v275
  %v1018 = vunpack.c.h.b16 %v275
  %v1019 = vunpack.c.l.b16 %v276
  %v1020 = vunpack.c.l.b16 %v277
  %v1021 = vunpack.c.h.b16 %v277
  %v1022 = vunpack.c.l.b16 %v278
  %v1023 = vunpack.c.l.b16 %v279
  %v1024 = vunpack.c.h.b16 %v279
  %v1025 = vunpack.c.l.b16 %v280
  %v1026 = vunpack.c.l.b16 %v281
  %v1027 = vunpack.c.h.b16 %v281
  %v1028 = vunpack.c.l.b16 %v282
  %v1029 = vunpack.c.l.b16 %v283
  %v1030 = vunpack.c.h.b16 %v283
  %v1031 = vunpack.c.l.b16 %v284
  %v1032 = vunpack.c.l.b16 %v285
  %v1033 = vunpack.c.h.b16 %v285
  %v1034 = vunpack.c.l.b16 %v286
  %v1035 = vunpack.c.l.b16 %v287
  %v1036 = vunpack.c.h.b16 %v287
  %v1037 = vunpack.c.l.b16 %v288
  %v1038 = vunpack.c.l.b16 %v289
  %v1039 = vunpack.c.h.b16 %v289
  %v1040 = vunpack.c.l.b16 %v290
  %v1041 = vunpack.c.l.b16 %v291
  %v1042 = vunpack.c.h.b16 %v291
  %v1043 = vunpack.c.l.b16 %v292
  %v1044 = vunpack.c.l.b16 %v293
  %v1045 = vunpack.c.h.b16 %v293
  %v1046 = vunpack.c.l.b16 %v294
  %v1047 = vunpack.c.l.b16 %v295
  %v1048 = vunpack.c.h.b16 %v295
  %v1049 = vunpack.c.l.b16 %v296
  %v1050 = vunpack.c.l.b16 %v297
  %v1051 = vunpack.c.h.b16 %v297
  %v1052 = vunpack.c.l.b16 %v298
  %v1053 = vunpack.c.l.b16 %v299
  %v1054 = vunpack.c.h.b16 %v299
  %v1055 = vunpack.c.l.b16 %v300
  %v1056 = vunpack.c.l.b16 %v301
  %v1057 = vunpack.c.h.b16 %v301
  %v1058 = vunpack.c.l.b16 %v302
  %v1059 = vpack.c.b16 %v630, %v627
  %v1060 = vpack.c.b16 %v631, %v628
  %v1061 = vpack.c.b16 %v632, %v629
  %v1062 = vpack.c.b16 %v636, %v633
  %v1063 = vpack.c.b16 %v637, %v634
  %v1064 = vpack.c.b16 %v638, %v635
  %v1065 = vpack.c.b16 %v642, %v639
  %v1066 = vpack.c.b16 %v643, %v640
  %v1067 = vpack.c.b16 %v644, %v641
  %v1068 = vpack.c.b16 %v648, %v645
  %v1069 = vpack.c.b16 %v649, %v646
  %v1070 = vpack.c.b16 %v650, %v647
  %v1071 = vpack.c.b16 %v654, %v651
  %v1072 = vpack.c.b16 %v655, %v652
  %v1073 = vpack.c.b16 %v656, %v653
  %v1074 = vpack.c.b16 %v660, %v657
  %v1075 = vpack.c.b16 %v661, %v658
  %v1076 = vpack.c.b16 %v662, %v659
  %v1077 = vpack.c.b16 %v666, %v663
  %v1078 = vpack.c.b16 %v667, %v664
  %v1079 = vpack.c.b16 %v668, %v665
  %v1080 = vpack.c.b16 %v672, %v669
  %v1081 = vpack.c.b16 %v673, %v670
  %v1082 = vpack.c.b16 %v674, %v671
  %v1083 = vpack.c.b16 %v678, %v675
  %v1084 = vpack.c.b16 %v679, %v676
  %v1085 = vpack.c.b16 %v680, %v677
  %v1086 = vpack.c.b16 %v684, %v681
  %v1087 = vpack.c.b16 %v685, %v682
  %v1088 = vpack.c.b16 %v686, %v683
  %v1089 = vpack.c.b16 %v690, %v687
  %v1090 = vpack.c.b16 %v691, %v688
  %v1091 = vpack.c.b16 %v692, %v689
  %v1092 = vpack.c.b16 %v696, %v693
  %v1093 = vpack.c.b16 %v697, %v694
  %v1094 = vpack.c.b16 %v698, %v695
  %v1095 = vpack.c.b16 %v702, %v699
  %v1096 = vpack.c.b16 %v703, %v700
  %v1097 = vpack.c.b16 %v704, %v701
  %v1098 = vpack.c.b16 %v708, %v705
  %v1099 = vpack.c.b16 %v709, %v706
  %v1100 = vpack.c.b16 %v710, %v707
  %v1101 = vpack.c.b16 %v714, %v711
  %v1102 = vpack.c.b16 %v715, %v712
  %v1103 = vpack.c.b16 %v716, %v713
  %v1104 = vpack.c.b16 %v720, %v717
  %v1105 = vpack.c.b16 %v721, %v718
  %v1106 = vpack.c.b16 %v722, %v719
  %v1107 = vpack.c.b16 %v726, %v723
  %v1108 = vpack.c.b16 %v727, %v724
  %v1109 = vpack.c.b16 %v728, %v725
  %v1110 = vpack.c.b16 %v732, %v729
  %v1111 = vpack.c.b16 %v733, %v730
  %v1112 = vpack.c.b16 %v734, %v731
  %v1113 = vpack.c.b16 %v738, %v735
  %v1114 = vpack.c.b16 %v739, %v736
  %v1115 = vpack.c.b16 %v740, %v737
  %v1116 = vpack.c.b16 %v744, %v741
  %v1117 = vpack.c.b16 %v745, %v742
  %v1118 = vpack.c.b16 %v746, %v743
  %v1119 = vpack.c.b16 %v750, %v747
  %v1120 = vpack.c.b16 %v751, %v748
  %v1121 = vpack.c.b16 %v752, %v749
  %v1122 = vpack.c.b16 %v756, %v753
  %v1123 = vpack.c.b16 %v757, %v754
  %v1124 = vpack.c.b16 %v758, %v755
  %v1125 = vpack.c.b16 %v762, %v759
  %v1126 = vpack.c.b16 %v763, %v760
  %v1127 = vpack.c.b16 %v764, %v761
  %v1128 = vpack.c.b16 %v768, %v765
  %v1129 = vpack.c.b16 %v769, %v766
  %v1130 = vpack.c.b16 %v770, %v767
  %v1131 = vpack.c.b16 %v774, %v771
  %v1132 = vpack.c.b16 %v775, %v772
  %v1133 = vpack.c.b16 %v776, %v773
  %v1134 = vpack.c.b16 %v780, %v777
  %v1135 = vpack.c.b16 %v781, %v778
  %v1136 = vpack.c.b16 %v782, %v779
  %v1137 = vpack.c.b16 %v786, %v783
  %v1138 = vpack.c.b16 %v787, %v784
  %v1139 = vpack.c.b16 %v788, %v785
  %v1140 = vpack.c.b16 %v792, %v789
  %v1141 = vpack.c.b16 %v793, %v790
  %v1142 = vpack.c.b16 %v794, %v791
  %v1143 = vpack.c.b16 %v798, %v795
  %v1144 = vpack.c.b16 %v799, %v796
  %v1145 = vpack.c.b16 %v800, %v797
  %v1146 = vpack.c.b16 %v804, %v801
  %v1147 = vpack.c.b16 %v805, %v802
  %v1148 = vpack.c.b16 %v806, %v803
  %v1149 = vpack.c.b16 %v810, %v807
  %v1150 = vpack.c.b16 %v811, %v808
  %v1151 = vpack.c.b16 %v812, %v809
  %v1152 = vpack.c.b16 %v816, %v813
  %v1153 = vpack.c.b16 %v817, %v814
  %v1154 = vpack.c.b16 %v818, %v815
  %v1155 = vpack.c.b16 %v822, %v819
  %v1156 = vpack.c.b16 %v823, %v820
  %v1157 = vpack.c.b16 %v824, %v821
  %v1158 = vpack.c.b16 %v828, %v825
  %v1159 = vpack.c.b16 %v829, %v826
  %v1160 = vpack.c.b16 %v830, %v827
  %v1161 = vpack.c.b16 %v834, %v831
  %v1162 = vpack.c.b16 %v835, %v832
  %v1163 = vpack.c.b16 %v836, %v833
  %v1164 = vpack.c.b16 %v840, %v837
  %v1165 = vpack.c.b16 %v841, %v838
  %v1166 = vpack.c.b16 %v842, %v839
  %v1167 = vpack.c.b16 %v846, %v843
  %v1168 = vpack.c.b16 %v847, %v844
  %v1169 = vpack.c.b16 %v848, %v845
  %v1170 = vpack.c.b16 %v852, %v849
  %v1171 = vpack.c.b16 %v853, %v850
  %v1172 = vpack.c.b16 %v854, %v851
  %v1173 = vpack.c.b16 %v858, %v855
  %v1174 = vpack.c.b16 %v859, %v856
  %v1175 = vpack.c.b16 %v860, %v857
  %v1176 = vpack.c.b16 %v864, %v861
  %v1177 = vpack.c.b16 %v865, %v862
  %v1178 = vpack.c.b16 %v866, %v863
  %v1179 = vpack.c.b16 %v870, %v867
  %v1180 = vpack.c.b16 %v871, %v868
  %v1181 = vpack.c.b16 %v872, %v869
  %v1182 = vpack.c.b16 %v876, %v873
  %v1183 = vpack.c.b16 %v877, %v874
  %v1184 = vpack.c.b16 %v878, %v875
  %v1185 = vpack.c.b16 %v882, %v879
  %v1186 = vpack.c.b16 %v883, %v880
  %v1187 = vpack.c.b16 %v884, %v881
  %v1188 = vpack.c.b16 %v888, %v885
  %v1189 = vpack.c.b16 %v889, %v886
  %v1190 = vpack.c.b16 %v890, %v887
  %v1191 = vpack.c.b16 %v894, %v891
  %v1192 = vpack.c.b16 %v895, %v892
  %v1193 = vpack.c.b16 %v896, %v893
  %v1194 = vpack.c.b16 %v900, %v897
  %v1195 = vpack.c.b16 %v901, %v898
  %v1196 = vpack.c.b16 %v902, %v899
  %v1197 = vpack.c.b16 %v906, %v903
  %v1198 = vpack.c.b16 %v907, %v904
  %v1199 = vpack.c.b16 %v908, %v905
  %v1200 = vpack.c.b16 %v912, %v909
  %v1201 = vpack.c.b16 %v913, %v910
  %v1202 = vpack.c.b16 %v914, %v911
  %v1203 = vpack.c.b16 %v918, %v915
  %v1204 = vpack.c.b16 %v919, %v916
  %v1205 = vpack.c.b16 %v920, %v917
  %v1206 = vpack.c.b16 %v924, %v921
  %v1207 = vpack.c.b16 %v925, %v922
  %v1208 = vpack.c.b16 %v926, %v923
  %v1209 = vpack.c.b16 %v930, %v927
  %v1210 = vpack.c.b16 %v931, %v928
  %v1211 = vpack.c.b16 %v932, %v929
  %v1212 = vpack.c.b16 %v936, %v933
  %v1213 = vpack.c.b16 %v937, %v934
  %v1214 = vpack.c.b16 %v938, %v935
  %v1215 = vpack.c.b16 %v942, %v939
  %v1216 = vpack.c.b16 %v943, %v940
  %v1217 = vpack.c.b16 %v944, %v941
  %v1218 = vpack.c.b16 %v948, %v945
  %v1219 = vpack.c.b16 %v949, %v946
  %v1220 = vpack.c.b16 %v950, %v947
  %v1221 = vpack.c.b16 %v954, %v951
  %v1222 = vpack.c.b16 %v955, %v952
  %v1223 = vpack.c.b16 %v956, %v953
  %v1224 = vpack.c.b16 %v960, %v957
  %v1225 = vpack.c.b16 %v961, %v958
  %v1226 = vpack.c.b16 %v962, %v959
  %v1227 = vpack.c.b16 %v966, %v963
  %v1228 = vpack.c.b16 %v967, %v964
  %v1229 = vpack.c.b16 %v968, %v965
  %v1230 = vpack.c.b16 %v972, %v969
  %v1231 = vpack.c.b16 %v973, %v970
  %v1232 = vpack.c.b16 %v974, %v971
  %v1233 = vpack.c.b16 %v978, %v975
  %v1234 = vpack.c.b16 %v979, %v976
  %v1235 = vpack.c.b16 %v980, %v977
  %v1236 = vpack.c.b16 %v984, %v981
  %v1237 = vpack.c.b16 %v985, %v982
  %v1238 = vpack.c.b16 %v986, %v983
  %v1239 = vpack.c.b16 %v990, %v987
  %v1240 = vpack.c.b16 %v991, %v988
  %v1241 = vpack.c.b16 %v992, %v989
  %v1242 = vpack.c.b16 %v996, %v993
  %v1243 = vpack.c.b16 %v997, %v994
  %v1244 = vpack.c.b16 %v998, %v995
  %v1245 = vpack.c.b16 %v1002, %v999
  %v1246 = vpack.c.b16 %v1003, %v1000
  %v1247 = vpack.c.b16 %v1004, %v1001
  %v1248 = vpack.c.b16 %v1008, %v1005
  %v1249 = vpack.c.b16 %v1009, %v1006
  %v1250 = vpack.c.b16 %v1010, %v1007
  %v1251 = vpack.c.b16 %v1014, %v1011
  %v1252 = vpack.c.b16 %v1015, %v1012
  %v1253 = vpack.c.b16 %v1016, %v1013
  %v1254 = vpack.c.b16 %v1020, %v1017
  %v1255 = vpack.c.b16 %v1021, %v1018
  %v1256 = vpack.c.b16 %v1022, %v1019
  %v1257 = vpack.c.b16 %v1026, %v1023
  %v1258 = vpack.c.b16 %v1027, %v1024
  %v1259 = vpack.c.b16 %v1028, %v1025
  %v1260 = vpack.c.b16 %v1032, %v1029
  %v1261 = vpack.c.b16 %v1033, %v1030
  %v1262 = vpack.c.b16 %v1034, %v1031
  %v1263 = vpack.c.b16 %v1038, %v1035
  %v1264 = vpack.c.b16 %v1039, %v1036
  %v1265 = vpack.c.b16 %v1040, %v1037
  %v1266 = vpack.c.b16 %v1044, %v1041
  %v1267 = vpack.c.b16 %v1045, %v1042
  %v1268 = vpack.c.b16 %v1046, %v1043
  %v1269 = vpack.c.b16 %v1050, %v1047
  %v1270 = vpack.c.b16 %v1051, %v1048
  %v1271 = vpack.c.b16 %v1052, %v1049
  %v1272 = vpack.c.b16 %v1056, %v1053
  %v1273 = vpack.c.b16 %v1057, %v1054
  %v1274 = vpack.c.b16 %v1058, %v1055
  %v1455 = vunpack.c.l.b16 %v303
  %v1456 = vunpack.c.l.b16 %v304
  %v1457 = vunpack.c.l.b16 %v305
  %v1458 = vunpack.c.l.b16 %v306
  %v1459 = vunpack.c.l.b16 %v307
  %v1460 = vunpack.c.l.b16 %v308
  %v1461 = vunpack.c.l.b16 %v309
  %v1462 = vunpack.c.l.b16 %v310
  %v1463 = vunpack.c.l.b16 %v311
  %v1464 = vunpack.c.l.b16 %v312
  %v1465 = vunpack.c.l.b16 %v313
  %v1466 = vunpack.c.l.b16 %v314
  %v1467 = vunpack.c.l.b16 %v315
  %v1468 = vunpack.c.l.b16 %v316
  %v1469 = vunpack.c.l.b16 %v317
  %v1470 = vunpack.c.l.b16 %v318
  %v1471 = vunpack.c.l.b16 %v319
  %v1472 = vunpack.c.l.b16 %v320
  %v1473 = vunpack.c.l.b16 %v321
  %v1474 = vunpack.c.l.b16 %v322
  %v1475 = vunpack.c.l.b16 %v323
  %v1476 = vunpack.c.l.b16 %v324
  %v1477 = vunpack.c.l.b16 %v325
  %v1478 = vunpack.c.l.b16 %v326
  %v1479 = vunpack.c.l.b16 %v327
  %v1480 = vunpack.c.l.b16 %v328
  %v1481 = vunpack.c.l.b16 %v329
  %v1482 = vunpack.c.l.b16 %v330
  %v1483 = vunpack.c.l.b16 %v331
  %v1484 = vunpack.c.l.b16 %v332
  %v1485 = vunpack.c.l.b16 %v333
  %v1486 = vunpack.c.l.b16 %v334
  %v1487 = vunpack.c.l.b16 %v335
  %v1488 = vunpack.c.l.b16 %v336
  %v1489 = vunpack.c.l.b16 %v337
  %v1490 = vunpack.c.l.b16 %v338
  %v1491 = vpack.c.b16 %v1456, %v1455
  %v1492 = vpack.c.b16 %v1458, %v1457
  %v1493 = vpack.c.b16 %v1460, %v1459
  %v1494 = vpack.c.b16 %v1462, %v1461
  %v1495 = vpack.c.b16 %v1464, %v1463
  %v1496 = vpack.c.b16 %v1466, %v1465
  %v1497 = vpack.c.b16 %v1468, %v1467
  %v1498 = vpack.c.b16 %v1470, %v1469
  %v1499 = vpack.c.b16 %v1472, %v1471
  %v1500 = vpack.c.b16 %v1474, %v1473
  %v1501 = vpack.c.b16 %v1476, %v1475
  %v1502 = vpack.c.b16 %v1478, %v1477
  %v1503 = vpack.c.b16 %v1480, %v1479
  %v1504 = vpack.c.b16 %v1482, %v1481
  %v1505 = vpack.c.b16 %v1484, %v1483
  %v1506 = vpack.c.b16 %v1486, %v1485
  %v1507 = vpack.c.b16 %v1488, %v1487
  %v1508 = vpack.c.b16 %v1490, %v1489
  %vm1527 = vcmask 261120
  %v1529 = vsel %vm1527, %v1061, 0
  %v1532 = vsel %vm1527, %v1064, 0
  %v1535 = vsel %vm1527, %v1067, 0
  %v1538 = vsel %vm1527, %v1070, 0
  %v1541 = vsel %vm1527, %v1073, 0
  %v1544 = vsel %vm1527, %v1076, 0
  %v1547 = vsel %vm1527, %v1079, 0
  %v1550 = vsel %vm1527, %v1082, 0
  %v1553 = vsel %vm1527, %v1085, 0
  %v1556 = vsel %vm1527, %v1088, 0
  %v1559 = vsel %vm1527, %v1091, 0
  %v1562 = vsel %vm1527, %v1094, 0
  %v1565 = vsel %vm1527, %v1097, 0
  %v1568 = vsel %vm1527, %v1100, 0
  %v1571 = vsel %vm1527, %v1103, 0
  %v1574 = vsel %vm1527, %v1106, 0
  %v1577 = vsel %vm1527, %v1109, 0
  %v1580 = vsel %vm1527, %v1112, 0
  %v1583 = vsel %vm1527, %v1115, 0
  %v1586 = vsel %vm1527, %v1118, 0
  %v1589 = vsel %vm1527, %v1121, 0
  %v1592 = vsel %vm1527, %v1124, 0
  %v1595 = vsel %vm1527, %v1127, 0
  %v1598 = vsel %vm1527, %v1130, 0
  %v1601 = vsel %vm1527, %v1133, 0
  %v1604 = vsel %vm1527, %v1136, 0
  %v1607 = vsel %vm1527, %v1139, 0
  %v1610 = vsel %vm1527, %v1142, 0
  %v1613 = vsel %vm1527, %v1145, 0
  %v1616 = vsel %vm1527, %v1148, 0
  %v1619 = vsel %vm1527, %v1151, 0
  %v1622 = vsel %vm1527, %v1154, 0
  %v1625 = vsel %vm1527, %v1157, 0
  %v1628 = vsel %vm1527, %v1160, 0
  %v1631 = vsel %vm1527, %v1163, 0
  %v1634 = vsel %vm1527, %v1166, 0
  %v1637 = vsel %vm1527, %v1169, 0
  %v1640 = vsel %vm1527, %v1172, 0
  %v1643 = vsel %vm1527, %v1175, 0
  %v1646 = vsel %vm1527, %v1178, 0
  %v1649 = vsel %vm1527, %v1181, 0
  %v1652 = vsel %vm1527, %v1184, 0
  %v1655 = vsel %vm1527, %v1187, 0
  %v1658 = vsel %vm1527, %v1190, 0
  %v1661 = vsel %vm1527, %v1193, 0
  %v1664 = vsel %vm1527, %v1196, 0
  %v1667 = vsel %vm1527, %v1199, 0
  %v1670 = vsel %vm1527, %v1202, 0
  %v1673 = vsel %vm1527, %v1205, 0
  %v1676 = vsel %vm1527, %v1208, 0
  %v1679 = vsel %vm1527, %v1211, 0
  %v1682 = vsel %vm1527, %v1214, 0
  %v1685 = vsel %vm1527, %v1217, 0
  %v1688 = vsel %vm1527, %v1220, 0
  %v1691 = vsel %vm1527, %v1223, 0
  %v1694 = vsel %vm1527, %v1226, 0
  %v1697 = vsel %vm1527, %v1229, 0
  %v1700 = vsel %vm1527, %v1232, 0
  %v1703 = vsel %vm1527, %v1235, 0
  %v1706 = vsel %vm1527, %v1238, 0
  %v1709 = vsel %vm1527, %v1241, 0
  %v1712 = vsel %vm1527, %v1244, 0
  %v1715 = vsel %vm1527, %v1247, 0
  %v1718 = vsel %vm1527, %v1250, 0
  %v1721 = vsel %vm1527, %v1253, 0
  %v1724 = vsel %vm1527, %v1256, 0
  %v1727 = vsel %vm1527, %v1259, 0
  %v1730 = vsel %vm1527, %v1262, 0
  %v1733 = vsel %vm1527, %v1265, 0
  %v1736 = vsel %vm1527, %v1268, 0
  %v1739 = vsel %vm1527, %v1271, 0
  %v1742 = vsel %vm1527, %v1274, 0
  %1744 = vmatpush.bf16.msra.mxu0 %v1498
  %1745 = vmatpush.bf16.msra.mxu0 %v1497
  %1746 = vmatpush.bf16.msra.mxu0 %v1496
  %1747 = vmatpush.bf16.msra.mxu0 %v1495
  %1748 = vmatpush.bf16.msra.mxu0 %v1494
  %1749 = vmatpush.bf16.msra.mxu0 %v1493
  %1750 = vmatpush.bf16.msra.mxu0 %v1492
  %1751 = vmatpush.bf16.msra.mxu0 %v1491
  %1752 = vmatmul.bf16.gmra.mxu0 %v1059
  %v1753 = vpop.f32.mrf.mxu0
  %v1754 = vadd.f32 0.0, %v1753
  %v1755 = vpop.f32.mrf.mxu0
  %v1756 = vadd.f32 0.0, %v1755
  %1757 = vmatmul.bf16.gmra.mxu0 %v1062
  %v1758 = vpop.f32.mrf.mxu0
  %v1759 = vadd.f32 0.0, %v1758
  %v1760 = vpop.f32.mrf.mxu0
  %v1761 = vadd.f32 0.0, %v1760
  %1762 = vmatmul.bf16.gmra.mxu0 %v1065
  %v1763 = vpop.f32.mrf.mxu0
  %v1764 = vadd.f32 0.0, %v1763
  %v1765 = vpop.f32.mrf.mxu0
  %v1766 = vadd.f32 0.0, %v1765
  %1767 = vmatmul.bf16.gmra.mxu0 %v1068
  %v1768 = vpop.f32.mrf.mxu0
  %v1769 = vadd.f32 0.0, %v1768
  %v1770 = vpop.f32.mrf.mxu0
  %v1771 = vadd.f32 0.0, %v1770
  %1772 = vmatmul.bf16.gmra.mxu0 %v1071
  %v1773 = vpop.f32.mrf.mxu0
  %v1774 = vadd.f32 0.0, %v1773
  %v1775 = vpop.f32.mrf.mxu0
  %v1776 = vadd.f32 0.0, %v1775
  %1777 = vmatmul.bf16.gmra.mxu0 %v1074
  %v1778 = vpop.f32.mrf.mxu0
  %v1779 = vadd.f32 0.0, %v1778
  %v1780 = vpop.f32.mrf.mxu0
  %v1781 = vadd.f32 0.0, %v1780
  %1782 = vmatmul.bf16.gmra.mxu0 %v1077
  %v1783 = vpop.f32.mrf.mxu0
  %v1784 = vadd.f32 0.0, %v1783
  %v1785 = vpop.f32.mrf.mxu0
  %v1786 = vadd.f32 0.0, %v1785
  %1787 = vmatmul.bf16.gmra.mxu0 %v1080
  %v1788 = vpop.f32.mrf.mxu0
  %v1789 = vadd.f32 0.0, %v1788
  %v1790 = vpop.f32.mrf.mxu0
  %v1791 = vadd.f32 0.0, %v1790
  %1792 = vmatmul.bf16.gmra.mxu0 %v1083
  %v1793 = vpop.f32.mrf.mxu0
  %v1794 = vadd.f32 0.0, %v1793
  %v1795 = vpop.f32.mrf.mxu0
  %v1796 = vadd.f32 0.0, %v1795
  %1797 = vmatmul.bf16.gmra.mxu0 %v1086
  %v1798 = vpop.f32.mrf.mxu0
  %v1799 = vadd.f32 0.0, %v1798
  %v1800 = vpop.f32.mrf.mxu0
  %v1801 = vadd.f32 0.0, %v1800
  %1802 = vmatmul.bf16.gmra.mxu0 %v1089
  %v1803 = vpop.f32.mrf.mxu0
  %v1804 = vadd.f32 0.0, %v1803
  %v1805 = vpop.f32.mrf.mxu0
  %v1806 = vadd.f32 0.0, %v1805
  %1807 = vmatmul.bf16.gmra.mxu0 %v1092
  %v1808 = vpop.f32.mrf.mxu0
  %v1809 = vadd.f32 0.0, %v1808
  %v1810 = vpop.f32.mrf.mxu0
  %v1811 = vadd.f32 0.0, %v1810
  %1812 = vmatmul.bf16.gmra.mxu0 %v1095
  %v1813 = vpop.f32.mrf.mxu0
  %v1814 = vadd.f32 0.0, %v1813
  %v1815 = vpop.f32.mrf.mxu0
  %v1816 = vadd.f32 0.0, %v1815
  %1817 = vmatmul.bf16.gmra.mxu0 %v1098
  %v1818 = vpop.f32.mrf.mxu0
  %v1819 = vadd.f32 0.0, %v1818
  %v1820 = vpop.f32.mrf.mxu0
  %v1821 = vadd.f32 0.0, %v1820
  %1822 = vmatmul.bf16.gmra.mxu0 %v1101
  %v1823 = vpop.f32.mrf.mxu0
  %v1824 = vadd.f32 0.0, %v1823
  %v1825 = vpop.f32.mrf.mxu0
  %v1826 = vadd.f32 0.0, %v1825
  %1827 = vmatmul.bf16.gmra.mxu0 %v1104
  %v1828 = vpop.f32.mrf.mxu0
  %v1829 = vadd.f32 0.0, %v1828
  %v1830 = vpop.f32.mrf.mxu0
  %v1831 = vadd.f32 0.0, %v1830
  %1832 = vmatmul.bf16.gmra.mxu0 %v1107
  %v1833 = vpop.f32.mrf.mxu0
  %v1834 = vadd.f32 0.0, %v1833
  %v1835 = vpop.f32.mrf.mxu0
  %v1836 = vadd.f32 0.0, %v1835
  %1837 = vmatmul.bf16.gmra.mxu0 %v1110
  %v1838 = vpop.f32.mrf.mxu0
  %v1839 = vadd.f32 0.0, %v1838
  %v1840 = vpop.f32.mrf.mxu0
  %v1841 = vadd.f32 0.0, %v1840
  %1842 = vmatmul.bf16.gmra.mxu0 %v1113
  %v1843 = vpop.f32.mrf.mxu0
  %v1844 = vadd.f32 0.0, %v1843
  %v1845 = vpop.f32.mrf.mxu0
  %v1846 = vadd.f32 0.0, %v1845
  %1847 = vmatmul.bf16.gmra.mxu0 %v1116
  %v1848 = vpop.f32.mrf.mxu0
  %v1849 = vadd.f32 0.0, %v1848
  %v1850 = vpop.f32.mrf.mxu0
  %v1851 = vadd.f32 0.0, %v1850
  %1852 = vmatmul.bf16.gmra.mxu0 %v1119
  %v1853 = vpop.f32.mrf.mxu0
  %v1854 = vadd.f32 0.0, %v1853
  %v1855 = vpop.f32.mrf.mxu0
  %v1856 = vadd.f32 0.0, %v1855
  %1857 = vmatmul.bf16.gmra.mxu0 %v1122
  %v1858 = vpop.f32.mrf.mxu0
  %v1859 = vadd.f32 0.0, %v1858
  %v1860 = vpop.f32.mrf.mxu0
  %v1861 = vadd.f32 0.0, %v1860
  %1862 = vmatmul.bf16.gmra.mxu0 %v1125
  %v1863 = vpop.f32.mrf.mxu0
  %v1864 = vadd.f32 0.0, %v1863
  %v1865 = vpop.f32.mrf.mxu0
  %v1866 = vadd.f32 0.0, %v1865
  %1867 = vmatmul.bf16.gmra.mxu0 %v1128
  %v1868 = vpop.f32.mrf.mxu0
  %v1869 = vadd.f32 0.0, %v1868
  %v1870 = vpop.f32.mrf.mxu0
  %v1871 = vadd.f32 0.0, %v1870
  %1872 = vmatmul.bf16.gmra.mxu0 %v1131
  %v1873 = vpop.f32.mrf.mxu0
  %v1874 = vadd.f32 0.0, %v1873
  %v1875 = vpop.f32.mrf.mxu0
  %v1876 = vadd.f32 0.0, %v1875
  %1877 = vmatmul.bf16.gmra.mxu0 %v1134
  %v1878 = vpop.f32.mrf.mxu0
  %v1879 = vadd.f32 0.0, %v1878
  %v1880 = vpop.f32.mrf.mxu0
  %v1881 = vadd.f32 0.0, %v1880
  %1882 = vmatmul.bf16.gmra.mxu0 %v1137
  %v1883 = vpop.f32.mrf.mxu0
  %v1884 = vadd.f32 0.0, %v1883
  %v1885 = vpop.f32.mrf.mxu0
  %v1886 = vadd.f32 0.0, %v1885
  %1887 = vmatmul.bf16.gmra.mxu0 %v1140
  %v1888 = vpop.f32.mrf.mxu0
  %v1889 = vadd.f32 0.0, %v1888
  %v1890 = vpop.f32.mrf.mxu0
  %v1891 = vadd.f32 0.0, %v1890
  %1892 = vmatmul.bf16.gmra.mxu0 %v1143
  %v1893 = vpop.f32.mrf.mxu0
  %v1894 = vadd.f32 0.0, %v1893
  %v1895 = vpop.f32.mrf.mxu0
  %v1896 = vadd.f32 0.0, %v1895
  %1897 = vmatmul.bf16.gmra.mxu0 %v1146
  %v1898 = vpop.f32.mrf.mxu0
  %v1899 = vadd.f32 0.0, %v1898
  %v1900 = vpop.f32.mrf.mxu0
  %v1901 = vadd.f32 0.0, %v1900
  %1902 = vmatmul.bf16.gmra.mxu0 %v1149
  %v1903 = vpop.f32.mrf.mxu0
  %v1904 = vadd.f32 0.0, %v1903
  %v1905 = vpop.f32.mrf.mxu0
  %v1906 = vadd.f32 0.0, %v1905
  %1907 = vmatmul.bf16.gmra.mxu0 %v1152
  %v1908 = vpop.f32.mrf.mxu0
  %v1909 = vadd.f32 0.0, %v1908
  %v1910 = vpop.f32.mrf.mxu0
  %v1911 = vadd.f32 0.0, %v1910
  %1912 = vmatmul.bf16.gmra.mxu0 %v1155
  %v1913 = vpop.f32.mrf.mxu0
  %v1914 = vadd.f32 0.0, %v1913
  %v1915 = vpop.f32.mrf.mxu0
  %v1916 = vadd.f32 0.0, %v1915
  %1917 = vmatmul.bf16.gmra.mxu0 %v1158
  %v1918 = vpop.f32.mrf.mxu0
  %v1919 = vadd.f32 0.0, %v1918
  %v1920 = vpop.f32.mrf.mxu0
  %v1921 = vadd.f32 0.0, %v1920
  %1922 = vmatmul.bf16.gmra.mxu0 %v1161
  %v1923 = vpop.f32.mrf.mxu0
  %v1924 = vadd.f32 0.0, %v1923
  %v1925 = vpop.f32.mrf.mxu0
  %v1926 = vadd.f32 0.0, %v1925
  %1927 = vmatmul.bf16.gmra.mxu0 %v1164
  %v1928 = vpop.f32.mrf.mxu0
  %v1929 = vadd.f32 0.0, %v1928
  %v1930 = vpop.f32.mrf.mxu0
  %v1931 = vadd.f32 0.0, %v1930
  %1932 = vmatmul.bf16.gmra.mxu0 %v1167
  %v1933 = vpop.f32.mrf.mxu0
  %v1934 = vadd.f32 0.0, %v1933
  %v1935 = vpop.f32.mrf.mxu0
  %v1936 = vadd.f32 0.0, %v1935
  %1937 = vmatmul.bf16.gmra.mxu0 %v1170
  %v1938 = vpop.f32.mrf.mxu0
  %v1939 = vadd.f32 0.0, %v1938
  %v1940 = vpop.f32.mrf.mxu0
  %v1941 = vadd.f32 0.0, %v1940
  %1942 = vmatmul.bf16.gmra.mxu0 %v1173
  %v1943 = vpop.f32.mrf.mxu0
  %v1944 = vadd.f32 0.0, %v1943
  %v1945 = vpop.f32.mrf.mxu0
  %v1946 = vadd.f32 0.0, %v1945
  %1947 = vmatmul.bf16.gmra.mxu0 %v1176
  %v1948 = vpop.f32.mrf.mxu0
  %v1949 = vadd.f32 0.0, %v1948
  %v1950 = vpop.f32.mrf.mxu0
  %v1951 = vadd.f32 0.0, %v1950
  %1952 = vmatmul.bf16.gmra.mxu0 %v1179
  %v1953 = vpop.f32.mrf.mxu0
  %v1954 = vadd.f32 0.0, %v1953
  %v1955 = vpop.f32.mrf.mxu0
  %v1956 = vadd.f32 0.0, %v1955
  %1957 = vmatmul.bf16.gmra.mxu0 %v1182
  %v1958 = vpop.f32.mrf.mxu0
  %v1959 = vadd.f32 0.0, %v1958
  %v1960 = vpop.f32.mrf.mxu0
  %v1961 = vadd.f32 0.0, %v1960
  %1962 = vmatmul.bf16.gmra.mxu0 %v1185
  %v1963 = vpop.f32.mrf.mxu0
  %v1964 = vadd.f32 0.0, %v1963
  %v1965 = vpop.f32.mrf.mxu0
  %v1966 = vadd.f32 0.0, %v1965
  %1967 = vmatmul.bf16.gmra.mxu0 %v1188
  %v1968 = vpop.f32.mrf.mxu0
  %v1969 = vadd.f32 0.0, %v1968
  %v1970 = vpop.f32.mrf.mxu0
  %v1971 = vadd.f32 0.0, %v1970
  %1972 = vmatmul.bf16.gmra.mxu0 %v1191
  %v1973 = vpop.f32.mrf.mxu0
  %v1974 = vadd.f32 0.0, %v1973
  %v1975 = vpop.f32.mrf.mxu0
  %v1976 = vadd.f32 0.0, %v1975
  %1977 = vmatmul.bf16.gmra.mxu0 %v1194
  %v1978 = vpop.f32.mrf.mxu0
  %v1979 = vadd.f32 0.0, %v1978
  %v1980 = vpop.f32.mrf.mxu0
  %v1981 = vadd.f32 0.0, %v1980
  %1982 = vmatmul.bf16.gmra.mxu0 %v1197
  %v1983 = vpop.f32.mrf.mxu0
  %v1984 = vadd.f32 0.0, %v1983
  %v1985 = vpop.f32.mrf.mxu0
  %v1986 = vadd.f32 0.0, %v1985
  %1987 = vmatmul.bf16.gmra.mxu0 %v1200
  %v1988 = vpop.f32.mrf.mxu0
  %v1989 = vadd.f32 0.0, %v1988
  %v1990 = vpop.f32.mrf.mxu0
  %v1991 = vadd.f32 0.0, %v1990
  %1992 = vmatmul.bf16.gmra.mxu0 %v1203
  %v1993 = vpop.f32.mrf.mxu0
  %v1994 = vadd.f32 0.0, %v1993
  %v1995 = vpop.f32.mrf.mxu0
  %v1996 = vadd.f32 0.0, %v1995
  %1997 = vmatmul.bf16.gmra.mxu0 %v1206
  %v1998 = vpop.f32.mrf.mxu0
  %v1999 = vadd.f32 0.0, %v1998
  %v2000 = vpop.f32.mrf.mxu0
  %v2001 = vadd.f32 0.0, %v2000
  %2002 = vmatmul.bf16.gmra.mxu0 %v1209
  %v2003 = vpop.f32.mrf.mxu0
  %v2004 = vadd.f32 0.0, %v2003
  %v2005 = vpop.f32.mrf.mxu0
  %v2006 = vadd.f32 0.0, %v2005
  %2007 = vmatmul.bf16.gmra.mxu0 %v1212
  %v2008 = vpop.f32.mrf.mxu0
  %v2009 = vadd.f32 0.0, %v2008
  %v2010 = vpop.f32.mrf.mxu0
  %v2011 = vadd.f32 0.0, %v2010
  %2012 = vmatmul.bf16.gmra.mxu0 %v1215
  %v2013 = vpop.f32.mrf.mxu0
  %v2014 = vadd.f32 0.0, %v2013
  %v2015 = vpop.f32.mrf.mxu0
  %v2016 = vadd.f32 0.0, %v2015
  %2017 = vmatmul.bf16.gmra.mxu0 %v1218
  %v2018 = vpop.f32.mrf.mxu0
  %v2019 = vadd.f32 0.0, %v2018
  %v2020 = vpop.f32.mrf.mxu0
  %v2021 = vadd.f32 0.0, %v2020
  %2022 = vmatmul.bf16.gmra.mxu0 %v1221
  %v2023 = vpop.f32.mrf.mxu0
  %v2024 = vadd.f32 0.0, %v2023
  %v2025 = vpop.f32.mrf.mxu0
  %v2026 = vadd.f32 0.0, %v2025
  %2027 = vmatmul.bf16.gmra.mxu0 %v1224
  %v2028 = vpop.f32.mrf.mxu0
  %v2029 = vadd.f32 0.0, %v2028
  %v2030 = vpop.f32.mrf.mxu0
  %v2031 = vadd.f32 0.0, %v2030
  %2032 = vmatmul.bf16.gmra.mxu0 %v1227
  %v2033 = vpop.f32.mrf.mxu0
  %v2034 = vadd.f32 0.0, %v2033
  %v2035 = vpop.f32.mrf.mxu0
  %v2036 = vadd.f32 0.0, %v2035
  %2037 = vmatmul.bf16.gmra.mxu0 %v1230
  %v2038 = vpop.f32.mrf.mxu0
  %v2039 = vadd.f32 0.0, %v2038
  %v2040 = vpop.f32.mrf.mxu0
  %v2041 = vadd.f32 0.0, %v2040
  %2042 = vmatmul.bf16.gmra.mxu0 %v1233
  %v2043 = vpop.f32.mrf.mxu0
  %v2044 = vadd.f32 0.0, %v2043
  %v2045 = vpop.f32.mrf.mxu0
  %v2046 = vadd.f32 0.0, %v2045
  %2047 = vmatmul.bf16.gmra.mxu0 %v1236
  %v2048 = vpop.f32.mrf.mxu0
  %v2049 = vadd.f32 0.0, %v2048
  %v2050 = vpop.f32.mrf.mxu0
  %v2051 = vadd.f32 0.0, %v2050
  %2052 = vmatmul.bf16.gmra.mxu0 %v1239
  %v2053 = vpop.f32.mrf.mxu0
  %v2054 = vadd.f32 0.0, %v2053
  %v2055 = vpop.f32.mrf.mxu0
  %v2056 = vadd.f32 0.0, %v2055
  %2057 = vmatmul.bf16.gmra.mxu0 %v1242
  %v2058 = vpop.f32.mrf.mxu0
  %v2059 = vadd.f32 0.0, %v2058
  %v2060 = vpop.f32.mrf.mxu0
  %v2061 = vadd.f32 0.0, %v2060
  %2062 = vmatmul.bf16.gmra.mxu0 %v1245
  %v2063 = vpop.f32.mrf.mxu0
  %v2064 = vadd.f32 0.0, %v2063
  %v2065 = vpop.f32.mrf.mxu0
  %v2066 = vadd.f32 0.0, %v2065
  %2067 = vmatmul.bf16.gmra.mxu0 %v1248
  %v2068 = vpop.f32.mrf.mxu0
  %v2069 = vadd.f32 0.0, %v2068
  %v2070 = vpop.f32.mrf.mxu0
  %v2071 = vadd.f32 0.0, %v2070
  %2072 = vmatmul.bf16.gmra.mxu0 %v1251
  %v2073 = vpop.f32.mrf.mxu0
  %v2074 = vadd.f32 0.0, %v2073
  %v2075 = vpop.f32.mrf.mxu0
  %v2076 = vadd.f32 0.0, %v2075
  %2077 = vmatmul.bf16.gmra.mxu0 %v1254
  %v2078 = vpop.f32.mrf.mxu0
  %v2079 = vadd.f32 0.0, %v2078
  %v2080 = vpop.f32.mrf.mxu0
  %v2081 = vadd.f32 0.0, %v2080
  %2082 = vmatmul.bf16.gmra.mxu0 %v1257
  %v2083 = vpop.f32.mrf.mxu0
  %v2084 = vadd.f32 0.0, %v2083
  %v2085 = vpop.f32.mrf.mxu0
  %v2086 = vadd.f32 0.0, %v2085
  %2087 = vmatmul.bf16.gmra.mxu0 %v1260
  %v2088 = vpop.f32.mrf.mxu0
  %v2089 = vadd.f32 0.0, %v2088
  %v2090 = vpop.f32.mrf.mxu0
  %v2091 = vadd.f32 0.0, %v2090
  %2092 = vmatmul.bf16.gmra.mxu0 %v1263
  %v2093 = vpop.f32.mrf.mxu0
  %v2094 = vadd.f32 0.0, %v2093
  %v2095 = vpop.f32.mrf.mxu0
  %v2096 = vadd.f32 0.0, %v2095
  %2097 = vmatmul.bf16.gmra.mxu0 %v1266
  %v2098 = vpop.f32.mrf.mxu0
  %v2099 = vadd.f32 0.0, %v2098
  %v2100 = vpop.f32.mrf.mxu0
  %v2101 = vadd.f32 0.0, %v2100
  %2102 = vmatmul.bf16.gmra.mxu0 %v1269
  %v2103 = vpop.f32.mrf.mxu0
  %v2104 = vadd.f32 0.0, %v2103
  %v2105 = vpop.f32.mrf.mxu0
  %v2106 = vadd.f32 0.0, %v2105
  %2107 = vmatmul.bf16.gmra.mxu0 %v1272
  %v2108 = vpop.f32.mrf.mxu0
  %v2109 = vadd.f32 0.0, %v2108
  %v2110 = vpop.f32.mrf.mxu0
  %v2111 = vadd.f32 0.0, %v2110
  %2112 = vdwg.mxu0
  %2113 = vmatpush.bf16.msra.mxu0 %v1506
  %2114 = vmatpush.bf16.msra.mxu0 %v1505
  %2115 = vmatpush.bf16.msra.mxu0 %v1504
  %2116 = vmatpush.bf16.msra.mxu0 %v1503
  %2117 = vmatpush.bf16.msra.mxu0 %v1502
  %2118 = vmatpush.bf16.msra.mxu0 %v1501
  %2119 = vmatpush.bf16.msra.mxu0 %v1500
  %2120 = vmatpush.bf16.msra.mxu0 %v1499
  %2121 = vmatmul.bf16.gmra.mxu0 %v1060
  %v2122 = vpop.f32.mrf.mxu0
  %v2123 = vadd.f32 %v1754, %v2122
  %v2124 = vpop.f32.mrf.mxu0
  %v2125 = vadd.f32 %v1756, %v2124
  %2126 = vmatmul.bf16.gmra.mxu0 %v1063
  %v2127 = vpop.f32.mrf.mxu0
  %v2128 = vadd.f32 %v1759, %v2127
  %v2129 = vpop.f32.mrf.mxu0
  %v2130 = vadd.f32 %v1761, %v2129
  %2131 = vmatmul.bf16.gmra.mxu0 %v1066
  %v2132 = vpop.f32.mrf.mxu0
  %v2133 = vadd.f32 %v1764, %v2132
  %v2134 = vpop.f32.mrf.mxu0
  %v2135 = vadd.f32 %v1766, %v2134
  %2136 = vmatmul.bf16.gmra.mxu0 %v1069
  %v2137 = vpop.f32.mrf.mxu0
  %v2138 = vadd.f32 %v1769, %v2137
  %v2139 = vpop.f32.mrf.mxu0
  %v2140 = vadd.f32 %v1771, %v2139
  %2141 = vmatmul.bf16.gmra.mxu0 %v1072
  %v2142 = vpop.f32.mrf.mxu0
  %v2143 = vadd.f32 %v1774, %v2142
  %v2144 = vpop.f32.mrf.mxu0
  %v2145 = vadd.f32 %v1776, %v2144
  %2146 = vmatmul.bf16.gmra.mxu0 %v1075
  %v2147 = vpop.f32.mrf.mxu0
  %v2148 = vadd.f32 %v1779, %v2147
  %v2149 = vpop.f32.mrf.mxu0
  %v2150 = vadd.f32 %v1781, %v2149
  %2151 = vmatmul.bf16.gmra.mxu0 %v1078
  %v2152 = vpop.f32.mrf.mxu0
  %v2153 = vadd.f32 %v1784, %v2152
  %v2154 = vpop.f32.mrf.mxu0
  %v2155 = vadd.f32 %v1786, %v2154
  %2156 = vmatmul.bf16.gmra.mxu0 %v1081
  %v2157 = vpop.f32.mrf.mxu0
  %v2158 = vadd.f32 %v1789, %v2157
  %v2159 = vpop.f32.mrf.mxu0
  %v2160 = vadd.f32 %v1791, %v2159
  %2161 = vmatmul.bf16.gmra.mxu0 %v1084
  %v2162 = vpop.f32.mrf.mxu0
  %v2163 = vadd.f32 %v1794, %v2162
  %v2164 = vpop.f32.mrf.mxu0
  %v2165 = vadd.f32 %v1796, %v2164
  %2166 = vmatmul.bf16.gmra.mxu0 %v1087
  %v2167 = vpop.f32.mrf.mxu0
  %v2168 = vadd.f32 %v1799, %v2167
  %v2169 = vpop.f32.mrf.mxu0
  %v2170 = vadd.f32 %v1801, %v2169
  %2171 = vmatmul.bf16.gmra.mxu0 %v1090
  %v2172 = vpop.f32.mrf.mxu0
  %v2173 = vadd.f32 %v1804, %v2172
  %v2174 = vpop.f32.mrf.mxu0
  %v2175 = vadd.f32 %v1806, %v2174
  %2176 = vmatmul.bf16.gmra.mxu0 %v1093
  %v2177 = vpop.f32.mrf.mxu0
  %v2178 = vadd.f32 %v1809, %v2177
  %v2179 = vpop.f32.mrf.mxu0
  %v2180 = vadd.f32 %v1811, %v2179
  %2181 = vmatmul.bf16.gmra.mxu0 %v1096
  %v2182 = vpop.f32.mrf.mxu0
  %v2183 = vadd.f32 %v1814, %v2182
  %v2184 = vpop.f32.mrf.mxu0
  %v2185 = vadd.f32 %v1816, %v2184
  %2186 = vmatmul.bf16.gmra.mxu0 %v1099
  %v2187 = vpop.f32.mrf.mxu0
  %v2188 = vadd.f32 %v1819, %v2187
  %v2189 = vpop.f32.mrf.mxu0
  %v2190 = vadd.f32 %v1821, %v2189
  %2191 = vmatmul.bf16.gmra.mxu0 %v1102
  %v2192 = vpop.f32.mrf.mxu0
  %v2193 = vadd.f32 %v1824, %v2192
  %v2194 = vpop.f32.mrf.mxu0
  %v2195 = vadd.f32 %v1826, %v2194
  %2196 = vmatmul.bf16.gmra.mxu0 %v1105
  %v2197 = vpop.f32.mrf.mxu0
  %v2198 = vadd.f32 %v1829, %v2197
  %v2199 = vpop.f32.mrf.mxu0
  %v2200 = vadd.f32 %v1831, %v2199
  %2201 = vmatmul.bf16.gmra.mxu0 %v1108
  %v2202 = vpop.f32.mrf.mxu0
  %v2203 = vadd.f32 %v1834, %v2202
  %v2204 = vpop.f32.mrf.mxu0
  %v2205 = vadd.f32 %v1836, %v2204
  %2206 = vmatmul.bf16.gmra.mxu0 %v1111
  %v2207 = vpop.f32.mrf.mxu0
  %v2208 = vadd.f32 %v1839, %v2207
  %v2209 = vpop.f32.mrf.mxu0
  %v2210 = vadd.f32 %v1841, %v2209
  %2211 = vmatmul.bf16.gmra.mxu0 %v1114
  %v2212 = vpop.f32.mrf.mxu0
  %v2213 = vadd.f32 %v1844, %v2212
  %v2214 = vpop.f32.mrf.mxu0
  %v2215 = vadd.f32 %v1846, %v2214
  %2216 = vmatmul.bf16.gmra.mxu0 %v1117
  %v2217 = vpop.f32.mrf.mxu0
  %v2218 = vadd.f32 %v1849, %v2217
  %v2219 = vpop.f32.mrf.mxu0
  %v2220 = vadd.f32 %v1851, %v2219
  %2221 = vmatmul.bf16.gmra.mxu0 %v1120
  %v2222 = vpop.f32.mrf.mxu0
  %v2223 = vadd.f32 %v1854, %v2222
  %v2224 = vpop.f32.mrf.mxu0
  %v2225 = vadd.f32 %v1856, %v2224
  %2226 = vmatmul.bf16.gmra.mxu0 %v1123
  %v2227 = vpop.f32.mrf.mxu0
  %v2228 = vadd.f32 %v1859, %v2227
  %v2229 = vpop.f32.mrf.mxu0
  %v2230 = vadd.f32 %v1861, %v2229
  %2231 = vmatmul.bf16.gmra.mxu0 %v1126
  %v2232 = vpop.f32.mrf.mxu0
  %v2233 = vadd.f32 %v1864, %v2232
  %v2234 = vpop.f32.mrf.mxu0
  %v2235 = vadd.f32 %v1866, %v2234
  %2236 = vmatmul.bf16.gmra.mxu0 %v1129
  %v2237 = vpop.f32.mrf.mxu0
  %v2238 = vadd.f32 %v1869, %v2237
  %v2239 = vpop.f32.mrf.mxu0
  %v2240 = vadd.f32 %v1871, %v2239
  %2241 = vmatmul.bf16.gmra.mxu0 %v1132
  %v2242 = vpop.f32.mrf.mxu0
  %v2243 = vadd.f32 %v1874, %v2242
  %v2244 = vpop.f32.mrf.mxu0
  %v2245 = vadd.f32 %v1876, %v2244
  %2246 = vmatmul.bf16.gmra.mxu0 %v1135
  %v2247 = vpop.f32.mrf.mxu0
  %v2248 = vadd.f32 %v1879, %v2247
  %v2249 = vpop.f32.mrf.mxu0
  %v2250 = vadd.f32 %v1881, %v2249
  %2251 = vmatmul.bf16.gmra.mxu0 %v1138
  %v2252 = vpop.f32.mrf.mxu0
  %v2253 = vadd.f32 %v1884, %v2252
  %v2254 = vpop.f32.mrf.mxu0
  %v2255 = vadd.f32 %v1886, %v2254
  %2256 = vmatmul.bf16.gmra.mxu0 %v1141
  %v2257 = vpop.f32.mrf.mxu0
  %v2258 = vadd.f32 %v1889, %v2257
  %v2259 = vpop.f32.mrf.mxu0
  %v2260 = vadd.f32 %v1891, %v2259
  %2261 = vmatmul.bf16.gmra.mxu0 %v1144
  %v2262 = vpop.f32.mrf.mxu0
  %v2263 = vadd.f32 %v1894, %v2262
  %v2264 = vpop.f32.mrf.mxu0
  %v2265 = vadd.f32 %v1896, %v2264
  %2266 = vmatmul.bf16.gmra.mxu0 %v1147
  %v2267 = vpop.f32.mrf.mxu0
  %v2268 = vadd.f32 %v1899, %v2267
  %v2269 = vpop.f32.mrf.mxu0
  %v2270 = vadd.f32 %v1901, %v2269
  %2271 = vmatmul.bf16.gmra.mxu0 %v1150
  %v2272 = vpop.f32.mrf.mxu0
  %v2273 = vadd.f32 %v1904, %v2272
  %v2274 = vpop.f32.mrf.mxu0
  %v2275 = vadd.f32 %v1906, %v2274
  %2276 = vmatmul.bf16.gmra.mxu0 %v1153
  %v2277 = vpop.f32.mrf.mxu0
  %v2278 = vadd.f32 %v1909, %v2277
  %v2279 = vpop.f32.mrf.mxu0
  %v2280 = vadd.f32 %v1911, %v2279
  %2281 = vmatmul.bf16.gmra.mxu0 %v1156
  %v2282 = vpop.f32.mrf.mxu0
  %v2283 = vadd.f32 %v1914, %v2282
  %v2284 = vpop.f32.mrf.mxu0
  %v2285 = vadd.f32 %v1916, %v2284
  %2286 = vmatmul.bf16.gmra.mxu0 %v1159
  %v2287 = vpop.f32.mrf.mxu0
  %v2288 = vadd.f32 %v1919, %v2287
  %v2289 = vpop.f32.mrf.mxu0
  %v2290 = vadd.f32 %v1921, %v2289
  %2291 = vmatmul.bf16.gmra.mxu0 %v1162
  %v2292 = vpop.f32.mrf.mxu0
  %v2293 = vadd.f32 %v1924, %v2292
  %v2294 = vpop.f32.mrf.mxu0
  %v2295 = vadd.f32 %v1926, %v2294
  %2296 = vmatmul.bf16.gmra.mxu0 %v1165
  %v2297 = vpop.f32.mrf.mxu0
  %v2298 = vadd.f32 %v1929, %v2297
  %v2299 = vpop.f32.mrf.mxu0
  %v2300 = vadd.f32 %v1931, %v2299
  %2301 = vmatmul.bf16.gmra.mxu0 %v1168
  %v2302 = vpop.f32.mrf.mxu0
  %v2303 = vadd.f32 %v1934, %v2302
  %v2304 = vpop.f32.mrf.mxu0
  %v2305 = vadd.f32 %v1936, %v2304
  %2306 = vmatmul.bf16.gmra.mxu0 %v1171
  %v2307 = vpop.f32.mrf.mxu0
  %v2308 = vadd.f32 %v1939, %v2307
  %v2309 = vpop.f32.mrf.mxu0
  %v2310 = vadd.f32 %v1941, %v2309
  %2311 = vmatmul.bf16.gmra.mxu0 %v1174
  %v2312 = vpop.f32.mrf.mxu0
  %v2313 = vadd.f32 %v1944, %v2312
  %v2314 = vpop.f32.mrf.mxu0
  %v2315 = vadd.f32 %v1946, %v2314
  %2316 = vmatmul.bf16.gmra.mxu0 %v1177
  %v2317 = vpop.f32.mrf.mxu0
  %v2318 = vadd.f32 %v1949, %v2317
  %v2319 = vpop.f32.mrf.mxu0
  %v2320 = vadd.f32 %v1951, %v2319
  %2321 = vmatmul.bf16.gmra.mxu0 %v1180
  %v2322 = vpop.f32.mrf.mxu0
  %v2323 = vadd.f32 %v1954, %v2322
  %v2324 = vpop.f32.mrf.mxu0
  %v2325 = vadd.f32 %v1956, %v2324
  %2326 = vmatmul.bf16.gmra.mxu0 %v1183
  %v2327 = vpop.f32.mrf.mxu0
  %v2328 = vadd.f32 %v1959, %v2327
  %v2329 = vpop.f32.mrf.mxu0
  %v2330 = vadd.f32 %v1961, %v2329
  %2331 = vmatmul.bf16.gmra.mxu0 %v1186
  %v2332 = vpop.f32.mrf.mxu0
  %v2333 = vadd.f32 %v1964, %v2332
  %v2334 = vpop.f32.mrf.mxu0
  %v2335 = vadd.f32 %v1966, %v2334
  %2336 = vmatmul.bf16.gmra.mxu0 %v1189
  %v2337 = vpop.f32.mrf.mxu0
  %v2338 = vadd.f32 %v1969, %v2337
  %v2339 = vpop.f32.mrf.mxu0
  %v2340 = vadd.f32 %v1971, %v2339
  %2341 = vmatmul.bf16.gmra.mxu0 %v1192
  %v2342 = vpop.f32.mrf.mxu0
  %v2343 = vadd.f32 %v1974, %v2342
  %v2344 = vpop.f32.mrf.mxu0
  %v2345 = vadd.f32 %v1976, %v2344
  %2346 = vmatmul.bf16.gmra.mxu0 %v1195
  %v2347 = vpop.f32.mrf.mxu0
  %v2348 = vadd.f32 %v1979, %v2347
  %v2349 = vpop.f32.mrf.mxu0
  %v2350 = vadd.f32 %v1981, %v2349
  %2351 = vmatmul.bf16.gmra.mxu0 %v1198
  %v2352 = vpop.f32.mrf.mxu0
  %v2353 = vadd.f32 %v1984, %v2352
  %v2354 = vpop.f32.mrf.mxu0
  %v2355 = vadd.f32 %v1986, %v2354
  %2356 = vmatmul.bf16.gmra.mxu0 %v1201
  %v2357 = vpop.f32.mrf.mxu0
  %v2358 = vadd.f32 %v1989, %v2357
  %v2359 = vpop.f32.mrf.mxu0
  %v2360 = vadd.f32 %v1991, %v2359
  %2361 = vmatmul.bf16.gmra.mxu0 %v1204
  %v2362 = vpop.f32.mrf.mxu0
  %v2363 = vadd.f32 %v1994, %v2362
  %v2364 = vpop.f32.mrf.mxu0
  %v2365 = vadd.f32 %v1996, %v2364
  %2366 = vmatmul.bf16.gmra.mxu0 %v1207
  %v2367 = vpop.f32.mrf.mxu0
  %v2368 = vadd.f32 %v1999, %v2367
  %v2369 = vpop.f32.mrf.mxu0
  %v2370 = vadd.f32 %v2001, %v2369
  %2371 = vmatmul.bf16.gmra.mxu0 %v1210
  %v2372 = vpop.f32.mrf.mxu0
  %v2373 = vadd.f32 %v2004, %v2372
  %v2374 = vpop.f32.mrf.mxu0
  %v2375 = vadd.f32 %v2006, %v2374
  %2376 = vmatmul.bf16.gmra.mxu0 %v1213
  %v2377 = vpop.f32.mrf.mxu0
  %v2378 = vadd.f32 %v2009, %v2377
  %v2379 = vpop.f32.mrf.mxu0
  %v2380 = vadd.f32 %v2011, %v2379
  %2381 = vmatmul.bf16.gmra.mxu0 %v1216
  %v2382 = vpop.f32.mrf.mxu0
  %v2383 = vadd.f32 %v2014, %v2382
  %v2384 = vpop.f32.mrf.mxu0
  %v2385 = vadd.f32 %v2016, %v2384
  %2386 = vmatmul.bf16.gmra.mxu0 %v1219
  %v2387 = vpop.f32.mrf.mxu0
  %v2388 = vadd.f32 %v2019, %v2387
  %v2389 = vpop.f32.mrf.mxu0
  %v2390 = vadd.f32 %v2021, %v2389
  %2391 = vmatmul.bf16.gmra.mxu0 %v1222
  %v2392 = vpop.f32.mrf.mxu0
  %v2393 = vadd.f32 %v2024, %v2392
  %v2394 = vpop.f32.mrf.mxu0
  %v2395 = vadd.f32 %v2026, %v2394
  %2396 = vmatmul.bf16.gmra.mxu0 %v1225
  %v2397 = vpop.f32.mrf.mxu0
  %v2398 = vadd.f32 %v2029, %v2397
  %v2399 = vpop.f32.mrf.mxu0
  %v2400 = vadd.f32 %v2031, %v2399
  %2401 = vmatmul.bf16.gmra.mxu0 %v1228
  %v2402 = vpop.f32.mrf.mxu0
  %v2403 = vadd.f32 %v2034, %v2402
  %v2404 = vpop.f32.mrf.mxu0
  %v2405 = vadd.f32 %v2036, %v2404
  %2406 = vmatmul.bf16.gmra.mxu0 %v1231
  %v2407 = vpop.f32.mrf.mxu0
  %v2408 = vadd.f32 %v2039, %v2407
  %v2409 = vpop.f32.mrf.mxu0
  %v2410 = vadd.f32 %v2041, %v2409
  %2411 = vmatmul.bf16.gmra.mxu0 %v1234
  %v2412 = vpop.f32.mrf.mxu0
  %v2413 = vadd.f32 %v2044, %v2412
  %v2414 = vpop.f32.mrf.mxu0
  %v2415 = vadd.f32 %v2046, %v2414
  %2416 = vmatmul.bf16.gmra.mxu0 %v1237
  %v2417 = vpop.f32.mrf.mxu0
  %v2418 = vadd.f32 %v2049, %v2417
  %v2419 = vpop.f32.mrf.mxu0
  %v2420 = vadd.f32 %v2051, %v2419
  %2421 = vmatmul.bf16.gmra.mxu0 %v1240
  %v2422 = vpop.f32.mrf.mxu0
  %v2423 = vadd.f32 %v2054, %v2422
  %v2424 = vpop.f32.mrf.mxu0
  %v2425 = vadd.f32 %v2056, %v2424
  %2426 = vmatmul.bf16.gmra.mxu0 %v1243
  %v2427 = vpop.f32.mrf.mxu0
  %v2428 = vadd.f32 %v2059, %v2427
  %v2429 = vpop.f32.mrf.mxu0
  %v2430 = vadd.f32 %v2061, %v2429
  %2431 = vmatmul.bf16.gmra.mxu0 %v1246
  %v2432 = vpop.f32.mrf.mxu0
  %v2433 = vadd.f32 %v2064, %v2432
  %v2434 = vpop.f32.mrf.mxu0
  %v2435 = vadd.f32 %v2066, %v2434
  %2436 = vmatmul.bf16.gmra.mxu0 %v1249
  %v2437 = vpop.f32.mrf.mxu0
  %v2438 = vadd.f32 %v2069, %v2437
  %v2439 = vpop.f32.mrf.mxu0
  %v2440 = vadd.f32 %v2071, %v2439
  %2441 = vmatmul.bf16.gmra.mxu0 %v1252
  %v2442 = vpop.f32.mrf.mxu0
  %v2443 = vadd.f32 %v2074, %v2442
  %v2444 = vpop.f32.mrf.mxu0
  %v2445 = vadd.f32 %v2076, %v2444
  %2446 = vmatmul.bf16.gmra.mxu0 %v1255
  %v2447 = vpop.f32.mrf.mxu0
  %v2448 = vadd.f32 %v2079, %v2447
  %v2449 = vpop.f32.mrf.mxu0
  %v2450 = vadd.f32 %v2081, %v2449
  %2451 = vmatmul.bf16.gmra.mxu0 %v1258
  %v2452 = vpop.f32.mrf.mxu0
  %v2453 = vadd.f32 %v2084, %v2452
  %v2454 = vpop.f32.mrf.mxu0
  %v2455 = vadd.f32 %v2086, %v2454
  %2456 = vmatmul.bf16.gmra.mxu0 %v1261
  %v2457 = vpop.f32.mrf.mxu0
  %v2458 = vadd.f32 %v2089, %v2457
  %v2459 = vpop.f32.mrf.mxu0
  %v2460 = vadd.f32 %v2091, %v2459
  %2461 = vmatmul.bf16.gmra.mxu0 %v1264
  %v2462 = vpop.f32.mrf.mxu0
  %v2463 = vadd.f32 %v2094, %v2462
  %v2464 = vpop.f32.mrf.mxu0
  %v2465 = vadd.f32 %v2096, %v2464
  %2466 = vmatmul.bf16.gmra.mxu0 %v1267
  %v2467 = vpop.f32.mrf.mxu0
  %v2468 = vadd.f32 %v2099, %v2467
  %v2469 = vpop.f32.mrf.mxu0
  %v2470 = vadd.f32 %v2101, %v2469
  %2471 = vmatmul.bf16.gmra.mxu0 %v1270
  %v2472 = vpop.f32.mrf.mxu0
  %v2473 = vadd.f32 %v2104, %v2472
  %v2474 = vpop.f32.mrf.mxu0
  %v2475 = vadd.f32 %v2106, %v2474
  %2476 = vmatmul.bf16.gmra.mxu0 %v1273
  %v2477 = vpop.f32.mrf.mxu0
  %v2478 = vadd.f32 %v2109, %v2477
  %v2479 = vpop.f32.mrf.mxu0
  %v2480 = vadd.f32 %v2111, %v2479
  %2481 = vdwg.mxu0
  %2482 = vmatpush.bf16.msra.mxu0 0
  %2483 = vmatpush.bf16.msra.mxu0 0
  %2484 = vmatpush.bf16.msra.mxu0 0
  %2485 = vmatpush.bf16.msra.mxu0 0
  %2486 = vmatpush.bf16.msra.mxu0 0
  %2487 = vmatpush.bf16.msra.mxu0 0
  %2488 = vmatpush.bf16.msra.mxu0 %v1508
  %2489 = vmatpush.bf16.msra.mxu0 %v1507
  %2490 = vmatmul.bf16.gmra.mxu0 %v1529
  %v2491 = vpop.f32.mrf.mxu0
  %v2492 = vadd.f32 %v2123, %v2491
  %v2493 = vpop.f32.mrf.mxu0
  %v2494 = vadd.f32 %v2125, %v2493
  %2495 = vmatmul.bf16.gmra.mxu0 %v1532
  %v2496 = vpop.f32.mrf.mxu0
  %v2497 = vadd.f32 %v2128, %v2496
  %v2498 = vpop.f32.mrf.mxu0
  %v2499 = vadd.f32 %v2130, %v2498
  %2500 = vmatmul.bf16.gmra.mxu0 %v1535
  %v2501 = vpop.f32.mrf.mxu0
  %v2502 = vadd.f32 %v2133, %v2501
  %v2503 = vpop.f32.mrf.mxu0
  %v2504 = vadd.f32 %v2135, %v2503
  %2505 = vmatmul.bf16.gmra.mxu0 %v1538
  %v2506 = vpop.f32.mrf.mxu0
  %v2507 = vadd.f32 %v2138, %v2506
  %v2508 = vpop.f32.mrf.mxu0
  %v2509 = vadd.f32 %v2140, %v2508
  %2510 = vmatmul.bf16.gmra.mxu0 %v1541
  %v2511 = vpop.f32.mrf.mxu0
  %v2512 = vadd.f32 %v2143, %v2511
  %v2513 = vpop.f32.mrf.mxu0
  %v2514 = vadd.f32 %v2145, %v2513
  %2515 = vmatmul.bf16.gmra.mxu0 %v1544
  %v2516 = vpop.f32.mrf.mxu0
  %v2517 = vadd.f32 %v2148, %v2516
  %v2518 = vpop.f32.mrf.mxu0
  %v2519 = vadd.f32 %v2150, %v2518
  %2520 = vmatmul.bf16.gmra.mxu0 %v1547
  %v2521 = vpop.f32.mrf.mxu0
  %v2522 = vadd.f32 %v2153, %v2521
  %v2523 = vpop.f32.mrf.mxu0
  %v2524 = vadd.f32 %v2155, %v2523
  %2525 = vmatmul.bf16.gmra.mxu0 %v1550
  %v2526 = vpop.f32.mrf.mxu0
  %v2527 = vadd.f32 %v2158, %v2526
  %v2528 = vpop.f32.mrf.mxu0
  %v2529 = vadd.f32 %v2160, %v2528
  %2530 = vmatmul.bf16.gmra.mxu0 %v1553
  %v2531 = vpop.f32.mrf.mxu0
  %v2532 = vadd.f32 %v2163, %v2531
  %v2533 = vpop.f32.mrf.mxu0
  %v2534 = vadd.f32 %v2165, %v2533
  %2535 = vmatmul.bf16.gmra.mxu0 %v1556
  %v2536 = vpop.f32.mrf.mxu0
  %v2537 = vadd.f32 %v2168, %v2536
  %v2538 = vpop.f32.mrf.mxu0
  %v2539 = vadd.f32 %v2170, %v2538
  %2540 = vmatmul.bf16.gmra.mxu0 %v1559
  %v2541 = vpop.f32.mrf.mxu0
  %v2542 = vadd.f32 %v2173, %v2541
  %v2543 = vpop.f32.mrf.mxu0
  %v2544 = vadd.f32 %v2175, %v2543
  %2545 = vmatmul.bf16.gmra.mxu0 %v1562
  %v2546 = vpop.f32.mrf.mxu0
  %v2547 = vadd.f32 %v2178, %v2546
  %v2548 = vpop.f32.mrf.mxu0
  %v2549 = vadd.f32 %v2180, %v2548
  %2550 = vmatmul.bf16.gmra.mxu0 %v1565
  %v2551 = vpop.f32.mrf.mxu0
  %v2552 = vadd.f32 %v2183, %v2551
  %v2553 = vpop.f32.mrf.mxu0
  %v2554 = vadd.f32 %v2185, %v2553
  %2555 = vmatmul.bf16.gmra.mxu0 %v1568
  %v2556 = vpop.f32.mrf.mxu0
  %v2557 = vadd.f32 %v2188, %v2556
  %v2558 = vpop.f32.mrf.mxu0
  %v2559 = vadd.f32 %v2190, %v2558
  %2560 = vmatmul.bf16.gmra.mxu0 %v1571
  %v2561 = vpop.f32.mrf.mxu0
  %v2562 = vadd.f32 %v2193, %v2561
  %v2563 = vpop.f32.mrf.mxu0
  %v2564 = vadd.f32 %v2195, %v2563
  %2565 = vmatmul.bf16.gmra.mxu0 %v1574
  %v2566 = vpop.f32.mrf.mxu0
  %v2567 = vadd.f32 %v2198, %v2566
  %v2568 = vpop.f32.mrf.mxu0
  %v2569 = vadd.f32 %v2200, %v2568
  %2570 = vmatmul.bf16.gmra.mxu0 %v1577
  %v2571 = vpop.f32.mrf.mxu0
  %v2572 = vadd.f32 %v2203, %v2571
  %v2573 = vpop.f32.mrf.mxu0
  %v2574 = vadd.f32 %v2205, %v2573
  %2575 = vmatmul.bf16.gmra.mxu0 %v1580
  %v2576 = vpop.f32.mrf.mxu0
  %v2577 = vadd.f32 %v2208, %v2576
  %v2578 = vpop.f32.mrf.mxu0
  %v2579 = vadd.f32 %v2210, %v2578
  %2580 = vmatmul.bf16.gmra.mxu0 %v1583
  %v2581 = vpop.f32.mrf.mxu0
  %v2582 = vadd.f32 %v2213, %v2581
  %v2583 = vpop.f32.mrf.mxu0
  %v2584 = vadd.f32 %v2215, %v2583
  %2585 = vmatmul.bf16.gmra.mxu0 %v1586
  %v2586 = vpop.f32.mrf.mxu0
  %v2587 = vadd.f32 %v2218, %v2586
  %v2588 = vpop.f32.mrf.mxu0
  %v2589 = vadd.f32 %v2220, %v2588
  %2590 = vmatmul.bf16.gmra.mxu0 %v1589
  %v2591 = vpop.f32.mrf.mxu0
  %v2592 = vadd.f32 %v2223, %v2591
  %v2593 = vpop.f32.mrf.mxu0
  %v2594 = vadd.f32 %v2225, %v2593
  %2595 = vmatmul.bf16.gmra.mxu0 %v1592
  %v2596 = vpop.f32.mrf.mxu0
  %v2597 = vadd.f32 %v2228, %v2596
  %v2598 = vpop.f32.mrf.mxu0
  %v2599 = vadd.f32 %v2230, %v2598
  %2600 = vmatmul.bf16.gmra.mxu0 %v1595
  %v2601 = vpop.f32.mrf.mxu0
  %v2602 = vadd.f32 %v2233, %v2601
  %v2603 = vpop.f32.mrf.mxu0
  %v2604 = vadd.f32 %v2235, %v2603
  %2605 = vmatmul.bf16.gmra.mxu0 %v1598
  %v2606 = vpop.f32.mrf.mxu0
  %v2607 = vadd.f32 %v2238, %v2606
  %v2608 = vpop.f32.mrf.mxu0
  %v2609 = vadd.f32 %v2240, %v2608
  %2610 = vmatmul.bf16.gmra.mxu0 %v1601
  %v2611 = vpop.f32.mrf.mxu0
  %v2612 = vadd.f32 %v2243, %v2611
  %v2613 = vpop.f32.mrf.mxu0
  %v2614 = vadd.f32 %v2245, %v2613
  %2615 = vmatmul.bf16.gmra.mxu0 %v1604
  %v2616 = vpop.f32.mrf.mxu0
  %v2617 = vadd.f32 %v2248, %v2616
  %v2618 = vpop.f32.mrf.mxu0
  %v2619 = vadd.f32 %v2250, %v2618
  %2620 = vmatmul.bf16.gmra.mxu0 %v1607
  %v2621 = vpop.f32.mrf.mxu0
  %v2622 = vadd.f32 %v2253, %v2621
  %v2623 = vpop.f32.mrf.mxu0
  %v2624 = vadd.f32 %v2255, %v2623
  %2625 = vmatmul.bf16.gmra.mxu0 %v1610
  %v2626 = vpop.f32.mrf.mxu0
  %v2627 = vadd.f32 %v2258, %v2626
  %v2628 = vpop.f32.mrf.mxu0
  %v2629 = vadd.f32 %v2260, %v2628
  %2630 = vmatmul.bf16.gmra.mxu0 %v1613
  %v2631 = vpop.f32.mrf.mxu0
  %v2632 = vadd.f32 %v2263, %v2631
  %v2633 = vpop.f32.mrf.mxu0
  %v2634 = vadd.f32 %v2265, %v2633
  %2635 = vmatmul.bf16.gmra.mxu0 %v1616
  %v2636 = vpop.f32.mrf.mxu0
  %v2637 = vadd.f32 %v2268, %v2636
  %v2638 = vpop.f32.mrf.mxu0
  %v2639 = vadd.f32 %v2270, %v2638
  %2640 = vmatmul.bf16.gmra.mxu0 %v1619
  %v2641 = vpop.f32.mrf.mxu0
  %v2642 = vadd.f32 %v2273, %v2641
  %v2643 = vpop.f32.mrf.mxu0
  %v2644 = vadd.f32 %v2275, %v2643
  %2645 = vmatmul.bf16.gmra.mxu0 %v1622
  %v2646 = vpop.f32.mrf.mxu0
  %v2647 = vadd.f32 %v2278, %v2646
  %v2648 = vpop.f32.mrf.mxu0
  %v2649 = vadd.f32 %v2280, %v2648
  %2650 = vmatmul.bf16.gmra.mxu0 %v1625
  %v2651 = vpop.f32.mrf.mxu0
  %v2652 = vadd.f32 %v2283, %v2651
  %v2653 = vpop.f32.mrf.mxu0
  %v2654 = vadd.f32 %v2285, %v2653
  %2655 = vmatmul.bf16.gmra.mxu0 %v1628
  %v2656 = vpop.f32.mrf.mxu0
  %v2657 = vadd.f32 %v2288, %v2656
  %v2658 = vpop.f32.mrf.mxu0
  %v2659 = vadd.f32 %v2290, %v2658
  %2660 = vmatmul.bf16.gmra.mxu0 %v1631
  %v2661 = vpop.f32.mrf.mxu0
  %v2662 = vadd.f32 %v2293, %v2661
  %v2663 = vpop.f32.mrf.mxu0
  %v2664 = vadd.f32 %v2295, %v2663
  %2665 = vmatmul.bf16.gmra.mxu0 %v1634
  %v2666 = vpop.f32.mrf.mxu0
  %v2667 = vadd.f32 %v2298, %v2666
  %v2668 = vpop.f32.mrf.mxu0
  %v2669 = vadd.f32 %v2300, %v2668
  %2670 = vmatmul.bf16.gmra.mxu0 %v1637
  %v2671 = vpop.f32.mrf.mxu0
  %v2672 = vadd.f32 %v2303, %v2671
  %v2673 = vpop.f32.mrf.mxu0
  %v2674 = vadd.f32 %v2305, %v2673
  %2675 = vmatmul.bf16.gmra.mxu0 %v1640
  %v2676 = vpop.f32.mrf.mxu0
  %v2677 = vadd.f32 %v2308, %v2676
  %v2678 = vpop.f32.mrf.mxu0
  %v2679 = vadd.f32 %v2310, %v2678
  %2680 = vmatmul.bf16.gmra.mxu0 %v1643
  %v2681 = vpop.f32.mrf.mxu0
  %v2682 = vadd.f32 %v2313, %v2681
  %v2683 = vpop.f32.mrf.mxu0
  %v2684 = vadd.f32 %v2315, %v2683
  %2685 = vmatmul.bf16.gmra.mxu0 %v1646
  %v2686 = vpop.f32.mrf.mxu0
  %v2687 = vadd.f32 %v2318, %v2686
  %v2688 = vpop.f32.mrf.mxu0
  %v2689 = vadd.f32 %v2320, %v2688
  %2690 = vmatmul.bf16.gmra.mxu0 %v1649
  %v2691 = vpop.f32.mrf.mxu0
  %v2692 = vadd.f32 %v2323, %v2691
  %v2693 = vpop.f32.mrf.mxu0
  %v2694 = vadd.f32 %v2325, %v2693
  %2695 = vmatmul.bf16.gmra.mxu0 %v1652
  %v2696 = vpop.f32.mrf.mxu0
  %v2697 = vadd.f32 %v2328, %v2696
  %v2698 = vpop.f32.mrf.mxu0
  %v2699 = vadd.f32 %v2330, %v2698
  %2700 = vmatmul.bf16.gmra.mxu0 %v1655
  %v2701 = vpop.f32.mrf.mxu0
  %v2702 = vadd.f32 %v2333, %v2701
  %v2703 = vpop.f32.mrf.mxu0
  %v2704 = vadd.f32 %v2335, %v2703
  %2705 = vmatmul.bf16.gmra.mxu0 %v1658
  %v2706 = vpop.f32.mrf.mxu0
  %v2707 = vadd.f32 %v2338, %v2706
  %v2708 = vpop.f32.mrf.mxu0
  %v2709 = vadd.f32 %v2340, %v2708
  %2710 = vmatmul.bf16.gmra.mxu0 %v1661
  %v2711 = vpop.f32.mrf.mxu0
  %v2712 = vadd.f32 %v2343, %v2711
  %v2713 = vpop.f32.mrf.mxu0
  %v2714 = vadd.f32 %v2345, %v2713
  %2715 = vmatmul.bf16.gmra.mxu0 %v1664
  %v2716 = vpop.f32.mrf.mxu0
  %v2717 = vadd.f32 %v2348, %v2716
  %v2718 = vpop.f32.mrf.mxu0
  %v2719 = vadd.f32 %v2350, %v2718
  %2720 = vmatmul.bf16.gmra.mxu0 %v1667
  %v2721 = vpop.f32.mrf.mxu0
  %v2722 = vadd.f32 %v2353, %v2721
  %v2723 = vpop.f32.mrf.mxu0
  %v2724 = vadd.f32 %v2355, %v2723
  %2725 = vmatmul.bf16.gmra.mxu0 %v1670
  %v2726 = vpop.f32.mrf.mxu0
  %v2727 = vadd.f32 %v2358, %v2726
  %v2728 = vpop.f32.mrf.mxu0
  %v2729 = vadd.f32 %v2360, %v2728
  %2730 = vmatmul.bf16.gmra.mxu0 %v1673
  %v2731 = vpop.f32.mrf.mxu0
  %v2732 = vadd.f32 %v2363, %v2731
  %v2733 = vpop.f32.mrf.mxu0
  %v2734 = vadd.f32 %v2365, %v2733
  %2735 = vmatmul.bf16.gmra.mxu0 %v1676
  %v2736 = vpop.f32.mrf.mxu0
  %v2737 = vadd.f32 %v2368, %v2736
  %v2738 = vpop.f32.mrf.mxu0
  %v2739 = vadd.f32 %v2370, %v2738
  %2740 = vmatmul.bf16.gmra.mxu0 %v1679
  %v2741 = vpop.f32.mrf.mxu0
  %v2742 = vadd.f32 %v2373, %v2741
  %v2743 = vpop.f32.mrf.mxu0
  %v2744 = vadd.f32 %v2375, %v2743
  %2745 = vmatmul.bf16.gmra.mxu0 %v1682
  %v2746 = vpop.f32.mrf.mxu0
  %v2747 = vadd.f32 %v2378, %v2746
  %v2748 = vpop.f32.mrf.mxu0
  %v2749 = vadd.f32 %v2380, %v2748
  %2750 = vmatmul.bf16.gmra.mxu0 %v1685
  %v2751 = vpop.f32.mrf.mxu0
  %v2752 = vadd.f32 %v2383, %v2751
  %v2753 = vpop.f32.mrf.mxu0
  %v2754 = vadd.f32 %v2385, %v2753
  %2755 = vmatmul.bf16.gmra.mxu0 %v1688
  %v2756 = vpop.f32.mrf.mxu0
  %v2757 = vadd.f32 %v2388, %v2756
  %v2758 = vpop.f32.mrf.mxu0
  %v2759 = vadd.f32 %v2390, %v2758
  %2760 = vmatmul.bf16.gmra.mxu0 %v1691
  %v2761 = vpop.f32.mrf.mxu0
  %v2762 = vadd.f32 %v2393, %v2761
  %v2763 = vpop.f32.mrf.mxu0
  %v2764 = vadd.f32 %v2395, %v2763
  %2765 = vmatmul.bf16.gmra.mxu0 %v1694
  %v2766 = vpop.f32.mrf.mxu0
  %v2767 = vadd.f32 %v2398, %v2766
  %v2768 = vpop.f32.mrf.mxu0
  %v2769 = vadd.f32 %v2400, %v2768
  %2770 = vmatmul.bf16.gmra.mxu0 %v1697
  %v2771 = vpop.f32.mrf.mxu0
  %v2772 = vadd.f32 %v2403, %v2771
  %v2773 = vpop.f32.mrf.mxu0
  %v2774 = vadd.f32 %v2405, %v2773
  %2775 = vmatmul.bf16.gmra.mxu0 %v1700
  %v2776 = vpop.f32.mrf.mxu0
  %v2777 = vadd.f32 %v2408, %v2776
  %v2778 = vpop.f32.mrf.mxu0
  %v2779 = vadd.f32 %v2410, %v2778
  %2780 = vmatmul.bf16.gmra.mxu0 %v1703
  %v2781 = vpop.f32.mrf.mxu0
  %v2782 = vadd.f32 %v2413, %v2781
  %v2783 = vpop.f32.mrf.mxu0
  %v2784 = vadd.f32 %v2415, %v2783
  %2785 = vmatmul.bf16.gmra.mxu0 %v1706
  %v2786 = vpop.f32.mrf.mxu0
  %v2787 = vadd.f32 %v2418, %v2786
  %v2788 = vpop.f32.mrf.mxu0
  %v2789 = vadd.f32 %v2420, %v2788
  %2790 = vmatmul.bf16.gmra.mxu0 %v1709
  %v2791 = vpop.f32.mrf.mxu0
  %v2792 = vadd.f32 %v2423, %v2791
  %v2793 = vpop.f32.mrf.mxu0
  %v2794 = vadd.f32 %v2425, %v2793
  %2795 = vmatmul.bf16.gmra.mxu0 %v1712
  %v2796 = vpop.f32.mrf.mxu0
  %v2797 = vadd.f32 %v2428, %v2796
  %v2798 = vpop.f32.mrf.mxu0
  %v2799 = vadd.f32 %v2430, %v2798
  %2800 = vmatmul.bf16.gmra.mxu0 %v1715
  %v2801 = vpop.f32.mrf.mxu0
  %v2802 = vadd.f32 %v2433, %v2801
  %v2803 = vpop.f32.mrf.mxu0
  %v2804 = vadd.f32 %v2435, %v2803
  %2805 = vmatmul.bf16.gmra.mxu0 %v1718
  %v2806 = vpop.f32.mrf.mxu0
  %v2807 = vadd.f32 %v2438, %v2806
  %v2808 = vpop.f32.mrf.mxu0
  %v2809 = vadd.f32 %v2440, %v2808
  %2810 = vmatmul.bf16.gmra.mxu0 %v1721
  %v2811 = vpop.f32.mrf.mxu0
  %v2812 = vadd.f32 %v2443, %v2811
  %v2813 = vpop.f32.mrf.mxu0
  %v2814 = vadd.f32 %v2445, %v2813
  %2815 = vmatmul.bf16.gmra.mxu0 %v1724
  %v2816 = vpop.f32.mrf.mxu0
  %v2817 = vadd.f32 %v2448, %v2816
  %v2818 = vpop.f32.mrf.mxu0
  %v2819 = vadd.f32 %v2450, %v2818
  %2820 = vmatmul.bf16.gmra.mxu0 %v1727
  %v2821 = vpop.f32.mrf.mxu0
  %v2822 = vadd.f32 %v2453, %v2821
  %v2823 = vpop.f32.mrf.mxu0
  %v2824 = vadd.f32 %v2455, %v2823
  %2825 = vmatmul.bf16.gmra.mxu0 %v1730
  %v2826 = vpop.f32.mrf.mxu0
  %v2827 = vadd.f32 %v2458, %v2826
  %v2828 = vpop.f32.mrf.mxu0
  %v2829 = vadd.f32 %v2460, %v2828
  %2830 = vmatmul.bf16.gmra.mxu0 %v1733
  %v2831 = vpop.f32.mrf.mxu0
  %v2832 = vadd.f32 %v2463, %v2831
  %v2833 = vpop.f32.mrf.mxu0
  %v2834 = vadd.f32 %v2465, %v2833
  %2835 = vmatmul.bf16.gmra.mxu0 %v1736
  %v2836 = vpop.f32.mrf.mxu0
  %v2837 = vadd.f32 %v2468, %v2836
  %v2838 = vpop.f32.mrf.mxu0
  %v2839 = vadd.f32 %v2470, %v2838
  %2840 = vmatmul.bf16.gmra.mxu0 %v1739
  %v2841 = vpop.f32.mrf.mxu0
  %v2842 = vadd.f32 %v2473, %v2841
  %v2843 = vpop.f32.mrf.mxu0
  %v2844 = vadd.f32 %v2475, %v2843
  %2845 = vmatmul.bf16.gmra.mxu0 %v1742
  %v2846 = vpop.f32.mrf.mxu0
  %v2847 = vadd.f32 %v2478, %v2846
  %v2848 = vpop.f32.mrf.mxu0
  %v2849 = vadd.f32 %v2480, %v2848
  %2850 = vdwg.mxu0
  %v2851 = vmax.f32 %v2492, %v2582
  %v2852 = vmax.f32 %v2494, %v2584
  %v2853 = vmax.f32 %v2497, %v2587
  %v2854 = vmax.f32 %v2499, %v2589
  %v2855 = vmax.f32 %v2502, %v2592
  %v2856 = vmax.f32 %v2504, %v2594
  %v2857 = vmax.f32 %v2507, %v2597
  %v2858 = vmax.f32 %v2509, %v2599
  %v2859 = vmax.f32 %v2512, %v2602
  %v2860 = vmax.f32 %v2514, %v2604
  %v2861 = vmax.f32 %v2517, %v2607
  %v2862 = vmax.f32 %v2519, %v2609
  %v2863 = vmax.f32 %v2522, %v2612
  %v2864 = vmax.f32 %v2524, %v2614
  %v2865 = vmax.f32 %v2527, %v2617
  %v2866 = vmax.f32 %v2529, %v2619
  %v2867 = vmax.f32 %v2532, %v2622
  %v2868 = vmax.f32 %v2534, %v2624
  %v2869 = vmax.f32 %v2537, %v2627
  %v2870 = vmax.f32 %v2539, %v2629
  %v2871 = vmax.f32 %v2542, %v2632
  %v2872 = vmax.f32 %v2544, %v2634
  %v2873 = vmax.f32 %v2547, %v2637
  %v2874 = vmax.f32 %v2549, %v2639
  %v2875 = vmax.f32 %v2552, %v2642
  %v2876 = vmax.f32 %v2554, %v2644
  %v2877 = vmax.f32 %v2557, %v2647
  %v2878 = vmax.f32 %v2559, %v2649
  %v2879 = vmax.f32 %v2562, %v2652
  %v2880 = vmax.f32 %v2564, %v2654
  %v2881 = vmax.f32 %v2567, %v2657
  %v2882 = vmax.f32 %v2569, %v2659
  %v2883 = vmax.f32 %v2572, %v2662
  %v2884 = vmax.f32 %v2574, %v2664
  %v2885 = vmax.f32 %v2577, %v2667
  %v2886 = vmax.f32 %v2579, %v2669
  %v2887 = vmax.f32 %v2672, %v2762
  %v2888 = vmax.f32 %v2674, %v2764
  %v2889 = vmax.f32 %v2677, %v2767
  %v2890 = vmax.f32 %v2679, %v2769
  %v2891 = vmax.f32 %v2682, %v2772
  %v2892 = vmax.f32 %v2684, %v2774
  %v2893 = vmax.f32 %v2687, %v2777
  %v2894 = vmax.f32 %v2689, %v2779
  %v2895 = vmax.f32 %v2692, %v2782
  %v2896 = vmax.f32 %v2694, %v2784
  %v2897 = vmax.f32 %v2697, %v2787
  %v2898 = vmax.f32 %v2699, %v2789
  %v2899 = vmax.f32 %v2702, %v2792
  %v2900 = vmax.f32 %v2704, %v2794
  %v2901 = vmax.f32 %v2707, %v2797
  %v2902 = vmax.f32 %v2709, %v2799
  %v2903 = vmax.f32 %v2712, %v2802
  %v2904 = vmax.f32 %v2714, %v2804
  %v2905 = vmax.f32 %v2717, %v2807
  %v2906 = vmax.f32 %v2719, %v2809
  %v2907 = vmax.f32 %v2722, %v2812
  %v2908 = vmax.f32 %v2724, %v2814
  %v2909 = vmax.f32 %v2727, %v2817
  %v2910 = vmax.f32 %v2729, %v2819
  %v2911 = vmax.f32 %v2732, %v2822
  %v2912 = vmax.f32 %v2734, %v2824
  %v2913 = vmax.f32 %v2737, %v2827
  %v2914 = vmax.f32 %v2739, %v2829
  %v2915 = vmax.f32 %v2742, %v2832
  %v2916 = vmax.f32 %v2744, %v2834
  %v2917 = vmax.f32 %v2747, %v2837
  %v2918 = vmax.f32 %v2749, %v2839
  %v2919 = vmax.f32 %v2752, %v2842
  %v2920 = vmax.f32 %v2754, %v2844
  %v2921 = vmax.f32 %v2757, %v2847
  %v2922 = vmax.f32 %v2759, %v2849
  %v2923 = vmax.f32 %v2851, %v2887
  %v2924 = vmax.f32 %v2852, %v2888
  %v2925 = vmax.f32 %v2853, %v2889
  %v2926 = vmax.f32 %v2854, %v2890
  %v2927 = vmax.f32 %v2855, %v2891
  %v2928 = vmax.f32 %v2856, %v2892
  %v2929 = vmax.f32 %v2857, %v2893
  %v2930 = vmax.f32 %v2858, %v2894
  %v2931 = vmax.f32 %v2859, %v2895
  %v2932 = vmax.f32 %v2860, %v2896
  %v2933 = vmax.f32 %v2861, %v2897
  %v2934 = vmax.f32 %v2862, %v2898
  %v2935 = vmax.f32 %v2863, %v2899
  %v2936 = vmax.f32 %v2864, %v2900
  %v2937 = vmax.f32 %v2865, %v2901
  %v2938 = vmax.f32 %v2866, %v2902
  %v2939 = vmax.f32 %v2867, %v2903
  %v2940 = vmax.f32 %v2868, %v2904
  %v2941 = vmax.f32 %v2869, %v2905
  %v2942 = vmax.f32 %v2870, %v2906
  %v2943 = vmax.f32 %v2871, %v2907
  %v2944 = vmax.f32 %v2872, %v2908
  %v2945 = vmax.f32 %v2873, %v2909
  %v2946 = vmax.f32 %v2874, %v2910
  %v2947 = vmax.f32 %v2875, %v2911
  %v2948 = vmax.f32 %v2876, %v2912
  %v2949 = vmax.f32 %v2877, %v2913
  %v2950 = vmax.f32 %v2878, %v2914
  %v2951 = vmax.f32 %v2879, %v2915
  %v2952 = vmax.f32 %v2880, %v2916
  %v2953 = vmax.f32 %v2881, %v2917
  %v2954 = vmax.f32 %v2882, %v2918
  %v2955 = vmax.f32 %v2883, %v2919
  %v2956 = vmax.f32 %v2884, %v2920
  %v2957 = vmax.f32 %v2885, %v2921
  %v2958 = vmax.f32 %v2886, %v2922
  %v2959 = vld [vmem:[%s2] sm:$0x1]
  %v2961 = vperm.slane %v2959, 0
  %v2963 = vadd.f32 %v2923, %v2961
  %v2964 = vadd.f32 %v2924, %v2961
  %v2965 = vadd.f32 %v2925, %v2961
  %v2966 = vadd.f32 %v2926, %v2961
  %v2967 = vadd.f32 %v2927, %v2961
  %v2968 = vadd.f32 %v2928, %v2961
  %v2969 = vadd.f32 %v2929, %v2961
  %v2970 = vadd.f32 %v2930, %v2961
  %v2971 = vadd.f32 %v2931, %v2961
  %v2972 = vadd.f32 %v2932, %v2961
  %v2973 = vadd.f32 %v2933, %v2961
  %v2974 = vadd.f32 %v2934, %v2961
  %v2975 = vadd.f32 %v2935, %v2961
  %v2976 = vadd.f32 %v2936, %v2961
  %v2977 = vadd.f32 %v2937, %v2961
  %v2978 = vadd.f32 %v2938, %v2961
  %v2979 = vadd.f32 %v2939, %v2961
  %v2980 = vadd.f32 %v2940, %v2961
  %v2981 = vadd.f32 %v2941, %v2961
  %v2982 = vadd.f32 %v2942, %v2961
  %v2983 = vadd.f32 %v2943, %v2961
  %v2984 = vadd.f32 %v2944, %v2961
  %v2985 = vadd.f32 %v2945, %v2961
  %v2986 = vadd.f32 %v2946, %v2961
  %v2987 = vadd.f32 %v2947, %v2961
  %v2988 = vadd.f32 %v2948, %v2961
  %v2989 = vadd.f32 %v2949, %v2961
  %v2990 = vadd.f32 %v2950, %v2961
  %v2991 = vadd.f32 %v2951, %v2961
  %v2992 = vadd.f32 %v2952, %v2961
  %v2993 = vadd.f32 %v2953, %v2961
  %v2994 = vadd.f32 %v2954, %v2961
  %v2995 = vadd.f32 %v2955, %v2961
  %v2996 = vadd.f32 %v2956, %v2961
  %v2997 = vadd.f32 %v2957, %v2961
  %v2998 = vadd.f32 %v2958, %v2961
  %v2999 = vmax.f32 %v2963, 0.0
  %v3000 = vmax.f32 %v2964, 0.0
  %v3001 = vmax.f32 %v2965, 0.0
  %v3002 = vmax.f32 %v2966, 0.0
  %v3003 = vmax.f32 %v2967, 0.0
  %v3004 = vmax.f32 %v2968, 0.0
  %v3005 = vmax.f32 %v2969, 0.0
  %v3006 = vmax.f32 %v2970, 0.0
  %v3007 = vmax.f32 %v2971, 0.0
  %v3008 = vmax.f32 %v2972, 0.0
  %v3009 = vmax.f32 %v2973, 0.0
  %v3010 = vmax.f32 %v2974, 0.0
  %v3011 = vmax.f32 %v2975, 0.0
  %v3012 = vmax.f32 %v2976, 0.0
  %v3013 = vmax.f32 %v2977, 0.0
  %v3014 = vmax.f32 %v2978, 0.0
  %v3015 = vmax.f32 %v2979, 0.0
  %v3016 = vmax.f32 %v2980, 0.0
  %v3017 = vmax.f32 %v2981, 0.0
  %v3018 = vmax.f32 %v2982, 0.0
  %v3019 = vmax.f32 %v2983, 0.0
  %v3020 = vmax.f32 %v2984, 0.0
  %v3021 = vmax.f32 %v2985, 0.0
  %v3022 = vmax.f32 %v2986, 0.0
  %v3023 = vmax.f32 %v2987, 0.0
  %v3024 = vmax.f32 %v2988, 0.0
  %v3025 = vmax.f32 %v2989, 0.0
  %v3026 = vmax.f32 %v2990, 0.0
  %v3027 = vmax.f32 %v2991, 0.0
  %v3028 = vmax.f32 %v2992, 0.0
  %v3029 = vmax.f32 %v2993, 0.0
  %v3030 = vmax.f32 %v2994, 0.0
  %v3031 = vmax.f32 %v2995, 0.0
  %v3032 = vmax.f32 %v2996, 0.0
  %v3033 = vmax.f32 %v2997, 0.0
  %v3034 = vmax.f32 %v2998, 0.0
  %v3035 = vpack.c.bf16 %v2999, %v2999
  %v3036 = vpack.c.bf16 %v3000, %v3000
  %v3037 = vpack.c.bf16 %v3001, %v3001
  %v3038 = vpack.c.bf16 %v3002, %v3002
  %v3039 = vpack.c.bf16 %v3003, %v3003
  %v3040 = vpack.c.bf16 %v3004, %v3004
  %v3041 = vpack.c.bf16 %v3005, %v3005
  %v3042 = vpack.c.bf16 %v3006, %v3006
  %v3043 = vpack.c.bf16 %v3007, %v3007
  %v3044 = vpack.c.bf16 %v3008, %v3008
  %v3045 = vpack.c.bf16 %v3009, %v3009
  %v3046 = vpack.c.bf16 %v3010, %v3010
  %v3047 = vpack.c.bf16 %v3011, %v3011
  %v3048 = vpack.c.bf16 %v3012, %v3012
  %v3049 = vpack.c.bf16 %v3013, %v3013
  %v3050 = vpack.c.bf16 %v3014, %v3014
  %v3051 = vpack.c.bf16 %v3015, %v3015
  %v3052 = vpack.c.bf16 %v3016, %v3016
  %v3053 = vpack.c.bf16 %v3017, %v3017
  %v3054 = vpack.c.bf16 %v3018, %v3018
  %v3055 = vpack.c.bf16 %v3019, %v3019
  %v3056 = vpack.c.bf16 %v3020, %v3020
  %v3057 = vpack.c.bf16 %v3021, %v3021
  %v3058 = vpack.c.bf16 %v3022, %v3022
  %v3059 = vpack.c.bf16 %v3023, %v3023
  %v3060 = vpack.c.bf16 %v3024, %v3024
  %v3061 = vpack.c.bf16 %v3025, %v3025
  %v3062 = vpack.c.bf16 %v3026, %v3026
  %v3063 = vpack.c.bf16 %v3027, %v3027
  %v3064 = vpack.c.bf16 %v3028, %v3028
  %v3065 = vpack.c.bf16 %v3029, %v3029
  %v3066 = vpack.c.bf16 %v3030, %v3030
  %v3067 = vpack.c.bf16 %v3031, %v3031
  %v3068 = vpack.c.bf16 %v3032, %v3032
  %v3069 = vpack.c.bf16 %v3033, %v3033
  %v3070 = vpack.c.bf16 %v3034, %v3034
  %3071 = vst [vmem:[%s3] sm:$0xf] %v3035
  %3072 = vst [vmem:[%s3 + $0x4] sm:$0xf] %v3036
  %3073 = vst [vmem:[%s3 + $0x8] sm:$0xf] %v3037
  %3074 = vst [vmem:[%s3 + $0xc] sm:$0xf] %v3038
  %3075 = vst [vmem:[%s3 + $0x10] sm:$0xf] %v3039
  %3076 = vst [vmem:[%s3 + $0x14] sm:$0xf] %v3040
  %3077 = vst [vmem:[%s3 + $0x18] sm:$0xf] %v3041
  %3078 = vst [vmem:[%s3 + $0x1c] sm:$0xf] %v3042
  %3079 = vst [vmem:[%s3 + $0x20] sm:$0xf] %v3043
  %3080 = vst [vmem:[%s3 + $0x24] sm:$0xf] %v3044
  %3081 = vst [vmem:[%s3 + $0x28] sm:$0xf] %v3045
  %3082 = vst [vmem:[%s3 + $0x2c] sm:$0xf] %v3046
  %3083 = vst [vmem:[%s3 + $0x30] sm:$0xf] %v3047
  %3084 = vst [vmem:[%s3 + $0x34] sm:$0xf] %v3048
  %3085 = vst [vmem:[%s3 + $0x38] sm:$0xf] %v3049
  %3086 = vst [vmem:[%s3 + $0x3c] sm:$0xf] %v3050
  %3087 = vst [vmem:[%s3 + $0x40] sm:$0xf] %v3051
  %3088 = vst [vmem:[%s3 + $0x44] sm:$0xf] %v3052
  %3089 = vst [vmem:[%s3 + $0x48] sm:$0xf] %v3053
  %3090 = vst [vmem:[%s3 + $0x4c] sm:$0xf] %v3054
  %3091 = vst [vmem:[%s3 + $0x50] sm:$0xf] %v3055
  %3092 = vst [vmem:[%s3 + $0x54] sm:$0xf] %v3056
  %3093 = vst [vmem:[%s3 + $0x58] sm:$0xf] %v3057
  %3094 = vst [vmem:[%s3 + $0x5c] sm:$0xf] %v3058
  %3095 = vst [vmem:[%s3 + $0x60] sm:$0xf] %v3059
  %3096 = vst [vmem:[%s3 + $0x64] sm:$0xf] %v3060
  %3097 = vst [vmem:[%s3 + $0x68] sm:$0xf] %v3061
  %3098 = vst [vmem:[%s3 + $0x6c] sm:$0xf] %v3062
  %3099 = vst [vmem:[%s3 + $0x70] sm:$0xf] %v3063
  %3100 = vst [vmem:[%s3 + $0x74] sm:$0xf] %v3064
  %3101 = vst [vmem:[%s3 + $0x78] sm:$0xf] %v3065
  %3102 = vst [vmem:[%s3 + $0x7c] sm:$0xf] %v3066
  %3103 = vst [vmem:[%s3 + $0x80] sm:$0xf] %v3067
  %3104 = vst [vmem:[%s3 + $0x84] sm:$0xf] %v3068
  %3105 = vst [vmem:[%s3 + $0x88] sm:$0xf] %v3069
  %3106 = vst [vmem:[%s3 + $0x8c] sm:$0xf] %v3070
  // Predicated region
  $region14: #{net1_forward.4} parent=0 // pred_check
    _
  $region15: #{net1_forward.4} parent=0 // pred_check_branch
    %3108 = sbr.rel (0) target = $region17
  $region16: #{net1_forward.4} parent=0 // pred_region
    _
  $region17: #{net1_forward.4} parent=0 // pred_fallthru
    _
  // Predicated region
  $region18: #{net1_forward.4} parent=0 // pred_check
    _
  $region19: #{net1_forward.4} parent=0 // pred_check_branch
    %3110 = sbr.rel (0) target = $region21
  $region20: #{net1_forward.4} parent=0 // pred_region
    _
  $region21: #{net1_forward.4} parent=0 // pred_fallthru
    _

// kernel: net1_forward.5
$region0: #{net1_forward.5}
  #allocation0 [shape = 'u32[]', space=smem, size = 0x4, offset = 0x4, fixed_abs, tag = 'smem constant byte address 0x4 - core index']
  #allocation1 [shape = 'u32[72,128]{1,0:T(1,128)}', space=vmem, size = 0x9000, scoped, tag = 'internal scratch']
  %s0 = inlined_call_operand.vmem [shape: bf16[1,288,576], index: 0, kind: input, shape index: {}]
  %s1 = inlined_call_operand.vmem [shape: bf16[576,128], index: 1, kind: input, shape index: {}]
  %s2 = inlined_call_operand.vmem [shape: f32[1,128], index: 2, kind: input, shape index: {}]
  %s3 = inlined_call_operand.vmem [shape: bf16[1152,128], index: 3, kind: input, shape index: {}]
  %s4 = inlined_call_operand.vmem [shape: f32[1,128], index: 4, kind: input, shape index: {}]
  %s5 = inlined_call_operand.vmem [shape: bf16[128,128], index: 5, kind: input, shape index: {}]
  %s6 = inlined_call_operand.vmem [shape: f32[1,128], index: 6, kind: input, shape index: {}]
  %s7 = inlined_call_operand.vmem [shape: f32[8,128], index: 7, kind: output, shape index: {}]
  %s8 = sld [smem:[#allocation0]]
  $region38: #{net1_forward.5} parent=0
    _
  %s10 = ssub.s32 1, %s8
  %s11 = scalar_select 0, %s10, %s8
  // Predicated region
  $region2: #{net1_forward.5} parent=0 // pred_check
    _
  $region3: #{net1_forward.5} parent=0 // pred_check_branch
    %13 = sbr.rel (0) target = $region5
  $region4: #{net1_forward.5} parent=0 // pred_region
    _
  $region5: #{net1_forward.5} parent=0 // pred_fallthru
    _
  // Predicated region
  $region6: #{net1_forward.5} parent=0 // pred_check
    _
  $region7: #{net1_forward.5} parent=0 // pred_check_branch
    %15 = sbr.rel (0) target = $region9
  $region8: #{net1_forward.5} parent=0 // pred_region
    _
  $region9: #{net1_forward.5} parent=0 // pred_fallthru
    _
  // Predicated region
  $region10: #{net1_forward.5} parent=0 // pred_check
    _
  $region11: #{net1_forward.5} parent=0 // pred_check_branch
    %17 = sbr.rel (0) target = $region13
  $region12: #{net1_forward.5} parent=0 // pred_region
    _
  $region13: #{net1_forward.5} parent=0 // pred_fallthru
    _
  // Predicated region
  $region14: #{net1_forward.5} parent=0 // pred_check
    _
  $region15: #{net1_forward.5} parent=0 // pred_check_branch
    %19 = sbr.rel (0) target = $region17
  $region16: #{net1_forward.5} parent=0 // pred_region
    _
  $region17: #{net1_forward.5} parent=0 // pred_fallthru
    _
  // Predicated region
  $region18: #{net1_forward.5} parent=0 // pred_check
    _
  $region19: #{net1_forward.5} parent=0 // pred_check_branch
    %21 = sbr.rel (0) target = $region21
  $region20: #{net1_forward.5} parent=0 // pred_region
    _
  $region21: #{net1_forward.5} parent=0 // pred_fallthru
    _
  // Predicated region
  $region22: #{net1_forward.5} parent=0 // pred_check
    _
  $region23: #{net1_forward.5} parent=0 // pred_check_branch
    %23 = sbr.rel (0) target = $region25
  $region24: #{net1_forward.5} parent=0 // pred_region
    _
  $region25: #{net1_forward.5} parent=0 // pred_fallthru
    _
  // Predicated region
  $region26: #{net1_forward.5} parent=0 // pred_check
    _
  $region27: #{net1_forward.5} parent=0 // pred_check_branch
    %25 = sbr.rel (0) target = $region29
  $region28: #{net1_forward.5} parent=0 // pred_region
    _
  $region29: #{net1_forward.5} parent=0 // pred_fallthru
    _
  %v27 = vld [vmem:[%s0] sm:$0xff]
  %v28 = vld [vmem:[%s0 + $0x8] sm:$0xff]
  %v29 = vld [vmem:[%s0 + $0x10] sm:$0xf]
  %v30 = vld [vmem:[%s0 + $0x14] sm:$0xff]
  %v31 = vld [vmem:[%s0 + $0x1c] sm:$0xff]
  %v32 = vld [vmem:[%s0 + $0x24] sm:$0xf]
  %v33 = vld [vmem:[%s0 + $0x28] sm:$0xff]
  %v34 = vld [vmem:[%s0 + $0x30] sm:$0xff]
  %v35 = vld [vmem:[%s0 + $0x38] sm:$0xf]
  %v36 = vld [vmem:[%s0 + $0x3c] sm:$0xff]
  %v37 = vld [vmem:[%s0 + $0x44] sm:$0xff]
  %v38 = vld [vmem:[%s0 + $0x4c] sm:$0xf]
  %v39 = vld [vmem:[%s0 + $0x50] sm:$0xff]
  %v40 = vld [vmem:[%s0 + $0x58] sm:$0xff]
  %v41 = vld [vmem:[%s0 + $0x60] sm:$0xf]
  %v42 = vld [vmem:[%s0 + $0x64] sm:$0xff]
  %v43 = vld [vmem:[%s0 + $0x6c] sm:$0xff]
  %v44 = vld [vmem:[%s0 + $0x74] sm:$0xf]
  %v45 = vld [vmem:[%s0 + $0x78] sm:$0xff]
  %v46 = vld [vmem:[%s0 + $0x80] sm:$0xff]
  %v47 = vld [vmem:[%s0 + $0x88] sm:$0xf]
  %v48 = vld [vmem:[%s0 + $0x8c] sm:$0xff]
  %v49 = vld [vmem:[%s0 + $0x94] sm:$0xff]
  %v50 = vld [vmem:[%s0 + $0x9c] sm:$0xf]
  %v51 = vld [vmem:[%s0 + $0xa0] sm:$0xff]
  %v52 = vld [vmem:[%s0 + $0xa8] sm:$0xff]
  %v53 = vld [vmem:[%s0 + $0xb0] sm:$0xf]
  %v54 = vld [vmem:[%s0 + $0xb4] sm:$0xff]
  %v55 = vld [vmem:[%s0 + $0xbc] sm:$0xff]
  %v56 = vld [vmem:[%s0 + $0xc4] sm:$0xf]
  %v57 = vld [vmem:[%s0 + $0xc8] sm:$0xff]
  %v58 = vld [vmem:[%s0 + $0xd0] sm:$0xff]
  %v59 = vld [vmem:[%s0 + $0xd8] sm:$0xf]
  %v60 = vld [vmem:[%s0 + $0xdc] sm:$0xff]
  %v61 = vld [vmem:[%s0 + $0xe4] sm:$0xff]
  %v62 = vld [vmem:[%s0 + $0xec] sm:$0xf]
  %v63 = vld [vmem:[%s0 + $0xf0] sm:$0xff]
  %v64 = vld [vmem:[%s0 + $0xf8] sm:$0xff]
  %v65 = vld [vmem:[%s0 + $0x100] sm:$0xf]
  %v66 = vld [vmem:[%s0 + $0x104] sm:$0xff]
  %v67 = vld [vmem:[%s0 + $0x10c] sm:$0xff]
  %v68 = vld [vmem:[%s0 + $0x114] sm:$0xf]
  %v69 = vld [vmem:[%s0 + $0x118] sm:$0xff]
  %v70 = vld [vmem:[%s0 + $0x120] sm:$0xff]
  %v71 = vld [vmem:[%s0 + $0x128] sm:$0xf]
  %v72 = vld [vmem:[%s0 + $0x12c] sm:$0xff]
  %v73 = vld [vmem:[%s0 + $0x134] sm:$0xff]
  %v74 = vld [vmem:[%s0 + $0x13c] sm:$0xf]
  %v75 = vld [vmem:[%s0 + $0x140] sm:$0xff]
  %v76 = vld [vmem:[%s0 + $0x148] sm:$0xff]
  %v77 = vld [vmem:[%s0 + $0x150] sm:$0xf]
  %v78 = vld [vmem:[%s0 + $0x154] sm:$0xff]
  %v79 = vld [vmem:[%s0 + $0x15c] sm:$0xff]
  %v80 = vld [vmem:[%s0 + $0x164] sm:$0xf]
  %v81 = vld [vmem:[%s0 + $0x168] sm:$0xff]
  %v82 = vld [vmem:[%s0 + $0x170] sm:$0xff]
  %v83 = vld [vmem:[%s0 + $0x178] sm:$0xf]
  %v84 = vld [vmem:[%s0 + $0x17c] sm:$0xff]
  %v85 = vld [vmem:[%s0 + $0x184] sm:$0xff]
  %v86 = vld [vmem:[%s0 + $0x18c] sm:$0xf]
  %v87 = vld [vmem:[%s0 + $0x190] sm:$0xff]
  %v88 = vld [vmem:[%s0 + $0x198] sm:$0xff]
  %v89 = vld [vmem:[%s0 + $0x1a0] sm:$0xf]
  %v90 = vld [vmem:[%s0 + $0x1a4] sm:$0xff]
  %v91 = vld [vmem:[%s0 + $0x1ac] sm:$0xff]
  %v92 = vld [vmem:[%s0 + $0x1b4] sm:$0xf]
  %v93 = vld [vmem:[%s0 + $0x1b8] sm:$0xff]
  %v94 = vld [vmem:[%s0 + $0x1c0] sm:$0xff]
  %v95 = vld [vmem:[%s0 + $0x1c8] sm:$0xf]
  %v96 = vld [vmem:[%s0 + $0x1cc] sm:$0xff]
  %v97 = vld [vmem:[%s0 + $0x1d4] sm:$0xff]
  %v98 = vld [vmem:[%s0 + $0x1dc] sm:$0xf]
  %v99 = vld [vmem:[%s0 + $0x1e0] sm:$0xff]
  %v100 = vld [vmem:[%s0 + $0x1e8] sm:$0xff]
  %v101 = vld [vmem:[%s0 + $0x1f0] sm:$0xf]
  %v102 = vld [vmem:[%s0 + $0x1f4] sm:$0xff]
  %v103 = vld [vmem:[%s0 + $0x1fc] sm:$0xff]
  %v104 = vld [vmem:[%s0 + $0x204] sm:$0xf]
  %v105 = vld [vmem:[%s0 + $0x208] sm:$0xff]
  %v106 = vld [vmem:[%s0 + $0x210] sm:$0xff]
  %v107 = vld [vmem:[%s0 + $0x218] sm:$0xf]
  %v108 = vld [vmem:[%s0 + $0x21c] sm:$0xff]
  %v109 = vld [vmem:[%s0 + $0x224] sm:$0xff]
  %v110 = vld [vmem:[%s0 + $0x22c] sm:$0xf]
  %v111 = vld [vmem:[%s0 + $0x230] sm:$0xff]
  %v112 = vld [vmem:[%s0 + $0x238] sm:$0xff]
  %v113 = vld [vmem:[%s0 + $0x240] sm:$0xf]
  %v114 = vld [vmem:[%s0 + $0x244] sm:$0xff]
  %v115 = vld [vmem:[%s0 + $0x24c] sm:$0xff]
  %v116 = vld [vmem:[%s0 + $0x254] sm:$0xf]
  %v117 = vld [vmem:[%s0 + $0x258] sm:$0xff]
  %v118 = vld [vmem:[%s0 + $0x260] sm:$0xff]
  %v119 = vld [vmem:[%s0 + $0x268] sm:$0xf]
  %v120 = vld [vmem:[%s0 + $0x26c] sm:$0xff]
  %v121 = vld [vmem:[%s0 + $0x274] sm:$0xff]
  %v122 = vld [vmem:[%s0 + $0x27c] sm:$0xf]
  %v123 = vld [vmem:[%s0 + $0x280] sm:$0xff]
  %v124 = vld [vmem:[%s0 + $0x288] sm:$0xff]
  %v125 = vld [vmem:[%s0 + $0x290] sm:$0xf]
  %v126 = vld [vmem:[%s0 + $0x294] sm:$0xff]
  %v127 = vld [vmem:[%s0 + $0x29c] sm:$0xff]
  %v128 = vld [vmem:[%s0 + $0x2a4] sm:$0xf]
  %v129 = vld [vmem:[%s0 + $0x2a8] sm:$0xff]
  %v130 = vld [vmem:[%s0 + $0x2b0] sm:$0xff]
  %v131 = vld [vmem:[%s0 + $0x2b8] sm:$0xf]
  %v132 = vld [vmem:[%s0 + $0x2bc] sm:$0xff]
  %v133 = vld [vmem:[%s0 + $0x2c4] sm:$0xff]
  %v134 = vld [vmem:[%s0 + $0x2cc] sm:$0xf]
  %v135 = vld [vmem:[%s1] sm:$0xf]
  %v136 = vld [vmem:[%s1 + $0x4] sm:$0xf]
  %v137 = vld [vmem:[%s1 + $0x8] sm:$0xf]
  %v138 = vld [vmem:[%s1 + $0xc] sm:$0xf]
  %v139 = vld [vmem:[%s1 + $0x10] sm:$0xf]
  %v140 = vld [vmem:[%s1 + $0x14] sm:$0xf]
  %v141 = vld [vmem:[%s1 + $0x18] sm:$0xf]
  %v142 = vld [vmem:[%s1 + $0x1c] sm:$0xf]
  %v143 = vld [vmem:[%s1 + $0x20] sm:$0xf]
  %v144 = vld [vmem:[%s1 + $0x24] sm:$0xf]
  %v145 = vld [vmem:[%s1 + $0x28] sm:$0xf]
  %v146 = vld [vmem:[%s1 + $0x2c] sm:$0xf]
  %v147 = vld [vmem:[%s1 + $0x30] sm:$0xf]
  %v148 = vld [vmem:[%s1 + $0x34] sm:$0xf]
  %v149 = vld [vmem:[%s1 + $0x38] sm:$0xf]
  %v150 = vld [vmem:[%s1 + $0x3c] sm:$0xf]
  %v151 = vld [vmem:[%s1 + $0x40] sm:$0xf]
  %v152 = vld [vmem:[%s1 + $0x44] sm:$0xf]
  %v153 = vld [vmem:[%s1 + $0x48] sm:$0xf]
  %v154 = vld [vmem:[%s1 + $0x4c] sm:$0xf]
  %v155 = vld [vmem:[%s1 + $0x50] sm:$0xf]
  %v156 = vld [vmem:[%s1 + $0x54] sm:$0xf]
  %v157 = vld [vmem:[%s1 + $0x58] sm:$0xf]
  %v158 = vld [vmem:[%s1 + $0x5c] sm:$0xf]
  %v159 = vld [vmem:[%s1 + $0x60] sm:$0xf]
  %v160 = vld [vmem:[%s1 + $0x64] sm:$0xf]
  %v161 = vld [vmem:[%s1 + $0x68] sm:$0xf]
  %v162 = vld [vmem:[%s1 + $0x6c] sm:$0xf]
  %v163 = vld [vmem:[%s1 + $0x70] sm:$0xf]
  %v164 = vld [vmem:[%s1 + $0x74] sm:$0xf]
  %v165 = vld [vmem:[%s1 + $0x78] sm:$0xf]
  %v166 = vld [vmem:[%s1 + $0x7c] sm:$0xf]
  %v167 = vld [vmem:[%s1 + $0x80] sm:$0xf]
  %v168 = vld [vmem:[%s1 + $0x84] sm:$0xf]
  %v169 = vld [vmem:[%s1 + $0x88] sm:$0xf]
  %v170 = vld [vmem:[%s1 + $0x8c] sm:$0xf]
  %v171 = vld [vmem:[%s1 + $0x90] sm:$0xf]
  %v172 = vld [vmem:[%s1 + $0x94] sm:$0xf]
  %v173 = vld [vmem:[%s1 + $0x98] sm:$0xf]
  %v174 = vld [vmem:[%s1 + $0x9c] sm:$0xf]
  %v175 = vld [vmem:[%s1 + $0xa0] sm:$0xf]
  %v176 = vld [vmem:[%s1 + $0xa4] sm:$0xf]
  %v177 = vld [vmem:[%s1 + $0xa8] sm:$0xf]
  %v178 = vld [vmem:[%s1 + $0xac] sm:$0xf]
  %v179 = vld [vmem:[%s1 + $0xb0] sm:$0xf]
  %v180 = vld [vmem:[%s1 + $0xb4] sm:$0xf]
  %v181 = vld [vmem:[%s1 + $0xb8] sm:$0xf]
  %v182 = vld [vmem:[%s1 + $0xbc] sm:$0xf]
  %v183 = vld [vmem:[%s1 + $0xc0] sm:$0xf]
  %v184 = vld [vmem:[%s1 + $0xc4] sm:$0xf]
  %v185 = vld [vmem:[%s1 + $0xc8] sm:$0xf]
  %v186 = vld [vmem:[%s1 + $0xcc] sm:$0xf]
  %v187 = vld [vmem:[%s1 + $0xd0] sm:$0xf]
  %v188 = vld [vmem:[%s1 + $0xd4] sm:$0xf]
  %v189 = vld [vmem:[%s1 + $0xd8] sm:$0xf]
  %v190 = vld [vmem:[%s1 + $0xdc] sm:$0xf]
  %v191 = vld [vmem:[%s1 + $0xe0] sm:$0xf]
  %v192 = vld [vmem:[%s1 + $0xe4] sm:$0xf]
  %v193 = vld [vmem:[%s1 + $0xe8] sm:$0xf]
  %v194 = vld [vmem:[%s1 + $0xec] sm:$0xf]
  %v195 = vld [vmem:[%s1 + $0xf0] sm:$0xf]
  %v196 = vld [vmem:[%s1 + $0xf4] sm:$0xf]
  %v197 = vld [vmem:[%s1 + $0xf8] sm:$0xf]
  %v198 = vld [vmem:[%s1 + $0xfc] sm:$0xf]
  %v199 = vld [vmem:[%s1 + $0x100] sm:$0xf]
  %v200 = vld [vmem:[%s1 + $0x104] sm:$0xf]
  %v201 = vld [vmem:[%s1 + $0x108] sm:$0xf]
  %v202 = vld [vmem:[%s1 + $0x10c] sm:$0xf]
  %v203 = vld [vmem:[%s1 + $0x110] sm:$0xf]
  %v204 = vld [vmem:[%s1 + $0x114] sm:$0xf]
  %v205 = vld [vmem:[%s1 + $0x118] sm:$0xf]
  %v206 = vld [vmem:[%s1 + $0x11c] sm:$0xf]
  %v315 = vunpack.c.l.b16 %v27
  %v316 = vunpack.c.h.b16 %v27
  %v317 = vunpack.c.l.b16 %v28
  %v318 = vunpack.c.h.b16 %v28
  %v319 = vunpack.c.l.b16 %v29
  %v320 = vunpack.c.l.b16 %v30
  %v321 = vunpack.c.h.b16 %v30
  %v322 = vunpack.c.l.b16 %v31
  %v323 = vunpack.c.h.b16 %v31
  %v324 = vunpack.c.l.b16 %v32
  %v325 = vunpack.c.l.b16 %v33
  %v326 = vunpack.c.h.b16 %v33
  %v327 = vunpack.c.l.b16 %v34
  %v328 = vunpack.c.h.b16 %v34
  %v329 = vunpack.c.l.b16 %v35
  %v330 = vunpack.c.l.b16 %v36
  %v331 = vunpack.c.h.b16 %v36
  %v332 = vunpack.c.l.b16 %v37
  %v333 = vunpack.c.h.b16 %v37
  %v334 = vunpack.c.l.b16 %v38
  %v335 = vunpack.c.l.b16 %v39
  %v336 = vunpack.c.h.b16 %v39
  %v337 = vunpack.c.l.b16 %v40
  %v338 = vunpack.c.h.b16 %v40
  %v339 = vunpack.c.l.b16 %v41
  %v340 = vunpack.c.l.b16 %v42
  %v341 = vunpack.c.h.b16 %v42
  %v342 = vunpack.c.l.b16 %v43
  %v343 = vunpack.c.h.b16 %v43
  %v344 = vunpack.c.l.b16 %v44
  %v345 = vunpack.c.l.b16 %v45
  %v346 = vunpack.c.h.b16 %v45
  %v347 = vunpack.c.l.b16 %v46
  %v348 = vunpack.c.h.b16 %v46
  %v349 = vunpack.c.l.b16 %v47
  %v350 = vunpack.c.l.b16 %v48
  %v351 = vunpack.c.h.b16 %v48
  %v352 = vunpack.c.l.b16 %v49
  %v353 = vunpack.c.h.b16 %v49
  %v354 = vunpack.c.l.b16 %v50
  %v355 = vunpack.c.l.b16 %v51
  %v356 = vunpack.c.h.b16 %v51
  %v357 = vunpack.c.l.b16 %v52
  %v358 = vunpack.c.h.b16 %v52
  %v359 = vunpack.c.l.b16 %v53
  %v360 = vunpack.c.l.b16 %v54
  %v361 = vunpack.c.h.b16 %v54
  %v362 = vunpack.c.l.b16 %v55
  %v363 = vunpack.c.h.b16 %v55
  %v364 = vunpack.c.l.b16 %v56
  %v365 = vunpack.c.l.b16 %v57
  %v366 = vunpack.c.h.b16 %v57
  %v367 = vunpack.c.l.b16 %v58
  %v368 = vunpack.c.h.b16 %v58
  %v369 = vunpack.c.l.b16 %v59
  %v370 = vunpack.c.l.b16 %v60
  %v371 = vunpack.c.h.b16 %v60
  %v372 = vunpack.c.l.b16 %v61
  %v373 = vunpack.c.h.b16 %v61
  %v374 = vunpack.c.l.b16 %v62
  %v375 = vunpack.c.l.b16 %v63
  %v376 = vunpack.c.h.b16 %v63
  %v377 = vunpack.c.l.b16 %v64
  %v378 = vunpack.c.h.b16 %v64
  %v379 = vunpack.c.l.b16 %v65
  %v380 = vunpack.c.l.b16 %v66
  %v381 = vunpack.c.h.b16 %v66
  %v382 = vunpack.c.l.b16 %v67
  %v383 = vunpack.c.h.b16 %v67
  %v384 = vunpack.c.l.b16 %v68
  %v385 = vunpack.c.l.b16 %v69
  %v386 = vunpack.c.h.b16 %v69
  %v387 = vunpack.c.l.b16 %v70
  %v388 = vunpack.c.h.b16 %v70
  %v389 = vunpack.c.l.b16 %v71
  %v390 = vunpack.c.l.b16 %v72
  %v391 = vunpack.c.h.b16 %v72
  %v392 = vunpack.c.l.b16 %v73
  %v393 = vunpack.c.h.b16 %v73
  %v394 = vunpack.c.l.b16 %v74
  %v395 = vunpack.c.l.b16 %v75
  %v396 = vunpack.c.h.b16 %v75
  %v397 = vunpack.c.l.b16 %v76
  %v398 = vunpack.c.h.b16 %v76
  %v399 = vunpack.c.l.b16 %v77
  %v400 = vunpack.c.l.b16 %v78
  %v401 = vunpack.c.h.b16 %v78
  %v402 = vunpack.c.l.b16 %v79
  %v403 = vunpack.c.h.b16 %v79
  %v404 = vunpack.c.l.b16 %v80
  %v405 = vunpack.c.l.b16 %v81
  %v406 = vunpack.c.h.b16 %v81
  %v407 = vunpack.c.l.b16 %v82
  %v408 = vunpack.c.h.b16 %v82
  %v409 = vunpack.c.l.b16 %v83
  %v410 = vunpack.c.l.b16 %v84
  %v411 = vunpack.c.h.b16 %v84
  %v412 = vunpack.c.l.b16 %v85
  %v413 = vunpack.c.h.b16 %v85
  %v414 = vunpack.c.l.b16 %v86
  %v415 = vunpack.c.l.b16 %v87
  %v416 = vunpack.c.h.b16 %v87
  %v417 = vunpack.c.l.b16 %v88
  %v418 = vunpack.c.h.b16 %v88
  %v419 = vunpack.c.l.b16 %v89
  %v420 = vunpack.c.l.b16 %v90
  %v421 = vunpack.c.h.b16 %v90
  %v422 = vunpack.c.l.b16 %v91
  %v423 = vunpack.c.h.b16 %v91
  %v424 = vunpack.c.l.b16 %v92
  %v425 = vunpack.c.l.b16 %v93
  %v426 = vunpack.c.h.b16 %v93
  %v427 = vunpack.c.l.b16 %v94
  %v428 = vunpack.c.h.b16 %v94
  %v429 = vunpack.c.l.b16 %v95
  %v430 = vunpack.c.l.b16 %v96
  %v431 = vunpack.c.h.b16 %v96
  %v432 = vunpack.c.l.b16 %v97
  %v433 = vunpack.c.h.b16 %v97
  %v434 = vunpack.c.l.b16 %v98
  %v435 = vunpack.c.l.b16 %v99
  %v436 = vunpack.c.h.b16 %v99
  %v437 = vunpack.c.l.b16 %v100
  %v438 = vunpack.c.h.b16 %v100
  %v439 = vunpack.c.l.b16 %v101
  %v440 = vunpack.c.l.b16 %v102
  %v441 = vunpack.c.h.b16 %v102
  %v442 = vunpack.c.l.b16 %v103
  %v443 = vunpack.c.h.b16 %v103
  %v444 = vunpack.c.l.b16 %v104
  %v445 = vunpack.c.l.b16 %v105
  %v446 = vunpack.c.h.b16 %v105
  %v447 = vunpack.c.l.b16 %v106
  %v448 = vunpack.c.h.b16 %v106
  %v449 = vunpack.c.l.b16 %v107
  %v450 = vunpack.c.l.b16 %v108
  %v451 = vunpack.c.h.b16 %v108
  %v452 = vunpack.c.l.b16 %v109
  %v453 = vunpack.c.h.b16 %v109
  %v454 = vunpack.c.l.b16 %v110
  %v455 = vunpack.c.l.b16 %v111
  %v456 = vunpack.c.h.b16 %v111
  %v457 = vunpack.c.l.b16 %v112
  %v458 = vunpack.c.h.b16 %v112
  %v459 = vunpack.c.l.b16 %v113
  %v460 = vunpack.c.l.b16 %v114
  %v461 = vunpack.c.h.b16 %v114
  %v462 = vunpack.c.l.b16 %v115
  %v463 = vunpack.c.h.b16 %v115
  %v464 = vunpack.c.l.b16 %v116
  %v465 = vunpack.c.l.b16 %v117
  %v466 = vunpack.c.h.b16 %v117
  %v467 = vunpack.c.l.b16 %v118
  %v468 = vunpack.c.h.b16 %v118
  %v469 = vunpack.c.l.b16 %v119
  %v470 = vunpack.c.l.b16 %v120
  %v471 = vunpack.c.h.b16 %v120
  %v472 = vunpack.c.l.b16 %v121
  %v473 = vunpack.c.h.b16 %v121
  %v474 = vunpack.c.l.b16 %v122
  %v475 = vunpack.c.l.b16 %v123
  %v476 = vunpack.c.h.b16 %v123
  %v477 = vunpack.c.l.b16 %v124
  %v478 = vunpack.c.h.b16 %v124
  %v479 = vunpack.c.l.b16 %v125
  %v480 = vunpack.c.l.b16 %v126
  %v481 = vunpack.c.h.b16 %v126
  %v482 = vunpack.c.l.b16 %v127
  %v483 = vunpack.c.h.b16 %v127
  %v484 = vunpack.c.l.b16 %v128
  %v485 = vunpack.c.l.b16 %v129
  %v486 = vunpack.c.h.b16 %v129
  %v487 = vunpack.c.l.b16 %v130
  %v488 = vunpack.c.h.b16 %v130
  %v489 = vunpack.c.l.b16 %v131
  %v490 = vunpack.c.l.b16 %v132
  %v491 = vunpack.c.h.b16 %v132
  %v492 = vunpack.c.l.b16 %v133
  %v493 = vunpack.c.h.b16 %v133
  %v494 = vunpack.c.l.b16 %v134
  %v495 = vpack.c.b16 %v320, %v315
  %v496 = vpack.c.b16 %v321, %v316
  %v497 = vpack.c.b16 %v322, %v317
  %v498 = vpack.c.b16 %v323, %v318
  %v499 = vpack.c.b16 %v324, %v319
  %v500 = vpack.c.b16 %v330, %v325
  %v501 = vpack.c.b16 %v331, %v326
  %v502 = vpack.c.b16 %v332, %v327
  %v503 = vpack.c.b16 %v333, %v328
  %v504 = vpack.c.b16 %v334, %v329
  %v505 = vpack.c.b16 %v340, %v335
  %v506 = vpack.c.b16 %v341, %v336
  %v507 = vpack.c.b16 %v342, %v337
  %v508 = vpack.c.b16 %v343, %v338
  %v509 = vpack.c.b16 %v344, %v339
  %v510 = vpack.c.b16 %v350, %v345
  %v511 = vpack.c.b16 %v351, %v346
  %v512 = vpack.c.b16 %v352, %v347
  %v513 = vpack.c.b16 %v353, %v348
  %v514 = vpack.c.b16 %v354, %v349
  %v515 = vpack.c.b16 %v360, %v355
  %v516 = vpack.c.b16 %v361, %v356
  %v517 = vpack.c.b16 %v362, %v357
  %v518 = vpack.c.b16 %v363, %v358
  %v519 = vpack.c.b16 %v364, %v359
  %v520 = vpack.c.b16 %v370, %v365
  %v521 = vpack.c.b16 %v371, %v366
  %v522 = vpack.c.b16 %v372, %v367
  %v523 = vpack.c.b16 %v373, %v368
  %v524 = vpack.c.b16 %v374, %v369
  %v525 = vpack.c.b16 %v380, %v375
  %v526 = vpack.c.b16 %v381, %v376
  %v527 = vpack.c.b16 %v382, %v377
  %v528 = vpack.c.b16 %v383, %v378
  %v529 = vpack.c.b16 %v384, %v379
  %v530 = vpack.c.b16 %v390, %v385
  %v531 = vpack.c.b16 %v391, %v386
  %v532 = vpack.c.b16 %v392, %v387
  %v533 = vpack.c.b16 %v393, %v388
  %v534 = vpack.c.b16 %v394, %v389
  %v535 = vpack.c.b16 %v400, %v395
  %v536 = vpack.c.b16 %v401, %v396
  %v537 = vpack.c.b16 %v402, %v397
  %v538 = vpack.c.b16 %v403, %v398
  %v539 = vpack.c.b16 %v404, %v399
  %v540 = vpack.c.b16 %v410, %v405
  %v541 = vpack.c.b16 %v411, %v406
  %v542 = vpack.c.b16 %v412, %v407
  %v543 = vpack.c.b16 %v413, %v408
  %v544 = vpack.c.b16 %v414, %v409
  %v545 = vpack.c.b16 %v420, %v415
  %v546 = vpack.c.b16 %v421, %v416
  %v547 = vpack.c.b16 %v422, %v417
  %v548 = vpack.c.b16 %v423, %v418
  %v549 = vpack.c.b16 %v424, %v419
  %v550 = vpack.c.b16 %v430, %v425
  %v551 = vpack.c.b16 %v431, %v426
  %v552 = vpack.c.b16 %v432, %v427
  %v553 = vpack.c.b16 %v433, %v428
  %v554 = vpack.c.b16 %v434, %v429
  %v555 = vpack.c.b16 %v440, %v435
  %v556 = vpack.c.b16 %v441, %v436
  %v557 = vpack.c.b16 %v442, %v437
  %v558 = vpack.c.b16 %v443, %v438
  %v559 = vpack.c.b16 %v444, %v439
  %v560 = vpack.c.b16 %v450, %v445
  %v561 = vpack.c.b16 %v451, %v446
  %v562 = vpack.c.b16 %v452, %v447
  %v563 = vpack.c.b16 %v453, %v448
  %v564 = vpack.c.b16 %v454, %v449
  %v565 = vpack.c.b16 %v460, %v455
  %v566 = vpack.c.b16 %v461, %v456
  %v567 = vpack.c.b16 %v462, %v457
  %v568 = vpack.c.b16 %v463, %v458
  %v569 = vpack.c.b16 %v464, %v459
  %v570 = vpack.c.b16 %v470, %v465
  %v571 = vpack.c.b16 %v471, %v466
  %v572 = vpack.c.b16 %v472, %v467
  %v573 = vpack.c.b16 %v473, %v468
  %v574 = vpack.c.b16 %v474, %v469
  %v575 = vpack.c.b16 %v480, %v475
  %v576 = vpack.c.b16 %v481, %v476
  %v577 = vpack.c.b16 %v482, %v477
  %v578 = vpack.c.b16 %v483, %v478
  %v579 = vpack.c.b16 %v484, %v479
  %v580 = vpack.c.b16 %v490, %v485
  %v581 = vpack.c.b16 %v491, %v486
  %v582 = vpack.c.b16 %v492, %v487
  %v583 = vpack.c.b16 %v493, %v488
  %v584 = vpack.c.b16 %v494, %v489
  %v729 = vunpack.c.l.b16 %v135
  %v730 = vunpack.c.l.b16 %v136
  %v731 = vunpack.c.l.b16 %v137
  %v732 = vunpack.c.l.b16 %v138
  %v733 = vunpack.c.l.b16 %v139
  %v734 = vunpack.c.l.b16 %v140
  %v735 = vunpack.c.l.b16 %v141
  %v736 = vunpack.c.l.b16 %v142
  %v737 = vunpack.c.l.b16 %v143
  %v738 = vunpack.c.l.b16 %v144
  %v739 = vunpack.c.l.b16 %v145
  %v740 = vunpack.c.l.b16 %v146
  %v741 = vunpack.c.l.b16 %v147
  %v742 = vunpack.c.l.b16 %v148
  %v743 = vunpack.c.l.b16 %v149
  %v744 = vunpack.c.l.b16 %v150
  %v745 = vunpack.c.l.b16 %v151
  %v746 = vunpack.c.l.b16 %v152
  %v747 = vunpack.c.l.b16 %v153
  %v748 = vunpack.c.l.b16 %v154
  %v749 = vunpack.c.l.b16 %v155
  %v750 = vunpack.c.l.b16 %v156
  %v751 = vunpack.c.l.b16 %v157
  %v752 = vunpack.c.l.b16 %v158
  %v753 = vunpack.c.l.b16 %v159
  %v754 = vunpack.c.l.b16 %v160
  %v755 = vunpack.c.l.b16 %v161
  %v756 = vunpack.c.l.b16 %v162
  %v757 = vunpack.c.l.b16 %v163
  %v758 = vunpack.c.l.b16 %v164
  %v759 = vunpack.c.l.b16 %v165
  %v760 = vunpack.c.l.b16 %v166
  %v761 = vunpack.c.l.b16 %v167
  %v762 = vunpack.c.l.b16 %v168
  %v763 = vunpack.c.l.b16 %v169
  %v764 = vunpack.c.l.b16 %v170
  %v765 = vunpack.c.l.b16 %v171
  %v766 = vunpack.c.l.b16 %v172
  %v767 = vunpack.c.l.b16 %v173
  %v768 = vunpack.c.l.b16 %v174
  %v769 = vunpack.c.l.b16 %v175
  %v770 = vunpack.c.l.b16 %v176
  %v771 = vunpack.c.l.b16 %v177
  %v772 = vunpack.c.l.b16 %v178
  %v773 = vunpack.c.l.b16 %v179
  %v774 = vunpack.c.l.b16 %v180
  %v775 = vunpack.c.l.b16 %v181
  %v776 = vunpack.c.l.b16 %v182
  %v777 = vunpack.c.l.b16 %v183
  %v778 = vunpack.c.l.b16 %v184
  %v779 = vunpack.c.l.b16 %v185
  %v780 = vunpack.c.l.b16 %v186
  %v781 = vunpack.c.l.b16 %v187
  %v782 = vunpack.c.l.b16 %v188
  %v783 = vunpack.c.l.b16 %v189
  %v784 = vunpack.c.l.b16 %v190
  %v785 = vunpack.c.l.b16 %v191
  %v786 = vunpack.c.l.b16 %v192
  %v787 = vunpack.c.l.b16 %v193
  %v788 = vunpack.c.l.b16 %v194
  %v789 = vunpack.c.l.b16 %v195
  %v790 = vunpack.c.l.b16 %v196
  %v791 = vunpack.c.l.b16 %v197
  %v792 = vunpack.c.l.b16 %v198
  %v793 = vunpack.c.l.b16 %v199
  %v794 = vunpack.c.l.b16 %v200
  %v795 = vunpack.c.l.b16 %v201
  %v796 = vunpack.c.l.b16 %v202
  %v797 = vunpack.c.l.b16 %v203
  %v798 = vunpack.c.l.b16 %v204
  %v799 = vunpack.c.l.b16 %v205
  %v800 = vunpack.c.l.b16 %v206
  %v801 = vpack.c.b16 %v730, %v729
  %v802 = vpack.c.b16 %v732, %v731
  %v803 = vpack.c.b16 %v734, %v733
  %v804 = vpack.c.b16 %v736, %v735
  %v805 = vpack.c.b16 %v738, %v737
  %v806 = vpack.c.b16 %v740, %v739
  %v807 = vpack.c.b16 %v742, %v741
  %v808 = vpack.c.b16 %v744, %v743
  %v809 = vpack.c.b16 %v746, %v745
  %v810 = vpack.c.b16 %v748, %v747
  %v811 = vpack.c.b16 %v750, %v749
  %v812 = vpack.c.b16 %v752, %v751
  %v813 = vpack.c.b16 %v754, %v753
  %v814 = vpack.c.b16 %v756, %v755
  %v815 = vpack.c.b16 %v758, %v757
  %v816 = vpack.c.b16 %v760, %v759
  %v817 = vpack.c.b16 %v762, %v761
  %v818 = vpack.c.b16 %v764, %v763
  %v819 = vpack.c.b16 %v766, %v765
  %v820 = vpack.c.b16 %v768, %v767
  %v821 = vpack.c.b16 %v770, %v769
  %v822 = vpack.c.b16 %v772, %v771
  %v823 = vpack.c.b16 %v774, %v773
  %v824 = vpack.c.b16 %v776, %v775
  %v825 = vpack.c.b16 %v778, %v777
  %v826 = vpack.c.b16 %v780, %v779
  %v827 = vpack.c.b16 %v782, %v781
  %v828 = vpack.c.b16 %v784, %v783
  %v829 = vpack.c.b16 %v786, %v785
  %v830 = vpack.c.b16 %v788, %v787
  %v831 = vpack.c.b16 %v790, %v789
  %v832 = vpack.c.b16 %v792, %v791
  %v833 = vpack.c.b16 %v794, %v793
  %v834 = vpack.c.b16 %v796, %v795
  %v835 = vpack.c.b16 %v798, %v797
  %v836 = vpack.c.b16 %v800, %v799
  %vm873 = vcmask 523264
  %v875 = vsel %vm873, %v499, 0
  %v878 = vsel %vm873, %v504, 0
  %v881 = vsel %vm873, %v509, 0
  %v884 = vsel %vm873, %v514, 0
  %v887 = vsel %vm873, %v519, 0
  %v890 = vsel %vm873, %v524, 0
  %v893 = vsel %vm873, %v529, 0
  %v896 = vsel %vm873, %v534, 0
  %v899 = vsel %vm873, %v539, 0
  %v902 = vsel %vm873, %v544, 0
  %v905 = vsel %vm873, %v549, 0
  %v908 = vsel %vm873, %v554, 0
  %v911 = vsel %vm873, %v559, 0
  %v914 = vsel %vm873, %v564, 0
  %v917 = vsel %vm873, %v569, 0
  %v920 = vsel %vm873, %v574, 0
  %v923 = vsel %vm873, %v579, 0
  %v926 = vsel %vm873, %v584, 0
  %928 = vmatpush.bf16.msra.mxu0 %v808
  %929 = vmatpush.bf16.msra.mxu0 %v807
  %930 = vmatpush.bf16.msra.mxu0 %v806
  %931 = vmatpush.bf16.msra.mxu0 %v805
  %932 = vmatpush.bf16.msra.mxu0 %v804
  %933 = vmatpush.bf16.msra.mxu0 %v803
  %934 = vmatpush.bf16.msra.mxu0 %v802
  %935 = vmatpush.bf16.msra.mxu0 %v801
  %936 = vmatmul.bf16.gmra.mxu0 %v495
  %v937 = vpop.f32.mrf.mxu0
  %v938 = vadd.f32 0.0, %v937
  %v939 = vpop.f32.mrf.mxu0
  %v940 = vadd.f32 0.0, %v939
  %941 = vmatmul.bf16.gmra.mxu0 %v500
  %v942 = vpop.f32.mrf.mxu0
  %v943 = vadd.f32 0.0, %v942
  %v944 = vpop.f32.mrf.mxu0
  %v945 = vadd.f32 0.0, %v944
  %946 = vmatmul.bf16.gmra.mxu0 %v505
  %v947 = vpop.f32.mrf.mxu0
  %v948 = vadd.f32 0.0, %v947
  %v949 = vpop.f32.mrf.mxu0
  %v950 = vadd.f32 0.0, %v949
  %951 = vmatmul.bf16.gmra.mxu0 %v510
  %v952 = vpop.f32.mrf.mxu0
  %v953 = vadd.f32 0.0, %v952
  %v954 = vpop.f32.mrf.mxu0
  %v955 = vadd.f32 0.0, %v954
  %956 = vmatmul.bf16.gmra.mxu0 %v515
  %v957 = vpop.f32.mrf.mxu0
  %v958 = vadd.f32 0.0, %v957
  %v959 = vpop.f32.mrf.mxu0
  %v960 = vadd.f32 0.0, %v959
  %961 = vmatmul.bf16.gmra.mxu0 %v520
  %v962 = vpop.f32.mrf.mxu0
  %v963 = vadd.f32 0.0, %v962
  %v964 = vpop.f32.mrf.mxu0
  %v965 = vadd.f32 0.0, %v964
  %966 = vmatmul.bf16.gmra.mxu0 %v525
  %v967 = vpop.f32.mrf.mxu0
  %v968 = vadd.f32 0.0, %v967
  %v969 = vpop.f32.mrf.mxu0
  %v970 = vadd.f32 0.0, %v969
  %971 = vmatmul.bf16.gmra.mxu0 %v530
  %v972 = vpop.f32.mrf.mxu0
  %v973 = vadd.f32 0.0, %v972
  %v974 = vpop.f32.mrf.mxu0
  %v975 = vadd.f32 0.0, %v974
  %976 = vmatmul.bf16.gmra.mxu0 %v535
  %v977 = vpop.f32.mrf.mxu0
  %v978 = vadd.f32 0.0, %v977
  %v979 = vpop.f32.mrf.mxu0
  %v980 = vadd.f32 0.0, %v979
  %981 = vmatmul.bf16.gmra.mxu0 %v540
  %v982 = vpop.f32.mrf.mxu0
  %v983 = vadd.f32 0.0, %v982
  %v984 = vpop.f32.mrf.mxu0
  %v985 = vadd.f32 0.0, %v984
  %986 = vmatmul.bf16.gmra.mxu0 %v545
  %v987 = vpop.f32.mrf.mxu0
  %v988 = vadd.f32 0.0, %v987
  %v989 = vpop.f32.mrf.mxu0
  %v990 = vadd.f32 0.0, %v989
  %991 = vmatmul.bf16.gmra.mxu0 %v550
  %v992 = vpop.f32.mrf.mxu0
  %v993 = vadd.f32 0.0, %v992
  %v994 = vpop.f32.mrf.mxu0
  %v995 = vadd.f32 0.0, %v994
  %996 = vmatmul.bf16.gmra.mxu0 %v555
  %v997 = vpop.f32.mrf.mxu0
  %v998 = vadd.f32 0.0, %v997
  %v999 = vpop.f32.mrf.mxu0
  %v1000 = vadd.f32 0.0, %v999
  %1001 = vmatmul.bf16.gmra.mxu0 %v560
  %v1002 = vpop.f32.mrf.mxu0
  %v1003 = vadd.f32 0.0, %v1002
  %v1004 = vpop.f32.mrf.mxu0
  %v1005 = vadd.f32 0.0, %v1004
  %1006 = vmatmul.bf16.gmra.mxu0 %v565
  %v1007 = vpop.f32.mrf.mxu0
  %v1008 = vadd.f32 0.0, %v1007
  %v1009 = vpop.f32.mrf.mxu0
  %v1010 = vadd.f32 0.0, %v1009
  %1011 = vmatmul.bf16.gmra.mxu0 %v570
  %v1012 = vpop.f32.mrf.mxu0
  %v1013 = vadd.f32 0.0, %v1012
  %v1014 = vpop.f32.mrf.mxu0
  %v1015 = vadd.f32 0.0, %v1014
  %1016 = vmatmul.bf16.gmra.mxu0 %v575
  %v1017 = vpop.f32.mrf.mxu0
  %v1018 = vadd.f32 0.0, %v1017
  %v1019 = vpop.f32.mrf.mxu0
  %v1020 = vadd.f32 0.0, %v1019
  %1021 = vmatmul.bf16.gmra.mxu0 %v580
  %v1022 = vpop.f32.mrf.mxu0
  %v1023 = vadd.f32 0.0, %v1022
  %v1024 = vpop.f32.mrf.mxu0
  %v1025 = vadd.f32 0.0, %v1024
  %1026 = vdwg.mxu0
  %1027 = vmatpush.bf16.msra.mxu0 %v816
  %1028 = vmatpush.bf16.msra.mxu0 %v815
  %1029 = vmatpush.bf16.msra.mxu0 %v814
  %1030 = vmatpush.bf16.msra.mxu0 %v813
  %1031 = vmatpush.bf16.msra.mxu0 %v812
  %1032 = vmatpush.bf16.msra.mxu0 %v811
  %1033 = vmatpush.bf16.msra.mxu0 %v810
  %1034 = vmatpush.bf16.msra.mxu0 %v809
  %1035 = vmatmul.bf16.gmra.mxu0 %v496
  %v1036 = vpop.f32.mrf.mxu0
  %v1037 = vadd.f32 %v938, %v1036
  %v1038 = vpop.f32.mrf.mxu0
  %v1039 = vadd.f32 %v940, %v1038
  %1040 = vmatmul.bf16.gmra.mxu0 %v501
  %v1041 = vpop.f32.mrf.mxu0
  %v1042 = vadd.f32 %v943, %v1041
  %v1043 = vpop.f32.mrf.mxu0
  %v1044 = vadd.f32 %v945, %v1043
  %1045 = vmatmul.bf16.gmra.mxu0 %v506
  %v1046 = vpop.f32.mrf.mxu0
  %v1047 = vadd.f32 %v948, %v1046
  %v1048 = vpop.f32.mrf.mxu0
  %v1049 = vadd.f32 %v950, %v1048
  %1050 = vmatmul.bf16.gmra.mxu0 %v511
  %v1051 = vpop.f32.mrf.mxu0
  %v1052 = vadd.f32 %v953, %v1051
  %v1053 = vpop.f32.mrf.mxu0
  %v1054 = vadd.f32 %v955, %v1053
  %1055 = vmatmul.bf16.gmra.mxu0 %v516
  %v1056 = vpop.f32.mrf.mxu0
  %v1057 = vadd.f32 %v958, %v1056
  %v1058 = vpop.f32.mrf.mxu0
  %v1059 = vadd.f32 %v960, %v1058
  %1060 = vmatmul.bf16.gmra.mxu0 %v521
  %v1061 = vpop.f32.mrf.mxu0
  %v1062 = vadd.f32 %v963, %v1061
  %v1063 = vpop.f32.mrf.mxu0
  %v1064 = vadd.f32 %v965, %v1063
  %1065 = vmatmul.bf16.gmra.mxu0 %v526
  %v1066 = vpop.f32.mrf.mxu0
  %v1067 = vadd.f32 %v968, %v1066
  %v1068 = vpop.f32.mrf.mxu0
  %v1069 = vadd.f32 %v970, %v1068
  %1070 = vmatmul.bf16.gmra.mxu0 %v531
  %v1071 = vpop.f32.mrf.mxu0
  %v1072 = vadd.f32 %v973, %v1071
  %v1073 = vpop.f32.mrf.mxu0
  %v1074 = vadd.f32 %v975, %v1073
  %1075 = vmatmul.bf16.gmra.mxu0 %v536
  %v1076 = vpop.f32.mrf.mxu0
  %v1077 = vadd.f32 %v978, %v1076
  %v1078 = vpop.f32.mrf.mxu0
  %v1079 = vadd.f32 %v980, %v1078
  %1080 = vmatmul.bf16.gmra.mxu0 %v541
  %v1081 = vpop.f32.mrf.mxu0
  %v1082 = vadd.f32 %v983, %v1081
  %v1083 = vpop.f32.mrf.mxu0
  %v1084 = vadd.f32 %v985, %v1083
  %1085 = vmatmul.bf16.gmra.mxu0 %v546
  %v1086 = vpop.f32.mrf.mxu0
  %v1087 = vadd.f32 %v988, %v1086
  %v1088 = vpop.f32.mrf.mxu0
  %v1089 = vadd.f32 %v990, %v1088
  %1090 = vmatmul.bf16.gmra.mxu0 %v551
  %v1091 = vpop.f32.mrf.mxu0
  %v1092 = vadd.f32 %v993, %v1091
  %v1093 = vpop.f32.mrf.mxu0
  %v1094 = vadd.f32 %v995, %v1093
  %1095 = vmatmul.bf16.gmra.mxu0 %v556
  %v1096 = vpop.f32.mrf.mxu0
  %v1097 = vadd.f32 %v998, %v1096
  %v1098 = vpop.f32.mrf.mxu0
  %v1099 = vadd.f32 %v1000, %v1098
  %1100 = vmatmul.bf16.gmra.mxu0 %v561
  %v1101 = vpop.f32.mrf.mxu0
  %v1102 = vadd.f32 %v1003, %v1101
  %v1103 = vpop.f32.mrf.mxu0
  %v1104 = vadd.f32 %v1005, %v1103
  %1105 = vmatmul.bf16.gmra.mxu0 %v566
  %v1106 = vpop.f32.mrf.mxu0
  %v1107 = vadd.f32 %v1008, %v1106
  %v1108 = vpop.f32.mrf.mxu0
  %v1109 = vadd.f32 %v1010, %v1108
  %1110 = vmatmul.bf16.gmra.mxu0 %v571
  %v1111 = vpop.f32.mrf.mxu0
  %v1112 = vadd.f32 %v1013, %v1111
  %v1113 = vpop.f32.mrf.mxu0
  %v1114 = vadd.f32 %v1015, %v1113
  %1115 = vmatmul.bf16.gmra.mxu0 %v576
  %v1116 = vpop.f32.mrf.mxu0
  %v1117 = vadd.f32 %v1018, %v1116
  %v1118 = vpop.f32.mrf.mxu0
  %v1119 = vadd.f32 %v1020, %v1118
  %1120 = vmatmul.bf16.gmra.mxu0 %v581
  %v1121 = vpop.f32.mrf.mxu0
  %v1122 = vadd.f32 %v1023, %v1121
  %v1123 = vpop.f32.mrf.mxu0
  %v1124 = vadd.f32 %v1025, %v1123
  %1125 = vdwg.mxu0
  %1126 = vmatpush.bf16.msra.mxu0 %v824
  %1127 = vmatpush.bf16.msra.mxu0 %v823
  %1128 = vmatpush.bf16.msra.mxu0 %v822
  %1129 = vmatpush.bf16.msra.mxu0 %v821
  %1130 = vmatpush.bf16.msra.mxu0 %v820
  %1131 = vmatpush.bf16.msra.mxu0 %v819
  %1132 = vmatpush.bf16.msra.mxu0 %v818
  %1133 = vmatpush.bf16.msra.mxu0 %v817
  %1134 = vmatmul.bf16.gmra.mxu0 %v497
  %v1135 = vpop.f32.mrf.mxu0
  %v1136 = vadd.f32 %v1037, %v1135
  %v1137 = vpop.f32.mrf.mxu0
  %v1138 = vadd.f32 %v1039, %v1137
  %1139 = vmatmul.bf16.gmra.mxu0 %v502
  %v1140 = vpop.f32.mrf.mxu0
  %v1141 = vadd.f32 %v1042, %v1140
  %v1142 = vpop.f32.mrf.mxu0
  %v1143 = vadd.f32 %v1044, %v1142
  %1144 = vmatmul.bf16.gmra.mxu0 %v507
  %v1145 = vpop.f32.mrf.mxu0
  %v1146 = vadd.f32 %v1047, %v1145
  %v1147 = vpop.f32.mrf.mxu0
  %v1148 = vadd.f32 %v1049, %v1147
  %1149 = vmatmul.bf16.gmra.mxu0 %v512
  %v1150 = vpop.f32.mrf.mxu0
  %v1151 = vadd.f32 %v1052, %v1150
  %v1152 = vpop.f32.mrf.mxu0
  %v1153 = vadd.f32 %v1054, %v1152
  %1154 = vmatmul.bf16.gmra.mxu0 %v517
  %v1155 = vpop.f32.mrf.mxu0
  %v1156 = vadd.f32 %v1057, %v1155
  %v1157 = vpop.f32.mrf.mxu0
  %v1158 = vadd.f32 %v1059, %v1157
  %1159 = vmatmul.bf16.gmra.mxu0 %v522
  %v1160 = vpop.f32.mrf.mxu0
  %v1161 = vadd.f32 %v1062, %v1160
  %v1162 = vpop.f32.mrf.mxu0
  %v1163 = vadd.f32 %v1064, %v1162
  %1164 = vmatmul.bf16.gmra.mxu0 %v527
  %v1165 = vpop.f32.mrf.mxu0
  %v1166 = vadd.f32 %v1067, %v1165
  %v1167 = vpop.f32.mrf.mxu0
  %v1168 = vadd.f32 %v1069, %v1167
  %1169 = vmatmul.bf16.gmra.mxu0 %v532
  %v1170 = vpop.f32.mrf.mxu0
  %v1171 = vadd.f32 %v1072, %v1170
  %v1172 = vpop.f32.mrf.mxu0
  %v1173 = vadd.f32 %v1074, %v1172
  %1174 = vmatmul.bf16.gmra.mxu0 %v537
  %v1175 = vpop.f32.mrf.mxu0
  %v1176 = vadd.f32 %v1077, %v1175
  %v1177 = vpop.f32.mrf.mxu0
  %v1178 = vadd.f32 %v1079, %v1177
  %1179 = vmatmul.bf16.gmra.mxu0 %v542
  %v1180 = vpop.f32.mrf.mxu0
  %v1181 = vadd.f32 %v1082, %v1180
  %v1182 = vpop.f32.mrf.mxu0
  %v1183 = vadd.f32 %v1084, %v1182
  %1184 = vmatmul.bf16.gmra.mxu0 %v547
  %v1185 = vpop.f32.mrf.mxu0
  %v1186 = vadd.f32 %v1087, %v1185
  %v1187 = vpop.f32.mrf.mxu0
  %v1188 = vadd.f32 %v1089, %v1187
  %1189 = vmatmul.bf16.gmra.mxu0 %v552
  %v1190 = vpop.f32.mrf.mxu0
  %v1191 = vadd.f32 %v1092, %v1190
  %v1192 = vpop.f32.mrf.mxu0
  %v1193 = vadd.f32 %v1094, %v1192
  %1194 = vmatmul.bf16.gmra.mxu0 %v557
  %v1195 = vpop.f32.mrf.mxu0
  %v1196 = vadd.f32 %v1097, %v1195
  %v1197 = vpop.f32.mrf.mxu0
  %v1198 = vadd.f32 %v1099, %v1197
  %1199 = vmatmul.bf16.gmra.mxu0 %v562
  %v1200 = vpop.f32.mrf.mxu0
  %v1201 = vadd.f32 %v1102, %v1200
  %v1202 = vpop.f32.mrf.mxu0
  %v1203 = vadd.f32 %v1104, %v1202
  %1204 = vmatmul.bf16.gmra.mxu0 %v567
  %v1205 = vpop.f32.mrf.mxu0
  %v1206 = vadd.f32 %v1107, %v1205
  %v1207 = vpop.f32.mrf.mxu0
  %v1208 = vadd.f32 %v1109, %v1207
  %1209 = vmatmul.bf16.gmra.mxu0 %v572
  %v1210 = vpop.f32.mrf.mxu0
  %v1211 = vadd.f32 %v1112, %v1210
  %v1212 = vpop.f32.mrf.mxu0
  %v1213 = vadd.f32 %v1114, %v1212
  %1214 = vmatmul.bf16.gmra.mxu0 %v577
  %v1215 = vpop.f32.mrf.mxu0
  %v1216 = vadd.f32 %v1117, %v1215
  %v1217 = vpop.f32.mrf.mxu0
  %v1218 = vadd.f32 %v1119, %v1217
  %1219 = vmatmul.bf16.gmra.mxu0 %v582
  %v1220 = vpop.f32.mrf.mxu0
  %v1221 = vadd.f32 %v1122, %v1220
  %v1222 = vpop.f32.mrf.mxu0
  %v1223 = vadd.f32 %v1124, %v1222
  %1224 = vdwg.mxu0
  %1225 = vmatpush.bf16.msra.mxu0 %v832
  %1226 = vmatpush.bf16.msra.mxu0 %v831
  %1227 = vmatpush.bf16.msra.mxu0 %v830
  %1228 = vmatpush.bf16.msra.mxu0 %v829
  %1229 = vmatpush.bf16.msra.mxu0 %v828
  %1230 = vmatpush.bf16.msra.mxu0 %v827
  %1231 = vmatpush.bf16.msra.mxu0 %v826
  %1232 = vmatpush.bf16.msra.mxu0 %v825
  %1233 = vmatmul.bf16.gmra.mxu0 %v498
  %v1234 = vpop.f32.mrf.mxu0
  %v1235 = vadd.f32 %v1136, %v1234
  %v1236 = vpop.f32.mrf.mxu0
  %v1237 = vadd.f32 %v1138, %v1236
  %1238 = vmatmul.bf16.gmra.mxu0 %v503
  %v1239 = vpop.f32.mrf.mxu0
  %v1240 = vadd.f32 %v1141, %v1239
  %v1241 = vpop.f32.mrf.mxu0
  %v1242 = vadd.f32 %v1143, %v1241
  %1243 = vmatmul.bf16.gmra.mxu0 %v508
  %v1244 = vpop.f32.mrf.mxu0
  %v1245 = vadd.f32 %v1146, %v1244
  %v1246 = vpop.f32.mrf.mxu0
  %v1247 = vadd.f32 %v1148, %v1246
  %1248 = vmatmul.bf16.gmra.mxu0 %v513
  %v1249 = vpop.f32.mrf.mxu0
  %v1250 = vadd.f32 %v1151, %v1249
  %v1251 = vpop.f32.mrf.mxu0
  %v1252 = vadd.f32 %v1153, %v1251
  %1253 = vmatmul.bf16.gmra.mxu0 %v518
  %v1254 = vpop.f32.mrf.mxu0
  %v1255 = vadd.f32 %v1156, %v1254
  %v1256 = vpop.f32.mrf.mxu0
  %v1257 = vadd.f32 %v1158, %v1256
  %1258 = vmatmul.bf16.gmra.mxu0 %v523
  %v1259 = vpop.f32.mrf.mxu0
  %v1260 = vadd.f32 %v1161, %v1259
  %v1261 = vpop.f32.mrf.mxu0
  %v1262 = vadd.f32 %v1163, %v1261
  %1263 = vmatmul.bf16.gmra.mxu0 %v528
  %v1264 = vpop.f32.mrf.mxu0
  %v1265 = vadd.f32 %v1166, %v1264
  %v1266 = vpop.f32.mrf.mxu0
  %v1267 = vadd.f32 %v1168, %v1266
  %1268 = vmatmul.bf16.gmra.mxu0 %v533
  %v1269 = vpop.f32.mrf.mxu0
  %v1270 = vadd.f32 %v1171, %v1269
  %v1271 = vpop.f32.mrf.mxu0
  %v1272 = vadd.f32 %v1173, %v1271
  %1273 = vmatmul.bf16.gmra.mxu0 %v538
  %v1274 = vpop.f32.mrf.mxu0
  %v1275 = vadd.f32 %v1176, %v1274
  %v1276 = vpop.f32.mrf.mxu0
  %v1277 = vadd.f32 %v1178, %v1276
  %1278 = vmatmul.bf16.gmra.mxu0 %v543
  %v1279 = vpop.f32.mrf.mxu0
  %v1280 = vadd.f32 %v1181, %v1279
  %v1281 = vpop.f32.mrf.mxu0
  %v1282 = vadd.f32 %v1183, %v1281
  %1283 = vmatmul.bf16.gmra.mxu0 %v548
  %v1284 = vpop.f32.mrf.mxu0
  %v1285 = vadd.f32 %v1186, %v1284
  %v1286 = vpop.f32.mrf.mxu0
  %v1287 = vadd.f32 %v1188, %v1286
  %1288 = vmatmul.bf16.gmra.mxu0 %v553
  %v1289 = vpop.f32.mrf.mxu0
  %v1290 = vadd.f32 %v1191, %v1289
  %v1291 = vpop.f32.mrf.mxu0
  %v1292 = vadd.f32 %v1193, %v1291
  %1293 = vmatmul.bf16.gmra.mxu0 %v558
  %v1294 = vpop.f32.mrf.mxu0
  %v1295 = vadd.f32 %v1196, %v1294
  %v1296 = vpop.f32.mrf.mxu0
  %v1297 = vadd.f32 %v1198, %v1296
  %1298 = vmatmul.bf16.gmra.mxu0 %v563
  %v1299 = vpop.f32.mrf.mxu0
  %v1300 = vadd.f32 %v1201, %v1299
  %v1301 = vpop.f32.mrf.mxu0
  %v1302 = vadd.f32 %v1203, %v1301
  %1303 = vmatmul.bf16.gmra.mxu0 %v568
  %v1304 = vpop.f32.mrf.mxu0
  %v1305 = vadd.f32 %v1206, %v1304
  %v1306 = vpop.f32.mrf.mxu0
  %v1307 = vadd.f32 %v1208, %v1306
  %1308 = vmatmul.bf16.gmra.mxu0 %v573
  %v1309 = vpop.f32.mrf.mxu0
  %v1310 = vadd.f32 %v1211, %v1309
  %v1311 = vpop.f32.mrf.mxu0
  %v1312 = vadd.f32 %v1213, %v1311
  %1313 = vmatmul.bf16.gmra.mxu0 %v578
  %v1314 = vpop.f32.mrf.mxu0
  %v1315 = vadd.f32 %v1216, %v1314
  %v1316 = vpop.f32.mrf.mxu0
  %v1317 = vadd.f32 %v1218, %v1316
  %1318 = vmatmul.bf16.gmra.mxu0 %v583
  %v1319 = vpop.f32.mrf.mxu0
  %v1320 = vadd.f32 %v1221, %v1319
  %v1321 = vpop.f32.mrf.mxu0
  %v1322 = vadd.f32 %v1223, %v1321
  %1323 = vdwg.mxu0
  %1324 = vmatpush.bf16.msra.mxu0 0
  %1325 = vmatpush.bf16.msra.mxu0 0
  %1326 = vmatpush.bf16.msra.mxu0 0
  %1327 = vmatpush.bf16.msra.mxu0 0
  %1328 = vmatpush.bf16.msra.mxu0 %v836
  %1329 = vmatpush.bf16.msra.mxu0 %v835
  %1330 = vmatpush.bf16.msra.mxu0 %v834
  %1331 = vmatpush.bf16.msra.mxu0 %v833
  %1332 = vmatmul.bf16.gmra.mxu0 %v875
  %v1333 = vpop.f32.mrf.mxu0
  %v1334 = vadd.f32 %v1235, %v1333
  %v1335 = vpop.f32.mrf.mxu0
  %v1336 = vadd.f32 %v1237, %v1335
  %1337 = vmatmul.bf16.gmra.mxu0 %v878
  %v1338 = vpop.f32.mrf.mxu0
  %v1339 = vadd.f32 %v1240, %v1338
  %v1340 = vpop.f32.mrf.mxu0
  %v1341 = vadd.f32 %v1242, %v1340
  %1342 = vmatmul.bf16.gmra.mxu0 %v881
  %v1343 = vpop.f32.mrf.mxu0
  %v1344 = vadd.f32 %v1245, %v1343
  %v1345 = vpop.f32.mrf.mxu0
  %v1346 = vadd.f32 %v1247, %v1345
  %1347 = vmatmul.bf16.gmra.mxu0 %v884
  %v1348 = vpop.f32.mrf.mxu0
  %v1349 = vadd.f32 %v1250, %v1348
  %v1350 = vpop.f32.mrf.mxu0
  %v1351 = vadd.f32 %v1252, %v1350
  %1352 = vmatmul.bf16.gmra.mxu0 %v887
  %v1353 = vpop.f32.mrf.mxu0
  %v1354 = vadd.f32 %v1255, %v1353
  %v1355 = vpop.f32.mrf.mxu0
  %v1356 = vadd.f32 %v1257, %v1355
  %1357 = vmatmul.bf16.gmra.mxu0 %v890
  %v1358 = vpop.f32.mrf.mxu0
  %v1359 = vadd.f32 %v1260, %v1358
  %v1360 = vpop.f32.mrf.mxu0
  %v1361 = vadd.f32 %v1262, %v1360
  %1362 = vmatmul.bf16.gmra.mxu0 %v893
  %v1363 = vpop.f32.mrf.mxu0
  %v1364 = vadd.f32 %v1265, %v1363
  %v1365 = vpop.f32.mrf.mxu0
  %v1366 = vadd.f32 %v1267, %v1365
  %1367 = vmatmul.bf16.gmra.mxu0 %v896
  %v1368 = vpop.f32.mrf.mxu0
  %v1369 = vadd.f32 %v1270, %v1368
  %v1370 = vpop.f32.mrf.mxu0
  %v1371 = vadd.f32 %v1272, %v1370
  %1372 = vmatmul.bf16.gmra.mxu0 %v899
  %v1373 = vpop.f32.mrf.mxu0
  %v1374 = vadd.f32 %v1275, %v1373
  %v1375 = vpop.f32.mrf.mxu0
  %v1376 = vadd.f32 %v1277, %v1375
  %1377 = vmatmul.bf16.gmra.mxu0 %v902
  %v1378 = vpop.f32.mrf.mxu0
  %v1379 = vadd.f32 %v1280, %v1378
  %v1380 = vpop.f32.mrf.mxu0
  %v1381 = vadd.f32 %v1282, %v1380
  %1382 = vmatmul.bf16.gmra.mxu0 %v905
  %v1383 = vpop.f32.mrf.mxu0
  %v1384 = vadd.f32 %v1285, %v1383
  %v1385 = vpop.f32.mrf.mxu0
  %v1386 = vadd.f32 %v1287, %v1385
  %1387 = vmatmul.bf16.gmra.mxu0 %v908
  %v1388 = vpop.f32.mrf.mxu0
  %v1389 = vadd.f32 %v1290, %v1388
  %v1390 = vpop.f32.mrf.mxu0
  %v1391 = vadd.f32 %v1292, %v1390
  %1392 = vmatmul.bf16.gmra.mxu0 %v911
  %v1393 = vpop.f32.mrf.mxu0
  %v1394 = vadd.f32 %v1295, %v1393
  %v1395 = vpop.f32.mrf.mxu0
  %v1396 = vadd.f32 %v1297, %v1395
  %1397 = vmatmul.bf16.gmra.mxu0 %v914
  %v1398 = vpop.f32.mrf.mxu0
  %v1399 = vadd.f32 %v1300, %v1398
  %v1400 = vpop.f32.mrf.mxu0
  %v1401 = vadd.f32 %v1302, %v1400
  %1402 = vmatmul.bf16.gmra.mxu0 %v917
  %v1403 = vpop.f32.mrf.mxu0
  %v1404 = vadd.f32 %v1305, %v1403
  %v1405 = vpop.f32.mrf.mxu0
  %v1406 = vadd.f32 %v1307, %v1405
  %1407 = vmatmul.bf16.gmra.mxu0 %v920
  %v1408 = vpop.f32.mrf.mxu0
  %v1409 = vadd.f32 %v1310, %v1408
  %v1410 = vpop.f32.mrf.mxu0
  %v1411 = vadd.f32 %v1312, %v1410
  %1412 = vmatmul.bf16.gmra.mxu0 %v923
  %v1413 = vpop.f32.mrf.mxu0
  %v1414 = vadd.f32 %v1315, %v1413
  %v1415 = vpop.f32.mrf.mxu0
  %v1416 = vadd.f32 %v1317, %v1415
  %1417 = vmatmul.bf16.gmra.mxu0 %v926
  %v1418 = vpop.f32.mrf.mxu0
  %v1419 = vadd.f32 %v1320, %v1418
  %v1420 = vpop.f32.mrf.mxu0
  %v1421 = vadd.f32 %v1322, %v1420
  %1422 = vdwg.mxu0
  %v1423 = vmax.f32 %v1334, %v1356
  %v1424 = vmax.f32 %v1336, %v1359
  %v1425 = vmax.f32 %v1339, %v1361
  %v1426 = vmax.f32 %v1341, %v1364
  %v1427 = vmax.f32 %v1344, %v1366
  %v1428 = vmax.f32 %v1346, %v1369
  %v1429 = vmax.f32 %v1349, %v1371
  %v1430 = vmax.f32 %v1351, %v1374
  %v1431 = vmax.f32 %v1354, %v1376
  %v1432 = vmax.f32 %v1379, %v1401
  %v1433 = vmax.f32 %v1381, %v1404
  %v1434 = vmax.f32 %v1384, %v1406
  %v1435 = vmax.f32 %v1386, %v1409
  %v1436 = vmax.f32 %v1389, %v1411
  %v1437 = vmax.f32 %v1391, %v1414
  %v1438 = vmax.f32 %v1394, %v1416
  %v1439 = vmax.f32 %v1396, %v1419
  %v1440 = vmax.f32 %v1399, %v1421
  %v1441 = vmax.f32 %v1423, %v1432
  %v1442 = vmax.f32 %v1424, %v1433
  %v1443 = vmax.f32 %v1425, %v1434
  %v1444 = vmax.f32 %v1426, %v1435
  %v1445 = vmax.f32 %v1427, %v1436
  %v1446 = vmax.f32 %v1428, %v1437
  %v1447 = vmax.f32 %v1429, %v1438
  %v1448 = vmax.f32 %v1430, %v1439
  %v1449 = vmax.f32 %v1431, %v1440
  %v1450 = vld [vmem:[%s2] sm:$0x1]
  %v1452 = vperm.slane %v1450, 0
  %v1454 = vadd.f32 %v1441, %v1452
  %v1455 = vadd.f32 %v1442, %v1452
  %v1456 = vadd.f32 %v1443, %v1452
  %v1457 = vadd.f32 %v1444, %v1452
  %v1458 = vadd.f32 %v1445, %v1452
  %v1459 = vadd.f32 %v1446, %v1452
  %v1460 = vadd.f32 %v1447, %v1452
  %v1461 = vadd.f32 %v1448, %v1452
  %v1462 = vadd.f32 %v1449, %v1452
  %v1463 = vmax.f32 %v1454, 0.0
  %v1464 = vmax.f32 %v1455, 0.0
  %v1465 = vmax.f32 %v1456, 0.0
  %v1466 = vmax.f32 %v1457, 0.0
  %v1467 = vmax.f32 %v1458, 0.0
  %v1468 = vmax.f32 %v1459, 0.0
  %v1469 = vmax.f32 %v1460, 0.0
  %v1470 = vmax.f32 %v1461, 0.0
  %v1471 = vmax.f32 %v1462, 0.0
  %v1472 = vld [vmem:[%s3] sm:$0xf]
  %v1473 = vld [vmem:[%s3 + $0x4] sm:$0xf]
  %v1474 = vld [vmem:[%s3 + $0x8] sm:$0xf]
  %v1475 = vld [vmem:[%s3 + $0xc] sm:$0xf]
  %v1476 = vld [vmem:[%s3 + $0x10] sm:$0xf]
  %v1477 = vld [vmem:[%s3 + $0x14] sm:$0xf]
  %v1478 = vld [vmem:[%s3 + $0x18] sm:$0xf]
  %v1479 = vld [vmem:[%s3 + $0x1c] sm:$0xf]
  %v1480 = vld [vmem:[%s3 + $0x20] sm:$0xf]
  %v1481 = vld [vmem:[%s3 + $0x24] sm:$0xf]
  %v1482 = vld [vmem:[%s3 + $0x28] sm:$0xf]
  %v1483 = vld [vmem:[%s3 + $0x2c] sm:$0xf]
  %v1484 = vld [vmem:[%s3 + $0x30] sm:$0xf]
  %v1485 = vld [vmem:[%s3 + $0x34] sm:$0xf]
  %v1486 = vld [vmem:[%s3 + $0x38] sm:$0xf]
  %v1487 = vld [vmem:[%s3 + $0x3c] sm:$0xf]
  %v1488 = vld [vmem:[%s3 + $0x40] sm:$0xf]
  %v1489 = vld [vmem:[%s3 + $0x44] sm:$0xf]
  %v1490 = vld [vmem:[%s3 + $0x48] sm:$0xf]
  %v1491 = vld [vmem:[%s3 + $0x4c] sm:$0xf]
  %v1492 = vld [vmem:[%s3 + $0x50] sm:$0xf]
  %v1493 = vld [vmem:[%s3 + $0x54] sm:$0xf]
  %v1494 = vld [vmem:[%s3 + $0x58] sm:$0xf]
  %v1495 = vld [vmem:[%s3 + $0x5c] sm:$0xf]
  %v1496 = vld [vmem:[%s3 + $0x60] sm:$0xf]
  %v1497 = vld [vmem:[%s3 + $0x64] sm:$0xf]
  %v1498 = vld [vmem:[%s3 + $0x68] sm:$0xf]
  %v1499 = vld [vmem:[%s3 + $0x6c] sm:$0xf]
  %v1500 = vld [vmem:[%s3 + $0x70] sm:$0xf]
  %v1501 = vld [vmem:[%s3 + $0x74] sm:$0xf]
  %v1502 = vld [vmem:[%s3 + $0x78] sm:$0xf]
  %v1503 = vld [vmem:[%s3 + $0x7c] sm:$0xf]
  %v1504 = vld [vmem:[%s3 + $0x80] sm:$0xf]
  %v1505 = vld [vmem:[%s3 + $0x84] sm:$0xf]
  %v1506 = vld [vmem:[%s3 + $0x88] sm:$0xf]
  %v1507 = vld [vmem:[%s3 + $0x8c] sm:$0xf]
  %v1508 = vld [vmem:[%s3 + $0x90] sm:$0xf]
  %v1509 = vld [vmem:[%s3 + $0x94] sm:$0xf]
  %v1510 = vld [vmem:[%s3 + $0x98] sm:$0xf]
  %v1511 = vld [vmem:[%s3 + $0x9c] sm:$0xf]
  %v1512 = vld [vmem:[%s3 + $0xa0] sm:$0xf]
  %v1513 = vld [vmem:[%s3 + $0xa4] sm:$0xf]
  %v1514 = vld [vmem:[%s3 + $0xa8] sm:$0xf]
  %v1515 = vld [vmem:[%s3 + $0xac] sm:$0xf]
  %v1516 = vld [vmem:[%s3 + $0xb0] sm:$0xf]
  %v1517 = vld [vmem:[%s3 + $0xb4] sm:$0xf]
  %v1518 = vld [vmem:[%s3 + $0xb8] sm:$0xf]
  %v1519 = vld [vmem:[%s3 + $0xbc] sm:$0xf]
  %v1520 = vld [vmem:[%s3 + $0xc0] sm:$0xf]
  %v1521 = vld [vmem:[%s3 + $0xc4] sm:$0xf]
  %v1522 = vld [vmem:[%s3 + $0xc8] sm:$0xf]
  %v1523 = vld [vmem:[%s3 + $0xcc] sm:$0xf]
  %v1524 = vld [vmem:[%s3 + $0xd0] sm:$0xf]
  %v1525 = vld [vmem:[%s3 + $0xd4] sm:$0xf]
  %v1526 = vld [vmem:[%s3 + $0xd8] sm:$0xf]
  %v1527 = vld [vmem:[%s3 + $0xdc] sm:$0xf]
  %v1528 = vld [vmem:[%s3 + $0xe0] sm:$0xf]
  %v1529 = vld [vmem:[%s3 + $0xe4] sm:$0xf]
  %v1530 = vld [vmem:[%s3 + $0xe8] sm:$0xf]
  %v1531 = vld [vmem:[%s3 + $0xec] sm:$0xf]
  %v1532 = vld [vmem:[%s3 + $0xf0] sm:$0xf]
  %v1533 = vld [vmem:[%s3 + $0xf4] sm:$0xf]
  %v1534 = vld [vmem:[%s3 + $0xf8] sm:$0xf]
  %v1535 = vld [vmem:[%s3 + $0xfc] sm:$0xf]
  %v1536 = vld [vmem:[%s3 + $0x100] sm:$0xf]
  %v1537 = vld [vmem:[%s3 + $0x104] sm:$0xf]
  %v1538 = vld [vmem:[%s3 + $0x108] sm:$0xf]
  %v1539 = vld [vmem:[%s3 + $0x10c] sm:$0xf]
  %v1540 = vld [vmem:[%s3 + $0x110] sm:$0xf]
  %v1541 = vld [vmem:[%s3 + $0x114] sm:$0xf]
  %v1542 = vld [vmem:[%s3 + $0x118] sm:$0xf]
  %v1543 = vld [vmem:[%s3 + $0x11c] sm:$0xf]
  %v1544 = vld [vmem:[%s3 + $0x120] sm:$0xf]
  %v1545 = vld [vmem:[%s3 + $0x124] sm:$0xf]
  %v1546 = vld [vmem:[%s3 + $0x128] sm:$0xf]
  %v1547 = vld [vmem:[%s3 + $0x12c] sm:$0xf]
  %v1548 = vld [vmem:[%s3 + $0x130] sm:$0xf]
  %v1549 = vld [vmem:[%s3 + $0x134] sm:$0xf]
  %v1550 = vld [vmem:[%s3 + $0x138] sm:$0xf]
  %v1551 = vld [vmem:[%s3 + $0x13c] sm:$0xf]
  %v1552 = vld [vmem:[%s3 + $0x140] sm:$0xf]
  %v1553 = vld [vmem:[%s3 + $0x144] sm:$0xf]
  %v1554 = vld [vmem:[%s3 + $0x148] sm:$0xf]
  %v1555 = vld [vmem:[%s3 + $0x14c] sm:$0xf]
  %v1556 = vld [vmem:[%s3 + $0x150] sm:$0xf]
  %v1557 = vld [vmem:[%s3 + $0x154] sm:$0xf]
  %v1558 = vld [vmem:[%s3 + $0x158] sm:$0xf]
  %v1559 = vld [vmem:[%s3 + $0x15c] sm:$0xf]
  %v1560 = vld [vmem:[%s3 + $0x160] sm:$0xf]
  %v1561 = vld [vmem:[%s3 + $0x164] sm:$0xf]
  %v1562 = vld [vmem:[%s3 + $0x168] sm:$0xf]
  %v1563 = vld [vmem:[%s3 + $0x16c] sm:$0xf]
  %v1564 = vld [vmem:[%s3 + $0x170] sm:$0xf]
  %v1565 = vld [vmem:[%s3 + $0x174] sm:$0xf]
  %v1566 = vld [vmem:[%s3 + $0x178] sm:$0xf]
  %v1567 = vld [vmem:[%s3 + $0x17c] sm:$0xf]
  %v1568 = vld [vmem:[%s3 + $0x180] sm:$0xf]
  %v1569 = vld [vmem:[%s3 + $0x184] sm:$0xf]
  %v1570 = vld [vmem:[%s3 + $0x188] sm:$0xf]
  %v1571 = vld [vmem:[%s3 + $0x18c] sm:$0xf]
  %v1572 = vld [vmem:[%s3 + $0x190] sm:$0xf]
  %v1573 = vld [vmem:[%s3 + $0x194] sm:$0xf]
  %v1574 = vld [vmem:[%s3 + $0x198] sm:$0xf]
  %v1575 = vld [vmem:[%s3 + $0x19c] sm:$0xf]
  %v1576 = vld [vmem:[%s3 + $0x1a0] sm:$0xf]
  %v1577 = vld [vmem:[%s3 + $0x1a4] sm:$0xf]
  %v1578 = vld [vmem:[%s3 + $0x1a8] sm:$0xf]
  %v1579 = vld [vmem:[%s3 + $0x1ac] sm:$0xf]
  %v1580 = vld [vmem:[%s3 + $0x1b0] sm:$0xf]
  %v1581 = vld [vmem:[%s3 + $0x1b4] sm:$0xf]
  %v1582 = vld [vmem:[%s3 + $0x1b8] sm:$0xf]
  %v1583 = vld [vmem:[%s3 + $0x1bc] sm:$0xf]
  %v1584 = vld [vmem:[%s3 + $0x1c0] sm:$0xf]
  %v1585 = vld [vmem:[%s3 + $0x1c4] sm:$0xf]
  %v1586 = vld [vmem:[%s3 + $0x1c8] sm:$0xf]
  %v1587 = vld [vmem:[%s3 + $0x1cc] sm:$0xf]
  %v1588 = vld [vmem:[%s3 + $0x1d0] sm:$0xf]
  %v1589 = vld [vmem:[%s3 + $0x1d4] sm:$0xf]
  %v1590 = vld [vmem:[%s3 + $0x1d8] sm:$0xf]
  %v1591 = vld [vmem:[%s3 + $0x1dc] sm:$0xf]
  %v1592 = vld [vmem:[%s3 + $0x1e0] sm:$0xf]
  %v1593 = vld [vmem:[%s3 + $0x1e4] sm:$0xf]
  %v1594 = vld [vmem:[%s3 + $0x1e8] sm:$0xf]
  %v1595 = vld [vmem:[%s3 + $0x1ec] sm:$0xf]
  %v1596 = vld [vmem:[%s3 + $0x1f0] sm:$0xf]
  %v1597 = vld [vmem:[%s3 + $0x1f4] sm:$0xf]
  %v1598 = vld [vmem:[%s3 + $0x1f8] sm:$0xf]
  %v1599 = vld [vmem:[%s3 + $0x1fc] sm:$0xf]
  %v1600 = vld [vmem:[%s3 + $0x200] sm:$0xf]
  %v1601 = vld [vmem:[%s3 + $0x204] sm:$0xf]
  %v1602 = vld [vmem:[%s3 + $0x208] sm:$0xf]
  %v1603 = vld [vmem:[%s3 + $0x20c] sm:$0xf]
  %v1604 = vld [vmem:[%s3 + $0x210] sm:$0xf]
  %v1605 = vld [vmem:[%s3 + $0x214] sm:$0xf]
  %v1606 = vld [vmem:[%s3 + $0x218] sm:$0xf]
  %v1607 = vld [vmem:[%s3 + $0x21c] sm:$0xf]
  %v1608 = vld [vmem:[%s3 + $0x220] sm:$0xf]
  %v1609 = vld [vmem:[%s3 + $0x224] sm:$0xf]
  %v1610 = vld [vmem:[%s3 + $0x228] sm:$0xf]
  %v1611 = vld [vmem:[%s3 + $0x22c] sm:$0xf]
  %v1612 = vld [vmem:[%s3 + $0x230] sm:$0xf]
  %v1613 = vld [vmem:[%s3 + $0x234] sm:$0xf]
  %v1614 = vld [vmem:[%s3 + $0x238] sm:$0xf]
  %v1615 = vld [vmem:[%s3 + $0x23c] sm:$0xf]
  %v1616 = vpack.c.bf16 %v1463, %v1463
  %v1617 = vpack.c.bf16 %v1464, %v1464
  %v1634 = vunpack.c.l.b16 %v1488
  %v1635 = vunpack.c.l.b16 %v1489
  %v1636 = vunpack.c.l.b16 %v1490
  %v1637 = vunpack.c.l.b16 %v1491
  %v1638 = vunpack.c.l.b16 %v1492
  %v1639 = vunpack.c.l.b16 %v1493
  %v1640 = vunpack.c.l.b16 %v1494
  %v1641 = vunpack.c.l.b16 %v1495
  %v1642 = vunpack.c.l.b16 %v1496
  %v1643 = vunpack.c.l.b16 %v1497
  %v1644 = vunpack.c.l.b16 %v1498
  %v1645 = vunpack.c.l.b16 %v1499
  %v1646 = vunpack.c.l.b16 %v1500
  %v1647 = vunpack.c.l.b16 %v1501
  %v1648 = vunpack.c.l.b16 %v1502
  %v1649 = vunpack.c.l.b16 %v1503
  %v1650 = vpack.c.b16 %v1635, %v1634
  %v1651 = vpack.c.b16 %v1637, %v1636
  %v1652 = vpack.c.b16 %v1639, %v1638
  %v1653 = vpack.c.b16 %v1641, %v1640
  %v1654 = vpack.c.b16 %v1643, %v1642
  %v1655 = vpack.c.b16 %v1645, %v1644
  %v1656 = vpack.c.b16 %v1647, %v1646
  %v1657 = vpack.c.b16 %v1649, %v1648
  %1666 = vmatpush.bf16.msra.mxu0 %v1657
  %1667 = vmatpush.bf16.msra.mxu0 %v1656
  %1668 = vmatpush.bf16.msra.mxu0 %v1655
  %1669 = vmatpush.bf16.msra.mxu0 %v1654
  %1670 = vmatpush.bf16.msra.mxu0 %v1653
  %1671 = vmatpush.bf16.msra.mxu0 %v1652
  %1672 = vmatpush.bf16.msra.mxu0 %v1651
  %1673 = vmatpush.bf16.msra.mxu0 %v1650
  %1674 = vmatmul.bf16.gmra.mxu0 %v1617
  %v1675 = vpop.f32.mrf.mxu0
  %v1676 = vadd.f32 0.0, %v1675
  %v1677 = vpop.f32.mrf.mxu0
  %1678 = vdwg.mxu0
  %v1695 = vunpack.c.l.b16 %v1472
  %v1696 = vunpack.c.l.b16 %v1473
  %v1697 = vunpack.c.l.b16 %v1474
  %v1698 = vunpack.c.l.b16 %v1475
  %v1699 = vunpack.c.l.b16 %v1476
  %v1700 = vunpack.c.l.b16 %v1477
  %v1701 = vunpack.c.l.b16 %v1478
  %v1702 = vunpack.c.l.b16 %v1479
  %v1703 = vunpack.c.l.b16 %v1480
  %v1704 = vunpack.c.l.b16 %v1481
  %v1705 = vunpack.c.l.b16 %v1482
  %v1706 = vunpack.c.l.b16 %v1483
  %v1707 = vunpack.c.l.b16 %v1484
  %v1708 = vunpack.c.l.b16 %v1485
  %v1709 = vunpack.c.l.b16 %v1486
  %v1710 = vunpack.c.l.b16 %v1487
  %v1711 = vpack.c.b16 %v1696, %v1695
  %v1712 = vpack.c.b16 %v1698, %v1697
  %v1713 = vpack.c.b16 %v1700, %v1699
  %v1714 = vpack.c.b16 %v1702, %v1701
  %v1715 = vpack.c.b16 %v1704, %v1703
  %v1716 = vpack.c.b16 %v1706, %v1705
  %v1717 = vpack.c.b16 %v1708, %v1707
  %v1718 = vpack.c.b16 %v1710, %v1709
  %1727 = vmatpush.bf16.msra.mxu0 %v1718
  %1728 = vmatpush.bf16.msra.mxu0 %v1717
  %1729 = vmatpush.bf16.msra.mxu0 %v1716
  %1730 = vmatpush.bf16.msra.mxu0 %v1715
  %1731 = vmatpush.bf16.msra.mxu0 %v1714
  %1732 = vmatpush.bf16.msra.mxu0 %v1713
  %1733 = vmatpush.bf16.msra.mxu0 %v1712
  %1734 = vmatpush.bf16.msra.mxu0 %v1711
  %1735 = vmatmul.bf16.gmra.mxu0 %v1616
  %v1736 = vpop.f32.mrf.mxu0
  %v1737 = vadd.f32 %v1676, %v1736
  %v1738 = vpop.f32.mrf.mxu0
  %1739 = vdwg.mxu0
  %v1740 = vpack.c.bf16 %v1465, %v1465
  %v1757 = vunpack.c.l.b16 %v1504
  %v1758 = vunpack.c.l.b16 %v1505
  %v1759 = vunpack.c.l.b16 %v1506
  %v1760 = vunpack.c.l.b16 %v1507
  %v1761 = vunpack.c.l.b16 %v1508
  %v1762 = vunpack.c.l.b16 %v1509
  %v1763 = vunpack.c.l.b16 %v1510
  %v1764 = vunpack.c.l.b16 %v1511
  %v1765 = vunpack.c.l.b16 %v1512
  %v1766 = vunpack.c.l.b16 %v1513
  %v1767 = vunpack.c.l.b16 %v1514
  %v1768 = vunpack.c.l.b16 %v1515
  %v1769 = vunpack.c.l.b16 %v1516
  %v1770 = vunpack.c.l.b16 %v1517
  %v1771 = vunpack.c.l.b16 %v1518
  %v1772 = vunpack.c.l.b16 %v1519
  %v1773 = vpack.c.b16 %v1758, %v1757
  %v1774 = vpack.c.b16 %v1760, %v1759
  %v1775 = vpack.c.b16 %v1762, %v1761
  %v1776 = vpack.c.b16 %v1764, %v1763
  %v1777 = vpack.c.b16 %v1766, %v1765
  %v1778 = vpack.c.b16 %v1768, %v1767
  %v1779 = vpack.c.b16 %v1770, %v1769
  %v1780 = vpack.c.b16 %v1772, %v1771
  %1789 = vmatpush.bf16.msra.mxu0 %v1780
  %1790 = vmatpush.bf16.msra.mxu0 %v1779
  %1791 = vmatpush.bf16.msra.mxu0 %v1778
  %1792 = vmatpush.bf16.msra.mxu0 %v1777
  %1793 = vmatpush.bf16.msra.mxu0 %v1776
  %1794 = vmatpush.bf16.msra.mxu0 %v1775
  %1795 = vmatpush.bf16.msra.mxu0 %v1774
  %1796 = vmatpush.bf16.msra.mxu0 %v1773
  %1797 = vmatmul.bf16.gmra.mxu0 %v1740
  %v1798 = vpop.f32.mrf.mxu0
  %v1799 = vadd.f32 0.0, %v1798
  %v1800 = vpop.f32.mrf.mxu0
  %1801 = vdwg.mxu0
  %v1802 = vadd.f32 %v1737, %v1799
  %v1803 = vpack.c.bf16 %v1466, %v1466
  %v1820 = vunpack.c.l.b16 %v1520
  %v1821 = vunpack.c.l.b16 %v1521
  %v1822 = vunpack.c.l.b16 %v1522
  %v1823 = vunpack.c.l.b16 %v1523
  %v1824 = vunpack.c.l.b16 %v1524
  %v1825 = vunpack.c.l.b16 %v1525
  %v1826 = vunpack.c.l.b16 %v1526
  %v1827 = vunpack.c.l.b16 %v1527
  %v1828 = vunpack.c.l.b16 %v1528
  %v1829 = vunpack.c.l.b16 %v1529
  %v1830 = vunpack.c.l.b16 %v1530
  %v1831 = vunpack.c.l.b16 %v1531
  %v1832 = vunpack.c.l.b16 %v1532
  %v1833 = vunpack.c.l.b16 %v1533
  %v1834 = vunpack.c.l.b16 %v1534
  %v1835 = vunpack.c.l.b16 %v1535
  %v1836 = vpack.c.b16 %v1821, %v1820
  %v1837 = vpack.c.b16 %v1823, %v1822
  %v1838 = vpack.c.b16 %v1825, %v1824
  %v1839 = vpack.c.b16 %v1827, %v1826
  %v1840 = vpack.c.b16 %v1829, %v1828
  %v1841 = vpack.c.b16 %v1831, %v1830
  %v1842 = vpack.c.b16 %v1833, %v1832
  %v1843 = vpack.c.b16 %v1835, %v1834
  %1852 = vmatpush.bf16.msra.mxu0 %v1843
  %1853 = vmatpush.bf16.msra.mxu0 %v1842
  %1854 = vmatpush.bf16.msra.mxu0 %v1841
  %1855 = vmatpush.bf16.msra.mxu0 %v1840
  %1856 = vmatpush.bf16.msra.mxu0 %v1839
  %1857 = vmatpush.bf16.msra.mxu0 %v1838
  %1858 = vmatpush.bf16.msra.mxu0 %v1837
  %1859 = vmatpush.bf16.msra.mxu0 %v1836
  %1860 = vmatmul.bf16.gmra.mxu0 %v1803
  %v1861 = vpop.f32.mrf.mxu0
  %v1862 = vadd.f32 0.0, %v1861
  %v1863 = vpop.f32.mrf.mxu0
  %1864 = vdwg.mxu0
  %v1865 = vadd.f32 %v1802, %v1862
  %v1866 = vpack.c.bf16 %v1467, %v1467
  %v1883 = vunpack.c.l.b16 %v1536
  %v1884 = vunpack.c.l.b16 %v1537
  %v1885 = vunpack.c.l.b16 %v1538
  %v1886 = vunpack.c.l.b16 %v1539
  %v1887 = vunpack.c.l.b16 %v1540
  %v1888 = vunpack.c.l.b16 %v1541
  %v1889 = vunpack.c.l.b16 %v1542
  %v1890 = vunpack.c.l.b16 %v1543
  %v1891 = vunpack.c.l.b16 %v1544
  %v1892 = vunpack.c.l.b16 %v1545
  %v1893 = vunpack.c.l.b16 %v1546
  %v1894 = vunpack.c.l.b16 %v1547
  %v1895 = vunpack.c.l.b16 %v1548
  %v1896 = vunpack.c.l.b16 %v1549
  %v1897 = vunpack.c.l.b16 %v1550
  %v1898 = vunpack.c.l.b16 %v1551
  %v1899 = vpack.c.b16 %v1884, %v1883
  %v1900 = vpack.c.b16 %v1886, %v1885
  %v1901 = vpack.c.b16 %v1888, %v1887
  %v1902 = vpack.c.b16 %v1890, %v1889
  %v1903 = vpack.c.b16 %v1892, %v1891
  %v1904 = vpack.c.b16 %v1894, %v1893
  %v1905 = vpack.c.b16 %v1896, %v1895
  %v1906 = vpack.c.b16 %v1898, %v1897
  %1915 = vmatpush.bf16.msra.mxu0 %v1906
  %1916 = vmatpush.bf16.msra.mxu0 %v1905
  %1917 = vmatpush.bf16.msra.mxu0 %v1904
  %1918 = vmatpush.bf16.msra.mxu0 %v1903
  %1919 = vmatpush.bf16.msra.mxu0 %v1902
  %1920 = vmatpush.bf16.msra.mxu0 %v1901
  %1921 = vmatpush.bf16.msra.mxu0 %v1900
  %1922 = vmatpush.bf16.msra.mxu0 %v1899
  %1923 = vmatmul.bf16.gmra.mxu0 %v1866
  %v1924 = vpop.f32.mrf.mxu0
  %v1925 = vadd.f32 0.0, %v1924
  %v1926 = vpop.f32.mrf.mxu0
  %1927 = vdwg.mxu0
  %v1928 = vadd.f32 %v1865, %v1925
  %v1929 = vpack.c.bf16 %v1468, %v1468
  %v1946 = vunpack.c.l.b16 %v1552
  %v1947 = vunpack.c.l.b16 %v1553
  %v1948 = vunpack.c.l.b16 %v1554
  %v1949 = vunpack.c.l.b16 %v1555
  %v1950 = vunpack.c.l.b16 %v1556
  %v1951 = vunpack.c.l.b16 %v1557
  %v1952 = vunpack.c.l.b16 %v1558
  %v1953 = vunpack.c.l.b16 %v1559
  %v1954 = vunpack.c.l.b16 %v1560
  %v1955 = vunpack.c.l.b16 %v1561
  %v1956 = vunpack.c.l.b16 %v1562
  %v1957 = vunpack.c.l.b16 %v1563
  %v1958 = vunpack.c.l.b16 %v1564
  %v1959 = vunpack.c.l.b16 %v1565
  %v1960 = vunpack.c.l.b16 %v1566
  %v1961 = vunpack.c.l.b16 %v1567
  %v1962 = vpack.c.b16 %v1947, %v1946
  %v1963 = vpack.c.b16 %v1949, %v1948
  %v1964 = vpack.c.b16 %v1951, %v1950
  %v1965 = vpack.c.b16 %v1953, %v1952
  %v1966 = vpack.c.b16 %v1955, %v1954
  %v1967 = vpack.c.b16 %v1957, %v1956
  %v1968 = vpack.c.b16 %v1959, %v1958
  %v1969 = vpack.c.b16 %v1961, %v1960
  %1978 = vmatpush.bf16.msra.mxu0 %v1969
  %1979 = vmatpush.bf16.msra.mxu0 %v1968
  %1980 = vmatpush.bf16.msra.mxu0 %v1967
  %1981 = vmatpush.bf16.msra.mxu0 %v1966
  %1982 = vmatpush.bf16.msra.mxu0 %v1965
  %1983 = vmatpush.bf16.msra.mxu0 %v1964
  %1984 = vmatpush.bf16.msra.mxu0 %v1963
  %1985 = vmatpush.bf16.msra.mxu0 %v1962
  %1986 = vmatmul.bf16.gmra.mxu0 %v1929
  %v1987 = vpop.f32.mrf.mxu0
  %v1988 = vadd.f32 0.0, %v1987
  %v1989 = vpop.f32.mrf.mxu0
  %1990 = vdwg.mxu0
  %v1991 = vadd.f32 %v1928, %v1988
  %v1992 = vpack.c.bf16 %v1469, %v1469
  %v2009 = vunpack.c.l.b16 %v1568
  %v2010 = vunpack.c.l.b16 %v1569
  %v2011 = vunpack.c.l.b16 %v1570
  %v2012 = vunpack.c.l.b16 %v1571
  %v2013 = vunpack.c.l.b16 %v1572
  %v2014 = vunpack.c.l.b16 %v1573
  %v2015 = vunpack.c.l.b16 %v1574
  %v2016 = vunpack.c.l.b16 %v1575
  %v2017 = vunpack.c.l.b16 %v1576
  %v2018 = vunpack.c.l.b16 %v1577
  %v2019 = vunpack.c.l.b16 %v1578
  %v2020 = vunpack.c.l.b16 %v1579
  %v2021 = vunpack.c.l.b16 %v1580
  %v2022 = vunpack.c.l.b16 %v1581
  %v2023 = vunpack.c.l.b16 %v1582
  %v2024 = vunpack.c.l.b16 %v1583
  %v2025 = vpack.c.b16 %v2010, %v2009
  %v2026 = vpack.c.b16 %v2012, %v2011
  %v2027 = vpack.c.b16 %v2014, %v2013
  %v2028 = vpack.c.b16 %v2016, %v2015
  %v2029 = vpack.c.b16 %v2018, %v2017
  %v2030 = vpack.c.b16 %v2020, %v2019
  %v2031 = vpack.c.b16 %v2022, %v2021
  %v2032 = vpack.c.b16 %v2024, %v2023
  %2041 = vmatpush.bf16.msra.mxu0 %v2032
  %2042 = vmatpush.bf16.msra.mxu0 %v2031
  %2043 = vmatpush.bf16.msra.mxu0 %v2030
  %2044 = vmatpush.bf16.msra.mxu0 %v2029
  %2045 = vmatpush.bf16.msra.mxu0 %v2028
  %2046 = vmatpush.bf16.msra.mxu0 %v2027
  %2047 = vmatpush.bf16.msra.mxu0 %v2026
  %2048 = vmatpush.bf16.msra.mxu0 %v2025
  %2049 = vmatmul.bf16.gmra.mxu0 %v1992
  %v2050 = vpop.f32.mrf.mxu0
  %v2051 = vadd.f32 0.0, %v2050
  %v2052 = vpop.f32.mrf.mxu0
  %2053 = vdwg.mxu0
  %v2054 = vadd.f32 %v1991, %v2051
  %v2055 = vpack.c.bf16 %v1470, %v1470
  %v2072 = vunpack.c.l.b16 %v1584
  %v2073 = vunpack.c.l.b16 %v1585
  %v2074 = vunpack.c.l.b16 %v1586
  %v2075 = vunpack.c.l.b16 %v1587
  %v2076 = vunpack.c.l.b16 %v1588
  %v2077 = vunpack.c.l.b16 %v1589
  %v2078 = vunpack.c.l.b16 %v1590
  %v2079 = vunpack.c.l.b16 %v1591
  %v2080 = vunpack.c.l.b16 %v1592
  %v2081 = vunpack.c.l.b16 %v1593
  %v2082 = vunpack.c.l.b16 %v1594
  %v2083 = vunpack.c.l.b16 %v1595
  %v2084 = vunpack.c.l.b16 %v1596
  %v2085 = vunpack.c.l.b16 %v1597
  %v2086 = vunpack.c.l.b16 %v1598
  %v2087 = vunpack.c.l.b16 %v1599
  %v2088 = vpack.c.b16 %v2073, %v2072
  %v2089 = vpack.c.b16 %v2075, %v2074
  %v2090 = vpack.c.b16 %v2077, %v2076
  %v2091 = vpack.c.b16 %v2079, %v2078
  %v2092 = vpack.c.b16 %v2081, %v2080
  %v2093 = vpack.c.b16 %v2083, %v2082
  %v2094 = vpack.c.b16 %v2085, %v2084
  %v2095 = vpack.c.b16 %v2087, %v2086
  %2104 = vmatpush.bf16.msra.mxu0 %v2095
  %2105 = vmatpush.bf16.msra.mxu0 %v2094
  %2106 = vmatpush.bf16.msra.mxu0 %v2093
  %2107 = vmatpush.bf16.msra.mxu0 %v2092
  %2108 = vmatpush.bf16.msra.mxu0 %v2091
  %2109 = vmatpush.bf16.msra.mxu0 %v2090
  %2110 = vmatpush.bf16.msra.mxu0 %v2089
  %2111 = vmatpush.bf16.msra.mxu0 %v2088
  %2112 = vmatmul.bf16.gmra.mxu0 %v2055
  %v2113 = vpop.f32.mrf.mxu0
  %v2114 = vadd.f32 0.0, %v2113
  %v2115 = vpop.f32.mrf.mxu0
  %2116 = vdwg.mxu0
  %v2117 = vadd.f32 %v2054, %v2114
  %v2118 = vpack.c.bf16 %v1471, %v1471
  %v2135 = vunpack.c.l.b16 %v1600
  %v2136 = vunpack.c.l.b16 %v1601
  %v2137 = vunpack.c.l.b16 %v1602
  %v2138 = vunpack.c.l.b16 %v1603
  %v2139 = vunpack.c.l.b16 %v1604
  %v2140 = vunpack.c.l.b16 %v1605
  %v2141 = vunpack.c.l.b16 %v1606
  %v2142 = vunpack.c.l.b16 %v1607
  %v2143 = vunpack.c.l.b16 %v1608
  %v2144 = vunpack.c.l.b16 %v1609
  %v2145 = vunpack.c.l.b16 %v1610
  %v2146 = vunpack.c.l.b16 %v1611
  %v2147 = vunpack.c.l.b16 %v1612
  %v2148 = vunpack.c.l.b16 %v1613
  %v2149 = vunpack.c.l.b16 %v1614
  %v2150 = vunpack.c.l.b16 %v1615
  %v2151 = vpack.c.b16 %v2136, %v2135
  %v2152 = vpack.c.b16 %v2138, %v2137
  %v2153 = vpack.c.b16 %v2140, %v2139
  %v2154 = vpack.c.b16 %v2142, %v2141
  %v2155 = vpack.c.b16 %v2144, %v2143
  %v2156 = vpack.c.b16 %v2146, %v2145
  %v2157 = vpack.c.b16 %v2148, %v2147
  %v2158 = vpack.c.b16 %v2150, %v2149
  %2167 = vmatpush.bf16.msra.mxu0 %v2158
  %2168 = vmatpush.bf16.msra.mxu0 %v2157
  %2169 = vmatpush.bf16.msra.mxu0 %v2156
  %2170 = vmatpush.bf16.msra.mxu0 %v2155
  %2171 = vmatpush.bf16.msra.mxu0 %v2154
  %2172 = vmatpush.bf16.msra.mxu0 %v2153
  %2173 = vmatpush.bf16.msra.mxu0 %v2152
  %2174 = vmatpush.bf16.msra.mxu0 %v2151
  %2175 = vmatmul.bf16.gmra.mxu0 %v2118
  %v2176 = vpop.f32.mrf.mxu0
  %v2177 = vadd.f32 0.0, %v2176
  %v2178 = vpop.f32.mrf.mxu0
  %2179 = vdwg.mxu0
  %v2180 = vadd.f32 %v2117, %v2177
  %v2181 = vld [vmem:[%s4] sm:$0x1]
  %v2183 = vperm.slane %v2181, 0
  %v2185 = vadd.f32 %v2180, %v2183
  %v2186 = vmax.f32 %v2185, 0.0
  %v2187 = vpack.c.bf16 %v2186, %v2186
  %v2188 = vld [vmem:[%s5] sm:$0xf]
  %v2189 = vld [vmem:[%s5 + $0x4] sm:$0xf]
  %v2190 = vld [vmem:[%s5 + $0x8] sm:$0xf]
  %v2191 = vld [vmem:[%s5 + $0xc] sm:$0xf]
  %v2192 = vld [vmem:[%s5 + $0x10] sm:$0xf]
  %v2193 = vld [vmem:[%s5 + $0x14] sm:$0xf]
  %v2194 = vld [vmem:[%s5 + $0x18] sm:$0xf]
  %v2195 = vld [vmem:[%s5 + $0x1c] sm:$0xf]
  %v2196 = vld [vmem:[%s5 + $0x20] sm:$0xf]
  %v2197 = vld [vmem:[%s5 + $0x24] sm:$0xf]
  %v2198 = vld [vmem:[%s5 + $0x28] sm:$0xf]
  %v2199 = vld [vmem:[%s5 + $0x2c] sm:$0xf]
  %v2200 = vld [vmem:[%s5 + $0x30] sm:$0xf]
  %v2201 = vld [vmem:[%s5 + $0x34] sm:$0xf]
  %v2202 = vld [vmem:[%s5 + $0x38] sm:$0xf]
  %v2203 = vld [vmem:[%s5 + $0x3c] sm:$0xf]
  %v2204 = vld [vmem:[%s6] sm:$0x1]
  %v2206 = vperm.slane %v2204, 0
  %v2224 = vunpack.c.l.b16 %v2188
  %v2225 = vunpack.c.l.b16 %v2189
  %v2226 = vunpack.c.l.b16 %v2190
  %v2227 = vunpack.c.l.b16 %v2191
  %v2228 = vunpack.c.l.b16 %v2192
  %v2229 = vunpack.c.l.b16 %v2193
  %v2230 = vunpack.c.l.b16 %v2194
  %v2231 = vunpack.c.l.b16 %v2195
  %v2232 = vunpack.c.l.b16 %v2196
  %v2233 = vunpack.c.l.b16 %v2197
  %v2234 = vunpack.c.l.b16 %v2198
  %v2235 = vunpack.c.l.b16 %v2199
  %v2236 = vunpack.c.l.b16 %v2200
  %v2237 = vunpack.c.l.b16 %v2201
  %v2238 = vunpack.c.l.b16 %v2202
  %v2239 = vunpack.c.l.b16 %v2203
  %v2240 = vpack.c.b16 %v2225, %v2224
  %v2241 = vpack.c.b16 %v2227, %v2226
  %v2242 = vpack.c.b16 %v2229, %v2228
  %v2243 = vpack.c.b16 %v2231, %v2230
  %v2244 = vpack.c.b16 %v2233, %v2232
  %v2245 = vpack.c.b16 %v2235, %v2234
  %v2246 = vpack.c.b16 %v2237, %v2236
  %v2247 = vpack.c.b16 %v2239, %v2238
  %2256 = vmatpush.bf16.msra.mxu0 %v2247
  %2257 = vmatpush.bf16.msra.mxu0 %v2246
  %2258 = vmatpush.bf16.msra.mxu0 %v2245
  %2259 = vmatpush.bf16.msra.mxu0 %v2244
  %2260 = vmatpush.bf16.msra.mxu0 %v2243
  %2261 = vmatpush.bf16.msra.mxu0 %v2242
  %2262 = vmatpush.bf16.msra.mxu0 %v2241
  %2263 = vmatpush.bf16.msra.mxu0 %v2240
  %2264 = vmatmul.bf16.gmra.mxu0 %v2187
  %v2265 = vpop.f32.mrf.mxu0
  %v2266 = vadd.f32 %v2206, %v2265
  %v2267 = vpop.f32.mrf.mxu0
  %2268 = vdwg.mxu0
  %2269 = vst [vmem:[%s7] sm:$0xff] %v2266
  // Predicated region
  $region30: #{net1_forward.5} parent=0 // pred_check
    _
  $region31: #{net1_forward.5} parent=0 // pred_check_branch
    %2271 = sbr.rel (0) target = $region33
  $region32: #{net1_forward.5} parent=0 // pred_region
    _
  $region33: #{net1_forward.5} parent=0 // pred_fallthru
    _
  // Predicated region
  $region34: #{net1_forward.5} parent=0 // pred_check
    _
  $region35: #{net1_forward.5} parent=0 // pred_check_branch
    %2273 = sbr.rel (0) target = $region37
  $region36: #{net1_forward.5} parent=0 // pred_region
    _
  $region37: #{net1_forward.5} parent=0 // pred_fallthru
    _

</llo_original>
